<compile_context>
chip_gen: v7x
topology: tpu7x:2x2x1
jax: 0.10.0
libtpu: 0.0.40
codegen_flags: <defaults>
</compile_context>

<pallas_src>
import functools

import jax
import jax.numpy as jnp
from jax.experimental import pallas as pl
from jax.experimental.pallas import tpu as pltpu

EPS = 1e-5


# ---------------------------------------------------------------------------
# Fused Pallas kernel (one batch element per grid step)
# ---------------------------------------------------------------------------
def _divconv_kernel(*refs, H, W, Cmid, Cout, has_down):
    """Fused: conv1+BN1+ReLU -> conv2+BN2 -> dwconv3 + residual -> BN3.

    refs (has_down=True):
      x_ref   : (1, H, W, Cin)      input tile, f32
      w1_ref  : (9, Cin, Cmid) bf16 block-diag conv1 taps, BN1 scale folded
      b1_ref  : (1, Cmid)      f32  folded BN1 bias (conv bias included)
      w2_ref  : (9, Cmid, Cout) bf16
      b2_ref  : (1, Cout)      f32
      wd_ref  : (9, Cin, Cout) f32  downsample conv taps        (if has_down)
      bd_ref  : (1, Cout)      f32  downsample conv bias        (if has_down)
      w3_ref  : (9, Cout)      f32  depthwise conv3 per-tap weights
      s3_ref  : (1, Cout)      f32  BN3 scale
      b3_ref  : (1, Cout)      f32  BN3 bias (conv3 bias folded in)
      o_ref   : (1, H, W*Cout)      lane-dense output slab
      xpad/h1pad/h2pad : (H+2, Wp, C) f32 VMEM scratch (padded activations)
    """
    if has_down:
        (x_ref, w1_ref, b1_ref, w2_ref, b2_ref, wd_ref, bd_ref,
         w3_ref, s3_ref, b3_ref, o_ref,
         xpad_ref, h1pad_ref, h2pad_ref) = refs
    else:
        (x_ref, w1_ref, b1_ref, w2_ref, b2_ref,
         w3_ref, s3_ref, b3_ref, o_ref,
         xpad_ref, h1pad_ref, h2pad_ref) = refs

    HW = H * W
    Cin = x_ref.shape[-1]
    x_f32 = x_ref[0]                                   # (H, W, Cin) f32

    def fill_pad(pad_ref, interior):
        # Zero the padded scratch, then slice-store the interior once.
        # (Zeroed every grid step so megacore-split grids stay correct.)
        pad_ref[...] = jnp.zeros(pad_ref.shape, pad_ref.dtype)
        pad_ref[pl.ds(1, H), pl.ds(1, W), :] = interior

    def win(pad_ref, dy, dx):
        # (H, W, C) shifted tap window, static slice load from VMEM scratch.
        return pad_ref[pl.ds(dy, H), pl.ds(dx, W), :]

    # --- conv1 (+BN1 folded, ReLU) and downsample conv: 9 per-tap dots ------
    fill_pad(xpad_ref, x_f32)
    w1 = w1_ref[...]                                   # (9, Cin, Cmid) bf16
    acc1 = jnp.zeros((HW, Cmid), jnp.float32)
    if has_down:
        wd = wd_ref[...]                               # (9, Cin, Cout) f32
        accd = jnp.zeros((HW, Cout), jnp.float32)
    for k in range(9):
        dy, dx = k // 3, k % 3
        xw = win(xpad_ref, dy, dx).reshape(HW, Cin)    # f32
        acc1 = acc1 + jnp.dot(xw.astype(jnp.bfloat16), w1[k],
                              preferred_element_type=jnp.float32)
        if has_down:                                   # residual path kept f32
            accd = accd + jnp.dot(xw, wd[k],
                                  preferred_element_type=jnp.float32)
    h1 = jnp.maximum(acc1 + b1_ref[0], 0.0)            # (HW, Cmid)

    # --- conv2 (+BN2 folded): 9 per-tap dots ---------------------------------
    fill_pad(h1pad_ref, h1.reshape(H, W, Cmid))
    w2 = w2_ref[...]                                   # (9, Cmid, Cout) bf16
    acc2 = jnp.zeros((HW, Cout), jnp.float32)
    for k in range(9):
        dy, dx = k // 3, k % 3
        h1w = win(h1pad_ref, dy, dx).reshape(HW, Cmid)
        acc2 = acc2 + jnp.dot(h1w.astype(jnp.bfloat16), w2[k],
                              preferred_element_type=jnp.float32)
    h2 = acc2 + b2_ref[0]                              # (HW, Cout)

    # --- depthwise conv3: 9 shifted VPU multiply-accumulates -----------------
    fill_pad(h2pad_ref, h2.reshape(H, W, Cout))
    w3 = w3_ref[...]                                   # (9, Cout) f32
    dw = jnp.zeros((H, W, Cout), jnp.float32)
    for k in range(9):
        dy, dx = k // 3, k % 3
        dw = dw + win(h2pad_ref, dy, dx) * w3[k]

    # --- residual (f32) + BN3 (conv3 bias folded into b3) --------------------
    if has_down:
        res = (accd + bd_ref[0]).reshape(H, W, Cout)
    else:
        res = x_f32                                    # identity, Cin == Cout

    out = (dw + res) * s3_ref[0] + b3_ref[0]           # (H, W, Cout)
    o_ref[0] = out.reshape(H, W * Cout)                # lane-dense store


def _divconv_call(x_nhwc, w1, b1, w2, b2, wd, bd, w3, s3, b3):
    N, H, W, Cin = x_nhwc.shape
    Cmid = w1.shape[-1]
    Cout = w2.shape[-1]
    has_down = wd is not None
    if not has_down:
        assert Cin == Cout, "identity residual requires in_planes == planes"
    Wp = ((W + 2 + 7) // 8) * 8        # sublane-aligned padded width

    kernel = functools.partial(_divconv_kernel, H=H, W=W, Cmid=Cmid, Cout=Cout,
                               has_down=has_down)

    def full(shape):
        if len(shape) == 2:
            return pl.BlockSpec(shape, lambda n: (0, 0))
        return pl.BlockSpec(shape, lambda n: (0, 0, 0))

    in_specs = [pl.BlockSpec((1, H, W, Cin), lambda n: (n, 0, 0, 0)),
                full((9, Cin, Cmid)), full((1, Cmid)),
                full((9, Cmid, Cout)), full((1, Cout))]
    args = [x_nhwc, w1, b1, w2, b2]
    if has_down:
        in_specs += [full((9, Cin, Cout)), full((1, Cout))]
        args += [wd, bd]
    in_specs += [full((9, Cout)), full((1, Cout)), full((1, Cout))]
    args += [w3, s3, b3]

    flops_per_img = (2 * H * W * 9 * (Cin * Cmid + Cmid * Cout
                                      + (Cin * Cout if has_down else 0))
                     + 2 * H * W * 9 * Cout + 4 * H * W * Cout)
    bytes_accessed = (N * H * W * (Cin + Cout) * 4
                      + 9 * (Cin * Cmid + Cmid * Cout) * 2
                      + (9 * Cin * Cout * 4 if has_down else 0)
                      + 9 * Cout * 4 + (Cmid + 4 * Cout) * 4)
    cost = pl.CostEstimate(flops=int(N * flops_per_img), transcendentals=0,
                           bytes_accessed=int(bytes_accessed))

    return pl.pallas_call(
        kernel,
        out_shape=jax.ShapeDtypeStruct((N, H, W * Cout), jnp.float32),
        grid=(N,),
        in_specs=in_specs,
        out_specs=pl.BlockSpec((1, H, W * Cout), lambda n: (n, 0, 0)),
        scratch_shapes=[pltpu.VMEM((H + 2, Wp, Cin), jnp.float32),
                        pltpu.VMEM((H + 2, Wp, Cmid), jnp.float32),
                        pltpu.VMEM((H + 2, Wp, Cout), jnp.float32)],
        compiler_params=pltpu.CompilerParams(
            dimension_semantics=("parallel",),
            vmem_limit_bytes=64 * 1024 * 1024),
        cost_estimate=cost,
    )(*args)


# ---------------------------------------------------------------------------
# Parameters, weight folding and forward wrapper
# ---------------------------------------------------------------------------
def make_params(key, in_planes, planes, ratio):
    expansion = 2
    sum_r = sum(ratio)
    keys = iter(jax.random.split(key, 64))

    def conv_w(cout, cin):
        return jax.random.normal(next(keys), (cout, cin, 3, 3), jnp.float32) * 0.1

    def vec(c, s=0.1):
        return jax.random.normal(next(keys), (c,), jnp.float32) * s

    def pos(c):
        return jax.random.uniform(next(keys), (c,), jnp.float32, 0.5, 1.5)

    p = {'inplanes_list': [], 'branches': []}
    for r in ratio:
        cin = in_planes * r // sum_r
        cout = planes * r // sum_r
        cmid = cout * expansion
        p['inplanes_list'].append(cin)
        p['branches'].append(dict(
            w1=conv_w(cmid, cin), cb1=vec(cmid),
            g1=pos(cmid), beta1=vec(cmid), m1=vec(cmid), v1=pos(cmid),
            w2=conv_w(cout, cmid), cb2=vec(cout),
            g2=pos(cout), beta2=vec(cout), m2=vec(cout), v2=pos(cout),
        ))
    p['w3'] = conv_w(planes, 1)          # depthwise (groups=planes)
    p['cb3'] = vec(planes)
    p['g3'] = pos(planes); p['beta3'] = vec(planes)
    p['m3'] = vec(planes); p['v3'] = pos(planes)
    if in_planes != planes:
        p['wd'] = conv_w(planes, in_planes)
        p['cbd'] = vec(planes)
    else:
        p['wd'] = None
        p['cbd'] = None
    return p


def _fold_bn(g, beta, m, v, conv_bias):
    s = g / jnp.sqrt(v + EPS)
    return s, (conv_bias - m) * s + beta


def _taps(w_oihw):
    # (O, I, 3, 3) -> (9, I, O), tap index k = dy*3 + dx
    o, i = w_oihw.shape[0], w_oihw.shape[1]
    return jnp.transpose(w_oihw, (2, 3, 1, 0)).reshape(9, i, o)


def divconv_pallas(x_nchw, p):
    x = jnp.transpose(x_nchw, (0, 2, 3, 1)).astype(jnp.float32)   # NHWC
    N, H, W, Cin = x.shape
    branches = p['branches']
    cmids = [br['w1'].shape[0] for br in branches]
    couts = [br['w2'].shape[0] for br in branches]
    Cmid, Cout = sum(cmids), sum(couts)

    # Block-diagonal per-tap conv1 / conv2 weights with BN scales folded in.
    # (Unused input channels — if ratio does not divide evenly — get zero rows.)
    W1 = jnp.zeros((9, Cin, Cmid), jnp.float32)
    W2 = jnp.zeros((9, Cmid, Cout), jnp.float32)
    b1 = jnp.zeros((Cmid,), jnp.float32)
    b2 = jnp.zeros((Cout,), jnp.float32)
    ri = mo = oo = 0
    for br, cin, cm, co in zip(branches, p['inplanes_list'], cmids, couts):
        s1, bb1 = _fold_bn(br['g1'], br['beta1'], br['m1'], br['v1'], br['cb1'])
        s2, bb2 = _fold_bn(br['g2'], br['beta2'], br['m2'], br['v2'], br['cb2'])
        W1 = W1.at[:, ri:ri + cin, mo:mo + cm].set(_taps(br['w1']) * s1)
        b1 = b1.at[mo:mo + cm].set(bb1)
        W2 = W2.at[:, mo:mo + cm, oo:oo + co].set(_taps(br['w2']) * s2)
        b2 = b2.at[oo:oo + co].set(bb2)
        ri += cin; mo += cm; oo += co
    W1 = W1.astype(jnp.bfloat16)
    W2 = W2.astype(jnp.bfloat16)

    # Depthwise conv3 per-tap weights: (9, Cout), tap k = dy*3 + dx.
    w3 = jnp.transpose(p['w3'][:, 0, :, :], (1, 2, 0)).reshape(9, Cout)
    w3 = w3.astype(jnp.float32)

    s3 = p['g3'] / jnp.sqrt(p['v3'] + EPS)
    b3 = (p['cb3'] - p['m3']) * s3 + p['beta3']            # conv3 bias folded

    if p['wd'] is not None:
        Wd = _taps(p['wd']).astype(jnp.float32)            # residual path in f32
        bd = p['cbd'].reshape(1, Cout)
    else:
        Wd, bd = None, None

    out = _divconv_call(x, W1, b1.reshape(1, Cmid), W2, b2.reshape(1, Cout),
                        Wd, bd, w3, s3.reshape(1, Cout), b3.reshape(1, Cout))
    out = out.reshape(N, H, W, Cout)                       # free reshape
    return jnp.transpose(out, (0, 3, 1, 2))                # back to NCHW


# ---------------------------------------------------------------------------
# Pure-JAX reference (lax.conv), NCHW, for numerical verification
# ---------------------------------------------------------------------------
def _conv_ref(x, w, b, groups=1):
    y = jax.lax.conv_general_dilated(
        x, w, (1, 1), ((1, 1), (1, 1)),
        dimension_numbers=('NCHW', 'OIHW', 'NCHW'),
        feature_group_count=groups)
    return y + b[None, :, None, None]


def _bn_ref(x, g, beta, m, v):
    inv = g / jnp.sqrt(v + EPS)
    return (x - m[None, :, None, None]) * inv[None, :, None, None] \
        + beta[None, :, None, None]


def divconv_ref(x, p):
    splits, start = [], 0
    for i, cin in enumerate(p['inplanes_list']):
        xi = x[:, start:start + cin]
        start += cin
        br = p['branches'][i]
        h = _conv_ref(xi, br['w1'], br['cb1'])
        h = _bn_ref(h, br['g1'], br['beta1'], br['m1'], br['v1'])
        h = jnp.maximum(h, 0.0)
        h = _conv_ref(h, br['w2'], br['cb2'])
        h = _bn_ref(h, br['g2'], br['beta2'], br['m2'], br['v2'])
        splits.append(h)
    out = jnp.concatenate(splits, axis=1)
    out = _conv_ref(out, p['w3'], p['cb3'], groups=out.shape[1])
    residual = _conv_ref(x, p['wd'], p['cbd']) if p['wd'] is not None else x
    out = out + residual
    out = _bn_ref(out, p['g3'], p['beta3'], p['m3'], p['v3'])
    return out


# ---------------------------------------------------------------------------
if __name__ == "__main__":
    key = jax.random.PRNGKey(0)
    k_p1, k_p2, k_x1, k_x2 = jax.random.split(key, 4)

    # bf16 MXU operands (f32 accumulate) -> slightly relaxed tolerance.
    RTOL = ATOL = 5e-2

    # Config 1: in_planes != planes -> downsample conv residual.
    in_planes, planes, ratio = 8, 16, (1, 1, 2)
    N, H, W = 2, 16, 16
    p1 = make_params(k_p1, in_planes, planes, ratio)
    x1 = jax.random.normal(k_x1, (N, in_planes, H, W), jnp.float32)
    out1 = jax.block_until_ready(divconv_pallas(x1, p1))
    ref1 = jax.block_until_ready(divconv_ref(x1, p1))
    assert out1.shape == (N, planes, H, W), out1.shape
    assert jnp.all(jnp.isfinite(out1))
    assert jnp.allclose(out1, ref1, rtol=RTOL, atol=ATOL), \
        float(jnp.max(jnp.abs(out1 - ref1)))

    # Config 2: in_planes == planes -> identity residual path.
    p2 = make_params(k_p2, planes, planes, ratio)
    x2 = jax.random.normal(k_x2, (N, planes, H, W), jnp.float32)
    out2 = jax.block_until_ready(divconv_pallas(x2, p2))
    ref2 = jax.block_until_ready(divconv_ref(x2, p2))
    assert out2.shape == (N, planes, H, W), out2.shape
    assert jnp.all(jnp.isfinite(out2))
    assert jnp.allclose(out2, ref2, rtol=RTOL, atol=ATOL), \
        float(jnp.max(jnp.abs(out2 - ref2)))

    print("KERNEL_OK")
</pallas_src>

<mosaic_0001>
module attributes {stable_mosaic.version = 11 : i64} {
  func.func @_divconv_kernel(%arg0: i32, %arg1: memref<1x16x16x8xf32, #tpu.memory_space<vmem>>, %arg2: memref<9x8x32xbf16, #tpu.memory_space<vmem>>, %arg3: memref<1x32xf32, #tpu.memory_space<vmem>>, %arg4: memref<9x32x16xbf16, #tpu.memory_space<vmem>>, %arg5: memref<1x16xf32, #tpu.memory_space<vmem>>, %arg6: memref<9x8x16xf32, #tpu.memory_space<vmem>>, %arg7: memref<1x16xf32, #tpu.memory_space<vmem>>, %arg8: memref<9x16xf32, #tpu.memory_space<vmem>>, %arg9: memref<1x16xf32, #tpu.memory_space<vmem>>, %arg10: memref<1x16xf32, #tpu.memory_space<vmem>>, %arg11: memref<1x16x256xf32, #tpu.memory_space<vmem>>, %arg12: memref<18x24x8xf32, #tpu.memory_space<vmem>>, %arg13: memref<18x24x32xf32, #tpu.memory_space<vmem>>, %arg14: memref<18x24x16xf32, #tpu.memory_space<vmem>>) attributes {dimension_semantics = [#tpu.dimension_semantics<parallel>], iteration_bounds = array<i64: 2>, scalar_prefetch = 0 : i64, scratch_operands = 3 : i64, tpu.core_type = #tpu.core_type<tc>, window_params = [{transform_indices = @transform_0, window_bounds = array<i64: 1, 16, 16, 8>}, {pipeline_mode = #tpu.pipeline_mode<synchronous>, transform_indices = @transform_1, window_bounds = array<i64: 9, 8, 32>}, {pipeline_mode = #tpu.pipeline_mode<synchronous>, transform_indices = @transform_2, window_bounds = array<i64: 1, 32>}, {pipeline_mode = #tpu.pipeline_mode<synchronous>, transform_indices = @transform_3, window_bounds = array<i64: 9, 32, 16>}, {pipeline_mode = #tpu.pipeline_mode<synchronous>, transform_indices = @transform_4, window_bounds = array<i64: 1, 16>}, {pipeline_mode = #tpu.pipeline_mode<synchronous>, transform_indices = @transform_5, window_bounds = array<i64: 9, 8, 16>}, {pipeline_mode = #tpu.pipeline_mode<synchronous>, transform_indices = @transform_6, window_bounds = array<i64: 1, 16>}, {pipeline_mode = #tpu.pipeline_mode<synchronous>, transform_indices = @transform_7, window_bounds = array<i64: 9, 16>}, {pipeline_mode = #tpu.pipeline_mode<synchronous>, transform_indices = @transform_8, window_bounds = array<i64: 1, 16>}, {pipeline_mode = #tpu.pipeline_mode<synchronous>, transform_indices = @transform_9, window_bounds = array<i64: 1, 16>}, {transform_indices = @transform_10, window_bounds = array<i64: 1, 16, 256>}]} {
    %c0 = arith.constant 0 : index
    %c0_0 = arith.constant 0 : index
    %c0_1 = arith.constant 0 : index
    %c0_2 = arith.constant 0 : index
    %0 = vector.load %arg1[%c0, %c0_0, %c0_1, %c0_2] : memref<1x16x16x8xf32, #tpu.memory_space<vmem>>, vector<1x16x16x8xf32>
    %1 = vector.shape_cast %0 : vector<1x16x16x8xf32> to vector<16x16x8xf32>
    %cst = arith.constant 0.000000e+00 : f32
    %2 = vector.broadcast %cst : f32 to vector<18x24x8xf32>
    %c0_3 = arith.constant 0 : index
    %c0_4 = arith.constant 0 : index
    %c0_5 = arith.constant 0 : index
    %3 = vector.load %arg12[%c0_3, %c0_4, %c0_5] : memref<18x24x8xf32, #tpu.memory_space<vmem>>, vector<18x24x8xf32>
    tpu.vector_store %arg12[%c0_3, %c0_4, %c0_5], %2 {strides = array<i32>} : memref<18x24x8xf32, #tpu.memory_space<vmem>>, vector<18x24x8xf32>,
    %c1 = arith.constant 1 : index
    %c1_6 = arith.constant 1 : index
    %c0_7 = arith.constant 0 : index
    %4 = vector.load %arg12[%c1, %c1_6, %c0_7] : memref<18x24x8xf32, #tpu.memory_space<vmem>>, vector<16x16x8xf32>
    tpu.vector_store %arg12[%c1, %c1_6, %c0_7], %1 {strides = array<i32>} : memref<18x24x8xf32, #tpu.memory_space<vmem>>, vector<16x16x8xf32>,
    %c0_8 = arith.constant 0 : index
    %c0_9 = arith.constant 0 : index
    %c0_10 = arith.constant 0 : index
    %5 = vector.load %arg2[%c0_8, %c0_9, %c0_10] : memref<9x8x32xbf16, #tpu.memory_space<vmem>>, vector<9x8x32xbf16>
    %cst_11 = arith.constant 0.000000e+00 : f32
    %6 = vector.broadcast %cst_11 : f32 to vector<256x32xf32>
    %c0_12 = arith.constant 0 : index
    %c0_13 = arith.constant 0 : index
    %c0_14 = arith.constant 0 : index
    %7 = vector.load %arg6[%c0_12, %c0_13, %c0_14] : memref<9x8x16xf32, #tpu.memory_space<vmem>>, vector<9x8x16xf32>
    %cst_15 = arith.constant 0.000000e+00 : f32
    %8 = vector.broadcast %cst_15 : f32 to vector<256x16xf32>
    %c0_16 = arith.constant 0 : index
    %c0_17 = arith.constant 0 : index
    %c0_18 = arith.constant 0 : index
    %9 = vector.load %arg12[%c0_16, %c0_17, %c0_18] : memref<18x24x8xf32, #tpu.memory_space<vmem>>, vector<16x16x8xf32>
    %10 = vector.shape_cast %9 : vector<16x16x8xf32> to vector<256x8xf32>
    %11 = arith.truncf %10 : vector<256x8xf32> to vector<256x8xbf16>
    %12 = vector.extract_strided_slice %5 {offsets = [0, 0, 0], sizes = [1, 8, 32], strides = [1, 1, 1]} : vector<9x8x32xbf16> to vector<1x8x32xbf16>
    %13 = vector.shape_cast %12 : vector<1x8x32xbf16> to vector<8x32xbf16>
    %cst_19 = arith.constant dense<0.000000e+00> : vector<256x32xf32>
    %14 = tpu.matmul %11, %13, %cst_19 {dimension_numbers = #tpu.dot_dimension_numbers<[1], [0], [0], [1], [0, 0, 1, 1], [], []>} : vector<256x8xbf16>, vector<8x32xbf16>, vector<256x32xf32> -> vector<256x32xf32>
    %15 = arith.addf %6, %14 : vector<256x32xf32>
    %16 = vector.extract_strided_slice %7 {offsets = [0, 0, 0], sizes = [1, 8, 16], strides = [1, 1, 1]} : vector<9x8x16xf32> to vector<1x8x16xf32>
    %17 = vector.shape_cast %16 : vector<1x8x16xf32> to vector<8x16xf32>
    %cst_20 = arith.constant dense<0.000000e+00> : vector<256x16xf32>
    %18 = tpu.matmul %10, %17, %cst_20 {dimension_numbers = #tpu.dot_dimension_numbers<[1], [0], [0], [1], [0, 0, 1, 1], [], []>} : vector<256x8xf32>, vector<8x16xf32>, vector<256x16xf32> -> vector<256x16xf32>
    %19 = arith.addf %8, %18 : vector<256x16xf32>
    %c0_21 = arith.constant 0 : index
    %c1_22 = arith.constant 1 : index
    %c0_23 = arith.constant 0 : index
    %20 = vector.load %arg12[%c0_21, %c1_22, %c0_23] : memref<18x24x8xf32, #tpu.memory_space<vmem>>, vector<16x16x8xf32>
    %21 = vector.shape_cast %20 : vector<16x16x8xf32> to vector<256x8xf32>
    %22 = arith.truncf %21 : vector<256x8xf32> to vector<256x8xbf16>
    %23 = vector.extract_strided_slice %5 {offsets = [1, 0, 0], sizes = [1, 8, 32], strides = [1, 1, 1]} : vector<9x8x32xbf16> to vector<1x8x32xbf16>
    %24 = vector.shape_cast %23 : vector<1x8x32xbf16> to vector<8x32xbf16>
    %cst_24 = arith.constant dense<0.000000e+00> : vector<256x32xf32>
    %25 = tpu.matmul %22, %24, %cst_24 {dimension_numbers = #tpu.dot_dimension_numbers<[1], [0], [0], [1], [0, 0, 1, 1], [], []>} : vector<256x8xbf16>, vector<8x32xbf16>, vector<256x32xf32> -> vector<256x32xf32>
    %26 = arith.addf %15, %25 : vector<256x32xf32>
    %27 = vector.extract_strided_slice %7 {offsets = [1, 0, 0], sizes = [1, 8, 16], strides = [1, 1, 1]} : vector<9x8x16xf32> to vector<1x8x16xf32>
    %28 = vector.shape_cast %27 : vector<1x8x16xf32> to vector<8x16xf32>
    %cst_25 = arith.constant dense<0.000000e+00> : vector<256x16xf32>
    %29 = tpu.matmul %21, %28, %cst_25 {dimension_numbers = #tpu.dot_dimension_numbers<[1], [0], [0], [1], [0, 0, 1, 1], [], []>} : vector<256x8xf32>, vector<8x16xf32>, vector<256x16xf32> -> vector<256x16xf32>
    %30 = arith.addf %19, %29 : vector<256x16xf32>
    %c0_26 = arith.constant 0 : index
    %c2 = arith.constant 2 : index
    %c0_27 = arith.constant 0 : index
    %31 = vector.load %arg12[%c0_26, %c2, %c0_27] : memref<18x24x8xf32, #tpu.memory_space<vmem>>, vector<16x16x8xf32>
    %32 = vector.shape_cast %31 : vector<16x16x8xf32> to vector<256x8xf32>
    %33 = arith.truncf %32 : vector<256x8xf32> to vector<256x8xbf16>
    %34 = vector.extract_strided_slice %5 {offsets = [2, 0, 0], sizes = [1, 8, 32], strides = [1, 1, 1]} : vector<9x8x32xbf16> to vector<1x8x32xbf16>
    %35 = vector.shape_cast %34 : vector<1x8x32xbf16> to vector<8x32xbf16>
    %cst_28 = arith.constant dense<0.000000e+00> : vector<256x32xf32>
    %36 = tpu.matmul %33, %35, %cst_28 {dimension_numbers = #tpu.dot_dimension_numbers<[1], [0], [0], [1], [0, 0, 1, 1], [], []>} : vector<256x8xbf16>, vector<8x32xbf16>, vector<256x32xf32> -> vector<256x32xf32>
    %37 = arith.addf %26, %36 : vector<256x32xf32>
    %38 = vector.extract_strided_slice %7 {offsets = [2, 0, 0], sizes = [1, 8, 16], strides = [1, 1, 1]} : vector<9x8x16xf32> to vector<1x8x16xf32>
    %39 = vector.shape_cast %38 : vector<1x8x16xf32> to vector<8x16xf32>
    %cst_29 = arith.constant dense<0.000000e+00> : vector<256x16xf32>
    %40 = tpu.matmul %32, %39, %cst_29 {dimension_numbers = #tpu.dot_dimension_numbers<[1], [0], [0], [1], [0, 0, 1, 1], [], []>} : vector<256x8xf32>, vector<8x16xf32>, vector<256x16xf32> -> vector<256x16xf32>
    %41 = arith.addf %30, %40 : vector<256x16xf32>
    %c1_30 = arith.constant 1 : index
    %c0_31 = arith.constant 0 : index
    %c0_32 = arith.constant 0 : index
    %42 = vector.load %arg12[%c1_30, %c0_31, %c0_32] : memref<18x24x8xf32, #tpu.memory_space<vmem>>, vector<16x16x8xf32>
    %43 = vector.shape_cast %42 : vector<16x16x8xf32> to vector<256x8xf32>
    %44 = arith.truncf %43 : vector<256x8xf32> to vector<256x8xbf16>
    %45 = vector.extract_strided_slice %5 {offsets = [3, 0, 0], sizes = [1, 8, 32], strides = [1, 1, 1]} : vector<9x8x32xbf16> to vector<1x8x32xbf16>
    %46 = vector.shape_cast %45 : vector<1x8x32xbf16> to vector<8x32xbf16>
    %cst_33 = arith.constant dense<0.000000e+00> : vector<256x32xf32>
    %47 = tpu.matmul %44, %46, %cst_33 {dimension_numbers = #tpu.dot_dimension_numbers<[1], [0], [0], [1], [0, 0, 1, 1], [], []>} : vector<256x8xbf16>, vector<8x32xbf16>, vector<256x32xf32> -> vector<256x32xf32>
    %48 = arith.addf %37, %47 : vector<256x32xf32>
    %49 = vector.extract_strided_slice %7 {offsets = [3, 0, 0], sizes = [1, 8, 16], strides = [1, 1, 1]} : vector<9x8x16xf32> to vector<1x8x16xf32>
    %50 = vector.shape_cast %49 : vector<1x8x16xf32> to vector<8x16xf32>
    %cst_34 = arith.constant dense<0.000000e+00> : vector<256x16xf32>
    %51 = tpu.matmul %43, %50, %cst_34 {dimension_numbers = #tpu.dot_dimension_numbers<[1], [0], [0], [1], [0, 0, 1, 1], [], []>} : vector<256x8xf32>, vector<8x16xf32>, vector<256x16xf32> -> vector<256x16xf32>
    %52 = arith.addf %41, %51 : vector<256x16xf32>
    %c1_35 = arith.constant 1 : index
    %c1_36 = arith.constant 1 : index
    %c0_37 = arith.constant 0 : index
    %53 = vector.load %arg12[%c1_35, %c1_36, %c0_37] : memref<18x24x8xf32, #tpu.memory_space<vmem>>, vector<16x16x8xf32>
    %54 = vector.shape_cast %53 : vector<16x16x8xf32> to vector<256x8xf32>
    %55 = arith.truncf %54 : vector<256x8xf32> to vector<256x8xbf16>
    %56 = vector.extract_strided_slice %5 {offsets = [4, 0, 0], sizes = [1, 8, 32], strides = [1, 1, 1]} : vector<9x8x32xbf16> to vector<1x8x32xbf16>
    %57 = vector.shape_cast %56 : vector<1x8x32xbf16> to vector<8x32xbf16>
    %cst_38 = arith.constant dense<0.000000e+00> : vector<256x32xf32>
    %58 = tpu.matmul %55, %57, %cst_38 {dimension_numbers = #tpu.dot_dimension_numbers<[1], [0], [0], [1], [0, 0, 1, 1], [], []>} : vector<256x8xbf16>, vector<8x32xbf16>, vector<256x32xf32> -> vector<256x32xf32>
    %59 = arith.addf %48, %58 : vector<256x32xf32>
    %60 = vector.extract_strided_slice %7 {offsets = [4, 0, 0], sizes = [1, 8, 16], strides = [1, 1, 1]} : vector<9x8x16xf32> to vector<1x8x16xf32>
    %61 = vector.shape_cast %60 : vector<1x8x16xf32> to vector<8x16xf32>
    %cst_39 = arith.constant dense<0.000000e+00> : vector<256x16xf32>
    %62 = tpu.matmul %54, %61, %cst_39 {dimension_numbers = #tpu.dot_dimension_numbers<[1], [0], [0], [1], [0, 0, 1, 1], [], []>} : vector<256x8xf32>, vector<8x16xf32>, vector<256x16xf32> -> vector<256x16xf32>
    %63 = arith.addf %52, %62 : vector<256x16xf32>
    %c1_40 = arith.constant 1 : index
    %c2_41 = arith.constant 2 : index
    %c0_42 = arith.constant 0 : index
    %64 = vector.load %arg12[%c1_40, %c2_41, %c0_42] : memref<18x24x8xf32, #tpu.memory_space<vmem>>, vector<16x16x8xf32>
    %65 = vector.shape_cast %64 : vector<16x16x8xf32> to vector<256x8xf32>
    %66 = arith.truncf %65 : vector<256x8xf32> to vector<256x8xbf16>
    %67 = vector.extract_strided_slice %5 {offsets = [5, 0, 0], sizes = [1, 8, 32], strides = [1, 1, 1]} : vector<9x8x32xbf16> to vector<1x8x32xbf16>
    %68 = vector.shape_cast %67 : vector<1x8x32xbf16> to vector<8x32xbf16>
    %cst_43 = arith.constant dense<0.000000e+00> : vector<256x32xf32>
    %69 = tpu.matmul %66, %68, %cst_43 {dimension_numbers = #tpu.dot_dimension_numbers<[1], [0], [0], [1], [0, 0, 1, 1], [], []>} : vector<256x8xbf16>, vector<8x32xbf16>, vector<256x32xf32> -> vector<256x32xf32>
    %70 = arith.addf %59, %69 : vector<256x32xf32>
    %71 = vector.extract_strided_slice %7 {offsets = [5, 0, 0], sizes = [1, 8, 16], strides = [1, 1, 1]} : vector<9x8x16xf32> to vector<1x8x16xf32>
    %72 = vector.shape_cast %71 : vector<1x8x16xf32> to vector<8x16xf32>
    %cst_44 = arith.constant dense<0.000000e+00> : vector<256x16xf32>
    %73 = tpu.matmul %65, %72, %cst_44 {dimension_numbers = #tpu.dot_dimension_numbers<[1], [0], [0], [1], [0, 0, 1, 1], [], []>} : vector<256x8xf32>, vector<8x16xf32>, vector<256x16xf32> -> vector<256x16xf32>
    %74 = arith.addf %63, %73 : vector<256x16xf32>
    %c2_45 = arith.constant 2 : index
    %c0_46 = arith.constant 0 : index
    %c0_47 = arith.constant 0 : index
    %75 = vector.load %arg12[%c2_45, %c0_46, %c0_47] : memref<18x24x8xf32, #tpu.memory_space<vmem>>, vector<16x16x8xf32>
    %76 = vector.shape_cast %75 : vector<16x16x8xf32> to vector<256x8xf32>
    %77 = arith.truncf %76 : vector<256x8xf32> to vector<256x8xbf16>
    %78 = vector.extract_strided_slice %5 {offsets = [6, 0, 0], sizes = [1, 8, 32], strides = [1, 1, 1]} : vector<9x8x32xbf16> to vector<1x8x32xbf16>
    %79 = vector.shape_cast %78 : vector<1x8x32xbf16> to vector<8x32xbf16>
    %cst_48 = arith.constant dense<0.000000e+00> : vector<256x32xf32>
    %80 = tpu.matmul %77, %79, %cst_48 {dimension_numbers = #tpu.dot_dimension_numbers<[1], [0], [0], [1], [0, 0, 1, 1], [], []>} : vector<256x8xbf16>, vector<8x32xbf16>, vector<256x32xf32> -> vector<256x32xf32>
    %81 = arith.addf %70, %80 : vector<256x32xf32>
    %82 = vector.extract_strided_slice %7 {offsets = [6, 0, 0], sizes = [1, 8, 16], strides = [1, 1, 1]} : vector<9x8x16xf32> to vector<1x8x16xf32>
    %83 = vector.shape_cast %82 : vector<1x8x16xf32> to vector<8x16xf32>
    %cst_49 = arith.constant dense<0.000000e+00> : vector<256x16xf32>
    %84 = tpu.matmul %76, %83, %cst_49 {dimension_numbers = #tpu.dot_dimension_numbers<[1], [0], [0], [1], [0, 0, 1, 1], [], []>} : vector<256x8xf32>, vector<8x16xf32>, vector<256x16xf32> -> vector<256x16xf32>
    %85 = arith.addf %74, %84 : vector<256x16xf32>
    %c2_50 = arith.constant 2 : index
    %c1_51 = arith.constant 1 : index
    %c0_52 = arith.constant 0 : index
    %86 = vector.load %arg12[%c2_50, %c1_51, %c0_52] : memref<18x24x8xf32, #tpu.memory_space<vmem>>, vector<16x16x8xf32>
    %87 = vector.shape_cast %86 : vector<16x16x8xf32> to vector<256x8xf32>
    %88 = arith.truncf %87 : vector<256x8xf32> to vector<256x8xbf16>
    %89 = vector.extract_strided_slice %5 {offsets = [7, 0, 0], sizes = [1, 8, 32], strides = [1, 1, 1]} : vector<9x8x32xbf16> to vector<1x8x32xbf16>
    %90 = vector.shape_cast %89 : vector<1x8x32xbf16> to vector<8x32xbf16>
    %cst_53 = arith.constant dense<0.000000e+00> : vector<256x32xf32>
    %91 = tpu.matmul %88, %90, %cst_53 {dimension_numbers = #tpu.dot_dimension_numbers<[1], [0], [0], [1], [0, 0, 1, 1], [], []>} : vector<256x8xbf16>, vector<8x32xbf16>, vector<256x32xf32> -> vector<256x32xf32>
    %92 = arith.addf %81, %91 : vector<256x32xf32>
    %93 = vector.extract_strided_slice %7 {offsets = [7, 0, 0], sizes = [1, 8, 16], strides = [1, 1, 1]} : vector<9x8x16xf32> to vector<1x8x16xf32>
    %94 = vector.shape_cast %93 : vector<1x8x16xf32> to vector<8x16xf32>
    %cst_54 = arith.constant dense<0.000000e+00> : vector<256x16xf32>
    %95 = tpu.matmul %87, %94, %cst_54 {dimension_numbers = #tpu.dot_dimension_numbers<[1], [0], [0], [1], [0, 0, 1, 1], [], []>} : vector<256x8xf32>, vector<8x16xf32>, vector<256x16xf32> -> vector<256x16xf32>
    %96 = arith.addf %85, %95 : vector<256x16xf32>
    %c2_55 = arith.constant 2 : index
    %c2_56 = arith.constant 2 : index
    %c0_57 = arith.constant 0 : index
    %97 = vector.load %arg12[%c2_55, %c2_56, %c0_57] : memref<18x24x8xf32, #tpu.memory_space<vmem>>, vector<16x16x8xf32>
    %98 = vector.shape_cast %97 : vector<16x16x8xf32> to vector<256x8xf32>
    %99 = arith.truncf %98 : vector<256x8xf32> to vector<256x8xbf16>
    %100 = vector.extract_strided_slice %5 {offsets = [8, 0, 0], sizes = [1, 8, 32], strides = [1, 1, 1]} : vector<9x8x32xbf16> to vector<1x8x32xbf16>
    %101 = vector.shape_cast %100 : vector<1x8x32xbf16> to vector<8x32xbf16>
    %cst_58 = arith.constant dense<0.000000e+00> : vector<256x32xf32>
    %102 = tpu.matmul %99, %101, %cst_58 {dimension_numbers = #tpu.dot_dimension_numbers<[1], [0], [0], [1], [0, 0, 1, 1], [], []>} : vector<256x8xbf16>, vector<8x32xbf16>, vector<256x32xf32> -> vector<256x32xf32>
    %103 = arith.addf %92, %102 : vector<256x32xf32>
    %104 = vector.extract_strided_slice %7 {offsets = [8, 0, 0], sizes = [1, 8, 16], strides = [1, 1, 1]} : vector<9x8x16xf32> to vector<1x8x16xf32>
    %105 = vector.shape_cast %104 : vector<1x8x16xf32> to vector<8x16xf32>
    %cst_59 = arith.constant dense<0.000000e+00> : vector<256x16xf32>
    %106 = tpu.matmul %98, %105, %cst_59 {dimension_numbers = #tpu.dot_dimension_numbers<[1], [0], [0], [1], [0, 0, 1, 1], [], []>} : vector<256x8xf32>, vector<8x16xf32>, vector<256x16xf32> -> vector<256x16xf32>
    %107 = arith.addf %96, %106 : vector<256x16xf32>
    %c0_60 = arith.constant 0 : index
    %c0_61 = arith.constant 0 : index
    %108 = vector.load %arg3[%c0_60, %c0_61] : memref<1x32xf32, #tpu.memory_space<vmem>>, vector<1x32xf32>
    %109 = vector.shape_cast %108 : vector<1x32xf32> to vector<32xf32>
    %110 = vector.shape_cast %109 : vector<32xf32> to vector<1x32xf32>
    %111 = vector.broadcast %110 : vector<1x32xf32> to vector<256x32xf32>
    %112 = arith.addf %103, %111 : vector<256x32xf32>
    %cst_62 = arith.constant 0.000000e+00 : f32
    %113 = vector.broadcast %cst_62 : f32 to vector<256x32xf32>
    %114 = arith.maximumf %112, %113 : vector<256x32xf32>
    %115 = vector.shape_cast %114 : vector<256x32xf32> to vector<16x16x32xf32>
    %cst_63 = arith.constant 0.000000e+00 : f32
    %116 = vector.broadcast %cst_63 : f32 to vector<18x24x32xf32>
    %c0_64 = arith.constant 0 : index
    %c0_65 = arith.constant 0 : index
    %c0_66 = arith.constant 0 : index
    %117 = vector.load %arg13[%c0_64, %c0_65, %c0_66] : memref<18x24x32xf32, #tpu.memory_space<vmem>>, vector<18x24x32xf32>
    tpu.vector_store %arg13[%c0_64, %c0_65, %c0_66], %116 {strides = array<i32>} : memref<18x24x32xf32, #tpu.memory_space<vmem>>, vector<18x24x32xf32>,
    %c1_67 = arith.constant 1 : index
    %c1_68 = arith.constant 1 : index
    %c0_69 = arith.constant 0 : index
    %118 = vector.load %arg13[%c1_67, %c1_68, %c0_69] : memref<18x24x32xf32, #tpu.memory_space<vmem>>, vector<16x16x32xf32>
    tpu.vector_store %arg13[%c1_67, %c1_68, %c0_69], %115 {strides = array<i32>} : memref<18x24x32xf32, #tpu.memory_space<vmem>>, vector<16x16x32xf32>,
    %c0_70 = arith.constant 0 : index
    %c0_71 = arith.constant 0 : index
    %c0_72 = arith.constant 0 : index
    %119 = vector.load %arg4[%c0_70, %c0_71, %c0_72] : memref<9x32x16xbf16, #tpu.memory_space<vmem>>, vector<9x32x16xbf16>
    %cst_73 = arith.constant 0.000000e+00 : f32
    %120 = vector.broadcast %cst_73 : f32 to vector<256x16xf32>
    %c0_74 = arith.constant 0 : index
    %c0_75 = arith.constant 0 : index
    %c0_76 = arith.constant 0 : index
    %121 = vector.load %arg13[%c0_74, %c0_75, %c0_76] : memref<18x24x32xf32, #tpu.memory_space<vmem>>, vector<16x16x32xf32>
    %122 = vector.shape_cast %121 : vector<16x16x32xf32> to vector<256x32xf32>
    %123 = arith.truncf %122 : vector<256x32xf32> to vector<256x32xbf16>
    %124 = vector.extract_strided_slice %119 {offsets = [0, 0, 0], sizes = [1, 32, 16], strides = [1, 1, 1]} : vector<9x32x16xbf16> to vector<1x32x16xbf16>
    %125 = vector.shape_cast %124 : vector<1x32x16xbf16> to vector<32x16xbf16>
    %cst_77 = arith.constant dense<0.000000e+00> : vector<256x16xf32>
    %126 = tpu.matmul %123, %125, %cst_77 {dimension_numbers = #tpu.dot_dimension_numbers<[1], [0], [0], [1], [0, 0, 1, 1], [], []>} : vector<256x32xbf16>, vector<32x16xbf16>, vector<256x16xf32> -> vector<256x16xf32>
    %127 = arith.addf %120, %126 : vector<256x16xf32>
    %c0_78 = arith.constant 0 : index
    %c1_79 = arith.constant 1 : index
    %c0_80 = arith.constant 0 : index
    %128 = vector.load %arg13[%c0_78, %c1_79, %c0_80] : memref<18x24x32xf32, #tpu.memory_space<vmem>>, vector<16x16x32xf32>
    %129 = vector.shape_cast %128 : vector<16x16x32xf32> to vector<256x32xf32>
    %130 = arith.truncf %129 : vector<256x32xf32> to vector<256x32xbf16>
    %131 = vector.extract_strided_slice %119 {offsets = [1, 0, 0], sizes = [1, 32, 16], strides = [1, 1, 1]} : vector<9x32x16xbf16> to vector<1x32x16xbf16>
    %132 = vector.shape_cast %131 : vector<1x32x16xbf16> to vector<32x16xbf16>
    %cst_81 = arith.constant dense<0.000000e+00> : vector<256x16xf32>
    %133 = tpu.matmul %130, %132, %cst_81 {dimension_numbers = #tpu.dot_dimension_numbers<[1], [0], [0], [1], [0, 0, 1, 1], [], []>} : vector<256x32xbf16>, vector<32x16xbf16>, vector<256x16xf32> -> vector<256x16xf32>
    %134 = arith.addf %127, %133 : vector<256x16xf32>
    %c0_82 = arith.constant 0 : index
    %c2_83 = arith.constant 2 : index
    %c0_84 = arith.constant 0 : index
    %135 = vector.load %arg13[%c0_82, %c2_83, %c0_84] : memref<18x24x32xf32, #tpu.memory_space<vmem>>, vector<16x16x32xf32>
    %136 = vector.shape_cast %135 : vector<16x16x32xf32> to vector<256x32xf32>
    %137 = arith.truncf %136 : vector<256x32xf32> to vector<256x32xbf16>
    %138 = vector.extract_strided_slice %119 {offsets = [2, 0, 0], sizes = [1, 32, 16], strides = [1, 1, 1]} : vector<9x32x16xbf16> to vector<1x32x16xbf16>
    %139 = vector.shape_cast %138 : vector<1x32x16xbf16> to vector<32x16xbf16>
    %cst_85 = arith.constant dense<0.000000e+00> : vector<256x16xf32>
    %140 = tpu.matmul %137, %139, %cst_85 {dimension_numbers = #tpu.dot_dimension_numbers<[1], [0], [0], [1], [0, 0, 1, 1], [], []>} : vector<256x32xbf16>, vector<32x16xbf16>, vector<256x16xf32> -> vector<256x16xf32>
    %141 = arith.addf %134, %140 : vector<256x16xf32>
    %c1_86 = arith.constant 1 : index
    %c0_87 = arith.constant 0 : index
    %c0_88 = arith.constant 0 : index
    %142 = vector.load %arg13[%c1_86, %c0_87, %c0_88] : memref<18x24x32xf32, #tpu.memory_space<vmem>>, vector<16x16x32xf32>
    %143 = vector.shape_cast %142 : vector<16x16x32xf32> to vector<256x32xf32>
    %144 = arith.truncf %143 : vector<256x32xf32> to vector<256x32xbf16>
    %145 = vector.extract_strided_slice %119 {offsets = [3, 0, 0], sizes = [1, 32, 16], strides = [1, 1, 1]} : vector<9x32x16xbf16> to vector<1x32x16xbf16>
    %146 = vector.shape_cast %145 : vector<1x32x16xbf16> to vector<32x16xbf16>
    %cst_89 = arith.constant dense<0.000000e+00> : vector<256x16xf32>
    %147 = tpu.matmul %144, %146, %cst_89 {dimension_numbers = #tpu.dot_dimension_numbers<[1], [0], [0], [1], [0, 0, 1, 1], [], []>} : vector<256x32xbf16>, vector<32x16xbf16>, vector<256x16xf32> -> vector<256x16xf32>
    %148 = arith.addf %141, %147 : vector<256x16xf32>
    %c1_90 = arith.constant 1 : index
    %c1_91 = arith.constant 1 : index
    %c0_92 = arith.constant 0 : index
    %149 = vector.load %arg13[%c1_90, %c1_91, %c0_92] : memref<18x24x32xf32, #tpu.memory_space<vmem>>, vector<16x16x32xf32>
    %150 = vector.shape_cast %149 : vector<16x16x32xf32> to vector<256x32xf32>
    %151 = arith.truncf %150 : vector<256x32xf32> to vector<256x32xbf16>
    %152 = vector.extract_strided_slice %119 {offsets = [4, 0, 0], sizes = [1, 32, 16], strides = [1, 1, 1]} : vector<9x32x16xbf16> to vector<1x32x16xbf16>
    %153 = vector.shape_cast %152 : vector<1x32x16xbf16> to vector<32x16xbf16>
    %cst_93 = arith.constant dense<0.000000e+00> : vector<256x16xf32>
    %154 = tpu.matmul %151, %153, %cst_93 {dimension_numbers = #tpu.dot_dimension_numbers<[1], [0], [0], [1], [0, 0, 1, 1], [], []>} : vector<256x32xbf16>, vector<32x16xbf16>, vector<256x16xf32> -> vector<256x16xf32>
    %155 = arith.addf %148, %154 : vector<256x16xf32>
    %c1_94 = arith.constant 1 : index
    %c2_95 = arith.constant 2 : index
    %c0_96 = arith.constant 0 : index
    %156 = vector.load %arg13[%c1_94, %c2_95, %c0_96] : memref<18x24x32xf32, #tpu.memory_space<vmem>>, vector<16x16x32xf32>
    %157 = vector.shape_cast %156 : vector<16x16x32xf32> to vector<256x32xf32>
    %158 = arith.truncf %157 : vector<256x32xf32> to vector<256x32xbf16>
    %159 = vector.extract_strided_slice %119 {offsets = [5, 0, 0], sizes = [1, 32, 16], strides = [1, 1, 1]} : vector<9x32x16xbf16> to vector<1x32x16xbf16>
    %160 = vector.shape_cast %159 : vector<1x32x16xbf16> to vector<32x16xbf16>
    %cst_97 = arith.constant dense<0.000000e+00> : vector<256x16xf32>
    %161 = tpu.matmul %158, %160, %cst_97 {dimension_numbers = #tpu.dot_dimension_numbers<[1], [0], [0], [1], [0, 0, 1, 1], [], []>} : vector<256x32xbf16>, vector<32x16xbf16>, vector<256x16xf32> -> vector<256x16xf32>
    %162 = arith.addf %155, %161 : vector<256x16xf32>
    %c2_98 = arith.constant 2 : index
    %c0_99 = arith.constant 0 : index
    %c0_100 = arith.constant 0 : index
    %163 = vector.load %arg13[%c2_98, %c0_99, %c0_100] : memref<18x24x32xf32, #tpu.memory_space<vmem>>, vector<16x16x32xf32>
    %164 = vector.shape_cast %163 : vector<16x16x32xf32> to vector<256x32xf32>
    %165 = arith.truncf %164 : vector<256x32xf32> to vector<256x32xbf16>
    %166 = vector.extract_strided_slice %119 {offsets = [6, 0, 0], sizes = [1, 32, 16], strides = [1, 1, 1]} : vector<9x32x16xbf16> to vector<1x32x16xbf16>
    %167 = vector.shape_cast %166 : vector<1x32x16xbf16> to vector<32x16xbf16>
    %cst_101 = arith.constant dense<0.000000e+00> : vector<256x16xf32>
    %168 = tpu.matmul %165, %167, %cst_101 {dimension_numbers = #tpu.dot_dimension_numbers<[1], [0], [0], [1], [0, 0, 1, 1], [], []>} : vector<256x32xbf16>, vector<32x16xbf16>, vector<256x16xf32> -> vector<256x16xf32>
    %169 = arith.addf %162, %168 : vector<256x16xf32>
    %c2_102 = arith.constant 2 : index
    %c1_103 = arith.constant 1 : index
    %c0_104 = arith.constant 0 : index
    %170 = vector.load %arg13[%c2_102, %c1_103, %c0_104] : memref<18x24x32xf32, #tpu.memory_space<vmem>>, vector<16x16x32xf32>
    %171 = vector.shape_cast %170 : vector<16x16x32xf32> to vector<256x32xf32>
    %172 = arith.truncf %171 : vector<256x32xf32> to vector<256x32xbf16>
    %173 = vector.extract_strided_slice %119 {offsets = [7, 0, 0], sizes = [1, 32, 16], strides = [1, 1, 1]} : vector<9x32x16xbf16> to vector<1x32x16xbf16>
    %174 = vector.shape_cast %173 : vector<1x32x16xbf16> to vector<32x16xbf16>
    %cst_105 = arith.constant dense<0.000000e+00> : vector<256x16xf32>
    %175 = tpu.matmul %172, %174, %cst_105 {dimension_numbers = #tpu.dot_dimension_numbers<[1], [0], [0], [1], [0, 0, 1, 1], [], []>} : vector<256x32xbf16>, vector<32x16xbf16>, vector<256x16xf32> -> vector<256x16xf32>
    %176 = arith.addf %169, %175 : vector<256x16xf32>
    %c2_106 = arith.constant 2 : index
    %c2_107 = arith.constant 2 : index
    %c0_108 = arith.constant 0 : index
    %177 = vector.load %arg13[%c2_106, %c2_107, %c0_108] : memref<18x24x32xf32, #tpu.memory_space<vmem>>, vector<16x16x32xf32>
    %178 = vector.shape_cast %177 : vector<16x16x32xf32> to vector<256x32xf32>
    %179 = arith.truncf %178 : vector<256x32xf32> to vector<256x32xbf16>
    %180 = vector.extract_strided_slice %119 {offsets = [8, 0, 0], sizes = [1, 32, 16], strides = [1, 1, 1]} : vector<9x32x16xbf16> to vector<1x32x16xbf16>
    %181 = vector.shape_cast %180 : vector<1x32x16xbf16> to vector<32x16xbf16>
    %cst_109 = arith.constant dense<0.000000e+00> : vector<256x16xf32>
    %182 = tpu.matmul %179, %181, %cst_109 {dimension_numbers = #tpu.dot_dimension_numbers<[1], [0], [0], [1], [0, 0, 1, 1], [], []>} : vector<256x32xbf16>, vector<32x16xbf16>, vector<256x16xf32> -> vector<256x16xf32>
    %183 = arith.addf %176, %182 : vector<256x16xf32>
    %c0_110 = arith.constant 0 : index
    %c0_111 = arith.constant 0 : index
    %184 = vector.load %arg5[%c0_110, %c0_111] : memref<1x16xf32, #tpu.memory_space<vmem>>, vector<1x16xf32>
    %185 = vector.shape_cast %184 : vector<1x16xf32> to vector<16xf32>
    %186 = vector.shape_cast %185 : vector<16xf32> to vector<1x16xf32>
    %187 = vector.broadcast %186 : vector<1x16xf32> to vector<256x16xf32>
    %188 = arith.addf %183, %187 : vector<256x16xf32>
    %189 = vector.shape_cast %188 : vector<256x16xf32> to vector<16x16x16xf32>
    %cst_112 = arith.constant 0.000000e+00 : f32
    %190 = vector.broadcast %cst_112 : f32 to vector<18x24x16xf32>
    %c0_113 = arith.constant 0 : index
    %c0_114 = arith.constant 0 : index
    %c0_115 = arith.constant 0 : index
    %191 = vector.load %arg14[%c0_113, %c0_114, %c0_115] : memref<18x24x16xf32, #tpu.memory_space<vmem>>, vector<18x24x16xf32>
    tpu.vector_store %arg14[%c0_113, %c0_114, %c0_115], %190 {strides = array<i32>} : memref<18x24x16xf32, #tpu.memory_space<vmem>>, vector<18x24x16xf32>,
    %c1_116 = arith.constant 1 : index
    %c1_117 = arith.constant 1 : index
    %c0_118 = arith.constant 0 : index
    %192 = vector.load %arg14[%c1_116, %c1_117, %c0_118] : memref<18x24x16xf32, #tpu.memory_space<vmem>>, vector<16x16x16xf32>
    tpu.vector_store %arg14[%c1_116, %c1_117, %c0_118], %189 {strides = array<i32>} : memref<18x24x16xf32, #tpu.memory_space<vmem>>, vector<16x16x16xf32>,
    %c0_119 = arith.constant 0 : index
    %c0_120 = arith.constant 0 : index
    %193 = vector.load %arg8[%c0_119, %c0_120] : memref<9x16xf32, #tpu.memory_space<vmem>>, vector<9x16xf32>
    %cst_121 = arith.constant 0.000000e+00 : f32
    %194 = vector.broadcast %cst_121 : f32 to vector<16x16x16xf32>
    %c0_122 = arith.constant 0 : index
    %c0_123 = arith.constant 0 : index
    %c0_124 = arith.constant 0 : index
    %195 = vector.load %arg14[%c0_122, %c0_123, %c0_124] : memref<18x24x16xf32, #tpu.memory_space<vmem>>, vector<16x16x16xf32>
    %196 = vector.extract_strided_slice %193 {offsets = [0, 0], sizes = [1, 16], strides = [1, 1]} : vector<9x16xf32> to vector<1x16xf32>
    %197 = vector.shape_cast %196 : vector<1x16xf32> to vector<16xf32>
    %198 = vector.shape_cast %197 : vector<16xf32> to vector<1x1x16xf32>
    %199 = vector.broadcast %198 : vector<1x1x16xf32> to vector<16x16x16xf32>
    %200 = arith.mulf %195, %199 : vector<16x16x16xf32>
    %201 = arith.addf %194, %200 : vector<16x16x16xf32>
    %c0_125 = arith.constant 0 : index
    %c1_126 = arith.constant 1 : index
    %c0_127 = arith.constant 0 : index
    %202 = vector.load %arg14[%c0_125, %c1_126, %c0_127] : memref<18x24x16xf32, #tpu.memory_space<vmem>>, vector<16x16x16xf32>
    %203 = vector.extract_strided_slice %193 {offsets = [1, 0], sizes = [1, 16], strides = [1, 1]} : vector<9x16xf32> to vector<1x16xf32>
    %204 = vector.shape_cast %203 : vector<1x16xf32> to vector<16xf32>
    %205 = vector.shape_cast %204 : vector<16xf32> to vector<1x1x16xf32>
    %206 = vector.broadcast %205 : vector<1x1x16xf32> to vector<16x16x16xf32>
    %207 = arith.mulf %202, %206 : vector<16x16x16xf32>
    %208 = arith.addf %201, %207 : vector<16x16x16xf32>
    %c0_128 = arith.constant 0 : index
    %c2_129 = arith.constant 2 : index
    %c0_130 = arith.constant 0 : index
    %209 = vector.load %arg14[%c0_128, %c2_129, %c0_130] : memref<18x24x16xf32, #tpu.memory_space<vmem>>, vector<16x16x16xf32>
    %210 = vector.extract_strided_slice %193 {offsets = [2, 0], sizes = [1, 16], strides = [1, 1]} : vector<9x16xf32> to vector<1x16xf32>
    %211 = vector.shape_cast %210 : vector<1x16xf32> to vector<16xf32>
    %212 = vector.shape_cast %211 : vector<16xf32> to vector<1x1x16xf32>
    %213 = vector.broadcast %212 : vector<1x1x16xf32> to vector<16x16x16xf32>
    %214 = arith.mulf %209, %213 : vector<16x16x16xf32>
    %215 = arith.addf %208, %214 : vector<16x16x16xf32>
    %c1_131 = arith.constant 1 : index
    %c0_132 = arith.constant 0 : index
    %c0_133 = arith.constant 0 : index
    %216 = vector.load %arg14[%c1_131, %c0_132, %c0_133] : memref<18x24x16xf32, #tpu.memory_space<vmem>>, vector<16x16x16xf32>
    %217 = vector.extract_strided_slice %193 {offsets = [3, 0], sizes = [1, 16], strides = [1, 1]} : vector<9x16xf32> to vector<1x16xf32>
    %218 = vector.shape_cast %217 : vector<1x16xf32> to vector<16xf32>
    %219 = vector.shape_cast %218 : vector<16xf32> to vector<1x1x16xf32>
    %220 = vector.broadcast %219 : vector<1x1x16xf32> to vector<16x16x16xf32>
    %221 = arith.mulf %216, %220 : vector<16x16x16xf32>
    %222 = arith.addf %215, %221 : vector<16x16x16xf32>
    %c1_134 = arith.constant 1 : index
    %c1_135 = arith.constant 1 : index
    %c0_136 = arith.constant 0 : index
    %223 = vector.load %arg14[%c1_134, %c1_135, %c0_136] : memref<18x24x16xf32, #tpu.memory_space<vmem>>, vector<16x16x16xf32>
    %224 = vector.extract_strided_slice %193 {offsets = [4, 0], sizes = [1, 16], strides = [1, 1]} : vector<9x16xf32> to vector<1x16xf32>
    %225 = vector.shape_cast %224 : vector<1x16xf32> to vector<16xf32>
    %226 = vector.shape_cast %225 : vector<16xf32> to vector<1x1x16xf32>
    %227 = vector.broadcast %226 : vector<1x1x16xf32> to vector<16x16x16xf32>
    %228 = arith.mulf %223, %227 : vector<16x16x16xf32>
    %229 = arith.addf %222, %228 : vector<16x16x16xf32>
    %c1_137 = arith.constant 1 : index
    %c2_138 = arith.constant 2 : index
    %c0_139 = arith.constant 0 : index
    %230 = vector.load %arg14[%c1_137, %c2_138, %c0_139] : memref<18x24x16xf32, #tpu.memory_space<vmem>>, vector<16x16x16xf32>
    %231 = vector.extract_strided_slice %193 {offsets = [5, 0], sizes = [1, 16], strides = [1, 1]} : vector<9x16xf32> to vector<1x16xf32>
    %232 = vector.shape_cast %231 : vector<1x16xf32> to vector<16xf32>
    %233 = vector.shape_cast %232 : vector<16xf32> to vector<1x1x16xf32>
    %234 = vector.broadcast %233 : vector<1x1x16xf32> to vector<16x16x16xf32>
    %235 = arith.mulf %230, %234 : vector<16x16x16xf32>
    %236 = arith.addf %229, %235 : vector<16x16x16xf32>
    %c2_140 = arith.constant 2 : index
    %c0_141 = arith.constant 0 : index
    %c0_142 = arith.constant 0 : index
    %237 = vector.load %arg14[%c2_140, %c0_141, %c0_142] : memref<18x24x16xf32, #tpu.memory_space<vmem>>, vector<16x16x16xf32>
    %238 = vector.extract_strided_slice %193 {offsets = [6, 0], sizes = [1, 16], strides = [1, 1]} : vector<9x16xf32> to vector<1x16xf32>
    %239 = vector.shape_cast %238 : vector<1x16xf32> to vector<16xf32>
    %240 = vector.shape_cast %239 : vector<16xf32> to vector<1x1x16xf32>
    %241 = vector.broadcast %240 : vector<1x1x16xf32> to vector<16x16x16xf32>
    %242 = arith.mulf %237, %241 : vector<16x16x16xf32>
    %243 = arith.addf %236, %242 : vector<16x16x16xf32>
    %c2_143 = arith.constant 2 : index
    %c1_144 = arith.constant 1 : index
    %c0_145 = arith.constant 0 : index
    %244 = vector.load %arg14[%c2_143, %c1_144, %c0_145] : memref<18x24x16xf32, #tpu.memory_space<vmem>>, vector<16x16x16xf32>
    %245 = vector.extract_strided_slice %193 {offsets = [7, 0], sizes = [1, 16], strides = [1, 1]} : vector<9x16xf32> to vector<1x16xf32>
    %246 = vector.shape_cast %245 : vector<1x16xf32> to vector<16xf32>
    %247 = vector.shape_cast %246 : vector<16xf32> to vector<1x1x16xf32>
    %248 = vector.broadcast %247 : vector<1x1x16xf32> to vector<16x16x16xf32>
    %249 = arith.mulf %244, %248 : vector<16x16x16xf32>
    %250 = arith.addf %243, %249 : vector<16x16x16xf32>
    %c2_146 = arith.constant 2 : index
    %c2_147 = arith.constant 2 : index
    %c0_148 = arith.constant 0 : index
    %251 = vector.load %arg14[%c2_146, %c2_147, %c0_148] : memref<18x24x16xf32, #tpu.memory_space<vmem>>, vector<16x16x16xf32>
    %252 = vector.extract_strided_slice %193 {offsets = [8, 0], sizes = [1, 16], strides = [1, 1]} : vector<9x16xf32> to vector<1x16xf32>
    %253 = vector.shape_cast %252 : vector<1x16xf32> to vector<16xf32>
    %254 = vector.shape_cast %253 : vector<16xf32> to vector<1x1x16xf32>
    %255 = vector.broadcast %254 : vector<1x1x16xf32> to vector<16x16x16xf32>
    %256 = arith.mulf %251, %255 : vector<16x16x16xf32>
    %257 = arith.addf %250, %256 : vector<16x16x16xf32>
    %c0_149 = arith.constant 0 : index
    %c0_150 = arith.constant 0 : index
    %258 = vector.load %arg7[%c0_149, %c0_150] : memref<1x16xf32, #tpu.memory_space<vmem>>, vector<1x16xf32>
    %259 = vector.shape_cast %258 : vector<1x16xf32> to vector<16xf32>
    %260 = vector.shape_cast %259 : vector<16xf32> to vector<1x16xf32>
    %261 = vector.broadcast %260 : vector<1x16xf32> to vector<256x16xf32>
    %262 = arith.addf %107, %261 : vector<256x16xf32>
    %263 = vector.shape_cast %262 : vector<256x16xf32> to vector<16x16x16xf32>
    %264 = arith.addf %257, %263 : vector<16x16x16xf32>
    %c0_151 = arith.constant 0 : index
    %c0_152 = arith.constant 0 : index
    %265 = vector.load %arg9[%c0_151, %c0_152] : memref<1x16xf32, #tpu.memory_space<vmem>>, vector<1x16xf32>
    %266 = vector.shape_cast %265 : vector<1x16xf32> to vector<16xf32>
    %267 = vector.shape_cast %266 : vector<16xf32> to vector<1x1x16xf32>
    %268 = vector.broadcast %267 : vector<1x1x16xf32> to vector<16x16x16xf32>
    %269 = arith.mulf %264, %268 : vector<16x16x16xf32>
    %c0_153 = arith.constant 0 : index
    %c0_154 = arith.constant 0 : index
    %270 = vector.load %arg10[%c0_153, %c0_154] : memref<1x16xf32, #tpu.memory_space<vmem>>, vector<1x16xf32>
    %271 = vector.shape_cast %270 : vector<1x16xf32> to vector<16xf32>
    %272 = vector.shape_cast %271 : vector<16xf32> to vector<1x1x16xf32>
    %273 = vector.broadcast %272 : vector<1x1x16xf32> to vector<16x16x16xf32>
    %274 = arith.addf %269, %273 : vector<16x16x16xf32>
    %275 = vector.shape_cast %274 : vector<16x16x16xf32> to vector<16x256xf32>
    %c0_155 = arith.constant 0 : index
    %c0_156 = arith.constant 0 : index
    %c0_157 = arith.constant 0 : index
    %276 = vector.load %arg11[%c0_155, %c0_156, %c0_157] : memref<1x16x256xf32, #tpu.memory_space<vmem>>, vector<1x16x256xf32>
    %277 = vector.shape_cast %276 : vector<1x16x256xf32> to vector<16x256xf32>
    %278 = vector.shape_cast %275 : vector<16x256xf32> to vector<1x16x256xf32>
    tpu.vector_store %arg11[%c0_155, %c0_156, %c0_157], %278 {strides = array<i32>} : memref<1x16x256xf32, #tpu.memory_space<vmem>>, vector<1x16x256xf32>,
    return
  }
  func.func @transform_0(%arg0: i32) -> (i32, i32, i32, i32) {
    %c0_i32 = arith.constant 0 : i32
    %c0_i32_0 = arith.constant 0 : i32
    %c0_i32_1 = arith.constant 0 : i32
    %c0_i32_2 = arith.constant 0 : i32
    return %arg0, %c0_i32, %c0_i32_0, %c0_i32_1 : i32, i32, i32, i32
  }
  func.func @transform_1(%arg0: i32) -> (i32, i32, i32) {
    %c0_i32 = arith.constant 0 : i32
    %c0_i32_0 = arith.constant 0 : i32
    %c0_i32_1 = arith.constant 0 : i32
    %c0_i32_2 = arith.constant 0 : i32
    return %c0_i32, %c0_i32_0, %c0_i32_1 : i32, i32, i32
  }
  func.func @transform_2(%arg0: i32) -> (i32, i32) {
    %c0_i32 = arith.constant 0 : i32
    %c0_i32_0 = arith.constant 0 : i32
    %c0_i32_1 = arith.constant 0 : i32
    return %c0_i32, %c0_i32_0 : i32, i32
  }
  func.func @transform_3(%arg0: i32) -> (i32, i32, i32) {
    %c0_i32 = arith.constant 0 : i32
    %c0_i32_0 = arith.constant 0 : i32
    %c0_i32_1 = arith.constant 0 : i32
    %c0_i32_2 = arith.constant 0 : i32
    return %c0_i32, %c0_i32_0, %c0_i32_1 : i32, i32, i32
  }
  func.func @transform_4(%arg0: i32) -> (i32, i32) {
    %c0_i32 = arith.constant 0 : i32
    %c0_i32_0 = arith.constant 0 : i32
    %c0_i32_1 = arith.constant 0 : i32
    return %c0_i32, %c0_i32_0 : i32, i32
  }
  func.func @transform_5(%arg0: i32) -> (i32, i32, i32) {
    %c0_i32 = arith.constant 0 : i32
    %c0_i32_0 = arith.constant 0 : i32
    %c0_i32_1 = arith.constant 0 : i32
    %c0_i32_2 = arith.constant 0 : i32
    return %c0_i32, %c0_i32_0, %c0_i32_1 : i32, i32, i32
  }
  func.func @transform_6(%arg0: i32) -> (i32, i32) {
    %c0_i32 = arith.constant 0 : i32
    %c0_i32_0 = arith.constant 0 : i32
    %c0_i32_1 = arith.constant 0 : i32
    return %c0_i32, %c0_i32_0 : i32, i32
  }
  func.func @transform_7(%arg0: i32) -> (i32, i32) {
    %c0_i32 = arith.constant 0 : i32
    %c0_i32_0 = arith.constant 0 : i32
    %c0_i32_1 = arith.constant 0 : i32
    return %c0_i32, %c0_i32_0 : i32, i32
  }
  func.func @transform_8(%arg0: i32) -> (i32, i32) {
    %c0_i32 = arith.constant 0 : i32
    %c0_i32_0 = arith.constant 0 : i32
    %c0_i32_1 = arith.constant 0 : i32
    return %c0_i32, %c0_i32_0 : i32, i32
  }
  func.func @transform_9(%arg0: i32) -> (i32, i32) {
    %c0_i32 = arith.constant 0 : i32
    %c0_i32_0 = arith.constant 0 : i32
    %c0_i32_1 = arith.constant 0 : i32
    return %c0_i32, %c0_i32_0 : i32, i32
  }
  func.func @transform_10(%arg0: i32) -> (i32, i32, i32) {
    %c0_i32 = arith.constant 0 : i32
    %c0_i32_0 = arith.constant 0 : i32
    %c0_i32_1 = arith.constant 0 : i32
    return %arg0, %c0_i32, %c0_i32_0 : i32, i32, i32
  }
}

</mosaic_0001>

<llo_original>
// kernel: tpu_custom_call.1
$region0: #{tpu_custom_call.1}
  #allocation0 [shape = 'u32[]', space=smem, size = 0x4, offset = 0x4, fixed_abs, tag = 'smem constant byte address 0x4 - core index']
  #allocation1 [shape = 'u32[144,128]{1,0:T(1,128)}', space=vmem, size = 0x12000, scoped, tag = 'internal scratch']
  #allocation2 [shape = 'f32[18,24,8]{2,1,0:T(8,128)}', space=vmem, size = 0x36000, scoped, tag = 'scratch operand']
  #allocation3 [shape = 'f32[18,24,32]{2,1,0:T(8,128)}', space=vmem, size = 0x36000, scoped, tag = 'scratch operand']
  #allocation4 [shape = 'f32[18,24,16]{2,1,0:T(8,128)}', space=vmem, size = 0x36000, scoped, tag = 'scratch operand']
  %s0 = inlined_call_operand.hbm [shape: f32[2,16,16,8], index: 0, kind: input, shape index: {}]
  %s1 = inlined_call_operand.hbm [shape: bf16[9,8,32], index: 1, kind: input, shape index: {}]
  %s2 = inlined_call_operand.hbm [shape: f32[1,32], index: 2, kind: input, shape index: {}]
  %s3 = inlined_call_operand.hbm [shape: bf16[9,32,16], index: 3, kind: input, shape index: {}]
  %s4 = inlined_call_operand.hbm [shape: f32[1,16], index: 4, kind: input, shape index: {}]
  %s5 = inlined_call_operand.hbm [shape: f32[9,8,16], index: 5, kind: input, shape index: {}]
  %s6 = inlined_call_operand.hbm [shape: f32[1,16], index: 6, kind: input, shape index: {}]
  %s7 = inlined_call_operand.hbm [shape: f32[9,16], index: 7, kind: input, shape index: {}]
  %s8 = inlined_call_operand.hbm [shape: f32[1,16], index: 8, kind: input, shape index: {}]
  %s9 = inlined_call_operand.hbm [shape: f32[1,16], index: 9, kind: input, shape index: {}]
  %s10 = inlined_call_operand.hbm [shape: f32[2,16,256], index: 10, kind: output, shape index: {}]
  %s11 = sld [smem:[#allocation0]]
  $region113: #{tpu_custom_call.1} parent=0
    _
  %s13 = ssub.s32 1, %s11
  %s14 = scalar_select 0, %s13, %s11
  $region1: #{tpu_custom_call.1} parent=0
    #allocation5 [shape = 'u8[262144]{0}', space=vmem, size = 0x40000, scoped, tag = 'input window, operand 0']
    #allocation6 [shape = 's32[2]{0}', space=sflag, size = 0x8, scoped, tag = 'scoped memory for tpu_custom_call.1']
    #allocation7 [shape = 's32[2]{0}', space=sflag, size = 0x8, scoped, tag = 'scoped memory for tpu_custom_call.1']
    #allocation8 [shape = 'u8[18432]{0}', space=vmem, size = 0x4800, scoped, tag = 'input window, operand 1, single buffered']
    #allocation9 [shape = 's32[1]{0}', space=sflag, size = 0x4, scoped, tag = 'scoped memory for tpu_custom_call.1']
    #allocation10 [shape = 'u8[512]{0}', space=vmem, size = 0x400, scoped, tag = 'input window, operand 2, single buffered']
    #allocation11 [shape = 'u8[73728]{0}', space=vmem, size = 0x12000, scoped, tag = 'input window, operand 3, single buffered']
    #allocation12 [shape = 's32[1]{0}', space=sflag, size = 0x4, scoped, tag = 'scoped memory for tpu_custom_call.1']
    #allocation13 [shape = 'u8[512]{0}', space=vmem, size = 0x400, scoped, tag = 'input window, operand 4, single buffered']
    #allocation14 [shape = 'u8[36864]{0}', space=vmem, size = 0x9000, scoped, tag = 'input window, operand 5, single buffered']
    #allocation15 [shape = 's32[1]{0}', space=sflag, size = 0x4, scoped, tag = 'scoped memory for tpu_custom_call.1']
    #allocation16 [shape = 'u8[512]{0}', space=vmem, size = 0x400, scoped, tag = 'input window, operand 6, single buffered']
    #allocation17 [shape = 'u8[8192]{0}', space=vmem, size = 0x2000, scoped, tag = 'input window, operand 7, single buffered']
    #allocation18 [shape = 's32[1]{0}', space=sflag, size = 0x4, scoped, tag = 'scoped memory for tpu_custom_call.1']
    #allocation19 [shape = 'u8[512]{0}', space=vmem, size = 0x400, scoped, tag = 'input window, operand 8, single buffered']
    #allocation20 [shape = 'u8[512]{0}', space=vmem, size = 0x400, scoped, tag = 'input window, operand 9, single buffered']
    #allocation21 [shape = 's32[1]{0}', space=sflag, size = 0x4, scoped, tag = 'scoped memory for tpu_custom_call.1']
    #allocation22 [shape = 'u8[32768]{0}', space=vmem, size = 0x8000, scoped, tag = 'output window, operand 0']
    %15 = vsyncpa [#allocation6], 0
    %s16 = scalar_lea.sflag [#allocation6], 1
    %17 = vsyncpa %s16, 0
    %18 = vsyncpa [#allocation9], 0
    %19 = vsyncpa [#allocation12], 0
    %20 = vsyncpa [#allocation15], 0
    %21 = vsyncpa [#allocation18], 0
    %22 = vsyncpa [#allocation21], 0
    %23 = vsyncpa [#allocation7], 0
    %s24 = scalar_lea.sflag [#allocation7], 1
    %25 = vsyncpa %s24, 0
    loop: start=0, step=1, limit=4
    $region2: #{tpu_custom_call.1} parent=1 // loop_pre_header
      _
    $region3: #{tpu_custom_call.1} parent=1 // loop_header
      %s27 = sphi 0, %s31
      %p28 = scmp.ge.s32.totalorder %s27, 4
      %s37 = sphi 0, %s39
      %s40 = sphi 0, %s37
      %s41 = sphi 0, %s40
      %s57 = sphi 0, %s41
      %s61 = sphi 0, %s61
      %s63 = sphi 0, %s61
      %s64 = sphi 0, %s63
      %s78 = sphi 0, %s64
      %s82 = sphi 0, %s82
      %s84 = sphi 0, %s82
      %s85 = sphi 0, %s84
      %s99 = sphi 0, %s85
      %s103 = sphi 0, %s103
      %s105 = sphi 0, %s103
      %s106 = sphi 0, %s105
      %s120 = sphi 0, %s106
      %s124 = sphi 0, %s124
      %s126 = sphi 0, %s124
      %s127 = sphi 0, %s126
      %s141 = sphi 0, %s127
      %s145 = sphi 0, %s145
      %s147 = sphi 0, %s145
      %s148 = sphi 0, %s147
      %s162 = sphi 0, %s148
      %s166 = sphi 0, %s166
      %s168 = sphi 0, %s166
      %s169 = sphi 0, %s168
      %s183 = sphi 0, %s169
      %s187 = sphi 0, %s187
      %s189 = sphi 0, %s187
      %s190 = sphi 0, %s189
      %s204 = sphi 0, %s190
      %s208 = sphi 0, %s208
      %s210 = sphi 0, %s208
      %s211 = sphi 0, %s210
      %s225 = sphi 0, %s211
      %s229 = sphi 0, %s229
      %s231 = sphi 0, %s229
      %s232 = sphi 0, %s231
      %s246 = sphi 0, %s232
      %s252 = sphi 0, %s254
      %s255 = sphi 0, %s252
      %s256 = sphi 0, %s255
      %s272 = sphi 0, %s256
    $region4: #{tpu_custom_call.1} parent=1 // loop_header_branch
      %30 = sbr.rel (%p28) target = $region8
    $region5: #{tpu_custom_call.1} parent=1 // loop_body
      %s32 = ssub.s32 %s27, 1
      %s33 = ssub.s32 %s27, 2
      %s34 = sadd.s32 %s27, 1
      %s35 = ssub.s32 %s27, %s34
      %p36 = scmp.eq.s32.totalorder %s35, 0
      %s38 = sadd.s32 %s37, 1
      %s39 = scalar_select %p36, %s37, %s38
      %p42 = pneg %p36
      %p43 = scmp.eq.s32.totalorder %s27, 1
      %p44 = por %p42, %p43
      %p45 = scmp.ne.s32.totalorder %s37, %s40
      %p46 = scmp.eq.s32.totalorder %s27, 0
      %p47 = por %p45, %p46
      %p48 = scmp.ne.s32.totalorder %s37, %s40
      %p49 = scmp.eq.s32.totalorder %s32, 1
      %p50 = por %p48, %p49
      %p51 = scmp.ne.s32.totalorder %s40, %s41
      %p52 = scmp.eq.s32.totalorder %s32, 0
      %p53 = por %p51, %p52
      %p54 = scmp.ne.s32.totalorder %s40, %s41
      %p55 = scmp.eq.s32.totalorder %s33, 1
      %p56 = por %p54, %p55
      %p58 = scmp.ne.s32.totalorder %s41, %s57
      %p59 = scmp.eq.s32.totalorder %s33, 0
      %p60 = por %p58, %p59
      %s62 = sadd.s32 %s61, 1
      %p65 = scmp.eq.s32.totalorder %s27, 1
      %p66 = scmp.ne.s32.totalorder %s61, %s63
      %p67 = scmp.eq.s32.totalorder %s27, 0
      %p68 = por %p66, %p67
      %p69 = scmp.ne.s32.totalorder %s61, %s63
      %p70 = scmp.eq.s32.totalorder %s32, 1
      %p71 = por %p69, %p70
      %p72 = scmp.ne.s32.totalorder %s63, %s64
      %p73 = scmp.eq.s32.totalorder %s32, 0
      %p74 = por %p72, %p73
      %p75 = scmp.ne.s32.totalorder %s63, %s64
      %p76 = scmp.eq.s32.totalorder %s33, 1
      %p77 = por %p75, %p76
      %p79 = scmp.ne.s32.totalorder %s64, %s78
      %p80 = scmp.eq.s32.totalorder %s33, 0
      %p81 = por %p79, %p80
      %s83 = sadd.s32 %s82, 1
      %p86 = scmp.eq.s32.totalorder %s27, 1
      %p87 = scmp.ne.s32.totalorder %s82, %s84
      %p88 = scmp.eq.s32.totalorder %s27, 0
      %p89 = por %p87, %p88
      %p90 = scmp.ne.s32.totalorder %s82, %s84
      %p91 = scmp.eq.s32.totalorder %s32, 1
      %p92 = por %p90, %p91
      %p93 = scmp.ne.s32.totalorder %s84, %s85
      %p94 = scmp.eq.s32.totalorder %s32, 0
      %p95 = por %p93, %p94
      %p96 = scmp.ne.s32.totalorder %s84, %s85
      %p97 = scmp.eq.s32.totalorder %s33, 1
      %p98 = por %p96, %p97
      %p100 = scmp.ne.s32.totalorder %s85, %s99
      %p101 = scmp.eq.s32.totalorder %s33, 0
      %p102 = por %p100, %p101
      %s104 = sadd.s32 %s103, 1
      %p107 = scmp.eq.s32.totalorder %s27, 1
      %p108 = scmp.ne.s32.totalorder %s103, %s105
      %p109 = scmp.eq.s32.totalorder %s27, 0
      %p110 = por %p108, %p109
      %p111 = scmp.ne.s32.totalorder %s103, %s105
      %p112 = scmp.eq.s32.totalorder %s32, 1
      %p113 = por %p111, %p112
      %p114 = scmp.ne.s32.totalorder %s105, %s106
      %p115 = scmp.eq.s32.totalorder %s32, 0
      %p116 = por %p114, %p115
      %p117 = scmp.ne.s32.totalorder %s105, %s106
      %p118 = scmp.eq.s32.totalorder %s33, 1
      %p119 = por %p117, %p118
      %p121 = scmp.ne.s32.totalorder %s106, %s120
      %p122 = scmp.eq.s32.totalorder %s33, 0
      %p123 = por %p121, %p122
      %s125 = sadd.s32 %s124, 1
      %p128 = scmp.eq.s32.totalorder %s27, 1
      %p129 = scmp.ne.s32.totalorder %s124, %s126
      %p130 = scmp.eq.s32.totalorder %s27, 0
      %p131 = por %p129, %p130
      %p132 = scmp.ne.s32.totalorder %s124, %s126
      %p133 = scmp.eq.s32.totalorder %s32, 1
      %p134 = por %p132, %p133
      %p135 = scmp.ne.s32.totalorder %s126, %s127
      %p136 = scmp.eq.s32.totalorder %s32, 0
      %p137 = por %p135, %p136
      %p138 = scmp.ne.s32.totalorder %s126, %s127
      %p139 = scmp.eq.s32.totalorder %s33, 1
      %p140 = por %p138, %p139
      %p142 = scmp.ne.s32.totalorder %s127, %s141
      %p143 = scmp.eq.s32.totalorder %s33, 0
      %p144 = por %p142, %p143
      %s146 = sadd.s32 %s145, 1
      %p149 = scmp.eq.s32.totalorder %s27, 1
      %p150 = scmp.ne.s32.totalorder %s145, %s147
      %p151 = scmp.eq.s32.totalorder %s27, 0
      %p152 = por %p150, %p151
      %p153 = scmp.ne.s32.totalorder %s145, %s147
      %p154 = scmp.eq.s32.totalorder %s32, 1
      %p155 = por %p153, %p154
      %p156 = scmp.ne.s32.totalorder %s147, %s148
      %p157 = scmp.eq.s32.totalorder %s32, 0
      %p158 = por %p156, %p157
      %p159 = scmp.ne.s32.totalorder %s147, %s148
      %p160 = scmp.eq.s32.totalorder %s33, 1
      %p161 = por %p159, %p160
      %p163 = scmp.ne.s32.totalorder %s148, %s162
      %p164 = scmp.eq.s32.totalorder %s33, 0
      %p165 = por %p163, %p164
      %s167 = sadd.s32 %s166, 1
      %p170 = scmp.eq.s32.totalorder %s27, 1
      %p171 = scmp.ne.s32.totalorder %s166, %s168
      %p172 = scmp.eq.s32.totalorder %s27, 0
      %p173 = por %p171, %p172
      %p174 = scmp.ne.s32.totalorder %s166, %s168
      %p175 = scmp.eq.s32.totalorder %s32, 1
      %p176 = por %p174, %p175
      %p177 = scmp.ne.s32.totalorder %s168, %s169
      %p178 = scmp.eq.s32.totalorder %s32, 0
      %p179 = por %p177, %p178
      %p180 = scmp.ne.s32.totalorder %s168, %s169
      %p181 = scmp.eq.s32.totalorder %s33, 1
      %p182 = por %p180, %p181
      %p184 = scmp.ne.s32.totalorder %s169, %s183
      %p185 = scmp.eq.s32.totalorder %s33, 0
      %p186 = por %p184, %p185
      %s188 = sadd.s32 %s187, 1
      %p191 = scmp.eq.s32.totalorder %s27, 1
      %p192 = scmp.ne.s32.totalorder %s187, %s189
      %p193 = scmp.eq.s32.totalorder %s27, 0
      %p194 = por %p192, %p193
      %p195 = scmp.ne.s32.totalorder %s187, %s189
      %p196 = scmp.eq.s32.totalorder %s32, 1
      %p197 = por %p195, %p196
      %p198 = scmp.ne.s32.totalorder %s189, %s190
      %p199 = scmp.eq.s32.totalorder %s32, 0
      %p200 = por %p198, %p199
      %p201 = scmp.ne.s32.totalorder %s189, %s190
      %p202 = scmp.eq.s32.totalorder %s33, 1
      %p203 = por %p201, %p202
      %p205 = scmp.ne.s32.totalorder %s190, %s204
      %p206 = scmp.eq.s32.totalorder %s33, 0
      %p207 = por %p205, %p206
      %s209 = sadd.s32 %s208, 1
      %p212 = scmp.eq.s32.totalorder %s27, 1
      %p213 = scmp.ne.s32.totalorder %s208, %s210
      %p214 = scmp.eq.s32.totalorder %s27, 0
      %p215 = por %p213, %p214
      %p216 = scmp.ne.s32.totalorder %s208, %s210
      %p217 = scmp.eq.s32.totalorder %s32, 1
      %p218 = por %p216, %p217
      %p219 = scmp.ne.s32.totalorder %s210, %s211
      %p220 = scmp.eq.s32.totalorder %s32, 0
      %p221 = por %p219, %p220
      %p222 = scmp.ne.s32.totalorder %s210, %s211
      %p223 = scmp.eq.s32.totalorder %s33, 1
      %p224 = por %p222, %p223
      %p226 = scmp.ne.s32.totalorder %s211, %s225
      %p227 = scmp.eq.s32.totalorder %s33, 0
      %p228 = por %p226, %p227
      %s230 = sadd.s32 %s229, 1
      %p233 = scmp.eq.s32.totalorder %s27, 1
      %p234 = scmp.ne.s32.totalorder %s229, %s231
      %p235 = scmp.eq.s32.totalorder %s27, 0
      %p236 = por %p234, %p235
      %p237 = scmp.ne.s32.totalorder %s229, %s231
      %p238 = scmp.eq.s32.totalorder %s32, 1
      %p239 = por %p237, %p238
      %p240 = scmp.ne.s32.totalorder %s231, %s232
      %p241 = scmp.eq.s32.totalorder %s32, 0
      %p242 = por %p240, %p241
      %p243 = scmp.ne.s32.totalorder %s231, %s232
      %p244 = scmp.eq.s32.totalorder %s33, 1
      %p245 = por %p243, %p244
      %p247 = scmp.ne.s32.totalorder %s232, %s246
      %p248 = scmp.eq.s32.totalorder %s33, 0
      %p249 = por %p247, %p248
      %s250 = ssub.s32 %s27, %s34
      %p251 = scmp.eq.s32.totalorder %s250, 0
      %s253 = sadd.s32 %s252, 1
      %s254 = scalar_select %p251, %s252, %s253
      %p257 = pneg %p251
      %p258 = scmp.eq.s32.totalorder %s27, 1
      %p259 = por %p257, %p258
      %p260 = scmp.ne.s32.totalorder %s252, %s255
      %p261 = scmp.eq.s32.totalorder %s27, 0
      %p262 = por %p260, %p261
      %p263 = scmp.ne.s32.totalorder %s252, %s255
      %p264 = scmp.eq.s32.totalorder %s32, 1
      %p265 = por %p263, %p264
      %p266 = scmp.ne.s32.totalorder %s255, %s256
      %p267 = scmp.eq.s32.totalorder %s32, 0
      %p268 = por %p266, %p267
      %p269 = scmp.ne.s32.totalorder %s255, %s256
      %p270 = scmp.eq.s32.totalorder %s33, 1
      %p271 = por %p269, %p270
      %p273 = scmp.ne.s32.totalorder %s256, %s272
      %p274 = scmp.eq.s32.totalorder %s33, 0
      %p275 = por %p273, %p274
      %p276 = scmp.le.s32.totalorder 1, %s27
      %p277 = scmp.lt.s32.totalorder %s27, 3
      %p278 = pnand %p276, %p277
      %p279 = pneg %p278
      // Predicated region
      $region9: #{tpu_custom_call.1} parent=5 // pred_check
        _
      $region10: #{tpu_custom_call.1} parent=5 // pred_check_branch
        %281 = sbr.rel (%p278) target = $region12
      $region11: #{tpu_custom_call.1} parent=5 // pred_region
        %s282 = ssub.s32 %s27, 1
        // Predicated region
        $region13: #{tpu_custom_call.1} parent=11 // pred_check
          %p283 = pneg %p74
        $region14: #{tpu_custom_call.1} parent=11 // pred_check_branch
          %285 = sbr.rel (%p283) target = $region16
        $region15: #{tpu_custom_call.1} parent=11 // pred_region
          %s287 = ssub.s32 576, 576
          %288 = vsyncadd [#allocation9], %s287
          %s289 = sshll.u32 [#allocation8], 4
          %s290 = int_to_ptr.vmem [resolvable:$true] %s289
          %295 = dma.hbm_to_vmem [thread:$0]  %s1, 576, %s290, [#allocation9], 64, 64, 4
        $region16: #{tpu_custom_call.1} parent=11 // pred_fallthru
          _
        // Predicated region
        $region17: #{tpu_custom_call.1} parent=11 // pred_check
          %p296 = pneg %p95
        $region18: #{tpu_custom_call.1} parent=11 // pred_check_branch
          %298 = sbr.rel (%p296) target = $region20
        $region19: #{tpu_custom_call.1} parent=11 // pred_region
          %s300 = ssub.s32 16, 16
          %301 = vsyncadd [#allocation9], %s300
          %s303 = sshll.u32 [#allocation10], 4
          %s304 = int_to_ptr.vmem [resolvable:$true] %s303
          %306 = dma.hbm_to_vmem [thread:$0]  %s2, 16, %s304, [#allocation9]
        $region20: #{tpu_custom_call.1} parent=11 // pred_fallthru
          _
        // Predicated region
        $region21: #{tpu_custom_call.1} parent=11 // pred_check
          %p307 = pneg %p116
        $region22: #{tpu_custom_call.1} parent=11 // pred_check_branch
          %309 = sbr.rel (%p307) target = $region24
        $region23: #{tpu_custom_call.1} parent=11 // pred_region
          %s311 = ssub.s32 2304, 2304
          %312 = vsyncadd [#allocation12], %s311
          %s313 = sshll.u32 [#allocation11], 4
          %s314 = int_to_ptr.vmem [resolvable:$true] %s313
          %319 = dma.hbm_to_vmem [thread:$0]  %s3, 2304, %s314, [#allocation12], 64, 64, 4
        $region24: #{tpu_custom_call.1} parent=11 // pred_fallthru
          _
        // Predicated region
        $region25: #{tpu_custom_call.1} parent=11 // pred_check
          %p320 = pneg %p137
        $region26: #{tpu_custom_call.1} parent=11 // pred_check_branch
          %322 = sbr.rel (%p320) target = $region28
        $region27: #{tpu_custom_call.1} parent=11 // pred_region
          %s324 = ssub.s32 16, 16
          %325 = vsyncadd [#allocation12], %s324
          %s327 = sshll.u32 [#allocation13], 4
          %s328 = int_to_ptr.vmem [resolvable:$true] %s327
          %330 = dma.hbm_to_vmem [thread:$0]  %s4, 16, %s328, [#allocation12]
        $region28: #{tpu_custom_call.1} parent=11 // pred_fallthru
          _
        // Predicated region
        $region29: #{tpu_custom_call.1} parent=11 // pred_check
          %p331 = pneg %p158
        $region30: #{tpu_custom_call.1} parent=11 // pred_check_branch
          %333 = sbr.rel (%p331) target = $region32
        $region31: #{tpu_custom_call.1} parent=11 // pred_region
          %s335 = ssub.s32 1152, 1152
          %336 = vsyncadd [#allocation15], %s335
          %s337 = sshll.u32 [#allocation14], 4
          %s338 = int_to_ptr.vmem [resolvable:$true] %s337
          %343 = dma.hbm_to_vmem [thread:$0]  %s5, 1152, %s338, [#allocation15], 128, 128, 8
        $region32: #{tpu_custom_call.1} parent=11 // pred_fallthru
          _
        // Predicated region
        $region33: #{tpu_custom_call.1} parent=11 // pred_check
          %p344 = pneg %p179
        $region34: #{tpu_custom_call.1} parent=11 // pred_check_branch
          %346 = sbr.rel (%p344) target = $region36
        $region35: #{tpu_custom_call.1} parent=11 // pred_region
          %s348 = ssub.s32 16, 16
          %349 = vsyncadd [#allocation15], %s348
          %s351 = sshll.u32 [#allocation16], 4
          %s352 = int_to_ptr.vmem [resolvable:$true] %s351
          %354 = dma.hbm_to_vmem [thread:$0]  %s6, 16, %s352, [#allocation15]
        $region36: #{tpu_custom_call.1} parent=11 // pred_fallthru
          _
        // Predicated region
        $region37: #{tpu_custom_call.1} parent=11 // pred_check
          %p355 = pneg %p200
        $region38: #{tpu_custom_call.1} parent=11 // pred_check_branch
          %357 = sbr.rel (%p355) target = $region40
        $region39: #{tpu_custom_call.1} parent=11 // pred_region
          %s359 = ssub.s32 256, 256
          %360 = vsyncadd [#allocation18], %s359
          %s361 = sshll.u32 [#allocation17], 4
          %s362 = int_to_ptr.vmem [resolvable:$true] %s361
          %367 = dma.hbm_to_vmem [thread:$0]  %s7, 256, %s362, [#allocation18], 128, 128, 8
        $region40: #{tpu_custom_call.1} parent=11 // pred_fallthru
          _
        // Predicated region
        $region41: #{tpu_custom_call.1} parent=11 // pred_check
          %p368 = pneg %p221
        $region42: #{tpu_custom_call.1} parent=11 // pred_check_branch
          %370 = sbr.rel (%p368) target = $region44
        $region43: #{tpu_custom_call.1} parent=11 // pred_region
          %s372 = ssub.s32 16, 16
          %373 = vsyncadd [#allocation18], %s372
          %s375 = sshll.u32 [#allocation19], 4
          %s376 = int_to_ptr.vmem [resolvable:$true] %s375
          %378 = dma.hbm_to_vmem [thread:$0]  %s8, 16, %s376, [#allocation18]
        $region44: #{tpu_custom_call.1} parent=11 // pred_fallthru
          _
        // Predicated region
        $region45: #{tpu_custom_call.1} parent=11 // pred_check
          %p379 = pneg %p242
        $region46: #{tpu_custom_call.1} parent=11 // pred_check_branch
          %381 = sbr.rel (%p379) target = $region48
        $region47: #{tpu_custom_call.1} parent=11 // pred_region
          %s383 = ssub.s32 16, 16
          %384 = vsyncadd [#allocation21], %s383
          %s386 = sshll.u32 [#allocation20], 4
          %s387 = int_to_ptr.vmem [resolvable:$true] %s386
          %389 = dma.hbm_to_vmem [thread:$0]  %s9, 16, %s387, [#allocation21]
        $region48: #{tpu_custom_call.1} parent=11 // pred_fallthru
          _
      $region12: #{tpu_custom_call.1} parent=5 // pred_fallthru
        _
      %p390 = scmp.lt.s32.totalorder %s27, 2
      // Predicated region
      $region49: #{tpu_custom_call.1} parent=5 // pred_check
        %p391 = pneg %p390
      $region50: #{tpu_custom_call.1} parent=5 // pred_check_branch
        %393 = sbr.rel (%p391) target = $region52
      $region51: #{tpu_custom_call.1} parent=5 // pred_region
        // Predicated region
        $region53: #{tpu_custom_call.1} parent=51 // pred_check
          %p394 = pneg %p47
        $region54: #{tpu_custom_call.1} parent=51 // pred_check_branch
          %396 = sbr.rel (%p394) target = $region56
        $region55: #{tpu_custom_call.1} parent=51 // pred_region
          %s397 = sand.u32 %s37, 1
          %s398 = scalar_lea.sflag [#allocation6], %s397
          %s399 = sand.u32 %s37, 1
          %s400 = smul.addr %s399, 256
          %s401 = scalar_lea.vmem [#allocation5], %s400
          %s403 = ssub.s32 4096, 4096
          %404 = vsyncadd %s398, %s403
          %s405 = smul.addr %s27, 32
          %s406 = smul.addr %s405, 128
          %s407 = scalar_lea.hbm %s0, %s406
          %s408 = sshll.u32 %s401, 4
          %s409 = int_to_ptr.vmem [resolvable:$true] %s408
          %414 = dma.hbm_to_vmem [thread:$0]  %s407, 4096, %s409, %s398, 128, 128, 8
        $region56: #{tpu_custom_call.1} parent=51 // pred_fallthru
          _
      $region52: #{tpu_custom_call.1} parent=5 // pred_fallthru
        _
      %p415 = scmp.le.s32.totalorder 1, %s27
      %p416 = scmp.lt.s32.totalorder %s27, 3
      %p417 = pnand %p415, %p416
      %p418 = pneg %p417
      // Predicated region
      $region57: #{tpu_custom_call.1} parent=5 // pred_check
        _
      $region58: #{tpu_custom_call.1} parent=5 // pred_check_branch
        %420 = sbr.rel (%p417) target = $region60
      $region59: #{tpu_custom_call.1} parent=5 // pred_region
        %s421 = ssub.s32 %s27, 1
        %s422 = sand.u32 %s40, 1
        %s423 = scalar_lea.sflag [#allocation6], %s422
        %s424 = sand.u32 %s40, 1
        %s425 = smul.addr %s424, 256
        %s426 = scalar_lea.vmem [#allocation5], %s425
        // Predicated region
        $region61: #{tpu_custom_call.1} parent=59 // pred_check
          %p427 = pneg %p53
        $region62: #{tpu_custom_call.1} parent=59 // pred_check_branch
          %429 = sbr.rel (%p427) target = $region64
        $region63: #{tpu_custom_call.1} parent=59 // pred_region
          %430 = dma.done %s423, 4096
        $region64: #{tpu_custom_call.1} parent=59 // pred_fallthru
          _
        // Predicated region
        $region65: #{tpu_custom_call.1} parent=59 // pred_check
          %p431 = pneg %p74
        $region66: #{tpu_custom_call.1} parent=59 // pred_check_branch
          %433 = sbr.rel (%p431) target = $region68
        $region67: #{tpu_custom_call.1} parent=59 // pred_region
          %434 = dma.done [#allocation9], 576
        $region68: #{tpu_custom_call.1} parent=59 // pred_fallthru
          _
        // Predicated region
        $region69: #{tpu_custom_call.1} parent=59 // pred_check
          %p435 = pneg %p95
        $region70: #{tpu_custom_call.1} parent=59 // pred_check_branch
          %437 = sbr.rel (%p435) target = $region72
        $region71: #{tpu_custom_call.1} parent=59 // pred_region
          %438 = dma.done [#allocation9], 16
        $region72: #{tpu_custom_call.1} parent=59 // pred_fallthru
          _
        // Predicated region
        $region73: #{tpu_custom_call.1} parent=59 // pred_check
          %p439 = pneg %p116
        $region74: #{tpu_custom_call.1} parent=59 // pred_check_branch
          %441 = sbr.rel (%p439) target = $region76
        $region75: #{tpu_custom_call.1} parent=59 // pred_region
          %442 = dma.done [#allocation12], 2304
        $region76: #{tpu_custom_call.1} parent=59 // pred_fallthru
          _
        // Predicated region
        $region77: #{tpu_custom_call.1} parent=59 // pred_check
          %p443 = pneg %p137
        $region78: #{tpu_custom_call.1} parent=59 // pred_check_branch
          %445 = sbr.rel (%p443) target = $region80
        $region79: #{tpu_custom_call.1} parent=59 // pred_region
          %446 = dma.done [#allocation12], 16
        $region80: #{tpu_custom_call.1} parent=59 // pred_fallthru
          _
        // Predicated region
        $region81: #{tpu_custom_call.1} parent=59 // pred_check
          %p447 = pneg %p158
        $region82: #{tpu_custom_call.1} parent=59 // pred_check_branch
          %449 = sbr.rel (%p447) target = $region84
        $region83: #{tpu_custom_call.1} parent=59 // pred_region
          %450 = dma.done [#allocation15], 1152
        $region84: #{tpu_custom_call.1} parent=59 // pred_fallthru
          _
        // Predicated region
        $region85: #{tpu_custom_call.1} parent=59 // pred_check
          %p451 = pneg %p179
        $region86: #{tpu_custom_call.1} parent=59 // pred_check_branch
          %453 = sbr.rel (%p451) target = $region88
        $region87: #{tpu_custom_call.1} parent=59 // pred_region
          %454 = dma.done [#allocation15], 16
        $region88: #{tpu_custom_call.1} parent=59 // pred_fallthru
          _
        // Predicated region
        $region89: #{tpu_custom_call.1} parent=59 // pred_check
          %p455 = pneg %p200
        $region90: #{tpu_custom_call.1} parent=59 // pred_check_branch
          %457 = sbr.rel (%p455) target = $region92
        $region91: #{tpu_custom_call.1} parent=59 // pred_region
          %458 = dma.done [#allocation18], 256
        $region92: #{tpu_custom_call.1} parent=59 // pred_fallthru
          _
        // Predicated region
        $region93: #{tpu_custom_call.1} parent=59 // pred_check
          %p459 = pneg %p221
        $region94: #{tpu_custom_call.1} parent=59 // pred_check_branch
          %461 = sbr.rel (%p459) target = $region96
        $region95: #{tpu_custom_call.1} parent=59 // pred_region
          %462 = dma.done [#allocation18], 16
        $region96: #{tpu_custom_call.1} parent=59 // pred_fallthru
          _
        // Predicated region
        $region97: #{tpu_custom_call.1} parent=59 // pred_check
          %p463 = pneg %p242
        $region98: #{tpu_custom_call.1} parent=59 // pred_check_branch
          %465 = sbr.rel (%p463) target = $region100
        $region99: #{tpu_custom_call.1} parent=59 // pred_region
          %466 = dma.done [#allocation21], 16
        $region100: #{tpu_custom_call.1} parent=59 // pred_fallthru
          _
        %s467 = sand.u32 %s40, 1
        %s468 = scalar_lea.sflag [#allocation6], %s467
        %s469 = sand.u32 %s40, 1
        %s470 = smul.addr %s469, 256
        %s471 = scalar_lea.vmem [#allocation5], %s470
        %p472 = pneg %p53
        %p473 = pneg %p50
        %p474 = pneg %p74
        %p475 = pneg %p71
        %p476 = pneg %p95
        %p477 = pneg %p92
        %p478 = pneg %p116
        %p479 = pneg %p113
        %p480 = pneg %p137
        %p481 = pneg %p134
        %p482 = pneg %p158
        %p483 = pneg %p155
        %p484 = pneg %p179
        %p485 = pneg %p176
        %p486 = pneg %p200
        %p487 = pneg %p197
        %p488 = pneg %p221
        %p489 = pneg %p218
        %p490 = pneg %p242
        %p491 = pneg %p239
        %p492 = pneg %p268
        %p493 = pneg %p265
        %s494 = sand.u32 %s255, 1
        %s495 = scalar_lea.sflag [#allocation7], %s494
        %s496 = sand.u32 %s255, 1
        %s497 = smul.addr %s496, 32
        %s498 = scalar_lea.vmem [#allocation22], %s497
        %v500 = vld [vmem:[%s426] sm:$0xff]
        %v501 = vld [vmem:[%s426 + $0x8] sm:$0xff]
        %v502 = vld [vmem:[%s426 + $0x10] sm:$0xff]
        %v503 = vld [vmem:[%s426 + $0x18] sm:$0xff]
        %v504 = vld [vmem:[%s426 + $0x20] sm:$0xff]
        %v505 = vld [vmem:[%s426 + $0x28] sm:$0xff]
        %v506 = vld [vmem:[%s426 + $0x30] sm:$0xff]
        %v507 = vld [vmem:[%s426 + $0x38] sm:$0xff]
        %v508 = vld [vmem:[%s426 + $0x40] sm:$0xff]
        %v509 = vld [vmem:[%s426 + $0x48] sm:$0xff]
        %v510 = vld [vmem:[%s426 + $0x50] sm:$0xff]
        %v511 = vld [vmem:[%s426 + $0x58] sm:$0xff]
        %v512 = vld [vmem:[%s426 + $0x60] sm:$0xff]
        %v513 = vld [vmem:[%s426 + $0x68] sm:$0xff]
        %v514 = vld [vmem:[%s426 + $0x70] sm:$0xff]
        %v515 = vld [vmem:[%s426 + $0x78] sm:$0xff]
        %v516 = vld [vmem:[%s426 + $0x80] sm:$0xff]
        %v517 = vld [vmem:[%s426 + $0x88] sm:$0xff]
        %v518 = vld [vmem:[%s426 + $0x90] sm:$0xff]
        %v519 = vld [vmem:[%s426 + $0x98] sm:$0xff]
        %v520 = vld [vmem:[%s426 + $0xa0] sm:$0xff]
        %v521 = vld [vmem:[%s426 + $0xa8] sm:$0xff]
        %v522 = vld [vmem:[%s426 + $0xb0] sm:$0xff]
        %v523 = vld [vmem:[%s426 + $0xb8] sm:$0xff]
        %v524 = vld [vmem:[%s426 + $0xc0] sm:$0xff]
        %v525 = vld [vmem:[%s426 + $0xc8] sm:$0xff]
        %v526 = vld [vmem:[%s426 + $0xd0] sm:$0xff]
        %v527 = vld [vmem:[%s426 + $0xd8] sm:$0xff]
        %v528 = vld [vmem:[%s426 + $0xe0] sm:$0xff]
        %v529 = vld [vmem:[%s426 + $0xe8] sm:$0xff]
        %v530 = vld [vmem:[%s426 + $0xf0] sm:$0xff]
        %v531 = vld [vmem:[%s426 + $0xf8] sm:$0xff]
        %vm532 = vcmask 64512
        %533 = vst.msk [vmem:[#allocation2] sm:$0xff] %vm532, 0.0
        %534 = vst.msk [vmem:[#allocation2 + $0x8] sm:$0xff] %vm532, 0.0
        %535 = vst.msk [vmem:[#allocation2 + $0x10] sm:$0xff] %vm532, 0.0
        %536 = vst.msk [vmem:[#allocation2 + $0x18] sm:$0xff] %vm532, 0.0
        %537 = vst.msk [vmem:[#allocation2 + $0x20] sm:$0xff] %vm532, 0.0
        %538 = vst.msk [vmem:[#allocation2 + $0x28] sm:$0xff] %vm532, 0.0
        %539 = vst.msk [vmem:[#allocation2 + $0x30] sm:$0xff] %vm532, 0.0
        %540 = vst.msk [vmem:[#allocation2 + $0x38] sm:$0xff] %vm532, 0.0
        %541 = vst.msk [vmem:[#allocation2 + $0x40] sm:$0xff] %vm532, 0.0
        %542 = vst.msk [vmem:[#allocation2 + $0x48] sm:$0xff] %vm532, 0.0
        %543 = vst.msk [vmem:[#allocation2 + $0x50] sm:$0xff] %vm532, 0.0
        %544 = vst.msk [vmem:[#allocation2 + $0x58] sm:$0xff] %vm532, 0.0
        %545 = vst.msk [vmem:[#allocation2 + $0x60] sm:$0xff] %vm532, 0.0
        %546 = vst.msk [vmem:[#allocation2 + $0x68] sm:$0xff] %vm532, 0.0
        %547 = vst.msk [vmem:[#allocation2 + $0x70] sm:$0xff] %vm532, 0.0
        %548 = vst.msk [vmem:[#allocation2 + $0x78] sm:$0xff] %vm532, 0.0
        %549 = vst.msk [vmem:[#allocation2 + $0x80] sm:$0xff] %vm532, 0.0
        %550 = vst.msk [vmem:[#allocation2 + $0x88] sm:$0xff] %vm532, 0.0
        %551 = vst.msk [vmem:[#allocation2 + $0x90] sm:$0xff] %vm532, 0.0
        %552 = vst.msk [vmem:[#allocation2 + $0x98] sm:$0xff] %vm532, 0.0
        %553 = vst.msk [vmem:[#allocation2 + $0xa0] sm:$0xff] %vm532, 0.0
        %554 = vst.msk [vmem:[#allocation2 + $0xa8] sm:$0xff] %vm532, 0.0
        %555 = vst.msk [vmem:[#allocation2 + $0xb0] sm:$0xff] %vm532, 0.0
        %556 = vst.msk [vmem:[#allocation2 + $0xb8] sm:$0xff] %vm532, 0.0
        %557 = vst.msk [vmem:[#allocation2 + $0xc0] sm:$0xff] %vm532, 0.0
        %558 = vst.msk [vmem:[#allocation2 + $0xc8] sm:$0xff] %vm532, 0.0
        %559 = vst.msk [vmem:[#allocation2 + $0xd0] sm:$0xff] %vm532, 0.0
        %560 = vst.msk [vmem:[#allocation2 + $0xd8] sm:$0xff] %vm532, 0.0
        %561 = vst.msk [vmem:[#allocation2 + $0xe0] sm:$0xff] %vm532, 0.0
        %562 = vst.msk [vmem:[#allocation2 + $0xe8] sm:$0xff] %vm532, 0.0
        %563 = vst.msk [vmem:[#allocation2 + $0xf0] sm:$0xff] %vm532, 0.0
        %564 = vst.msk [vmem:[#allocation2 + $0xf8] sm:$0xff] %vm532, 0.0
        %565 = vst.msk [vmem:[#allocation2 + $0x100] sm:$0xff] %vm532, 0.0
        %566 = vst.msk [vmem:[#allocation2 + $0x108] sm:$0xff] %vm532, 0.0
        %567 = vst.msk [vmem:[#allocation2 + $0x110] sm:$0xff] %vm532, 0.0
        %568 = vst.msk [vmem:[#allocation2 + $0x118] sm:$0xff] %vm532, 0.0
        %569 = vst.msk [vmem:[#allocation2 + $0x120] sm:$0xff] %vm532, 0.0
        %570 = vst.msk [vmem:[#allocation2 + $0x128] sm:$0xff] %vm532, 0.0
        %571 = vst.msk [vmem:[#allocation2 + $0x130] sm:$0xff] %vm532, 0.0
        %572 = vst.msk [vmem:[#allocation2 + $0x138] sm:$0xff] %vm532, 0.0
        %573 = vst.msk [vmem:[#allocation2 + $0x140] sm:$0xff] %vm532, 0.0
        %574 = vst.msk [vmem:[#allocation2 + $0x148] sm:$0xff] %vm532, 0.0
        %575 = vst.msk [vmem:[#allocation2 + $0x150] sm:$0xff] %vm532, 0.0
        %576 = vst.msk [vmem:[#allocation2 + $0x158] sm:$0xff] %vm532, 0.0
        %577 = vst.msk [vmem:[#allocation2 + $0x160] sm:$0xff] %vm532, 0.0
        %578 = vst.msk [vmem:[#allocation2 + $0x168] sm:$0xff] %vm532, 0.0
        %579 = vst.msk [vmem:[#allocation2 + $0x170] sm:$0xff] %vm532, 0.0
        %580 = vst.msk [vmem:[#allocation2 + $0x178] sm:$0xff] %vm532, 0.0
        %581 = vst.msk [vmem:[#allocation2 + $0x180] sm:$0xff] %vm532, 0.0
        %582 = vst.msk [vmem:[#allocation2 + $0x188] sm:$0xff] %vm532, 0.0
        %583 = vst.msk [vmem:[#allocation2 + $0x190] sm:$0xff] %vm532, 0.0
        %584 = vst.msk [vmem:[#allocation2 + $0x198] sm:$0xff] %vm532, 0.0
        %585 = vst.msk [vmem:[#allocation2 + $0x1a0] sm:$0xff] %vm532, 0.0
        %586 = vst.msk [vmem:[#allocation2 + $0x1a8] sm:$0xff] %vm532, 0.0
        %s587 = scalar_lea.vmem [#allocation2], 24
        %588 = vst.msk [vmem:[%s587 + $0x1] sm:$0xff] %vm532, %v500
        %589 = vst.msk [vmem:[%s587 + $0x9] sm:$0xff] %vm532, %v501
        %590 = vst.msk [vmem:[%s587 + $0x19] sm:$0xff] %vm532, %v502
        %591 = vst.msk [vmem:[%s587 + $0x21] sm:$0xff] %vm532, %v503
        %592 = vst.msk [vmem:[%s587 + $0x31] sm:$0xff] %vm532, %v504
        %593 = vst.msk [vmem:[%s587 + $0x39] sm:$0xff] %vm532, %v505
        %594 = vst.msk [vmem:[%s587 + $0x49] sm:$0xff] %vm532, %v506
        %595 = vst.msk [vmem:[%s587 + $0x51] sm:$0xff] %vm532, %v507
        %596 = vst.msk [vmem:[%s587 + $0x61] sm:$0xff] %vm532, %v508
        %597 = vst.msk [vmem:[%s587 + $0x69] sm:$0xff] %vm532, %v509
        %598 = vst.msk [vmem:[%s587 + $0x79] sm:$0xff] %vm532, %v510
        %599 = vst.msk [vmem:[%s587 + $0x81] sm:$0xff] %vm532, %v511
        %600 = vst.msk [vmem:[%s587 + $0x91] sm:$0xff] %vm532, %v512
        %601 = vst.msk [vmem:[%s587 + $0x99] sm:$0xff] %vm532, %v513
        %602 = vst.msk [vmem:[%s587 + $0xa9] sm:$0xff] %vm532, %v514
        %603 = vst.msk [vmem:[%s587 + $0xb1] sm:$0xff] %vm532, %v515
        %604 = vst.msk [vmem:[%s587 + $0xc1] sm:$0xff] %vm532, %v516
        %605 = vst.msk [vmem:[%s587 + $0xc9] sm:$0xff] %vm532, %v517
        %606 = vst.msk [vmem:[%s587 + $0xd9] sm:$0xff] %vm532, %v518
        %607 = vst.msk [vmem:[%s587 + $0xe1] sm:$0xff] %vm532, %v519
        %608 = vst.msk [vmem:[%s587 + $0xf1] sm:$0xff] %vm532, %v520
        %609 = vst.msk [vmem:[%s587 + $0xf9] sm:$0xff] %vm532, %v521
        %610 = vst.msk [vmem:[%s587 + $0x109] sm:$0xff] %vm532, %v522
        %611 = vst.msk [vmem:[%s587 + $0x111] sm:$0xff] %vm532, %v523
        %612 = vst.msk [vmem:[%s587 + $0x121] sm:$0xff] %vm532, %v524
        %613 = vst.msk [vmem:[%s587 + $0x129] sm:$0xff] %vm532, %v525
        %614 = vst.msk [vmem:[%s587 + $0x139] sm:$0xff] %vm532, %v526
        %615 = vst.msk [vmem:[%s587 + $0x141] sm:$0xff] %vm532, %v527
        %616 = vst.msk [vmem:[%s587 + $0x151] sm:$0xff] %vm532, %v528
        %617 = vst.msk [vmem:[%s587 + $0x159] sm:$0xff] %vm532, %v529
        %618 = vst.msk [vmem:[%s587 + $0x169] sm:$0xff] %vm532, %v530
        %619 = vst.msk [vmem:[%s587 + $0x171] sm:$0xff] %vm532, %v531
        %v620 = vld [vmem:[#allocation8] sm:$0xf]
        %v621 = vld [vmem:[#allocation8 + $0x4] sm:$0xf]
        %v622 = vld [vmem:[#allocation8 + $0x8] sm:$0xf]
        %v623 = vld [vmem:[#allocation8 + $0xc] sm:$0xf]
        %v624 = vld [vmem:[#allocation8 + $0x10] sm:$0xf]
        %v625 = vld [vmem:[#allocation8 + $0x14] sm:$0xf]
        %v626 = vld [vmem:[#allocation8 + $0x18] sm:$0xf]
        %v627 = vld [vmem:[#allocation8 + $0x1c] sm:$0xf]
        %v628 = vld [vmem:[#allocation8 + $0x20] sm:$0xf]
        %v629 = vld [vmem:[#allocation14] sm:$0xff]
        %v630 = vld [vmem:[#allocation14 + $0x8] sm:$0xff]
        %v631 = vld [vmem:[#allocation14 + $0x10] sm:$0xff]
        %v632 = vld [vmem:[#allocation14 + $0x18] sm:$0xff]
        %v633 = vld [vmem:[#allocation14 + $0x20] sm:$0xff]
        %v634 = vld [vmem:[#allocation14 + $0x28] sm:$0xff]
        %v635 = vld [vmem:[#allocation14 + $0x30] sm:$0xff]
        %v636 = vld [vmem:[#allocation14 + $0x38] sm:$0xff]
        %v637 = vld [vmem:[#allocation14 + $0x40] sm:$0xff]
        %v638 = vld [vmem:[#allocation2] sm:$0xff]
        %v639 = vld [vmem:[#allocation2 + $0x8] sm:$0xff]
        %v640 = vld [vmem:[#allocation2 + $0x18] sm:$0xff]
        %v641 = vld [vmem:[#allocation2 + $0x20] sm:$0xff]
        %v642 = vld [vmem:[#allocation2 + $0x30] sm:$0xff]
        %v643 = vld [vmem:[#allocation2 + $0x38] sm:$0xff]
        %v644 = vld [vmem:[#allocation2 + $0x48] sm:$0xff]
        %v645 = vld [vmem:[#allocation2 + $0x50] sm:$0xff]
        %v646 = vld [vmem:[#allocation2 + $0x60] sm:$0xff]
        %v647 = vld [vmem:[#allocation2 + $0x68] sm:$0xff]
        %v648 = vld [vmem:[#allocation2 + $0x78] sm:$0xff]
        %v649 = vld [vmem:[#allocation2 + $0x80] sm:$0xff]
        %v650 = vld [vmem:[#allocation2 + $0x90] sm:$0xff]
        %v651 = vld [vmem:[#allocation2 + $0x98] sm:$0xff]
        %v652 = vld [vmem:[#allocation2 + $0xa8] sm:$0xff]
        %v653 = vld [vmem:[#allocation2 + $0xb0] sm:$0xff]
        %v654 = vld [vmem:[#allocation2 + $0xc0] sm:$0xff]
        %v655 = vld [vmem:[#allocation2 + $0xc8] sm:$0xff]
        %v656 = vld [vmem:[#allocation2 + $0xd8] sm:$0xff]
        %v657 = vld [vmem:[#allocation2 + $0xe0] sm:$0xff]
        %v658 = vld [vmem:[#allocation2 + $0xf0] sm:$0xff]
        %v659 = vld [vmem:[#allocation2 + $0xf8] sm:$0xff]
        %v660 = vld [vmem:[#allocation2 + $0x108] sm:$0xff]
        %v661 = vld [vmem:[#allocation2 + $0x110] sm:$0xff]
        %v662 = vld [vmem:[#allocation2 + $0x120] sm:$0xff]
        %v663 = vld [vmem:[#allocation2 + $0x128] sm:$0xff]
        %v664 = vld [vmem:[#allocation2 + $0x138] sm:$0xff]
        %v665 = vld [vmem:[#allocation2 + $0x140] sm:$0xff]
        %v666 = vld [vmem:[#allocation2 + $0x150] sm:$0xff]
        %v667 = vld [vmem:[#allocation2 + $0x158] sm:$0xff]
        %v668 = vld [vmem:[#allocation2 + $0x168] sm:$0xff]
        %v669 = vld [vmem:[#allocation2 + $0x170] sm:$0xff]
        %v670 = vpack.c.bf16 %v639, %v638
        %v671 = vpack.c.bf16 %v641, %v640
        %v672 = vpack.c.bf16 %v643, %v642
        %v673 = vpack.c.bf16 %v645, %v644
        %v674 = vpack.c.bf16 %v647, %v646
        %v675 = vpack.c.bf16 %v649, %v648
        %v676 = vpack.c.bf16 %v651, %v650
        %v677 = vpack.c.bf16 %v653, %v652
        %v678 = vpack.c.bf16 %v655, %v654
        %v679 = vpack.c.bf16 %v657, %v656
        %v680 = vpack.c.bf16 %v659, %v658
        %v681 = vpack.c.bf16 %v661, %v660
        %v682 = vpack.c.bf16 %v663, %v662
        %v683 = vpack.c.bf16 %v665, %v664
        %v684 = vpack.c.bf16 %v667, %v666
        %v685 = vpack.c.bf16 %v669, %v668
        %v686 = vld [vmem:[#allocation2 + $0x1] sm:$0xff]
        %v687 = vld [vmem:[#allocation2 + $0x9] sm:$0xff]
        %v688 = vld [vmem:[#allocation2 + $0x19] sm:$0xff]
        %v689 = vld [vmem:[#allocation2 + $0x21] sm:$0xff]
        %v690 = vld [vmem:[#allocation2 + $0x31] sm:$0xff]
        %v691 = vld [vmem:[#allocation2 + $0x39] sm:$0xff]
        %v692 = vld [vmem:[#allocation2 + $0x49] sm:$0xff]
        %v693 = vld [vmem:[#allocation2 + $0x51] sm:$0xff]
        %v694 = vld [vmem:[#allocation2 + $0x61] sm:$0xff]
        %v695 = vld [vmem:[#allocation2 + $0x69] sm:$0xff]
        %v696 = vld [vmem:[#allocation2 + $0x79] sm:$0xff]
        %v697 = vld [vmem:[#allocation2 + $0x81] sm:$0xff]
        %v698 = vld [vmem:[#allocation2 + $0x91] sm:$0xff]
        %v699 = vld [vmem:[#allocation2 + $0x99] sm:$0xff]
        %v700 = vld [vmem:[#allocation2 + $0xa9] sm:$0xff]
        %v701 = vld [vmem:[#allocation2 + $0xb1] sm:$0xff]
        %v702 = vld [vmem:[#allocation2 + $0xc1] sm:$0xff]
        %v703 = vld [vmem:[#allocation2 + $0xc9] sm:$0xff]
        %v704 = vld [vmem:[#allocation2 + $0xd9] sm:$0xff]
        %v705 = vld [vmem:[#allocation2 + $0xe1] sm:$0xff]
        %v706 = vld [vmem:[#allocation2 + $0xf1] sm:$0xff]
        %v707 = vld [vmem:[#allocation2 + $0xf9] sm:$0xff]
        %v708 = vld [vmem:[#allocation2 + $0x109] sm:$0xff]
        %v709 = vld [vmem:[#allocation2 + $0x111] sm:$0xff]
        %v710 = vld [vmem:[#allocation2 + $0x121] sm:$0xff]
        %v711 = vld [vmem:[#allocation2 + $0x129] sm:$0xff]
        %v712 = vld [vmem:[#allocation2 + $0x139] sm:$0xff]
        %v713 = vld [vmem:[#allocation2 + $0x141] sm:$0xff]
        %v714 = vld [vmem:[#allocation2 + $0x151] sm:$0xff]
        %v715 = vld [vmem:[#allocation2 + $0x159] sm:$0xff]
        %v716 = vld [vmem:[#allocation2 + $0x169] sm:$0xff]
        %v717 = vld [vmem:[#allocation2 + $0x171] sm:$0xff]
        %v718 = vpack.c.bf16 %v687, %v686
        %v719 = vpack.c.bf16 %v689, %v688
        %v720 = vpack.c.bf16 %v691, %v690
        %v721 = vpack.c.bf16 %v693, %v692
        %v722 = vpack.c.bf16 %v695, %v694
        %v723 = vpack.c.bf16 %v697, %v696
        %v724 = vpack.c.bf16 %v699, %v698
        %v725 = vpack.c.bf16 %v701, %v700
        %v726 = vpack.c.bf16 %v703, %v702
        %v727 = vpack.c.bf16 %v705, %v704
        %v728 = vpack.c.bf16 %v707, %v706
        %v729 = vpack.c.bf16 %v709, %v708
        %v730 = vpack.c.bf16 %v711, %v710
        %v731 = vpack.c.bf16 %v713, %v712
        %v732 = vpack.c.bf16 %v715, %v714
        %v733 = vpack.c.bf16 %v717, %v716
        %v735 = vsel %vm532, %v718, 0
        %v738 = vsel %vm532, %v719, 0
        %v741 = vsel %vm532, %v720, 0
        %v744 = vsel %vm532, %v721, 0
        %v747 = vsel %vm532, %v722, 0
        %v750 = vsel %vm532, %v723, 0
        %v753 = vsel %vm532, %v724, 0
        %v756 = vsel %vm532, %v725, 0
        %v759 = vsel %vm532, %v726, 0
        %v762 = vsel %vm532, %v727, 0
        %v765 = vsel %vm532, %v728, 0
        %v768 = vsel %vm532, %v729, 0
        %v771 = vsel %vm532, %v730, 0
        %v774 = vsel %vm532, %v731, 0
        %v777 = vsel %vm532, %v732, 0
        %v780 = vsel %vm532, %v733, 0
        %vm782 = vcmask 1043456
        %v784 = vsel %vm782, %v621, 0
        %786 = vmatprep.subr.bf16.mxu0 0
        %787 = vmatpush1.bf16.msra.mxu0 %v784
        %788 = vmatprep.subr.bf16.mxu0 0
        %789 = vmatpush1.bf16.msra.mxu0 0
        %790 = vmatprep.subr.bf16.mxu0 0
        %791 = vmatpush1.bf16.msra.mxu0 0
        %792 = vmatprep.subr.bf16.mxu0 0
        %793 = vmatpush1.bf16.msra.mxu0 0
        %794 = vmatprep.subr.bf16.mxu0 0
        %795 = vmatpush1.bf16.msra.mxu0 0
        %796 = vmatprep.subr.bf16.mxu0 0
        %797 = vmatpush1.bf16.msra.mxu0 0
        %798 = vmatprep.subr.bf16.mxu0 0
        %799 = vmatpush1.bf16.msra.mxu0 0
        %800 = vmatprep.subr.bf16.mxu0 0
        %801 = vmatpush1.bf16.msra.mxu0 0
        %802 = vmatprep.subr.bf16.mxu0 0
        %803 = vmatpush1.bf16.msra.mxu0 0
        %804 = vmatprep.subr.bf16.mxu0 0
        %805 = vmatpush1.bf16.msra.mxu0 0
        %806 = vmatprep.subr.bf16.mxu0 0
        %807 = vmatpush1.bf16.msra.mxu0 0
        %808 = vmatprep.subr.bf16.mxu0 0
        %809 = vmatpush1.bf16.msra.mxu0 0
        %810 = vmatprep.subr.bf16.mxu0 0
        %811 = vmatpush1.bf16.msra.mxu0 0
        %812 = vmatprep.subr.bf16.mxu0 0
        %813 = vmatpush1.bf16.msra.mxu0 0
        %814 = vmatprep.subr.bf16.mxu0 0
        %815 = vmatpush1.bf16.msra.mxu0 0
        %816 = vmatprep.subr.bf16.mxu0 0
        %817 = vmatpush1.bf16.msra.mxu0 0
        %818 = vmatprep.mubr.bf16.mxu0 0
        %819 = vmatmul.mubr.bf16.gmra.mrb[0].mxu0 %v735
        %v820 = vpop.f32.mrb[0].mxu0
        %v821 = vadd.f32 0.0, %v820
        %v822 = vpop.f32.mrb[0].mxu0
        %v823 = vpop.f32.mrb[0].mxu0
        %v824 = vadd.f32 0.0, %v823
        %v825 = vpop.f32.mrb[0].mxu0
        %826 = vmatprep.mubr.bf16.mxu0 0
        %827 = vmatmul.mubr.bf16.gmra.mrb[0].mxu0 %v738
        %v828 = vpop.f32.mrb[0].mxu0
        %v829 = vadd.f32 0.0, %v828
        %v830 = vpop.f32.mrb[0].mxu0
        %v831 = vpop.f32.mrb[0].mxu0
        %v832 = vadd.f32 0.0, %v831
        %v833 = vpop.f32.mrb[0].mxu0
        %834 = vmatprep.mubr.bf16.mxu0 0
        %835 = vmatmul.mubr.bf16.gmra.mrb[0].mxu0 %v741
        %v836 = vpop.f32.mrb[0].mxu0
        %v837 = vadd.f32 0.0, %v836
        %v838 = vpop.f32.mrb[0].mxu0
        %v839 = vpop.f32.mrb[0].mxu0
        %v840 = vadd.f32 0.0, %v839
        %v841 = vpop.f32.mrb[0].mxu0
        %842 = vmatprep.mubr.bf16.mxu0 0
        %843 = vmatmul.mubr.bf16.gmra.mrb[0].mxu0 %v744
        %v844 = vpop.f32.mrb[0].mxu0
        %v845 = vadd.f32 0.0, %v844
        %v846 = vpop.f32.mrb[0].mxu0
        %v847 = vpop.f32.mrb[0].mxu0
        %v848 = vadd.f32 0.0, %v847
        %v849 = vpop.f32.mrb[0].mxu0
        %850 = vmatprep.mubr.bf16.mxu0 0
        %851 = vmatmul.mubr.bf16.gmra.mrb[0].mxu0 %v747
        %v852 = vpop.f32.mrb[0].mxu0
        %v853 = vadd.f32 0.0, %v852
        %v854 = vpop.f32.mrb[0].mxu0
        %v855 = vpop.f32.mrb[0].mxu0
        %v856 = vadd.f32 0.0, %v855
        %v857 = vpop.f32.mrb[0].mxu0
        %858 = vmatprep.mubr.bf16.mxu0 0
        %859 = vmatmul.mubr.bf16.gmra.mrb[0].mxu0 %v750
        %v860 = vpop.f32.mrb[0].mxu0
        %v861 = vadd.f32 0.0, %v860
        %v862 = vpop.f32.mrb[0].mxu0
        %v863 = vpop.f32.mrb[0].mxu0
        %v864 = vadd.f32 0.0, %v863
        %v865 = vpop.f32.mrb[0].mxu0
        %866 = vmatprep.mubr.bf16.mxu0 0
        %867 = vmatmul.mubr.bf16.gmra.mrb[0].mxu0 %v753
        %v868 = vpop.f32.mrb[0].mxu0
        %v869 = vadd.f32 0.0, %v868
        %v870 = vpop.f32.mrb[0].mxu0
        %v871 = vpop.f32.mrb[0].mxu0
        %v872 = vadd.f32 0.0, %v871
        %v873 = vpop.f32.mrb[0].mxu0
        %874 = vmatprep.mubr.bf16.mxu0 0
        %875 = vmatmul.mubr.bf16.gmra.mrb[0].mxu0 %v756
        %v876 = vpop.f32.mrb[0].mxu0
        %v877 = vadd.f32 0.0, %v876
        %v878 = vpop.f32.mrb[0].mxu0
        %v879 = vpop.f32.mrb[0].mxu0
        %v880 = vadd.f32 0.0, %v879
        %v881 = vpop.f32.mrb[0].mxu0
        %882 = vmatprep.mubr.bf16.mxu0 0
        %883 = vmatmul.mubr.bf16.gmra.mrb[0].mxu0 %v759
        %v884 = vpop.f32.mrb[0].mxu0
        %v885 = vadd.f32 0.0, %v884
        %v886 = vpop.f32.mrb[0].mxu0
        %v887 = vpop.f32.mrb[0].mxu0
        %v888 = vadd.f32 0.0, %v887
        %v889 = vpop.f32.mrb[0].mxu0
        %890 = vmatprep.mubr.bf16.mxu0 0
        %891 = vmatmul.mubr.bf16.gmra.mrb[0].mxu0 %v762
        %v892 = vpop.f32.mrb[0].mxu0
        %v893 = vadd.f32 0.0, %v892
        %v894 = vpop.f32.mrb[0].mxu0
        %v895 = vpop.f32.mrb[0].mxu0
        %v896 = vadd.f32 0.0, %v895
        %v897 = vpop.f32.mrb[0].mxu0
        %898 = vmatprep.mubr.bf16.mxu0 0
        %899 = vmatmul.mubr.bf16.gmra.mrb[0].mxu0 %v765
        %v900 = vpop.f32.mrb[0].mxu0
        %v901 = vadd.f32 0.0, %v900
        %v902 = vpop.f32.mrb[0].mxu0
        %v903 = vpop.f32.mrb[0].mxu0
        %v904 = vadd.f32 0.0, %v903
        %v905 = vpop.f32.mrb[0].mxu0
        %906 = vmatprep.mubr.bf16.mxu0 0
        %907 = vmatmul.mubr.bf16.gmra.mrb[0].mxu0 %v768
        %v908 = vpop.f32.mrb[0].mxu0
        %v909 = vadd.f32 0.0, %v908
        %v910 = vpop.f32.mrb[0].mxu0
        %v911 = vpop.f32.mrb[0].mxu0
        %v912 = vadd.f32 0.0, %v911
        %v913 = vpop.f32.mrb[0].mxu0
        %914 = vmatprep.mubr.bf16.mxu0 0
        %915 = vmatmul.mubr.bf16.gmra.mrb[0].mxu0 %v771
        %v916 = vpop.f32.mrb[0].mxu0
        %v917 = vadd.f32 0.0, %v916
        %v918 = vpop.f32.mrb[0].mxu0
        %v919 = vpop.f32.mrb[0].mxu0
        %v920 = vadd.f32 0.0, %v919
        %v921 = vpop.f32.mrb[0].mxu0
        %922 = vmatprep.mubr.bf16.mxu0 0
        %923 = vmatmul.mubr.bf16.gmra.mrb[0].mxu0 %v774
        %v924 = vpop.f32.mrb[0].mxu0
        %v925 = vadd.f32 0.0, %v924
        %v926 = vpop.f32.mrb[0].mxu0
        %v927 = vpop.f32.mrb[0].mxu0
        %v928 = vadd.f32 0.0, %v927
        %v929 = vpop.f32.mrb[0].mxu0
        %930 = vmatprep.mubr.bf16.mxu0 0
        %931 = vmatmul.mubr.bf16.gmra.mrb[0].mxu0 %v777
        %v932 = vpop.f32.mrb[0].mxu0
        %v933 = vadd.f32 0.0, %v932
        %v934 = vpop.f32.mrb[0].mxu0
        %v935 = vpop.f32.mrb[0].mxu0
        %v936 = vadd.f32 0.0, %v935
        %v937 = vpop.f32.mrb[0].mxu0
        %938 = vmatprep.mubr.bf16.mxu0 0
        %939 = vmatmul.mubr.bf16.gmra.mrb[0].mxu0 %v780
        %v940 = vpop.f32.mrb[0].mxu0
        %v941 = vadd.f32 0.0, %v940
        %v942 = vpop.f32.mrb[0].mxu0
        %v943 = vpop.f32.mrb[0].mxu0
        %v944 = vadd.f32 0.0, %v943
        %v945 = vpop.f32.mrb[0].mxu0
        %946 = vdwg.mxu0
        %v948 = vsel %vm532, %v670, 0
        %v951 = vsel %vm532, %v671, 0
        %v954 = vsel %vm532, %v672, 0
        %v957 = vsel %vm532, %v673, 0
        %v960 = vsel %vm532, %v674, 0
        %v963 = vsel %vm532, %v675, 0
        %v966 = vsel %vm532, %v676, 0
        %v969 = vsel %vm532, %v677, 0
        %v972 = vsel %vm532, %v678, 0
        %v975 = vsel %vm532, %v679, 0
        %v978 = vsel %vm532, %v680, 0
        %v981 = vsel %vm532, %v681, 0
        %v984 = vsel %vm532, %v682, 0
        %v987 = vsel %vm532, %v683, 0
        %v990 = vsel %vm532, %v684, 0
        %v993 = vsel %vm532, %v685, 0
        %v996 = vsel %vm782, %v620, 0
        %998 = vmatprep.subr.bf16.mxu0 0
        %999 = vmatpush1.bf16.msra.mxu0 %v996
        %1000 = vmatprep.subr.bf16.mxu0 0
        %1001 = vmatpush1.bf16.msra.mxu0 0
        %1002 = vmatprep.subr.bf16.mxu0 0
        %1003 = vmatpush1.bf16.msra.mxu0 0
        %1004 = vmatprep.subr.bf16.mxu0 0
        %1005 = vmatpush1.bf16.msra.mxu0 0
        %1006 = vmatprep.subr.bf16.mxu0 0
        %1007 = vmatpush1.bf16.msra.mxu0 0
        %1008 = vmatprep.subr.bf16.mxu0 0
        %1009 = vmatpush1.bf16.msra.mxu0 0
        %1010 = vmatprep.subr.bf16.mxu0 0
        %1011 = vmatpush1.bf16.msra.mxu0 0
        %1012 = vmatprep.subr.bf16.mxu0 0
        %1013 = vmatpush1.bf16.msra.mxu0 0
        %1014 = vmatprep.subr.bf16.mxu0 0
        %1015 = vmatpush1.bf16.msra.mxu0 0
        %1016 = vmatprep.subr.bf16.mxu0 0
        %1017 = vmatpush1.bf16.msra.mxu0 0
        %1018 = vmatprep.subr.bf16.mxu0 0
        %1019 = vmatpush1.bf16.msra.mxu0 0
        %1020 = vmatprep.subr.bf16.mxu0 0
        %1021 = vmatpush1.bf16.msra.mxu0 0
        %1022 = vmatprep.subr.bf16.mxu0 0
        %1023 = vmatpush1.bf16.msra.mxu0 0
        %1024 = vmatprep.subr.bf16.mxu0 0
        %1025 = vmatpush1.bf16.msra.mxu0 0
        %1026 = vmatprep.subr.bf16.mxu0 0
        %1027 = vmatpush1.bf16.msra.mxu0 0
        %1028 = vmatprep.subr.bf16.mxu0 0
        %1029 = vmatpush1.bf16.msra.mxu0 0
        %1030 = vmatprep.mubr.bf16.mxu0 0
        %1031 = vmatmul.mubr.bf16.gmra.mrb[0].mxu0 %v948
        %v1032 = vpop.f32.mrb[0].mxu0
        %v1033 = vadd.f32 %v821, %v1032
        %v1034 = vpop.f32.mrb[0].mxu0
        %v1035 = vpop.f32.mrb[0].mxu0
        %v1036 = vadd.f32 %v824, %v1035
        %v1037 = vpop.f32.mrb[0].mxu0
        %1038 = vmatprep.mubr.bf16.mxu0 0
        %1039 = vmatmul.mubr.bf16.gmra.mrb[0].mxu0 %v951
        %v1040 = vpop.f32.mrb[0].mxu0
        %v1041 = vadd.f32 %v829, %v1040
        %v1042 = vpop.f32.mrb[0].mxu0
        %v1043 = vpop.f32.mrb[0].mxu0
        %v1044 = vadd.f32 %v832, %v1043
        %v1045 = vpop.f32.mrb[0].mxu0
        %1046 = vmatprep.mubr.bf16.mxu0 0
        %1047 = vmatmul.mubr.bf16.gmra.mrb[0].mxu0 %v954
        %v1048 = vpop.f32.mrb[0].mxu0
        %v1049 = vadd.f32 %v837, %v1048
        %v1050 = vpop.f32.mrb[0].mxu0
        %v1051 = vpop.f32.mrb[0].mxu0
        %v1052 = vadd.f32 %v840, %v1051
        %v1053 = vpop.f32.mrb[0].mxu0
        %1054 = vmatprep.mubr.bf16.mxu0 0
        %1055 = vmatmul.mubr.bf16.gmra.mrb[0].mxu0 %v957
        %v1056 = vpop.f32.mrb[0].mxu0
        %v1057 = vadd.f32 %v845, %v1056
        %v1058 = vpop.f32.mrb[0].mxu0
        %v1059 = vpop.f32.mrb[0].mxu0
        %v1060 = vadd.f32 %v848, %v1059
        %v1061 = vpop.f32.mrb[0].mxu0
        %1062 = vmatprep.mubr.bf16.mxu0 0
        %1063 = vmatmul.mubr.bf16.gmra.mrb[0].mxu0 %v960
        %v1064 = vpop.f32.mrb[0].mxu0
        %v1065 = vadd.f32 %v853, %v1064
        %v1066 = vpop.f32.mrb[0].mxu0
        %v1067 = vpop.f32.mrb[0].mxu0
        %v1068 = vadd.f32 %v856, %v1067
        %v1069 = vpop.f32.mrb[0].mxu0
        %1070 = vmatprep.mubr.bf16.mxu0 0
        %1071 = vmatmul.mubr.bf16.gmra.mrb[0].mxu0 %v963
        %v1072 = vpop.f32.mrb[0].mxu0
        %v1073 = vadd.f32 %v861, %v1072
        %v1074 = vpop.f32.mrb[0].mxu0
        %v1075 = vpop.f32.mrb[0].mxu0
        %v1076 = vadd.f32 %v864, %v1075
        %v1077 = vpop.f32.mrb[0].mxu0
        %1078 = vmatprep.mubr.bf16.mxu0 0
        %1079 = vmatmul.mubr.bf16.gmra.mrb[0].mxu0 %v966
        %v1080 = vpop.f32.mrb[0].mxu0
        %v1081 = vadd.f32 %v869, %v1080
        %v1082 = vpop.f32.mrb[0].mxu0
        %v1083 = vpop.f32.mrb[0].mxu0
        %v1084 = vadd.f32 %v872, %v1083
        %v1085 = vpop.f32.mrb[0].mxu0
        %1086 = vmatprep.mubr.bf16.mxu0 0
        %1087 = vmatmul.mubr.bf16.gmra.mrb[0].mxu0 %v969
        %v1088 = vpop.f32.mrb[0].mxu0
        %v1089 = vadd.f32 %v877, %v1088
        %v1090 = vpop.f32.mrb[0].mxu0
        %v1091 = vpop.f32.mrb[0].mxu0
        %v1092 = vadd.f32 %v880, %v1091
        %v1093 = vpop.f32.mrb[0].mxu0
        %1094 = vmatprep.mubr.bf16.mxu0 0
        %1095 = vmatmul.mubr.bf16.gmra.mrb[0].mxu0 %v972
        %v1096 = vpop.f32.mrb[0].mxu0
        %v1097 = vadd.f32 %v885, %v1096
        %v1098 = vpop.f32.mrb[0].mxu0
        %v1099 = vpop.f32.mrb[0].mxu0
        %v1100 = vadd.f32 %v888, %v1099
        %v1101 = vpop.f32.mrb[0].mxu0
        %1102 = vmatprep.mubr.bf16.mxu0 0
        %1103 = vmatmul.mubr.bf16.gmra.mrb[0].mxu0 %v975
        %v1104 = vpop.f32.mrb[0].mxu0
        %v1105 = vadd.f32 %v893, %v1104
        %v1106 = vpop.f32.mrb[0].mxu0
        %v1107 = vpop.f32.mrb[0].mxu0
        %v1108 = vadd.f32 %v896, %v1107
        %v1109 = vpop.f32.mrb[0].mxu0
        %1110 = vmatprep.mubr.bf16.mxu0 0
        %1111 = vmatmul.mubr.bf16.gmra.mrb[0].mxu0 %v978
        %v1112 = vpop.f32.mrb[0].mxu0
        %v1113 = vadd.f32 %v901, %v1112
        %v1114 = vpop.f32.mrb[0].mxu0
        %v1115 = vpop.f32.mrb[0].mxu0
        %v1116 = vadd.f32 %v904, %v1115
        %v1117 = vpop.f32.mrb[0].mxu0
        %1118 = vmatprep.mubr.bf16.mxu0 0
        %1119 = vmatmul.mubr.bf16.gmra.mrb[0].mxu0 %v981
        %v1120 = vpop.f32.mrb[0].mxu0
        %v1121 = vadd.f32 %v909, %v1120
        %v1122 = vpop.f32.mrb[0].mxu0
        %v1123 = vpop.f32.mrb[0].mxu0
        %v1124 = vadd.f32 %v912, %v1123
        %v1125 = vpop.f32.mrb[0].mxu0
        %1126 = vmatprep.mubr.bf16.mxu0 0
        %1127 = vmatmul.mubr.bf16.gmra.mrb[0].mxu0 %v984
        %v1128 = vpop.f32.mrb[0].mxu0
        %v1129 = vadd.f32 %v917, %v1128
        %v1130 = vpop.f32.mrb[0].mxu0
        %v1131 = vpop.f32.mrb[0].mxu0
        %v1132 = vadd.f32 %v920, %v1131
        %v1133 = vpop.f32.mrb[0].mxu0
        %1134 = vmatprep.mubr.bf16.mxu0 0
        %1135 = vmatmul.mubr.bf16.gmra.mrb[0].mxu0 %v987
        %v1136 = vpop.f32.mrb[0].mxu0
        %v1137 = vadd.f32 %v925, %v1136
        %v1138 = vpop.f32.mrb[0].mxu0
        %v1139 = vpop.f32.mrb[0].mxu0
        %v1140 = vadd.f32 %v928, %v1139
        %v1141 = vpop.f32.mrb[0].mxu0
        %1142 = vmatprep.mubr.bf16.mxu0 0
        %1143 = vmatmul.mubr.bf16.gmra.mrb[0].mxu0 %v990
        %v1144 = vpop.f32.mrb[0].mxu0
        %v1145 = vadd.f32 %v933, %v1144
        %v1146 = vpop.f32.mrb[0].mxu0
        %v1147 = vpop.f32.mrb[0].mxu0
        %v1148 = vadd.f32 %v936, %v1147
        %v1149 = vpop.f32.mrb[0].mxu0
        %1150 = vmatprep.mubr.bf16.mxu0 0
        %1151 = vmatmul.mubr.bf16.gmra.mrb[0].mxu0 %v993
        %v1152 = vpop.f32.mrb[0].mxu0
        %v1153 = vadd.f32 %v941, %v1152
        %v1154 = vpop.f32.mrb[0].mxu0
        %v1155 = vpop.f32.mrb[0].mxu0
        %v1156 = vadd.f32 %v944, %v1155
        %v1157 = vpop.f32.mrb[0].mxu0
        %1158 = vdwg.mxu0
        %v1160 = vsel %vm532, %v686, 0
        %v1163 = vsel %vm532, %v687, 0
        %v1166 = vsel %vm532, %v688, 0
        %v1169 = vsel %vm532, %v689, 0
        %v1172 = vsel %vm532, %v690, 0
        %v1175 = vsel %vm532, %v691, 0
        %v1178 = vsel %vm532, %v692, 0
        %v1181 = vsel %vm532, %v693, 0
        %v1184 = vsel %vm532, %v694, 0
        %v1187 = vsel %vm532, %v695, 0
        %v1190 = vsel %vm532, %v696, 0
        %v1193 = vsel %vm532, %v697, 0
        %v1196 = vsel %vm532, %v698, 0
        %v1199 = vsel %vm532, %v699, 0
        %v1202 = vsel %vm532, %v700, 0
        %v1205 = vsel %vm532, %v701, 0
        %v1208 = vsel %vm532, %v702, 0
        %v1211 = vsel %vm532, %v703, 0
        %v1214 = vsel %vm532, %v704, 0
        %v1217 = vsel %vm532, %v705, 0
        %v1220 = vsel %vm532, %v706, 0
        %v1223 = vsel %vm532, %v707, 0
        %v1226 = vsel %vm532, %v708, 0
        %v1229 = vsel %vm532, %v709, 0
        %v1232 = vsel %vm532, %v710, 0
        %v1235 = vsel %vm532, %v711, 0
        %v1238 = vsel %vm532, %v712, 0
        %v1241 = vsel %vm532, %v713, 0
        %v1244 = vsel %vm532, %v714, 0
        %v1247 = vsel %vm532, %v715, 0
        %v1250 = vsel %vm532, %v716, 0
        %v1253 = vsel %vm532, %v717, 0
        %1255 = vmatprep.subr.mxu0 0.0
        %1256 = vmatpush1.msra.mxu0 %v630
        %1257 = vmatprep.subr.mxu0 0.0
        %1258 = vmatpush1.msra.mxu0 0.0
        %1259 = vmatprep.subr.mxu0 0.0
        %1260 = vmatpush1.msra.mxu0 0.0
        %1261 = vmatprep.subr.mxu0 0.0
        %1262 = vmatpush1.msra.mxu0 0.0
        %1263 = vmatprep.subr.mxu0 0.0
        %1264 = vmatpush1.msra.mxu0 0.0
        %1265 = vmatprep.subr.mxu0 0.0
        %1266 = vmatpush1.msra.mxu0 0.0
        %1267 = vmatprep.subr.mxu0 0.0
        %1268 = vmatpush1.msra.mxu0 0.0
        %1269 = vmatprep.subr.mxu0 0.0
        %1270 = vmatpush1.msra.mxu0 0.0
        %1271 = vmatprep.subr.mxu0 0.0
        %1272 = vmatpush1.msra.mxu0 0.0
        %1273 = vmatprep.subr.mxu0 0.0
        %1274 = vmatpush1.msra.mxu0 0.0
        %1275 = vmatprep.subr.mxu0 0.0
        %1276 = vmatpush1.msra.mxu0 0.0
        %1277 = vmatprep.subr.mxu0 0.0
        %1278 = vmatpush1.msra.mxu0 0.0
        %1279 = vmatprep.subr.mxu0 0.0
        %1280 = vmatpush1.msra.mxu0 0.0
        %1281 = vmatprep.subr.mxu0 0.0
        %1282 = vmatpush1.msra.mxu0 0.0
        %1283 = vmatprep.subr.mxu0 0.0
        %1284 = vmatpush1.msra.mxu0 0.0
        %1285 = vmatprep.subr.mxu0 0.0
        %1286 = vmatpush1.msra.mxu0 0.0
        %1287 = vmatprep.subr.mxu0 0.0
        %1288 = vmatpush1.msra.mxu0 0.0
        %1289 = vmatprep.subr.mxu0 0.0
        %1290 = vmatpush1.msra.mxu0 0.0
        %1291 = vmatprep.subr.mxu0 0.0
        %1292 = vmatpush1.msra.mxu0 0.0
        %1293 = vmatprep.subr.mxu0 0.0
        %1294 = vmatpush1.msra.mxu0 0.0
        %1295 = vmatprep.subr.mxu0 0.0
        %1296 = vmatpush1.msra.mxu0 0.0
        %1297 = vmatprep.subr.mxu0 0.0
        %1298 = vmatpush1.msra.mxu0 0.0
        %1299 = vmatprep.subr.mxu0 0.0
        %1300 = vmatpush1.msra.mxu0 0.0
        %1301 = vmatprep.subr.mxu0 0.0
        %1302 = vmatpush1.msra.mxu0 0.0
        %1303 = vmatprep.subr.mxu0 0.0
        %1304 = vmatpush1.msra.mxu0 0.0
        %1305 = vmatprep.subr.mxu0 0.0
        %1306 = vmatpush1.msra.mxu0 0.0
        %1307 = vmatprep.subr.mxu0 0.0
        %1308 = vmatpush1.msra.mxu0 0.0
        %1309 = vmatprep.subr.mxu0 0.0
        %1310 = vmatpush1.msra.mxu0 0.0
        %1311 = vmatprep.subr.mxu0 0.0
        %1312 = vmatpush1.msra.mxu0 0.0
        %1313 = vmatprep.subr.mxu0 0.0
        %1314 = vmatpush1.msra.mxu0 0.0
        %1315 = vmatprep.subr.mxu0 0.0
        %1316 = vmatpush1.msra.mxu0 0.0
        %1317 = vmatprep.subr.mxu0 0.0
        %1318 = vmatpush1.msra.mxu0 0.0
        %1319 = vmatprep.mubr.f32.mxu0 0.0
        %1320 = vmatmul.mubr.f32.gmra.mrb[0].mxu0 %v1160
        %v1321 = vpop.f32.mrb[0].mxu0
        %v1322 = vadd.f32 0.0, %v1321
        %v1323 = vpop.f32.mrb[0].mxu0
        %1324 = vmatprep.mubr.f32.mxu0 0.0
        %1325 = vmatmul.mubr.f32.gmra.mrb[0].mxu0 %v1163
        %v1326 = vpop.f32.mrb[0].mxu0
        %v1327 = vadd.f32 0.0, %v1326
        %v1328 = vpop.f32.mrb[0].mxu0
        %1329 = vmatprep.mubr.f32.mxu0 0.0
        %1330 = vmatmul.mubr.f32.gmra.mrb[0].mxu0 %v1166
        %v1331 = vpop.f32.mrb[0].mxu0
        %v1332 = vadd.f32 0.0, %v1331
        %v1333 = vpop.f32.mrb[0].mxu0
        %1334 = vmatprep.mubr.f32.mxu0 0.0
        %1335 = vmatmul.mubr.f32.gmra.mrb[0].mxu0 %v1169
        %v1336 = vpop.f32.mrb[0].mxu0
        %v1337 = vadd.f32 0.0, %v1336
        %v1338 = vpop.f32.mrb[0].mxu0
        %1339 = vmatprep.mubr.f32.mxu0 0.0
        %1340 = vmatmul.mubr.f32.gmra.mrb[0].mxu0 %v1172
        %v1341 = vpop.f32.mrb[0].mxu0
        %v1342 = vadd.f32 0.0, %v1341
        %v1343 = vpop.f32.mrb[0].mxu0
        %1344 = vmatprep.mubr.f32.mxu0 0.0
        %1345 = vmatmul.mubr.f32.gmra.mrb[0].mxu0 %v1175
        %v1346 = vpop.f32.mrb[0].mxu0
        %v1347 = vadd.f32 0.0, %v1346
        %v1348 = vpop.f32.mrb[0].mxu0
        %1349 = vmatprep.mubr.f32.mxu0 0.0
        %1350 = vmatmul.mubr.f32.gmra.mrb[0].mxu0 %v1178
        %v1351 = vpop.f32.mrb[0].mxu0
        %v1352 = vadd.f32 0.0, %v1351
        %v1353 = vpop.f32.mrb[0].mxu0
        %1354 = vmatprep.mubr.f32.mxu0 0.0
        %1355 = vmatmul.mubr.f32.gmra.mrb[0].mxu0 %v1181
        %v1356 = vpop.f32.mrb[0].mxu0
        %v1357 = vadd.f32 0.0, %v1356
        %v1358 = vpop.f32.mrb[0].mxu0
        %1359 = vmatprep.mubr.f32.mxu0 0.0
        %1360 = vmatmul.mubr.f32.gmra.mrb[0].mxu0 %v1184
        %v1361 = vpop.f32.mrb[0].mxu0
        %v1362 = vadd.f32 0.0, %v1361
        %v1363 = vpop.f32.mrb[0].mxu0
        %1364 = vmatprep.mubr.f32.mxu0 0.0
        %1365 = vmatmul.mubr.f32.gmra.mrb[0].mxu0 %v1187
        %v1366 = vpop.f32.mrb[0].mxu0
        %v1367 = vadd.f32 0.0, %v1366
        %v1368 = vpop.f32.mrb[0].mxu0
        %1369 = vmatprep.mubr.f32.mxu0 0.0
        %1370 = vmatmul.mubr.f32.gmra.mrb[0].mxu0 %v1190
        %v1371 = vpop.f32.mrb[0].mxu0
        %v1372 = vadd.f32 0.0, %v1371
        %v1373 = vpop.f32.mrb[0].mxu0
        %1374 = vmatprep.mubr.f32.mxu0 0.0
        %1375 = vmatmul.mubr.f32.gmra.mrb[0].mxu0 %v1193
        %v1376 = vpop.f32.mrb[0].mxu0
        %v1377 = vadd.f32 0.0, %v1376
        %v1378 = vpop.f32.mrb[0].mxu0
        %1379 = vmatprep.mubr.f32.mxu0 0.0
        %1380 = vmatmul.mubr.f32.gmra.mrb[0].mxu0 %v1196
        %v1381 = vpop.f32.mrb[0].mxu0
        %v1382 = vadd.f32 0.0, %v1381
        %v1383 = vpop.f32.mrb[0].mxu0
        %1384 = vmatprep.mubr.f32.mxu0 0.0
        %1385 = vmatmul.mubr.f32.gmra.mrb[0].mxu0 %v1199
        %v1386 = vpop.f32.mrb[0].mxu0
        %v1387 = vadd.f32 0.0, %v1386
        %v1388 = vpop.f32.mrb[0].mxu0
        %1389 = vmatprep.mubr.f32.mxu0 0.0
        %1390 = vmatmul.mubr.f32.gmra.mrb[0].mxu0 %v1202
        %v1391 = vpop.f32.mrb[0].mxu0
        %v1392 = vadd.f32 0.0, %v1391
        %v1393 = vpop.f32.mrb[0].mxu0
        %1394 = vmatprep.mubr.f32.mxu0 0.0
        %1395 = vmatmul.mubr.f32.gmra.mrb[0].mxu0 %v1205
        %v1396 = vpop.f32.mrb[0].mxu0
        %v1397 = vadd.f32 0.0, %v1396
        %v1398 = vpop.f32.mrb[0].mxu0
        %1399 = vmatprep.mubr.f32.mxu0 0.0
        %1400 = vmatmul.mubr.f32.gmra.mrb[0].mxu0 %v1208
        %v1401 = vpop.f32.mrb[0].mxu0
        %v1402 = vadd.f32 0.0, %v1401
        %v1403 = vpop.f32.mrb[0].mxu0
        %1404 = vmatprep.mubr.f32.mxu0 0.0
        %1405 = vmatmul.mubr.f32.gmra.mrb[0].mxu0 %v1211
        %v1406 = vpop.f32.mrb[0].mxu0
        %v1407 = vadd.f32 0.0, %v1406
        %v1408 = vpop.f32.mrb[0].mxu0
        %1409 = vmatprep.mubr.f32.mxu0 0.0
        %1410 = vmatmul.mubr.f32.gmra.mrb[0].mxu0 %v1214
        %v1411 = vpop.f32.mrb[0].mxu0
        %v1412 = vadd.f32 0.0, %v1411
        %v1413 = vpop.f32.mrb[0].mxu0
        %1414 = vmatprep.mubr.f32.mxu0 0.0
        %1415 = vmatmul.mubr.f32.gmra.mrb[0].mxu0 %v1217
        %v1416 = vpop.f32.mrb[0].mxu0
        %v1417 = vadd.f32 0.0, %v1416
        %v1418 = vpop.f32.mrb[0].mxu0
        %1419 = vmatprep.mubr.f32.mxu0 0.0
        %1420 = vmatmul.mubr.f32.gmra.mrb[0].mxu0 %v1220
        %v1421 = vpop.f32.mrb[0].mxu0
        %v1422 = vadd.f32 0.0, %v1421
        %v1423 = vpop.f32.mrb[0].mxu0
        %1424 = vmatprep.mubr.f32.mxu0 0.0
        %1425 = vmatmul.mubr.f32.gmra.mrb[0].mxu0 %v1223
        %v1426 = vpop.f32.mrb[0].mxu0
        %v1427 = vadd.f32 0.0, %v1426
        %v1428 = vpop.f32.mrb[0].mxu0
        %1429 = vmatprep.mubr.f32.mxu0 0.0
        %1430 = vmatmul.mubr.f32.gmra.mrb[0].mxu0 %v1226
        %v1431 = vpop.f32.mrb[0].mxu0
        %v1432 = vadd.f32 0.0, %v1431
        %v1433 = vpop.f32.mrb[0].mxu0
        %1434 = vmatprep.mubr.f32.mxu0 0.0
        %1435 = vmatmul.mubr.f32.gmra.mrb[0].mxu0 %v1229
        %v1436 = vpop.f32.mrb[0].mxu0
        %v1437 = vadd.f32 0.0, %v1436
        %v1438 = vpop.f32.mrb[0].mxu0
        %1439 = vmatprep.mubr.f32.mxu0 0.0
        %1440 = vmatmul.mubr.f32.gmra.mrb[0].mxu0 %v1232
        %v1441 = vpop.f32.mrb[0].mxu0
        %v1442 = vadd.f32 0.0, %v1441
        %v1443 = vpop.f32.mrb[0].mxu0
        %1444 = vmatprep.mubr.f32.mxu0 0.0
        %1445 = vmatmul.mubr.f32.gmra.mrb[0].mxu0 %v1235
        %v1446 = vpop.f32.mrb[0].mxu0
        %v1447 = vadd.f32 0.0, %v1446
        %v1448 = vpop.f32.mrb[0].mxu0
        %1449 = vmatprep.mubr.f32.mxu0 0.0
        %1450 = vmatmul.mubr.f32.gmra.mrb[0].mxu0 %v1238
        %v1451 = vpop.f32.mrb[0].mxu0
        %v1452 = vadd.f32 0.0, %v1451
        %v1453 = vpop.f32.mrb[0].mxu0
        %1454 = vmatprep.mubr.f32.mxu0 0.0
        %1455 = vmatmul.mubr.f32.gmra.mrb[0].mxu0 %v1241
        %v1456 = vpop.f32.mrb[0].mxu0
        %v1457 = vadd.f32 0.0, %v1456
        %v1458 = vpop.f32.mrb[0].mxu0
        %1459 = vmatprep.mubr.f32.mxu0 0.0
        %1460 = vmatmul.mubr.f32.gmra.mrb[0].mxu0 %v1244
        %v1461 = vpop.f32.mrb[0].mxu0
        %v1462 = vadd.f32 0.0, %v1461
        %v1463 = vpop.f32.mrb[0].mxu0
        %1464 = vmatprep.mubr.f32.mxu0 0.0
        %1465 = vmatmul.mubr.f32.gmra.mrb[0].mxu0 %v1247
        %v1466 = vpop.f32.mrb[0].mxu0
        %v1467 = vadd.f32 0.0, %v1466
        %v1468 = vpop.f32.mrb[0].mxu0
        %1469 = vmatprep.mubr.f32.mxu0 0.0
        %1470 = vmatmul.mubr.f32.gmra.mrb[0].mxu0 %v1250
        %v1471 = vpop.f32.mrb[0].mxu0
        %v1472 = vadd.f32 0.0, %v1471
        %v1473 = vpop.f32.mrb[0].mxu0
        %1474 = vmatprep.mubr.f32.mxu0 0.0
        %1475 = vmatmul.mubr.f32.gmra.mrb[0].mxu0 %v1253
        %v1476 = vpop.f32.mrb[0].mxu0
        %v1477 = vadd.f32 0.0, %v1476
        %v1478 = vpop.f32.mrb[0].mxu0
        %1479 = vdwg.mxu0
        %v1481 = vsel %vm532, %v638, 0
        %v1484 = vsel %vm532, %v639, 0
        %v1487 = vsel %vm532, %v640, 0
        %v1490 = vsel %vm532, %v641, 0
        %v1493 = vsel %vm532, %v642, 0
        %v1496 = vsel %vm532, %v643, 0
        %v1499 = vsel %vm532, %v644, 0
        %v1502 = vsel %vm532, %v645, 0
        %v1505 = vsel %vm532, %v646, 0
        %v1508 = vsel %vm532, %v647, 0
        %v1511 = vsel %vm532, %v648, 0
        %v1514 = vsel %vm532, %v649, 0
        %v1517 = vsel %vm532, %v650, 0
        %v1520 = vsel %vm532, %v651, 0
        %v1523 = vsel %vm532, %v652, 0
        %v1526 = vsel %vm532, %v653, 0
        %v1529 = vsel %vm532, %v654, 0
        %v1532 = vsel %vm532, %v655, 0
        %v1535 = vsel %vm532, %v656, 0
        %v1538 = vsel %vm532, %v657, 0
        %v1541 = vsel %vm532, %v658, 0
        %v1544 = vsel %vm532, %v659, 0
        %v1547 = vsel %vm532, %v660, 0
        %v1550 = vsel %vm532, %v661, 0
        %v1553 = vsel %vm532, %v662, 0
        %v1556 = vsel %vm532, %v663, 0
        %v1559 = vsel %vm532, %v664, 0
        %v1562 = vsel %vm532, %v665, 0
        %v1565 = vsel %vm532, %v666, 0
        %v1568 = vsel %vm532, %v667, 0
        %v1571 = vsel %vm532, %v668, 0
        %v1574 = vsel %vm532, %v669, 0
        %1576 = vmatprep.subr.mxu0 0.0
        %1577 = vmatpush1.msra.mxu0 %v629
        %1578 = vmatprep.subr.mxu0 0.0
        %1579 = vmatpush1.msra.mxu0 0.0
        %1580 = vmatprep.subr.mxu0 0.0
        %1581 = vmatpush1.msra.mxu0 0.0
        %1582 = vmatprep.subr.mxu0 0.0
        %1583 = vmatpush1.msra.mxu0 0.0
        %1584 = vmatprep.subr.mxu0 0.0
        %1585 = vmatpush1.msra.mxu0 0.0
        %1586 = vmatprep.subr.mxu0 0.0
        %1587 = vmatpush1.msra.mxu0 0.0
        %1588 = vmatprep.subr.mxu0 0.0
        %1589 = vmatpush1.msra.mxu0 0.0
        %1590 = vmatprep.subr.mxu0 0.0
        %1591 = vmatpush1.msra.mxu0 0.0
        %1592 = vmatprep.subr.mxu0 0.0
        %1593 = vmatpush1.msra.mxu0 0.0
        %1594 = vmatprep.subr.mxu0 0.0
        %1595 = vmatpush1.msra.mxu0 0.0
        %1596 = vmatprep.subr.mxu0 0.0
        %1597 = vmatpush1.msra.mxu0 0.0
        %1598 = vmatprep.subr.mxu0 0.0
        %1599 = vmatpush1.msra.mxu0 0.0
        %1600 = vmatprep.subr.mxu0 0.0
        %1601 = vmatpush1.msra.mxu0 0.0
        %1602 = vmatprep.subr.mxu0 0.0
        %1603 = vmatpush1.msra.mxu0 0.0
        %1604 = vmatprep.subr.mxu0 0.0
        %1605 = vmatpush1.msra.mxu0 0.0
        %1606 = vmatprep.subr.mxu0 0.0
        %1607 = vmatpush1.msra.mxu0 0.0
        %1608 = vmatprep.subr.mxu0 0.0
        %1609 = vmatpush1.msra.mxu0 0.0
        %1610 = vmatprep.subr.mxu0 0.0
        %1611 = vmatpush1.msra.mxu0 0.0
        %1612 = vmatprep.subr.mxu0 0.0
        %1613 = vmatpush1.msra.mxu0 0.0
        %1614 = vmatprep.subr.mxu0 0.0
        %1615 = vmatpush1.msra.mxu0 0.0
        %1616 = vmatprep.subr.mxu0 0.0
        %1617 = vmatpush1.msra.mxu0 0.0
        %1618 = vmatprep.subr.mxu0 0.0
        %1619 = vmatpush1.msra.mxu0 0.0
        %1620 = vmatprep.subr.mxu0 0.0
        %1621 = vmatpush1.msra.mxu0 0.0
        %1622 = vmatprep.subr.mxu0 0.0
        %1623 = vmatpush1.msra.mxu0 0.0
        %1624 = vmatprep.subr.mxu0 0.0
        %1625 = vmatpush1.msra.mxu0 0.0
        %1626 = vmatprep.subr.mxu0 0.0
        %1627 = vmatpush1.msra.mxu0 0.0
        %1628 = vmatprep.subr.mxu0 0.0
        %1629 = vmatpush1.msra.mxu0 0.0
        %1630 = vmatprep.subr.mxu0 0.0
        %1631 = vmatpush1.msra.mxu0 0.0
        %1632 = vmatprep.subr.mxu0 0.0
        %1633 = vmatpush1.msra.mxu0 0.0
        %1634 = vmatprep.subr.mxu0 0.0
        %1635 = vmatpush1.msra.mxu0 0.0
        %1636 = vmatprep.subr.mxu0 0.0
        %1637 = vmatpush1.msra.mxu0 0.0
        %1638 = vmatprep.subr.mxu0 0.0
        %1639 = vmatpush1.msra.mxu0 0.0
        %1640 = vmatprep.mubr.f32.mxu0 0.0
        %1641 = vmatmul.mubr.f32.gmra.mrb[0].mxu0 %v1481
        %v1642 = vpop.f32.mrb[0].mxu0
        %v1643 = vadd.f32 %v1322, %v1642
        %v1644 = vpop.f32.mrb[0].mxu0
        %1645 = vmatprep.mubr.f32.mxu0 0.0
        %1646 = vmatmul.mubr.f32.gmra.mrb[0].mxu0 %v1484
        %v1647 = vpop.f32.mrb[0].mxu0
        %v1648 = vadd.f32 %v1327, %v1647
        %v1649 = vpop.f32.mrb[0].mxu0
        %1650 = vmatprep.mubr.f32.mxu0 0.0
        %1651 = vmatmul.mubr.f32.gmra.mrb[0].mxu0 %v1487
        %v1652 = vpop.f32.mrb[0].mxu0
        %v1653 = vadd.f32 %v1332, %v1652
        %v1654 = vpop.f32.mrb[0].mxu0
        %1655 = vmatprep.mubr.f32.mxu0 0.0
        %1656 = vmatmul.mubr.f32.gmra.mrb[0].mxu0 %v1490
        %v1657 = vpop.f32.mrb[0].mxu0
        %v1658 = vadd.f32 %v1337, %v1657
        %v1659 = vpop.f32.mrb[0].mxu0
        %1660 = vmatprep.mubr.f32.mxu0 0.0
        %1661 = vmatmul.mubr.f32.gmra.mrb[0].mxu0 %v1493
        %v1662 = vpop.f32.mrb[0].mxu0
        %v1663 = vadd.f32 %v1342, %v1662
        %v1664 = vpop.f32.mrb[0].mxu0
        %1665 = vmatprep.mubr.f32.mxu0 0.0
        %1666 = vmatmul.mubr.f32.gmra.mrb[0].mxu0 %v1496
        %v1667 = vpop.f32.mrb[0].mxu0
        %v1668 = vadd.f32 %v1347, %v1667
        %v1669 = vpop.f32.mrb[0].mxu0
        %1670 = vmatprep.mubr.f32.mxu0 0.0
        %1671 = vmatmul.mubr.f32.gmra.mrb[0].mxu0 %v1499
        %v1672 = vpop.f32.mrb[0].mxu0
        %v1673 = vadd.f32 %v1352, %v1672
        %v1674 = vpop.f32.mrb[0].mxu0
        %1675 = vmatprep.mubr.f32.mxu0 0.0
        %1676 = vmatmul.mubr.f32.gmra.mrb[0].mxu0 %v1502
        %v1677 = vpop.f32.mrb[0].mxu0
        %v1678 = vadd.f32 %v1357, %v1677
        %v1679 = vpop.f32.mrb[0].mxu0
        %1680 = vmatprep.mubr.f32.mxu0 0.0
        %1681 = vmatmul.mubr.f32.gmra.mrb[0].mxu0 %v1505
        %v1682 = vpop.f32.mrb[0].mxu0
        %v1683 = vadd.f32 %v1362, %v1682
        %v1684 = vpop.f32.mrb[0].mxu0
        %1685 = vmatprep.mubr.f32.mxu0 0.0
        %1686 = vmatmul.mubr.f32.gmra.mrb[0].mxu0 %v1508
        %v1687 = vpop.f32.mrb[0].mxu0
        %v1688 = vadd.f32 %v1367, %v1687
        %v1689 = vpop.f32.mrb[0].mxu0
        %1690 = vmatprep.mubr.f32.mxu0 0.0
        %1691 = vmatmul.mubr.f32.gmra.mrb[0].mxu0 %v1511
        %v1692 = vpop.f32.mrb[0].mxu0
        %v1693 = vadd.f32 %v1372, %v1692
        %v1694 = vpop.f32.mrb[0].mxu0
        %1695 = vmatprep.mubr.f32.mxu0 0.0
        %1696 = vmatmul.mubr.f32.gmra.mrb[0].mxu0 %v1514
        %v1697 = vpop.f32.mrb[0].mxu0
        %v1698 = vadd.f32 %v1377, %v1697
        %v1699 = vpop.f32.mrb[0].mxu0
        %1700 = vmatprep.mubr.f32.mxu0 0.0
        %1701 = vmatmul.mubr.f32.gmra.mrb[0].mxu0 %v1517
        %v1702 = vpop.f32.mrb[0].mxu0
        %v1703 = vadd.f32 %v1382, %v1702
        %v1704 = vpop.f32.mrb[0].mxu0
        %1705 = vmatprep.mubr.f32.mxu0 0.0
        %1706 = vmatmul.mubr.f32.gmra.mrb[0].mxu0 %v1520
        %v1707 = vpop.f32.mrb[0].mxu0
        %v1708 = vadd.f32 %v1387, %v1707
        %v1709 = vpop.f32.mrb[0].mxu0
        %1710 = vmatprep.mubr.f32.mxu0 0.0
        %1711 = vmatmul.mubr.f32.gmra.mrb[0].mxu0 %v1523
        %v1712 = vpop.f32.mrb[0].mxu0
        %v1713 = vadd.f32 %v1392, %v1712
        %v1714 = vpop.f32.mrb[0].mxu0
        %1715 = vmatprep.mubr.f32.mxu0 0.0
        %1716 = vmatmul.mubr.f32.gmra.mrb[0].mxu0 %v1526
        %v1717 = vpop.f32.mrb[0].mxu0
        %v1718 = vadd.f32 %v1397, %v1717
        %v1719 = vpop.f32.mrb[0].mxu0
        %1720 = vmatprep.mubr.f32.mxu0 0.0
        %1721 = vmatmul.mubr.f32.gmra.mrb[0].mxu0 %v1529
        %v1722 = vpop.f32.mrb[0].mxu0
        %v1723 = vadd.f32 %v1402, %v1722
        %v1724 = vpop.f32.mrb[0].mxu0
        %1725 = vmatprep.mubr.f32.mxu0 0.0
        %1726 = vmatmul.mubr.f32.gmra.mrb[0].mxu0 %v1532
        %v1727 = vpop.f32.mrb[0].mxu0
        %v1728 = vadd.f32 %v1407, %v1727
        %v1729 = vpop.f32.mrb[0].mxu0
        %1730 = vmatprep.mubr.f32.mxu0 0.0
        %1731 = vmatmul.mubr.f32.gmra.mrb[0].mxu0 %v1535
        %v1732 = vpop.f32.mrb[0].mxu0
        %v1733 = vadd.f32 %v1412, %v1732
        %v1734 = vpop.f32.mrb[0].mxu0
        %1735 = vmatprep.mubr.f32.mxu0 0.0
        %1736 = vmatmul.mubr.f32.gmra.mrb[0].mxu0 %v1538
        %v1737 = vpop.f32.mrb[0].mxu0
        %v1738 = vadd.f32 %v1417, %v1737
        %v1739 = vpop.f32.mrb[0].mxu0
        %1740 = vmatprep.mubr.f32.mxu0 0.0
        %1741 = vmatmul.mubr.f32.gmra.mrb[0].mxu0 %v1541
        %v1742 = vpop.f32.mrb[0].mxu0
        %v1743 = vadd.f32 %v1422, %v1742
        %v1744 = vpop.f32.mrb[0].mxu0
        %1745 = vmatprep.mubr.f32.mxu0 0.0
        %1746 = vmatmul.mubr.f32.gmra.mrb[0].mxu0 %v1544
        %v1747 = vpop.f32.mrb[0].mxu0
        %v1748 = vadd.f32 %v1427, %v1747
        %v1749 = vpop.f32.mrb[0].mxu0
        %1750 = vmatprep.mubr.f32.mxu0 0.0
        %1751 = vmatmul.mubr.f32.gmra.mrb[0].mxu0 %v1547
        %v1752 = vpop.f32.mrb[0].mxu0
        %v1753 = vadd.f32 %v1432, %v1752
        %v1754 = vpop.f32.mrb[0].mxu0
        %1755 = vmatprep.mubr.f32.mxu0 0.0
        %1756 = vmatmul.mubr.f32.gmra.mrb[0].mxu0 %v1550
        %v1757 = vpop.f32.mrb[0].mxu0
        %v1758 = vadd.f32 %v1437, %v1757
        %v1759 = vpop.f32.mrb[0].mxu0
        %1760 = vmatprep.mubr.f32.mxu0 0.0
        %1761 = vmatmul.mubr.f32.gmra.mrb[0].mxu0 %v1553
        %v1762 = vpop.f32.mrb[0].mxu0
        %v1763 = vadd.f32 %v1442, %v1762
        %v1764 = vpop.f32.mrb[0].mxu0
        %1765 = vmatprep.mubr.f32.mxu0 0.0
        %1766 = vmatmul.mubr.f32.gmra.mrb[0].mxu0 %v1556
        %v1767 = vpop.f32.mrb[0].mxu0
        %v1768 = vadd.f32 %v1447, %v1767
        %v1769 = vpop.f32.mrb[0].mxu0
        %1770 = vmatprep.mubr.f32.mxu0 0.0
        %1771 = vmatmul.mubr.f32.gmra.mrb[0].mxu0 %v1559
        %v1772 = vpop.f32.mrb[0].mxu0
        %v1773 = vadd.f32 %v1452, %v1772
        %v1774 = vpop.f32.mrb[0].mxu0
        %1775 = vmatprep.mubr.f32.mxu0 0.0
        %1776 = vmatmul.mubr.f32.gmra.mrb[0].mxu0 %v1562
        %v1777 = vpop.f32.mrb[0].mxu0
        %v1778 = vadd.f32 %v1457, %v1777
        %v1779 = vpop.f32.mrb[0].mxu0
        %1780 = vmatprep.mubr.f32.mxu0 0.0
        %1781 = vmatmul.mubr.f32.gmra.mrb[0].mxu0 %v1565
        %v1782 = vpop.f32.mrb[0].mxu0
        %v1783 = vadd.f32 %v1462, %v1782
        %v1784 = vpop.f32.mrb[0].mxu0
        %1785 = vmatprep.mubr.f32.mxu0 0.0
        %1786 = vmatmul.mubr.f32.gmra.mrb[0].mxu0 %v1568
        %v1787 = vpop.f32.mrb[0].mxu0
        %v1788 = vadd.f32 %v1467, %v1787
        %v1789 = vpop.f32.mrb[0].mxu0
        %1790 = vmatprep.mubr.f32.mxu0 0.0
        %1791 = vmatmul.mubr.f32.gmra.mrb[0].mxu0 %v1571
        %v1792 = vpop.f32.mrb[0].mxu0
        %v1793 = vadd.f32 %v1472, %v1792
        %v1794 = vpop.f32.mrb[0].mxu0
        %1795 = vmatprep.mubr.f32.mxu0 0.0
        %1796 = vmatmul.mubr.f32.gmra.mrb[0].mxu0 %v1574
        %v1797 = vpop.f32.mrb[0].mxu0
        %v1798 = vadd.f32 %v1477, %v1797
        %v1799 = vpop.f32.mrb[0].mxu0
        %1800 = vdwg.mxu0
        %v1801 = vld [vmem:[#allocation2 + $0x2] sm:$0xff]
        %v1802 = vld [vmem:[#allocation2 + $0xa] sm:$0xff]
        %v1803 = vld [vmem:[#allocation2 + $0x1a] sm:$0xff]
        %v1804 = vld [vmem:[#allocation2 + $0x22] sm:$0xff]
        %v1805 = vld [vmem:[#allocation2 + $0x32] sm:$0xff]
        %v1806 = vld [vmem:[#allocation2 + $0x3a] sm:$0xff]
        %v1807 = vld [vmem:[#allocation2 + $0x4a] sm:$0xff]
        %v1808 = vld [vmem:[#allocation2 + $0x52] sm:$0xff]
        %v1809 = vld [vmem:[#allocation2 + $0x62] sm:$0xff]
        %v1810 = vld [vmem:[#allocation2 + $0x6a] sm:$0xff]
        %v1811 = vld [vmem:[#allocation2 + $0x7a] sm:$0xff]
        %v1812 = vld [vmem:[#allocation2 + $0x82] sm:$0xff]
        %v1813 = vld [vmem:[#allocation2 + $0x92] sm:$0xff]
        %v1814 = vld [vmem:[#allocation2 + $0x9a] sm:$0xff]
        %v1815 = vld [vmem:[#allocation2 + $0xaa] sm:$0xff]
        %v1816 = vld [vmem:[#allocation2 + $0xb2] sm:$0xff]
        %v1817 = vld [vmem:[#allocation2 + $0xc2] sm:$0xff]
        %v1818 = vld [vmem:[#allocation2 + $0xca] sm:$0xff]
        %v1819 = vld [vmem:[#allocation2 + $0xda] sm:$0xff]
        %v1820 = vld [vmem:[#allocation2 + $0xe2] sm:$0xff]
        %v1821 = vld [vmem:[#allocation2 + $0xf2] sm:$0xff]
        %v1822 = vld [vmem:[#allocation2 + $0xfa] sm:$0xff]
        %v1823 = vld [vmem:[#allocation2 + $0x10a] sm:$0xff]
        %v1824 = vld [vmem:[#allocation2 + $0x112] sm:$0xff]
        %v1825 = vld [vmem:[#allocation2 + $0x122] sm:$0xff]
        %v1826 = vld [vmem:[#allocation2 + $0x12a] sm:$0xff]
        %v1827 = vld [vmem:[#allocation2 + $0x13a] sm:$0xff]
        %v1828 = vld [vmem:[#allocation2 + $0x142] sm:$0xff]
        %v1829 = vld [vmem:[#allocation2 + $0x152] sm:$0xff]
        %v1830 = vld [vmem:[#allocation2 + $0x15a] sm:$0xff]
        %v1831 = vld [vmem:[#allocation2 + $0x16a] sm:$0xff]
        %v1832 = vld [vmem:[#allocation2 + $0x172] sm:$0xff]
        %v1833 = vpack.c.bf16 %v1802, %v1801
        %v1834 = vpack.c.bf16 %v1804, %v1803
        %v1835 = vpack.c.bf16 %v1806, %v1805
        %v1836 = vpack.c.bf16 %v1808, %v1807
        %v1837 = vpack.c.bf16 %v1810, %v1809
        %v1838 = vpack.c.bf16 %v1812, %v1811
        %v1839 = vpack.c.bf16 %v1814, %v1813
        %v1840 = vpack.c.bf16 %v1816, %v1815
        %v1841 = vpack.c.bf16 %v1818, %v1817
        %v1842 = vpack.c.bf16 %v1820, %v1819
        %v1843 = vpack.c.bf16 %v1822, %v1821
        %v1844 = vpack.c.bf16 %v1824, %v1823
        %v1845 = vpack.c.bf16 %v1826, %v1825
        %v1846 = vpack.c.bf16 %v1828, %v1827
        %v1847 = vpack.c.bf16 %v1830, %v1829
        %v1848 = vpack.c.bf16 %v1832, %v1831
        %v1850 = vsel %vm532, %v1833, 0
        %v1853 = vsel %vm532, %v1834, 0
        %v1856 = vsel %vm532, %v1835, 0
        %v1859 = vsel %vm532, %v1836, 0
        %v1862 = vsel %vm532, %v1837, 0
        %v1865 = vsel %vm532, %v1838, 0
        %v1868 = vsel %vm532, %v1839, 0
        %v1871 = vsel %vm532, %v1840, 0
        %v1874 = vsel %vm532, %v1841, 0
        %v1877 = vsel %vm532, %v1842, 0
        %v1880 = vsel %vm532, %v1843, 0
        %v1883 = vsel %vm532, %v1844, 0
        %v1886 = vsel %vm532, %v1845, 0
        %v1889 = vsel %vm532, %v1846, 0
        %v1892 = vsel %vm532, %v1847, 0
        %v1895 = vsel %vm532, %v1848, 0
        %v1898 = vsel %vm782, %v622, 0
        %1900 = vmatprep.subr.bf16.mxu0 0
        %1901 = vmatpush1.bf16.msra.mxu0 %v1898
        %1902 = vmatprep.subr.bf16.mxu0 0
        %1903 = vmatpush1.bf16.msra.mxu0 0
        %1904 = vmatprep.subr.bf16.mxu0 0
        %1905 = vmatpush1.bf16.msra.mxu0 0
        %1906 = vmatprep.subr.bf16.mxu0 0
        %1907 = vmatpush1.bf16.msra.mxu0 0
        %1908 = vmatprep.subr.bf16.mxu0 0
        %1909 = vmatpush1.bf16.msra.mxu0 0
        %1910 = vmatprep.subr.bf16.mxu0 0
        %1911 = vmatpush1.bf16.msra.mxu0 0
        %1912 = vmatprep.subr.bf16.mxu0 0
        %1913 = vmatpush1.bf16.msra.mxu0 0
        %1914 = vmatprep.subr.bf16.mxu0 0
        %1915 = vmatpush1.bf16.msra.mxu0 0
        %1916 = vmatprep.subr.bf16.mxu0 0
        %1917 = vmatpush1.bf16.msra.mxu0 0
        %1918 = vmatprep.subr.bf16.mxu0 0
        %1919 = vmatpush1.bf16.msra.mxu0 0
        %1920 = vmatprep.subr.bf16.mxu0 0
        %1921 = vmatpush1.bf16.msra.mxu0 0
        %1922 = vmatprep.subr.bf16.mxu0 0
        %1923 = vmatpush1.bf16.msra.mxu0 0
        %1924 = vmatprep.subr.bf16.mxu0 0
        %1925 = vmatpush1.bf16.msra.mxu0 0
        %1926 = vmatprep.subr.bf16.mxu0 0
        %1927 = vmatpush1.bf16.msra.mxu0 0
        %1928 = vmatprep.subr.bf16.mxu0 0
        %1929 = vmatpush1.bf16.msra.mxu0 0
        %1930 = vmatprep.subr.bf16.mxu0 0
        %1931 = vmatpush1.bf16.msra.mxu0 0
        %1932 = vmatprep.mubr.bf16.mxu0 0
        %1933 = vmatmul.mubr.bf16.gmra.mrb[0].mxu0 %v1850
        %v1934 = vpop.f32.mrb[0].mxu0
        %v1935 = vadd.f32 0.0, %v1934
        %v1936 = vpop.f32.mrb[0].mxu0
        %v1937 = vpop.f32.mrb[0].mxu0
        %v1938 = vadd.f32 0.0, %v1937
        %v1939 = vpop.f32.mrb[0].mxu0
        %1940 = vmatprep.mubr.bf16.mxu0 0
        %1941 = vmatmul.mubr.bf16.gmra.mrb[0].mxu0 %v1853
        %v1942 = vpop.f32.mrb[0].mxu0
        %v1943 = vadd.f32 0.0, %v1942
        %v1944 = vpop.f32.mrb[0].mxu0
        %v1945 = vpop.f32.mrb[0].mxu0
        %v1946 = vadd.f32 0.0, %v1945
        %v1947 = vpop.f32.mrb[0].mxu0
        %1948 = vmatprep.mubr.bf16.mxu0 0
        %1949 = vmatmul.mubr.bf16.gmra.mrb[0].mxu0 %v1856
        %v1950 = vpop.f32.mrb[0].mxu0
        %v1951 = vadd.f32 0.0, %v1950
        %v1952 = vpop.f32.mrb[0].mxu0
        %v1953 = vpop.f32.mrb[0].mxu0
        %v1954 = vadd.f32 0.0, %v1953
        %v1955 = vpop.f32.mrb[0].mxu0
        %1956 = vmatprep.mubr.bf16.mxu0 0
        %1957 = vmatmul.mubr.bf16.gmra.mrb[0].mxu0 %v1859
        %v1958 = vpop.f32.mrb[0].mxu0
        %v1959 = vadd.f32 0.0, %v1958
        %v1960 = vpop.f32.mrb[0].mxu0
        %v1961 = vpop.f32.mrb[0].mxu0
        %v1962 = vadd.f32 0.0, %v1961
        %v1963 = vpop.f32.mrb[0].mxu0
        %1964 = vmatprep.mubr.bf16.mxu0 0
        %1965 = vmatmul.mubr.bf16.gmra.mrb[0].mxu0 %v1862
        %v1966 = vpop.f32.mrb[0].mxu0
        %v1967 = vadd.f32 0.0, %v1966
        %v1968 = vpop.f32.mrb[0].mxu0
        %v1969 = vpop.f32.mrb[0].mxu0
        %v1970 = vadd.f32 0.0, %v1969
        %v1971 = vpop.f32.mrb[0].mxu0
        %1972 = vmatprep.mubr.bf16.mxu0 0
        %1973 = vmatmul.mubr.bf16.gmra.mrb[0].mxu0 %v1865
        %v1974 = vpop.f32.mrb[0].mxu0
        %v1975 = vadd.f32 0.0, %v1974
        %v1976 = vpop.f32.mrb[0].mxu0
        %v1977 = vpop.f32.mrb[0].mxu0
        %v1978 = vadd.f32 0.0, %v1977
        %v1979 = vpop.f32.mrb[0].mxu0
        %1980 = vmatprep.mubr.bf16.mxu0 0
        %1981 = vmatmul.mubr.bf16.gmra.mrb[0].mxu0 %v1868
        %v1982 = vpop.f32.mrb[0].mxu0
        %v1983 = vadd.f32 0.0, %v1982
        %v1984 = vpop.f32.mrb[0].mxu0
        %v1985 = vpop.f32.mrb[0].mxu0
        %v1986 = vadd.f32 0.0, %v1985
        %v1987 = vpop.f32.mrb[0].mxu0
        %1988 = vmatprep.mubr.bf16.mxu0 0
        %1989 = vmatmul.mubr.bf16.gmra.mrb[0].mxu0 %v1871
        %v1990 = vpop.f32.mrb[0].mxu0
        %v1991 = vadd.f32 0.0, %v1990
        %v1992 = vpop.f32.mrb[0].mxu0
        %v1993 = vpop.f32.mrb[0].mxu0
        %v1994 = vadd.f32 0.0, %v1993
        %v1995 = vpop.f32.mrb[0].mxu0
        %1996 = vmatprep.mubr.bf16.mxu0 0
        %1997 = vmatmul.mubr.bf16.gmra.mrb[0].mxu0 %v1874
        %v1998 = vpop.f32.mrb[0].mxu0
        %v1999 = vadd.f32 0.0, %v1998
        %v2000 = vpop.f32.mrb[0].mxu0
        %v2001 = vpop.f32.mrb[0].mxu0
        %v2002 = vadd.f32 0.0, %v2001
        %v2003 = vpop.f32.mrb[0].mxu0
        %2004 = vmatprep.mubr.bf16.mxu0 0
        %2005 = vmatmul.mubr.bf16.gmra.mrb[0].mxu0 %v1877
        %v2006 = vpop.f32.mrb[0].mxu0
        %v2007 = vadd.f32 0.0, %v2006
        %v2008 = vpop.f32.mrb[0].mxu0
        %v2009 = vpop.f32.mrb[0].mxu0
        %v2010 = vadd.f32 0.0, %v2009
        %v2011 = vpop.f32.mrb[0].mxu0
        %2012 = vmatprep.mubr.bf16.mxu0 0
        %2013 = vmatmul.mubr.bf16.gmra.mrb[0].mxu0 %v1880
        %v2014 = vpop.f32.mrb[0].mxu0
        %v2015 = vadd.f32 0.0, %v2014
        %v2016 = vpop.f32.mrb[0].mxu0
        %v2017 = vpop.f32.mrb[0].mxu0
        %v2018 = vadd.f32 0.0, %v2017
        %v2019 = vpop.f32.mrb[0].mxu0
        %2020 = vmatprep.mubr.bf16.mxu0 0
        %2021 = vmatmul.mubr.bf16.gmra.mrb[0].mxu0 %v1883
        %v2022 = vpop.f32.mrb[0].mxu0
        %v2023 = vadd.f32 0.0, %v2022
        %v2024 = vpop.f32.mrb[0].mxu0
        %v2025 = vpop.f32.mrb[0].mxu0
        %v2026 = vadd.f32 0.0, %v2025
        %v2027 = vpop.f32.mrb[0].mxu0
        %2028 = vmatprep.mubr.bf16.mxu0 0
        %2029 = vmatmul.mubr.bf16.gmra.mrb[0].mxu0 %v1886
        %v2030 = vpop.f32.mrb[0].mxu0
        %v2031 = vadd.f32 0.0, %v2030
        %v2032 = vpop.f32.mrb[0].mxu0
        %v2033 = vpop.f32.mrb[0].mxu0
        %v2034 = vadd.f32 0.0, %v2033
        %v2035 = vpop.f32.mrb[0].mxu0
        %2036 = vmatprep.mubr.bf16.mxu0 0
        %2037 = vmatmul.mubr.bf16.gmra.mrb[0].mxu0 %v1889
        %v2038 = vpop.f32.mrb[0].mxu0
        %v2039 = vadd.f32 0.0, %v2038
        %v2040 = vpop.f32.mrb[0].mxu0
        %v2041 = vpop.f32.mrb[0].mxu0
        %v2042 = vadd.f32 0.0, %v2041
        %v2043 = vpop.f32.mrb[0].mxu0
        %2044 = vmatprep.mubr.bf16.mxu0 0
        %2045 = vmatmul.mubr.bf16.gmra.mrb[0].mxu0 %v1892
        %v2046 = vpop.f32.mrb[0].mxu0
        %v2047 = vadd.f32 0.0, %v2046
        %v2048 = vpop.f32.mrb[0].mxu0
        %v2049 = vpop.f32.mrb[0].mxu0
        %v2050 = vadd.f32 0.0, %v2049
        %v2051 = vpop.f32.mrb[0].mxu0
        %2052 = vmatprep.mubr.bf16.mxu0 0
        %2053 = vmatmul.mubr.bf16.gmra.mrb[0].mxu0 %v1895
        %v2054 = vpop.f32.mrb[0].mxu0
        %v2055 = vadd.f32 0.0, %v2054
        %v2056 = vpop.f32.mrb[0].mxu0
        %v2057 = vpop.f32.mrb[0].mxu0
        %v2058 = vadd.f32 0.0, %v2057
        %v2059 = vpop.f32.mrb[0].mxu0
        %2060 = vdwg.mxu0
        %v2061 = vadd.f32 %v1033, %v1935
        %v2062 = vadd.f32 %v1036, %v1938
        %v2063 = vadd.f32 %v1041, %v1943
        %v2064 = vadd.f32 %v1044, %v1946
        %v2065 = vadd.f32 %v1049, %v1951
        %v2066 = vadd.f32 %v1052, %v1954
        %v2067 = vadd.f32 %v1057, %v1959
        %v2068 = vadd.f32 %v1060, %v1962
        %v2069 = vadd.f32 %v1065, %v1967
        %v2070 = vadd.f32 %v1068, %v1970
        %v2071 = vadd.f32 %v1073, %v1975
        %v2072 = vadd.f32 %v1076, %v1978
        %v2073 = vadd.f32 %v1081, %v1983
        %v2074 = vadd.f32 %v1084, %v1986
        %v2075 = vadd.f32 %v1089, %v1991
        %v2076 = vadd.f32 %v1092, %v1994
        %v2077 = vadd.f32 %v1097, %v1999
        %v2078 = vadd.f32 %v1100, %v2002
        %v2079 = vadd.f32 %v1105, %v2007
        %v2080 = vadd.f32 %v1108, %v2010
        %v2081 = vadd.f32 %v1113, %v2015
        %v2082 = vadd.f32 %v1116, %v2018
        %v2083 = vadd.f32 %v1121, %v2023
        %v2084 = vadd.f32 %v1124, %v2026
        %v2085 = vadd.f32 %v1129, %v2031
        %v2086 = vadd.f32 %v1132, %v2034
        %v2087 = vadd.f32 %v1137, %v2039
        %v2088 = vadd.f32 %v1140, %v2042
        %v2089 = vadd.f32 %v1145, %v2047
        %v2090 = vadd.f32 %v1148, %v2050
        %v2091 = vadd.f32 %v1153, %v2055
        %v2092 = vadd.f32 %v1156, %v2058
        %v2094 = vsel %vm532, %v1801, 0
        %v2097 = vsel %vm532, %v1802, 0
        %v2100 = vsel %vm532, %v1803, 0
        %v2103 = vsel %vm532, %v1804, 0
        %v2106 = vsel %vm532, %v1805, 0
        %v2109 = vsel %vm532, %v1806, 0
        %v2112 = vsel %vm532, %v1807, 0
        %v2115 = vsel %vm532, %v1808, 0
        %v2118 = vsel %vm532, %v1809, 0
        %v2121 = vsel %vm532, %v1810, 0
        %v2124 = vsel %vm532, %v1811, 0
        %v2127 = vsel %vm532, %v1812, 0
        %v2130 = vsel %vm532, %v1813, 0
        %v2133 = vsel %vm532, %v1814, 0
        %v2136 = vsel %vm532, %v1815, 0
        %v2139 = vsel %vm532, %v1816, 0
        %v2142 = vsel %vm532, %v1817, 0
        %v2145 = vsel %vm532, %v1818, 0
        %v2148 = vsel %vm532, %v1819, 0
        %v2151 = vsel %vm532, %v1820, 0
        %v2154 = vsel %vm532, %v1821, 0
        %v2157 = vsel %vm532, %v1822, 0
        %v2160 = vsel %vm532, %v1823, 0
        %v2163 = vsel %vm532, %v1824, 0
        %v2166 = vsel %vm532, %v1825, 0
        %v2169 = vsel %vm532, %v1826, 0
        %v2172 = vsel %vm532, %v1827, 0
        %v2175 = vsel %vm532, %v1828, 0
        %v2178 = vsel %vm532, %v1829, 0
        %v2181 = vsel %vm532, %v1830, 0
        %v2184 = vsel %vm532, %v1831, 0
        %v2187 = vsel %vm532, %v1832, 0
        %2189 = vmatprep.subr.mxu0 0.0
        %2190 = vmatpush1.msra.mxu0 %v631
        %2191 = vmatprep.subr.mxu0 0.0
        %2192 = vmatpush1.msra.mxu0 0.0
        %2193 = vmatprep.subr.mxu0 0.0
        %2194 = vmatpush1.msra.mxu0 0.0
        %2195 = vmatprep.subr.mxu0 0.0
        %2196 = vmatpush1.msra.mxu0 0.0
        %2197 = vmatprep.subr.mxu0 0.0
        %2198 = vmatpush1.msra.mxu0 0.0
        %2199 = vmatprep.subr.mxu0 0.0
        %2200 = vmatpush1.msra.mxu0 0.0
        %2201 = vmatprep.subr.mxu0 0.0
        %2202 = vmatpush1.msra.mxu0 0.0
        %2203 = vmatprep.subr.mxu0 0.0
        %2204 = vmatpush1.msra.mxu0 0.0
        %2205 = vmatprep.subr.mxu0 0.0
        %2206 = vmatpush1.msra.mxu0 0.0
        %2207 = vmatprep.subr.mxu0 0.0
        %2208 = vmatpush1.msra.mxu0 0.0
        %2209 = vmatprep.subr.mxu0 0.0
        %2210 = vmatpush1.msra.mxu0 0.0
        %2211 = vmatprep.subr.mxu0 0.0
        %2212 = vmatpush1.msra.mxu0 0.0
        %2213 = vmatprep.subr.mxu0 0.0
        %2214 = vmatpush1.msra.mxu0 0.0
        %2215 = vmatprep.subr.mxu0 0.0
        %2216 = vmatpush1.msra.mxu0 0.0
        %2217 = vmatprep.subr.mxu0 0.0
        %2218 = vmatpush1.msra.mxu0 0.0
        %2219 = vmatprep.subr.mxu0 0.0
        %2220 = vmatpush1.msra.mxu0 0.0
        %2221 = vmatprep.subr.mxu0 0.0
        %2222 = vmatpush1.msra.mxu0 0.0
        %2223 = vmatprep.subr.mxu0 0.0
        %2224 = vmatpush1.msra.mxu0 0.0
        %2225 = vmatprep.subr.mxu0 0.0
        %2226 = vmatpush1.msra.mxu0 0.0
        %2227 = vmatprep.subr.mxu0 0.0
        %2228 = vmatpush1.msra.mxu0 0.0
        %2229 = vmatprep.subr.mxu0 0.0
        %2230 = vmatpush1.msra.mxu0 0.0
        %2231 = vmatprep.subr.mxu0 0.0
        %2232 = vmatpush1.msra.mxu0 0.0
        %2233 = vmatprep.subr.mxu0 0.0
        %2234 = vmatpush1.msra.mxu0 0.0
        %2235 = vmatprep.subr.mxu0 0.0
        %2236 = vmatpush1.msra.mxu0 0.0
        %2237 = vmatprep.subr.mxu0 0.0
        %2238 = vmatpush1.msra.mxu0 0.0
        %2239 = vmatprep.subr.mxu0 0.0
        %2240 = vmatpush1.msra.mxu0 0.0
        %2241 = vmatprep.subr.mxu0 0.0
        %2242 = vmatpush1.msra.mxu0 0.0
        %2243 = vmatprep.subr.mxu0 0.0
        %2244 = vmatpush1.msra.mxu0 0.0
        %2245 = vmatprep.subr.mxu0 0.0
        %2246 = vmatpush1.msra.mxu0 0.0
        %2247 = vmatprep.subr.mxu0 0.0
        %2248 = vmatpush1.msra.mxu0 0.0
        %2249 = vmatprep.subr.mxu0 0.0
        %2250 = vmatpush1.msra.mxu0 0.0
        %2251 = vmatprep.subr.mxu0 0.0
        %2252 = vmatpush1.msra.mxu0 0.0
        %2253 = vmatprep.mubr.f32.mxu0 0.0
        %2254 = vmatmul.mubr.f32.gmra.mrb[0].mxu0 %v2094
        %v2255 = vpop.f32.mrb[0].mxu0
        %v2256 = vadd.f32 0.0, %v2255
        %v2257 = vpop.f32.mrb[0].mxu0
        %2258 = vmatprep.mubr.f32.mxu0 0.0
        %2259 = vmatmul.mubr.f32.gmra.mrb[0].mxu0 %v2097
        %v2260 = vpop.f32.mrb[0].mxu0
        %v2261 = vadd.f32 0.0, %v2260
        %v2262 = vpop.f32.mrb[0].mxu0
        %2263 = vmatprep.mubr.f32.mxu0 0.0
        %2264 = vmatmul.mubr.f32.gmra.mrb[0].mxu0 %v2100
        %v2265 = vpop.f32.mrb[0].mxu0
        %v2266 = vadd.f32 0.0, %v2265
        %v2267 = vpop.f32.mrb[0].mxu0
        %2268 = vmatprep.mubr.f32.mxu0 0.0
        %2269 = vmatmul.mubr.f32.gmra.mrb[0].mxu0 %v2103
        %v2270 = vpop.f32.mrb[0].mxu0
        %v2271 = vadd.f32 0.0, %v2270
        %v2272 = vpop.f32.mrb[0].mxu0
        %2273 = vmatprep.mubr.f32.mxu0 0.0
        %2274 = vmatmul.mubr.f32.gmra.mrb[0].mxu0 %v2106
        %v2275 = vpop.f32.mrb[0].mxu0
        %v2276 = vadd.f32 0.0, %v2275
        %v2277 = vpop.f32.mrb[0].mxu0
        %2278 = vmatprep.mubr.f32.mxu0 0.0
        %2279 = vmatmul.mubr.f32.gmra.mrb[0].mxu0 %v2109
        %v2280 = vpop.f32.mrb[0].mxu0
        %v2281 = vadd.f32 0.0, %v2280
        %v2282 = vpop.f32.mrb[0].mxu0
        %2283 = vmatprep.mubr.f32.mxu0 0.0
        %2284 = vmatmul.mubr.f32.gmra.mrb[0].mxu0 %v2112
        %v2285 = vpop.f32.mrb[0].mxu0
        %v2286 = vadd.f32 0.0, %v2285
        %v2287 = vpop.f32.mrb[0].mxu0
        %2288 = vmatprep.mubr.f32.mxu0 0.0
        %2289 = vmatmul.mubr.f32.gmra.mrb[0].mxu0 %v2115
        %v2290 = vpop.f32.mrb[0].mxu0
        %v2291 = vadd.f32 0.0, %v2290
        %v2292 = vpop.f32.mrb[0].mxu0
        %2293 = vmatprep.mubr.f32.mxu0 0.0
        %2294 = vmatmul.mubr.f32.gmra.mrb[0].mxu0 %v2118
        %v2295 = vpop.f32.mrb[0].mxu0
        %v2296 = vadd.f32 0.0, %v2295
        %v2297 = vpop.f32.mrb[0].mxu0
        %2298 = vmatprep.mubr.f32.mxu0 0.0
        %2299 = vmatmul.mubr.f32.gmra.mrb[0].mxu0 %v2121
        %v2300 = vpop.f32.mrb[0].mxu0
        %v2301 = vadd.f32 0.0, %v2300
        %v2302 = vpop.f32.mrb[0].mxu0
        %2303 = vmatprep.mubr.f32.mxu0 0.0
        %2304 = vmatmul.mubr.f32.gmra.mrb[0].mxu0 %v2124
        %v2305 = vpop.f32.mrb[0].mxu0
        %v2306 = vadd.f32 0.0, %v2305
        %v2307 = vpop.f32.mrb[0].mxu0
        %2308 = vmatprep.mubr.f32.mxu0 0.0
        %2309 = vmatmul.mubr.f32.gmra.mrb[0].mxu0 %v2127
        %v2310 = vpop.f32.mrb[0].mxu0
        %v2311 = vadd.f32 0.0, %v2310
        %v2312 = vpop.f32.mrb[0].mxu0
        %2313 = vmatprep.mubr.f32.mxu0 0.0
        %2314 = vmatmul.mubr.f32.gmra.mrb[0].mxu0 %v2130
        %v2315 = vpop.f32.mrb[0].mxu0
        %v2316 = vadd.f32 0.0, %v2315
        %v2317 = vpop.f32.mrb[0].mxu0
        %2318 = vmatprep.mubr.f32.mxu0 0.0
        %2319 = vmatmul.mubr.f32.gmra.mrb[0].mxu0 %v2133
        %v2320 = vpop.f32.mrb[0].mxu0
        %v2321 = vadd.f32 0.0, %v2320
        %v2322 = vpop.f32.mrb[0].mxu0
        %2323 = vmatprep.mubr.f32.mxu0 0.0
        %2324 = vmatmul.mubr.f32.gmra.mrb[0].mxu0 %v2136
        %v2325 = vpop.f32.mrb[0].mxu0
        %v2326 = vadd.f32 0.0, %v2325
        %v2327 = vpop.f32.mrb[0].mxu0
        %2328 = vmatprep.mubr.f32.mxu0 0.0
        %2329 = vmatmul.mubr.f32.gmra.mrb[0].mxu0 %v2139
        %v2330 = vpop.f32.mrb[0].mxu0
        %v2331 = vadd.f32 0.0, %v2330
        %v2332 = vpop.f32.mrb[0].mxu0
        %2333 = vmatprep.mubr.f32.mxu0 0.0
        %2334 = vmatmul.mubr.f32.gmra.mrb[0].mxu0 %v2142
        %v2335 = vpop.f32.mrb[0].mxu0
        %v2336 = vadd.f32 0.0, %v2335
        %v2337 = vpop.f32.mrb[0].mxu0
        %2338 = vmatprep.mubr.f32.mxu0 0.0
        %2339 = vmatmul.mubr.f32.gmra.mrb[0].mxu0 %v2145
        %v2340 = vpop.f32.mrb[0].mxu0
        %v2341 = vadd.f32 0.0, %v2340
        %v2342 = vpop.f32.mrb[0].mxu0
        %2343 = vmatprep.mubr.f32.mxu0 0.0
        %2344 = vmatmul.mubr.f32.gmra.mrb[0].mxu0 %v2148
        %v2345 = vpop.f32.mrb[0].mxu0
        %v2346 = vadd.f32 0.0, %v2345
        %v2347 = vpop.f32.mrb[0].mxu0
        %2348 = vmatprep.mubr.f32.mxu0 0.0
        %2349 = vmatmul.mubr.f32.gmra.mrb[0].mxu0 %v2151
        %v2350 = vpop.f32.mrb[0].mxu0
        %v2351 = vadd.f32 0.0, %v2350
        %v2352 = vpop.f32.mrb[0].mxu0
        %2353 = vmatprep.mubr.f32.mxu0 0.0
        %2354 = vmatmul.mubr.f32.gmra.mrb[0].mxu0 %v2154
        %v2355 = vpop.f32.mrb[0].mxu0
        %v2356 = vadd.f32 0.0, %v2355
        %v2357 = vpop.f32.mrb[0].mxu0
        %2358 = vmatprep.mubr.f32.mxu0 0.0
        %2359 = vmatmul.mubr.f32.gmra.mrb[0].mxu0 %v2157
        %v2360 = vpop.f32.mrb[0].mxu0
        %v2361 = vadd.f32 0.0, %v2360
        %v2362 = vpop.f32.mrb[0].mxu0
        %2363 = vmatprep.mubr.f32.mxu0 0.0
        %2364 = vmatmul.mubr.f32.gmra.mrb[0].mxu0 %v2160
        %v2365 = vpop.f32.mrb[0].mxu0
        %v2366 = vadd.f32 0.0, %v2365
        %v2367 = vpop.f32.mrb[0].mxu0
        %2368 = vmatprep.mubr.f32.mxu0 0.0
        %2369 = vmatmul.mubr.f32.gmra.mrb[0].mxu0 %v2163
        %v2370 = vpop.f32.mrb[0].mxu0
        %v2371 = vadd.f32 0.0, %v2370
        %v2372 = vpop.f32.mrb[0].mxu0
        %2373 = vmatprep.mubr.f32.mxu0 0.0
        %2374 = vmatmul.mubr.f32.gmra.mrb[0].mxu0 %v2166
        %v2375 = vpop.f32.mrb[0].mxu0
        %v2376 = vadd.f32 0.0, %v2375
        %v2377 = vpop.f32.mrb[0].mxu0
        %2378 = vmatprep.mubr.f32.mxu0 0.0
        %2379 = vmatmul.mubr.f32.gmra.mrb[0].mxu0 %v2169
        %v2380 = vpop.f32.mrb[0].mxu0
        %v2381 = vadd.f32 0.0, %v2380
        %v2382 = vpop.f32.mrb[0].mxu0
        %2383 = vmatprep.mubr.f32.mxu0 0.0
        %2384 = vmatmul.mubr.f32.gmra.mrb[0].mxu0 %v2172
        %v2385 = vpop.f32.mrb[0].mxu0
        %v2386 = vadd.f32 0.0, %v2385
        %v2387 = vpop.f32.mrb[0].mxu0
        %2388 = vmatprep.mubr.f32.mxu0 0.0
        %2389 = vmatmul.mubr.f32.gmra.mrb[0].mxu0 %v2175
        %v2390 = vpop.f32.mrb[0].mxu0
        %v2391 = vadd.f32 0.0, %v2390
        %v2392 = vpop.f32.mrb[0].mxu0
        %2393 = vmatprep.mubr.f32.mxu0 0.0
        %2394 = vmatmul.mubr.f32.gmra.mrb[0].mxu0 %v2178
        %v2395 = vpop.f32.mrb[0].mxu0
        %v2396 = vadd.f32 0.0, %v2395
        %v2397 = vpop.f32.mrb[0].mxu0
        %2398 = vmatprep.mubr.f32.mxu0 0.0
        %2399 = vmatmul.mubr.f32.gmra.mrb[0].mxu0 %v2181
        %v2400 = vpop.f32.mrb[0].mxu0
        %v2401 = vadd.f32 0.0, %v2400
        %v2402 = vpop.f32.mrb[0].mxu0
        %2403 = vmatprep.mubr.f32.mxu0 0.0
        %2404 = vmatmul.mubr.f32.gmra.mrb[0].mxu0 %v2184
        %v2405 = vpop.f32.mrb[0].mxu0
        %v2406 = vadd.f32 0.0, %v2405
        %v2407 = vpop.f32.mrb[0].mxu0
        %2408 = vmatprep.mubr.f32.mxu0 0.0
        %2409 = vmatmul.mubr.f32.gmra.mrb[0].mxu0 %v2187
        %v2410 = vpop.f32.mrb[0].mxu0
        %v2411 = vadd.f32 0.0, %v2410
        %v2412 = vpop.f32.mrb[0].mxu0
        %2413 = vdwg.mxu0
        %v2414 = vadd.f32 %v1643, %v2256
        %v2415 = vadd.f32 %v1648, %v2261
        %v2416 = vadd.f32 %v1653, %v2266
        %v2417 = vadd.f32 %v1658, %v2271
        %v2418 = vadd.f32 %v1663, %v2276
        %v2419 = vadd.f32 %v1668, %v2281
        %v2420 = vadd.f32 %v1673, %v2286
        %v2421 = vadd.f32 %v1678, %v2291
        %v2422 = vadd.f32 %v1683, %v2296
        %v2423 = vadd.f32 %v1688, %v2301
        %v2424 = vadd.f32 %v1693, %v2306
        %v2425 = vadd.f32 %v1698, %v2311
        %v2426 = vadd.f32 %v1703, %v2316
        %v2427 = vadd.f32 %v1708, %v2321
        %v2428 = vadd.f32 %v1713, %v2326
        %v2429 = vadd.f32 %v1718, %v2331
        %v2430 = vadd.f32 %v1723, %v2336
        %v2431 = vadd.f32 %v1728, %v2341
        %v2432 = vadd.f32 %v1733, %v2346
        %v2433 = vadd.f32 %v1738, %v2351
        %v2434 = vadd.f32 %v1743, %v2356
        %v2435 = vadd.f32 %v1748, %v2361
        %v2436 = vadd.f32 %v1753, %v2366
        %v2437 = vadd.f32 %v1758, %v2371
        %v2438 = vadd.f32 %v1763, %v2376
        %v2439 = vadd.f32 %v1768, %v2381
        %v2440 = vadd.f32 %v1773, %v2386
        %v2441 = vadd.f32 %v1778, %v2391
        %v2442 = vadd.f32 %v1783, %v2396
        %v2443 = vadd.f32 %v1788, %v2401
        %v2444 = vadd.f32 %v1793, %v2406
        %v2445 = vadd.f32 %v1798, %v2411
        %v2446 = vld [vmem:[%s587] sm:$0xff]
        %v2447 = vld [vmem:[%s587 + $0x8] sm:$0xff]
        %v2448 = vld [vmem:[%s587 + $0x18] sm:$0xff]
        %v2449 = vld [vmem:[%s587 + $0x20] sm:$0xff]
        %v2450 = vld [vmem:[%s587 + $0x30] sm:$0xff]
        %v2451 = vld [vmem:[%s587 + $0x38] sm:$0xff]
        %v2452 = vld [vmem:[%s587 + $0x48] sm:$0xff]
        %v2453 = vld [vmem:[%s587 + $0x50] sm:$0xff]
        %v2454 = vld [vmem:[%s587 + $0x60] sm:$0xff]
        %v2455 = vld [vmem:[%s587 + $0x68] sm:$0xff]
        %v2456 = vld [vmem:[%s587 + $0x78] sm:$0xff]
        %v2457 = vld [vmem:[%s587 + $0x80] sm:$0xff]
        %v2458 = vld [vmem:[%s587 + $0x90] sm:$0xff]
        %v2459 = vld [vmem:[%s587 + $0x98] sm:$0xff]
        %v2460 = vld [vmem:[%s587 + $0xa8] sm:$0xff]
        %v2461 = vld [vmem:[%s587 + $0xb0] sm:$0xff]
        %v2462 = vld [vmem:[%s587 + $0xc0] sm:$0xff]
        %v2463 = vld [vmem:[%s587 + $0xc8] sm:$0xff]
        %v2464 = vld [vmem:[%s587 + $0xd8] sm:$0xff]
        %v2465 = vld [vmem:[%s587 + $0xe0] sm:$0xff]
        %v2466 = vld [vmem:[%s587 + $0xf0] sm:$0xff]
        %v2467 = vld [vmem:[%s587 + $0xf8] sm:$0xff]
        %v2468 = vld [vmem:[%s587 + $0x108] sm:$0xff]
        %v2469 = vld [vmem:[%s587 + $0x110] sm:$0xff]
        %v2470 = vld [vmem:[%s587 + $0x120] sm:$0xff]
        %v2471 = vld [vmem:[%s587 + $0x128] sm:$0xff]
        %v2472 = vld [vmem:[%s587 + $0x138] sm:$0xff]
        %v2473 = vld [vmem:[%s587 + $0x140] sm:$0xff]
        %v2474 = vld [vmem:[%s587 + $0x150] sm:$0xff]
        %v2475 = vld [vmem:[%s587 + $0x158] sm:$0xff]
        %v2476 = vld [vmem:[%s587 + $0x168] sm:$0xff]
        %v2477 = vld [vmem:[%s587 + $0x170] sm:$0xff]
        %v2478 = vpack.c.bf16 %v2447, %v2446
        %v2479 = vpack.c.bf16 %v2449, %v2448
        %v2480 = vpack.c.bf16 %v2451, %v2450
        %v2481 = vpack.c.bf16 %v2453, %v2452
        %v2482 = vpack.c.bf16 %v2455, %v2454
        %v2483 = vpack.c.bf16 %v2457, %v2456
        %v2484 = vpack.c.bf16 %v2459, %v2458
        %v2485 = vpack.c.bf16 %v2461, %v2460
        %v2486 = vpack.c.bf16 %v2463, %v2462
        %v2487 = vpack.c.bf16 %v2465, %v2464
        %v2488 = vpack.c.bf16 %v2467, %v2466
        %v2489 = vpack.c.bf16 %v2469, %v2468
        %v2490 = vpack.c.bf16 %v2471, %v2470
        %v2491 = vpack.c.bf16 %v2473, %v2472
        %v2492 = vpack.c.bf16 %v2475, %v2474
        %v2493 = vpack.c.bf16 %v2477, %v2476
        %v2495 = vsel %vm532, %v2478, 0
        %v2498 = vsel %vm532, %v2479, 0
        %v2501 = vsel %vm532, %v2480, 0
        %v2504 = vsel %vm532, %v2481, 0
        %v2507 = vsel %vm532, %v2482, 0
        %v2510 = vsel %vm532, %v2483, 0
        %v2513 = vsel %vm532, %v2484, 0
        %v2516 = vsel %vm532, %v2485, 0
        %v2519 = vsel %vm532, %v2486, 0
        %v2522 = vsel %vm532, %v2487, 0
        %v2525 = vsel %vm532, %v2488, 0
        %v2528 = vsel %vm532, %v2489, 0
        %v2531 = vsel %vm532, %v2490, 0
        %v2534 = vsel %vm532, %v2491, 0
        %v2537 = vsel %vm532, %v2492, 0
        %v2540 = vsel %vm532, %v2493, 0
        %v2543 = vsel %vm782, %v623, 0
        %2545 = vmatprep.subr.bf16.mxu0 0
        %2546 = vmatpush1.bf16.msra.mxu0 %v2543
        %2547 = vmatprep.subr.bf16.mxu0 0
        %2548 = vmatpush1.bf16.msra.mxu0 0
        %2549 = vmatprep.subr.bf16.mxu0 0
        %2550 = vmatpush1.bf16.msra.mxu0 0
        %2551 = vmatprep.subr.bf16.mxu0 0
        %2552 = vmatpush1.bf16.msra.mxu0 0
        %2553 = vmatprep.subr.bf16.mxu0 0
        %2554 = vmatpush1.bf16.msra.mxu0 0
        %2555 = vmatprep.subr.bf16.mxu0 0
        %2556 = vmatpush1.bf16.msra.mxu0 0
        %2557 = vmatprep.subr.bf16.mxu0 0
        %2558 = vmatpush1.bf16.msra.mxu0 0
        %2559 = vmatprep.subr.bf16.mxu0 0
        %2560 = vmatpush1.bf16.msra.mxu0 0
        %2561 = vmatprep.subr.bf16.mxu0 0
        %2562 = vmatpush1.bf16.msra.mxu0 0
        %2563 = vmatprep.subr.bf16.mxu0 0
        %2564 = vmatpush1.bf16.msra.mxu0 0
        %2565 = vmatprep.subr.bf16.mxu0 0
        %2566 = vmatpush1.bf16.msra.mxu0 0
        %2567 = vmatprep.subr.bf16.mxu0 0
        %2568 = vmatpush1.bf16.msra.mxu0 0
        %2569 = vmatprep.subr.bf16.mxu0 0
        %2570 = vmatpush1.bf16.msra.mxu0 0
        %2571 = vmatprep.subr.bf16.mxu0 0
        %2572 = vmatpush1.bf16.msra.mxu0 0
        %2573 = vmatprep.subr.bf16.mxu0 0
        %2574 = vmatpush1.bf16.msra.mxu0 0
        %2575 = vmatprep.subr.bf16.mxu0 0
        %2576 = vmatpush1.bf16.msra.mxu0 0
        %2577 = vmatprep.mubr.bf16.mxu0 0
        %2578 = vmatmul.mubr.bf16.gmra.mrb[0].mxu0 %v2495
        %v2579 = vpop.f32.mrb[0].mxu0
        %v2580 = vadd.f32 0.0, %v2579
        %v2581 = vpop.f32.mrb[0].mxu0
        %v2582 = vpop.f32.mrb[0].mxu0
        %v2583 = vadd.f32 0.0, %v2582
        %v2584 = vpop.f32.mrb[0].mxu0
        %2585 = vmatprep.mubr.bf16.mxu0 0
        %2586 = vmatmul.mubr.bf16.gmra.mrb[0].mxu0 %v2498
        %v2587 = vpop.f32.mrb[0].mxu0
        %v2588 = vadd.f32 0.0, %v2587
        %v2589 = vpop.f32.mrb[0].mxu0
        %v2590 = vpop.f32.mrb[0].mxu0
        %v2591 = vadd.f32 0.0, %v2590
        %v2592 = vpop.f32.mrb[0].mxu0
        %2593 = vmatprep.mubr.bf16.mxu0 0
        %2594 = vmatmul.mubr.bf16.gmra.mrb[0].mxu0 %v2501
        %v2595 = vpop.f32.mrb[0].mxu0
        %v2596 = vadd.f32 0.0, %v2595
        %v2597 = vpop.f32.mrb[0].mxu0
        %v2598 = vpop.f32.mrb[0].mxu0
        %v2599 = vadd.f32 0.0, %v2598
        %v2600 = vpop.f32.mrb[0].mxu0
        %2601 = vmatprep.mubr.bf16.mxu0 0
        %2602 = vmatmul.mubr.bf16.gmra.mrb[0].mxu0 %v2504
        %v2603 = vpop.f32.mrb[0].mxu0
        %v2604 = vadd.f32 0.0, %v2603
        %v2605 = vpop.f32.mrb[0].mxu0
        %v2606 = vpop.f32.mrb[0].mxu0
        %v2607 = vadd.f32 0.0, %v2606
        %v2608 = vpop.f32.mrb[0].mxu0
        %2609 = vmatprep.mubr.bf16.mxu0 0
        %2610 = vmatmul.mubr.bf16.gmra.mrb[0].mxu0 %v2507
        %v2611 = vpop.f32.mrb[0].mxu0
        %v2612 = vadd.f32 0.0, %v2611
        %v2613 = vpop.f32.mrb[0].mxu0
        %v2614 = vpop.f32.mrb[0].mxu0
        %v2615 = vadd.f32 0.0, %v2614
        %v2616 = vpop.f32.mrb[0].mxu0
        %2617 = vmatprep.mubr.bf16.mxu0 0
        %2618 = vmatmul.mubr.bf16.gmra.mrb[0].mxu0 %v2510
        %v2619 = vpop.f32.mrb[0].mxu0
        %v2620 = vadd.f32 0.0, %v2619
        %v2621 = vpop.f32.mrb[0].mxu0
        %v2622 = vpop.f32.mrb[0].mxu0
        %v2623 = vadd.f32 0.0, %v2622
        %v2624 = vpop.f32.mrb[0].mxu0
        %2625 = vmatprep.mubr.bf16.mxu0 0
        %2626 = vmatmul.mubr.bf16.gmra.mrb[0].mxu0 %v2513
        %v2627 = vpop.f32.mrb[0].mxu0
        %v2628 = vadd.f32 0.0, %v2627
        %v2629 = vpop.f32.mrb[0].mxu0
        %v2630 = vpop.f32.mrb[0].mxu0
        %v2631 = vadd.f32 0.0, %v2630
        %v2632 = vpop.f32.mrb[0].mxu0
        %2633 = vmatprep.mubr.bf16.mxu0 0
        %2634 = vmatmul.mubr.bf16.gmra.mrb[0].mxu0 %v2516
        %v2635 = vpop.f32.mrb[0].mxu0
        %v2636 = vadd.f32 0.0, %v2635
        %v2637 = vpop.f32.mrb[0].mxu0
        %v2638 = vpop.f32.mrb[0].mxu0
        %v2639 = vadd.f32 0.0, %v2638
        %v2640 = vpop.f32.mrb[0].mxu0
        %2641 = vmatprep.mubr.bf16.mxu0 0
        %2642 = vmatmul.mubr.bf16.gmra.mrb[0].mxu0 %v2519
        %v2643 = vpop.f32.mrb[0].mxu0
        %v2644 = vadd.f32 0.0, %v2643
        %v2645 = vpop.f32.mrb[0].mxu0
        %v2646 = vpop.f32.mrb[0].mxu0
        %v2647 = vadd.f32 0.0, %v2646
        %v2648 = vpop.f32.mrb[0].mxu0
        %2649 = vmatprep.mubr.bf16.mxu0 0
        %2650 = vmatmul.mubr.bf16.gmra.mrb[0].mxu0 %v2522
        %v2651 = vpop.f32.mrb[0].mxu0
        %v2652 = vadd.f32 0.0, %v2651
        %v2653 = vpop.f32.mrb[0].mxu0
        %v2654 = vpop.f32.mrb[0].mxu0
        %v2655 = vadd.f32 0.0, %v2654
        %v2656 = vpop.f32.mrb[0].mxu0
        %2657 = vmatprep.mubr.bf16.mxu0 0
        %2658 = vmatmul.mubr.bf16.gmra.mrb[0].mxu0 %v2525
        %v2659 = vpop.f32.mrb[0].mxu0
        %v2660 = vadd.f32 0.0, %v2659
        %v2661 = vpop.f32.mrb[0].mxu0
        %v2662 = vpop.f32.mrb[0].mxu0
        %v2663 = vadd.f32 0.0, %v2662
        %v2664 = vpop.f32.mrb[0].mxu0
        %2665 = vmatprep.mubr.bf16.mxu0 0
        %2666 = vmatmul.mubr.bf16.gmra.mrb[0].mxu0 %v2528
        %v2667 = vpop.f32.mrb[0].mxu0
        %v2668 = vadd.f32 0.0, %v2667
        %v2669 = vpop.f32.mrb[0].mxu0
        %v2670 = vpop.f32.mrb[0].mxu0
        %v2671 = vadd.f32 0.0, %v2670
        %v2672 = vpop.f32.mrb[0].mxu0
        %2673 = vmatprep.mubr.bf16.mxu0 0
        %2674 = vmatmul.mubr.bf16.gmra.mrb[0].mxu0 %v2531
        %v2675 = vpop.f32.mrb[0].mxu0
        %v2676 = vadd.f32 0.0, %v2675
        %v2677 = vpop.f32.mrb[0].mxu0
        %v2678 = vpop.f32.mrb[0].mxu0
        %v2679 = vadd.f32 0.0, %v2678
        %v2680 = vpop.f32.mrb[0].mxu0
        %2681 = vmatprep.mubr.bf16.mxu0 0
        %2682 = vmatmul.mubr.bf16.gmra.mrb[0].mxu0 %v2534
        %v2683 = vpop.f32.mrb[0].mxu0
        %v2684 = vadd.f32 0.0, %v2683
        %v2685 = vpop.f32.mrb[0].mxu0
        %v2686 = vpop.f32.mrb[0].mxu0
        %v2687 = vadd.f32 0.0, %v2686
        %v2688 = vpop.f32.mrb[0].mxu0
        %2689 = vmatprep.mubr.bf16.mxu0 0
        %2690 = vmatmul.mubr.bf16.gmra.mrb[0].mxu0 %v2537
        %v2691 = vpop.f32.mrb[0].mxu0
        %v2692 = vadd.f32 0.0, %v2691
        %v2693 = vpop.f32.mrb[0].mxu0
        %v2694 = vpop.f32.mrb[0].mxu0
        %v2695 = vadd.f32 0.0, %v2694
        %v2696 = vpop.f32.mrb[0].mxu0
        %2697 = vmatprep.mubr.bf16.mxu0 0
        %2698 = vmatmul.mubr.bf16.gmra.mrb[0].mxu0 %v2540
        %v2699 = vpop.f32.mrb[0].mxu0
        %v2700 = vadd.f32 0.0, %v2699
        %v2701 = vpop.f32.mrb[0].mxu0
        %v2702 = vpop.f32.mrb[0].mxu0
        %v2703 = vadd.f32 0.0, %v2702
        %v2704 = vpop.f32.mrb[0].mxu0
        %2705 = vdwg.mxu0
        %v2706 = vadd.f32 %v2061, %v2580
        %v2707 = vadd.f32 %v2062, %v2583
        %v2708 = vadd.f32 %v2063, %v2588
        %v2709 = vadd.f32 %v2064, %v2591
        %v2710 = vadd.f32 %v2065, %v2596
        %v2711 = vadd.f32 %v2066, %v2599
        %v2712 = vadd.f32 %v2067, %v2604
        %v2713 = vadd.f32 %v2068, %v2607
        %v2714 = vadd.f32 %v2069, %v2612
        %v2715 = vadd.f32 %v2070, %v2615
        %v2716 = vadd.f32 %v2071, %v2620
        %v2717 = vadd.f32 %v2072, %v2623
        %v2718 = vadd.f32 %v2073, %v2628
        %v2719 = vadd.f32 %v2074, %v2631
        %v2720 = vadd.f32 %v2075, %v2636
        %v2721 = vadd.f32 %v2076, %v2639
        %v2722 = vadd.f32 %v2077, %v2644
        %v2723 = vadd.f32 %v2078, %v2647
        %v2724 = vadd.f32 %v2079, %v2652
        %v2725 = vadd.f32 %v2080, %v2655
        %v2726 = vadd.f32 %v2081, %v2660
        %v2727 = vadd.f32 %v2082, %v2663
        %v2728 = vadd.f32 %v2083, %v2668
        %v2729 = vadd.f32 %v2084, %v2671
        %v2730 = vadd.f32 %v2085, %v2676
        %v2731 = vadd.f32 %v2086, %v2679
        %v2732 = vadd.f32 %v2087, %v2684
        %v2733 = vadd.f32 %v2088, %v2687
        %v2734 = vadd.f32 %v2089, %v2692
        %v2735 = vadd.f32 %v2090, %v2695
        %v2736 = vadd.f32 %v2091, %v2700
        %v2737 = vadd.f32 %v2092, %v2703
        %v2739 = vsel %vm532, %v2446, 0
        %v2742 = vsel %vm532, %v2447, 0
        %v2745 = vsel %vm532, %v2448, 0
        %v2748 = vsel %vm532, %v2449, 0
        %v2751 = vsel %vm532, %v2450, 0
        %v2754 = vsel %vm532, %v2451, 0
        %v2757 = vsel %vm532, %v2452, 0
        %v2760 = vsel %vm532, %v2453, 0
        %v2763 = vsel %vm532, %v2454, 0
        %v2766 = vsel %vm532, %v2455, 0
        %v2769 = vsel %vm532, %v2456, 0
        %v2772 = vsel %vm532, %v2457, 0
        %v2775 = vsel %vm532, %v2458, 0
        %v2778 = vsel %vm532, %v2459, 0
        %v2781 = vsel %vm532, %v2460, 0
        %v2784 = vsel %vm532, %v2461, 0
        %v2787 = vsel %vm532, %v2462, 0
        %v2790 = vsel %vm532, %v2463, 0
        %v2793 = vsel %vm532, %v2464, 0
        %v2796 = vsel %vm532, %v2465, 0
        %v2799 = vsel %vm532, %v2466, 0
        %v2802 = vsel %vm532, %v2467, 0
        %v2805 = vsel %vm532, %v2468, 0
        %v2808 = vsel %vm532, %v2469, 0
        %v2811 = vsel %vm532, %v2470, 0
        %v2814 = vsel %vm532, %v2471, 0
        %v2817 = vsel %vm532, %v2472, 0
        %v2820 = vsel %vm532, %v2473, 0
        %v2823 = vsel %vm532, %v2474, 0
        %v2826 = vsel %vm532, %v2475, 0
        %v2829 = vsel %vm532, %v2476, 0
        %v2832 = vsel %vm532, %v2477, 0
        %2834 = vmatprep.subr.mxu0 0.0
        %2835 = vmatpush1.msra.mxu0 %v632
        %2836 = vmatprep.subr.mxu0 0.0
        %2837 = vmatpush1.msra.mxu0 0.0
        %2838 = vmatprep.subr.mxu0 0.0
        %2839 = vmatpush1.msra.mxu0 0.0
        %2840 = vmatprep.subr.mxu0 0.0
        %2841 = vmatpush1.msra.mxu0 0.0
        %2842 = vmatprep.subr.mxu0 0.0
        %2843 = vmatpush1.msra.mxu0 0.0
        %2844 = vmatprep.subr.mxu0 0.0
        %2845 = vmatpush1.msra.mxu0 0.0
        %2846 = vmatprep.subr.mxu0 0.0
        %2847 = vmatpush1.msra.mxu0 0.0
        %2848 = vmatprep.subr.mxu0 0.0
        %2849 = vmatpush1.msra.mxu0 0.0
        %2850 = vmatprep.subr.mxu0 0.0
        %2851 = vmatpush1.msra.mxu0 0.0
        %2852 = vmatprep.subr.mxu0 0.0
        %2853 = vmatpush1.msra.mxu0 0.0
        %2854 = vmatprep.subr.mxu0 0.0
        %2855 = vmatpush1.msra.mxu0 0.0
        %2856 = vmatprep.subr.mxu0 0.0
        %2857 = vmatpush1.msra.mxu0 0.0
        %2858 = vmatprep.subr.mxu0 0.0
        %2859 = vmatpush1.msra.mxu0 0.0
        %2860 = vmatprep.subr.mxu0 0.0
        %2861 = vmatpush1.msra.mxu0 0.0
        %2862 = vmatprep.subr.mxu0 0.0
        %2863 = vmatpush1.msra.mxu0 0.0
        %2864 = vmatprep.subr.mxu0 0.0
        %2865 = vmatpush1.msra.mxu0 0.0
        %2866 = vmatprep.subr.mxu0 0.0
        %2867 = vmatpush1.msra.mxu0 0.0
        %2868 = vmatprep.subr.mxu0 0.0
        %2869 = vmatpush1.msra.mxu0 0.0
        %2870 = vmatprep.subr.mxu0 0.0
        %2871 = vmatpush1.msra.mxu0 0.0
        %2872 = vmatprep.subr.mxu0 0.0
        %2873 = vmatpush1.msra.mxu0 0.0
        %2874 = vmatprep.subr.mxu0 0.0
        %2875 = vmatpush1.msra.mxu0 0.0
        %2876 = vmatprep.subr.mxu0 0.0
        %2877 = vmatpush1.msra.mxu0 0.0
        %2878 = vmatprep.subr.mxu0 0.0
        %2879 = vmatpush1.msra.mxu0 0.0
        %2880 = vmatprep.subr.mxu0 0.0
        %2881 = vmatpush1.msra.mxu0 0.0
        %2882 = vmatprep.subr.mxu0 0.0
        %2883 = vmatpush1.msra.mxu0 0.0
        %2884 = vmatprep.subr.mxu0 0.0
        %2885 = vmatpush1.msra.mxu0 0.0
        %2886 = vmatprep.subr.mxu0 0.0
        %2887 = vmatpush1.msra.mxu0 0.0
        %2888 = vmatprep.subr.mxu0 0.0
        %2889 = vmatpush1.msra.mxu0 0.0
        %2890 = vmatprep.subr.mxu0 0.0
        %2891 = vmatpush1.msra.mxu0 0.0
        %2892 = vmatprep.subr.mxu0 0.0
        %2893 = vmatpush1.msra.mxu0 0.0
        %2894 = vmatprep.subr.mxu0 0.0
        %2895 = vmatpush1.msra.mxu0 0.0
        %2896 = vmatprep.subr.mxu0 0.0
        %2897 = vmatpush1.msra.mxu0 0.0
        %2898 = vmatprep.mubr.f32.mxu0 0.0
        %2899 = vmatmul.mubr.f32.gmra.mrb[0].mxu0 %v2739
        %v2900 = vpop.f32.mrb[0].mxu0
        %v2901 = vadd.f32 0.0, %v2900
        %v2902 = vpop.f32.mrb[0].mxu0
        %2903 = vmatprep.mubr.f32.mxu0 0.0
        %2904 = vmatmul.mubr.f32.gmra.mrb[0].mxu0 %v2742
        %v2905 = vpop.f32.mrb[0].mxu0
        %v2906 = vadd.f32 0.0, %v2905
        %v2907 = vpop.f32.mrb[0].mxu0
        %2908 = vmatprep.mubr.f32.mxu0 0.0
        %2909 = vmatmul.mubr.f32.gmra.mrb[0].mxu0 %v2745
        %v2910 = vpop.f32.mrb[0].mxu0
        %v2911 = vadd.f32 0.0, %v2910
        %v2912 = vpop.f32.mrb[0].mxu0
        %2913 = vmatprep.mubr.f32.mxu0 0.0
        %2914 = vmatmul.mubr.f32.gmra.mrb[0].mxu0 %v2748
        %v2915 = vpop.f32.mrb[0].mxu0
        %v2916 = vadd.f32 0.0, %v2915
        %v2917 = vpop.f32.mrb[0].mxu0
        %2918 = vmatprep.mubr.f32.mxu0 0.0
        %2919 = vmatmul.mubr.f32.gmra.mrb[0].mxu0 %v2751
        %v2920 = vpop.f32.mrb[0].mxu0
        %v2921 = vadd.f32 0.0, %v2920
        %v2922 = vpop.f32.mrb[0].mxu0
        %2923 = vmatprep.mubr.f32.mxu0 0.0
        %2924 = vmatmul.mubr.f32.gmra.mrb[0].mxu0 %v2754
        %v2925 = vpop.f32.mrb[0].mxu0
        %v2926 = vadd.f32 0.0, %v2925
        %v2927 = vpop.f32.mrb[0].mxu0
        %2928 = vmatprep.mubr.f32.mxu0 0.0
        %2929 = vmatmul.mubr.f32.gmra.mrb[0].mxu0 %v2757
        %v2930 = vpop.f32.mrb[0].mxu0
        %v2931 = vadd.f32 0.0, %v2930
        %v2932 = vpop.f32.mrb[0].mxu0
        %2933 = vmatprep.mubr.f32.mxu0 0.0
        %2934 = vmatmul.mubr.f32.gmra.mrb[0].mxu0 %v2760
        %v2935 = vpop.f32.mrb[0].mxu0
        %v2936 = vadd.f32 0.0, %v2935
        %v2937 = vpop.f32.mrb[0].mxu0
        %2938 = vmatprep.mubr.f32.mxu0 0.0
        %2939 = vmatmul.mubr.f32.gmra.mrb[0].mxu0 %v2763
        %v2940 = vpop.f32.mrb[0].mxu0
        %v2941 = vadd.f32 0.0, %v2940
        %v2942 = vpop.f32.mrb[0].mxu0
        %2943 = vmatprep.mubr.f32.mxu0 0.0
        %2944 = vmatmul.mubr.f32.gmra.mrb[0].mxu0 %v2766
        %v2945 = vpop.f32.mrb[0].mxu0
        %v2946 = vadd.f32 0.0, %v2945
        %v2947 = vpop.f32.mrb[0].mxu0
        %2948 = vmatprep.mubr.f32.mxu0 0.0
        %2949 = vmatmul.mubr.f32.gmra.mrb[0].mxu0 %v2769
        %v2950 = vpop.f32.mrb[0].mxu0
        %v2951 = vadd.f32 0.0, %v2950
        %v2952 = vpop.f32.mrb[0].mxu0
        %2953 = vmatprep.mubr.f32.mxu0 0.0
        %2954 = vmatmul.mubr.f32.gmra.mrb[0].mxu0 %v2772
        %v2955 = vpop.f32.mrb[0].mxu0
        %v2956 = vadd.f32 0.0, %v2955
        %v2957 = vpop.f32.mrb[0].mxu0
        %2958 = vmatprep.mubr.f32.mxu0 0.0
        %2959 = vmatmul.mubr.f32.gmra.mrb[0].mxu0 %v2775
        %v2960 = vpop.f32.mrb[0].mxu0
        %v2961 = vadd.f32 0.0, %v2960
        %v2962 = vpop.f32.mrb[0].mxu0
        %2963 = vmatprep.mubr.f32.mxu0 0.0
        %2964 = vmatmul.mubr.f32.gmra.mrb[0].mxu0 %v2778
        %v2965 = vpop.f32.mrb[0].mxu0
        %v2966 = vadd.f32 0.0, %v2965
        %v2967 = vpop.f32.mrb[0].mxu0
        %2968 = vmatprep.mubr.f32.mxu0 0.0
        %2969 = vmatmul.mubr.f32.gmra.mrb[0].mxu0 %v2781
        %v2970 = vpop.f32.mrb[0].mxu0
        %v2971 = vadd.f32 0.0, %v2970
        %v2972 = vpop.f32.mrb[0].mxu0
        %2973 = vmatprep.mubr.f32.mxu0 0.0
        %2974 = vmatmul.mubr.f32.gmra.mrb[0].mxu0 %v2784
        %v2975 = vpop.f32.mrb[0].mxu0
        %v2976 = vadd.f32 0.0, %v2975
        %v2977 = vpop.f32.mrb[0].mxu0
        %2978 = vmatprep.mubr.f32.mxu0 0.0
        %2979 = vmatmul.mubr.f32.gmra.mrb[0].mxu0 %v2787
        %v2980 = vpop.f32.mrb[0].mxu0
        %v2981 = vadd.f32 0.0, %v2980
        %v2982 = vpop.f32.mrb[0].mxu0
        %2983 = vmatprep.mubr.f32.mxu0 0.0
        %2984 = vmatmul.mubr.f32.gmra.mrb[0].mxu0 %v2790
        %v2985 = vpop.f32.mrb[0].mxu0
        %v2986 = vadd.f32 0.0, %v2985
        %v2987 = vpop.f32.mrb[0].mxu0
        %2988 = vmatprep.mubr.f32.mxu0 0.0
        %2989 = vmatmul.mubr.f32.gmra.mrb[0].mxu0 %v2793
        %v2990 = vpop.f32.mrb[0].mxu0
        %v2991 = vadd.f32 0.0, %v2990
        %v2992 = vpop.f32.mrb[0].mxu0
        %2993 = vmatprep.mubr.f32.mxu0 0.0
        %2994 = vmatmul.mubr.f32.gmra.mrb[0].mxu0 %v2796
        %v2995 = vpop.f32.mrb[0].mxu0
        %v2996 = vadd.f32 0.0, %v2995
        %v2997 = vpop.f32.mrb[0].mxu0
        %2998 = vmatprep.mubr.f32.mxu0 0.0
        %2999 = vmatmul.mubr.f32.gmra.mrb[0].mxu0 %v2799
        %v3000 = vpop.f32.mrb[0].mxu0
        %v3001 = vadd.f32 0.0, %v3000
        %v3002 = vpop.f32.mrb[0].mxu0
        %3003 = vmatprep.mubr.f32.mxu0 0.0
        %3004 = vmatmul.mubr.f32.gmra.mrb[0].mxu0 %v2802
        %v3005 = vpop.f32.mrb[0].mxu0
        %v3006 = vadd.f32 0.0, %v3005
        %v3007 = vpop.f32.mrb[0].mxu0
        %3008 = vmatprep.mubr.f32.mxu0 0.0
        %3009 = vmatmul.mubr.f32.gmra.mrb[0].mxu0 %v2805
        %v3010 = vpop.f32.mrb[0].mxu0
        %v3011 = vadd.f32 0.0, %v3010
        %v3012 = vpop.f32.mrb[0].mxu0
        %3013 = vmatprep.mubr.f32.mxu0 0.0
        %3014 = vmatmul.mubr.f32.gmra.mrb[0].mxu0 %v2808
        %v3015 = vpop.f32.mrb[0].mxu0
        %v3016 = vadd.f32 0.0, %v3015
        %v3017 = vpop.f32.mrb[0].mxu0
        %3018 = vmatprep.mubr.f32.mxu0 0.0
        %3019 = vmatmul.mubr.f32.gmra.mrb[0].mxu0 %v2811
        %v3020 = vpop.f32.mrb[0].mxu0
        %v3021 = vadd.f32 0.0, %v3020
        %v3022 = vpop.f32.mrb[0].mxu0
        %3023 = vmatprep.mubr.f32.mxu0 0.0
        %3024 = vmatmul.mubr.f32.gmra.mrb[0].mxu0 %v2814
        %v3025 = vpop.f32.mrb[0].mxu0
        %v3026 = vadd.f32 0.0, %v3025
        %v3027 = vpop.f32.mrb[0].mxu0
        %3028 = vmatprep.mubr.f32.mxu0 0.0
        %3029 = vmatmul.mubr.f32.gmra.mrb[0].mxu0 %v2817
        %v3030 = vpop.f32.mrb[0].mxu0
        %v3031 = vadd.f32 0.0, %v3030
        %v3032 = vpop.f32.mrb[0].mxu0
        %3033 = vmatprep.mubr.f32.mxu0 0.0
        %3034 = vmatmul.mubr.f32.gmra.mrb[0].mxu0 %v2820
        %v3035 = vpop.f32.mrb[0].mxu0
        %v3036 = vadd.f32 0.0, %v3035
        %v3037 = vpop.f32.mrb[0].mxu0
        %3038 = vmatprep.mubr.f32.mxu0 0.0
        %3039 = vmatmul.mubr.f32.gmra.mrb[0].mxu0 %v2823
        %v3040 = vpop.f32.mrb[0].mxu0
        %v3041 = vadd.f32 0.0, %v3040
        %v3042 = vpop.f32.mrb[0].mxu0
        %3043 = vmatprep.mubr.f32.mxu0 0.0
        %3044 = vmatmul.mubr.f32.gmra.mrb[0].mxu0 %v2826
        %v3045 = vpop.f32.mrb[0].mxu0
        %v3046 = vadd.f32 0.0, %v3045
        %v3047 = vpop.f32.mrb[0].mxu0
        %3048 = vmatprep.mubr.f32.mxu0 0.0
        %3049 = vmatmul.mubr.f32.gmra.mrb[0].mxu0 %v2829
        %v3050 = vpop.f32.mrb[0].mxu0
        %v3051 = vadd.f32 0.0, %v3050
        %v3052 = vpop.f32.mrb[0].mxu0
        %3053 = vmatprep.mubr.f32.mxu0 0.0
        %3054 = vmatmul.mubr.f32.gmra.mrb[0].mxu0 %v2832
        %v3055 = vpop.f32.mrb[0].mxu0
        %v3056 = vadd.f32 0.0, %v3055
        %v3057 = vpop.f32.mrb[0].mxu0
        %3058 = vdwg.mxu0
        %v3059 = vadd.f32 %v2414, %v2901
        %v3060 = vadd.f32 %v2415, %v2906
        %v3061 = vadd.f32 %v2416, %v2911
        %v3062 = vadd.f32 %v2417, %v2916
        %v3063 = vadd.f32 %v2418, %v2921
        %v3064 = vadd.f32 %v2419, %v2926
        %v3065 = vadd.f32 %v2420, %v2931
        %v3066 = vadd.f32 %v2421, %v2936
        %v3067 = vadd.f32 %v2422, %v2941
        %v3068 = vadd.f32 %v2423, %v2946
        %v3069 = vadd.f32 %v2424, %v2951
        %v3070 = vadd.f32 %v2425, %v2956
        %v3071 = vadd.f32 %v2426, %v2961
        %v3072 = vadd.f32 %v2427, %v2966
        %v3073 = vadd.f32 %v2428, %v2971
        %v3074 = vadd.f32 %v2429, %v2976
        %v3075 = vadd.f32 %v2430, %v2981
        %v3076 = vadd.f32 %v2431, %v2986
        %v3077 = vadd.f32 %v2432, %v2991
        %v3078 = vadd.f32 %v2433, %v2996
        %v3079 = vadd.f32 %v2434, %v3001
        %v3080 = vadd.f32 %v2435, %v3006
        %v3081 = vadd.f32 %v2436, %v3011
        %v3082 = vadd.f32 %v2437, %v3016
        %v3083 = vadd.f32 %v2438, %v3021
        %v3084 = vadd.f32 %v2439, %v3026
        %v3085 = vadd.f32 %v2440, %v3031
        %v3086 = vadd.f32 %v2441, %v3036
        %v3087 = vadd.f32 %v2442, %v3041
        %v3088 = vadd.f32 %v2443, %v3046
        %v3089 = vadd.f32 %v2444, %v3051
        %v3090 = vadd.f32 %v2445, %v3056
        %v3091 = vld [vmem:[%s587 + $0x1] sm:$0xff]
        %v3092 = vld [vmem:[%s587 + $0x9] sm:$0xff]
        %v3093 = vld [vmem:[%s587 + $0x19] sm:$0xff]
        %v3094 = vld [vmem:[%s587 + $0x21] sm:$0xff]
        %v3095 = vld [vmem:[%s587 + $0x31] sm:$0xff]
        %v3096 = vld [vmem:[%s587 + $0x39] sm:$0xff]
        %v3097 = vld [vmem:[%s587 + $0x49] sm:$0xff]
        %v3098 = vld [vmem:[%s587 + $0x51] sm:$0xff]
        %v3099 = vld [vmem:[%s587 + $0x61] sm:$0xff]
        %v3100 = vld [vmem:[%s587 + $0x69] sm:$0xff]
        %v3101 = vld [vmem:[%s587 + $0x79] sm:$0xff]
        %v3102 = vld [vmem:[%s587 + $0x81] sm:$0xff]
        %v3103 = vld [vmem:[%s587 + $0x91] sm:$0xff]
        %v3104 = vld [vmem:[%s587 + $0x99] sm:$0xff]
        %v3105 = vld [vmem:[%s587 + $0xa9] sm:$0xff]
        %v3106 = vld [vmem:[%s587 + $0xb1] sm:$0xff]
        %v3107 = vld [vmem:[%s587 + $0xc1] sm:$0xff]
        %v3108 = vld [vmem:[%s587 + $0xc9] sm:$0xff]
        %v3109 = vld [vmem:[%s587 + $0xd9] sm:$0xff]
        %v3110 = vld [vmem:[%s587 + $0xe1] sm:$0xff]
        %v3111 = vld [vmem:[%s587 + $0xf1] sm:$0xff]
        %v3112 = vld [vmem:[%s587 + $0xf9] sm:$0xff]
        %v3113 = vld [vmem:[%s587 + $0x109] sm:$0xff]
        %v3114 = vld [vmem:[%s587 + $0x111] sm:$0xff]
        %v3115 = vld [vmem:[%s587 + $0x121] sm:$0xff]
        %v3116 = vld [vmem:[%s587 + $0x129] sm:$0xff]
        %v3117 = vld [vmem:[%s587 + $0x139] sm:$0xff]
        %v3118 = vld [vmem:[%s587 + $0x141] sm:$0xff]
        %v3119 = vld [vmem:[%s587 + $0x151] sm:$0xff]
        %v3120 = vld [vmem:[%s587 + $0x159] sm:$0xff]
        %v3121 = vld [vmem:[%s587 + $0x169] sm:$0xff]
        %v3122 = vld [vmem:[%s587 + $0x171] sm:$0xff]
        %v3123 = vpack.c.bf16 %v3092, %v3091
        %v3124 = vpack.c.bf16 %v3094, %v3093
        %v3125 = vpack.c.bf16 %v3096, %v3095
        %v3126 = vpack.c.bf16 %v3098, %v3097
        %v3127 = vpack.c.bf16 %v3100, %v3099
        %v3128 = vpack.c.bf16 %v3102, %v3101
        %v3129 = vpack.c.bf16 %v3104, %v3103
        %v3130 = vpack.c.bf16 %v3106, %v3105
        %v3131 = vpack.c.bf16 %v3108, %v3107
        %v3132 = vpack.c.bf16 %v3110, %v3109
        %v3133 = vpack.c.bf16 %v3112, %v3111
        %v3134 = vpack.c.bf16 %v3114, %v3113
        %v3135 = vpack.c.bf16 %v3116, %v3115
        %v3136 = vpack.c.bf16 %v3118, %v3117
        %v3137 = vpack.c.bf16 %v3120, %v3119
        %v3138 = vpack.c.bf16 %v3122, %v3121
        %v3140 = vsel %vm532, %v3123, 0
        %v3143 = vsel %vm532, %v3124, 0
        %v3146 = vsel %vm532, %v3125, 0
        %v3149 = vsel %vm532, %v3126, 0
        %v3152 = vsel %vm532, %v3127, 0
        %v3155 = vsel %vm532, %v3128, 0
        %v3158 = vsel %vm532, %v3129, 0
        %v3161 = vsel %vm532, %v3130, 0
        %v3164 = vsel %vm532, %v3131, 0
        %v3167 = vsel %vm532, %v3132, 0
        %v3170 = vsel %vm532, %v3133, 0
        %v3173 = vsel %vm532, %v3134, 0
        %v3176 = vsel %vm532, %v3135, 0
        %v3179 = vsel %vm532, %v3136, 0
        %v3182 = vsel %vm532, %v3137, 0
        %v3185 = vsel %vm532, %v3138, 0
        %v3188 = vsel %vm782, %v624, 0
        %3190 = vmatprep.subr.bf16.mxu0 0
        %3191 = vmatpush1.bf16.msra.mxu0 %v3188
        %3192 = vmatprep.subr.bf16.mxu0 0
        %3193 = vmatpush1.bf16.msra.mxu0 0
        %3194 = vmatprep.subr.bf16.mxu0 0
        %3195 = vmatpush1.bf16.msra.mxu0 0
        %3196 = vmatprep.subr.bf16.mxu0 0
        %3197 = vmatpush1.bf16.msra.mxu0 0
        %3198 = vmatprep.subr.bf16.mxu0 0
        %3199 = vmatpush1.bf16.msra.mxu0 0
        %3200 = vmatprep.subr.bf16.mxu0 0
        %3201 = vmatpush1.bf16.msra.mxu0 0
        %3202 = vmatprep.subr.bf16.mxu0 0
        %3203 = vmatpush1.bf16.msra.mxu0 0
        %3204 = vmatprep.subr.bf16.mxu0 0
        %3205 = vmatpush1.bf16.msra.mxu0 0
        %3206 = vmatprep.subr.bf16.mxu0 0
        %3207 = vmatpush1.bf16.msra.mxu0 0
        %3208 = vmatprep.subr.bf16.mxu0 0
        %3209 = vmatpush1.bf16.msra.mxu0 0
        %3210 = vmatprep.subr.bf16.mxu0 0
        %3211 = vmatpush1.bf16.msra.mxu0 0
        %3212 = vmatprep.subr.bf16.mxu0 0
        %3213 = vmatpush1.bf16.msra.mxu0 0
        %3214 = vmatprep.subr.bf16.mxu0 0
        %3215 = vmatpush1.bf16.msra.mxu0 0
        %3216 = vmatprep.subr.bf16.mxu0 0
        %3217 = vmatpush1.bf16.msra.mxu0 0
        %3218 = vmatprep.subr.bf16.mxu0 0
        %3219 = vmatpush1.bf16.msra.mxu0 0
        %3220 = vmatprep.subr.bf16.mxu0 0
        %3221 = vmatpush1.bf16.msra.mxu0 0
        %3222 = vmatprep.mubr.bf16.mxu0 0
        %3223 = vmatmul.mubr.bf16.gmra.mrb[0].mxu0 %v3140
        %v3224 = vpop.f32.mrb[0].mxu0
        %v3225 = vadd.f32 0.0, %v3224
        %v3226 = vpop.f32.mrb[0].mxu0
        %v3227 = vpop.f32.mrb[0].mxu0
        %v3228 = vadd.f32 0.0, %v3227
        %v3229 = vpop.f32.mrb[0].mxu0
        %3230 = vmatprep.mubr.bf16.mxu0 0
        %3231 = vmatmul.mubr.bf16.gmra.mrb[0].mxu0 %v3143
        %v3232 = vpop.f32.mrb[0].mxu0
        %v3233 = vadd.f32 0.0, %v3232
        %v3234 = vpop.f32.mrb[0].mxu0
        %v3235 = vpop.f32.mrb[0].mxu0
        %v3236 = vadd.f32 0.0, %v3235
        %v3237 = vpop.f32.mrb[0].mxu0
        %3238 = vmatprep.mubr.bf16.mxu0 0
        %3239 = vmatmul.mubr.bf16.gmra.mrb[0].mxu0 %v3146
        %v3240 = vpop.f32.mrb[0].mxu0
        %v3241 = vadd.f32 0.0, %v3240
        %v3242 = vpop.f32.mrb[0].mxu0
        %v3243 = vpop.f32.mrb[0].mxu0
        %v3244 = vadd.f32 0.0, %v3243
        %v3245 = vpop.f32.mrb[0].mxu0
        %3246 = vmatprep.mubr.bf16.mxu0 0
        %3247 = vmatmul.mubr.bf16.gmra.mrb[0].mxu0 %v3149
        %v3248 = vpop.f32.mrb[0].mxu0
        %v3249 = vadd.f32 0.0, %v3248
        %v3250 = vpop.f32.mrb[0].mxu0
        %v3251 = vpop.f32.mrb[0].mxu0
        %v3252 = vadd.f32 0.0, %v3251
        %v3253 = vpop.f32.mrb[0].mxu0
        %3254 = vmatprep.mubr.bf16.mxu0 0
        %3255 = vmatmul.mubr.bf16.gmra.mrb[0].mxu0 %v3152
        %v3256 = vpop.f32.mrb[0].mxu0
        %v3257 = vadd.f32 0.0, %v3256
        %v3258 = vpop.f32.mrb[0].mxu0
        %v3259 = vpop.f32.mrb[0].mxu0
        %v3260 = vadd.f32 0.0, %v3259
        %v3261 = vpop.f32.mrb[0].mxu0
        %3262 = vmatprep.mubr.bf16.mxu0 0
        %3263 = vmatmul.mubr.bf16.gmra.mrb[0].mxu0 %v3155
        %v3264 = vpop.f32.mrb[0].mxu0
        %v3265 = vadd.f32 0.0, %v3264
        %v3266 = vpop.f32.mrb[0].mxu0
        %v3267 = vpop.f32.mrb[0].mxu0
        %v3268 = vadd.f32 0.0, %v3267
        %v3269 = vpop.f32.mrb[0].mxu0
        %3270 = vmatprep.mubr.bf16.mxu0 0
        %3271 = vmatmul.mubr.bf16.gmra.mrb[0].mxu0 %v3158
        %v3272 = vpop.f32.mrb[0].mxu0
        %v3273 = vadd.f32 0.0, %v3272
        %v3274 = vpop.f32.mrb[0].mxu0
        %v3275 = vpop.f32.mrb[0].mxu0
        %v3276 = vadd.f32 0.0, %v3275
        %v3277 = vpop.f32.mrb[0].mxu0
        %3278 = vmatprep.mubr.bf16.mxu0 0
        %3279 = vmatmul.mubr.bf16.gmra.mrb[0].mxu0 %v3161
        %v3280 = vpop.f32.mrb[0].mxu0
        %v3281 = vadd.f32 0.0, %v3280
        %v3282 = vpop.f32.mrb[0].mxu0
        %v3283 = vpop.f32.mrb[0].mxu0
        %v3284 = vadd.f32 0.0, %v3283
        %v3285 = vpop.f32.mrb[0].mxu0
        %3286 = vmatprep.mubr.bf16.mxu0 0
        %3287 = vmatmul.mubr.bf16.gmra.mrb[0].mxu0 %v3164
        %v3288 = vpop.f32.mrb[0].mxu0
        %v3289 = vadd.f32 0.0, %v3288
        %v3290 = vpop.f32.mrb[0].mxu0
        %v3291 = vpop.f32.mrb[0].mxu0
        %v3292 = vadd.f32 0.0, %v3291
        %v3293 = vpop.f32.mrb[0].mxu0
        %3294 = vmatprep.mubr.bf16.mxu0 0
        %3295 = vmatmul.mubr.bf16.gmra.mrb[0].mxu0 %v3167
        %v3296 = vpop.f32.mrb[0].mxu0
        %v3297 = vadd.f32 0.0, %v3296
        %v3298 = vpop.f32.mrb[0].mxu0
        %v3299 = vpop.f32.mrb[0].mxu0
        %v3300 = vadd.f32 0.0, %v3299
        %v3301 = vpop.f32.mrb[0].mxu0
        %3302 = vmatprep.mubr.bf16.mxu0 0
        %3303 = vmatmul.mubr.bf16.gmra.mrb[0].mxu0 %v3170
        %v3304 = vpop.f32.mrb[0].mxu0
        %v3305 = vadd.f32 0.0, %v3304
        %v3306 = vpop.f32.mrb[0].mxu0
        %v3307 = vpop.f32.mrb[0].mxu0
        %v3308 = vadd.f32 0.0, %v3307
        %v3309 = vpop.f32.mrb[0].mxu0
        %3310 = vmatprep.mubr.bf16.mxu0 0
        %3311 = vmatmul.mubr.bf16.gmra.mrb[0].mxu0 %v3173
        %v3312 = vpop.f32.mrb[0].mxu0
        %v3313 = vadd.f32 0.0, %v3312
        %v3314 = vpop.f32.mrb[0].mxu0
        %v3315 = vpop.f32.mrb[0].mxu0
        %v3316 = vadd.f32 0.0, %v3315
        %v3317 = vpop.f32.mrb[0].mxu0
        %3318 = vmatprep.mubr.bf16.mxu0 0
        %3319 = vmatmul.mubr.bf16.gmra.mrb[0].mxu0 %v3176
        %v3320 = vpop.f32.mrb[0].mxu0
        %v3321 = vadd.f32 0.0, %v3320
        %v3322 = vpop.f32.mrb[0].mxu0
        %v3323 = vpop.f32.mrb[0].mxu0
        %v3324 = vadd.f32 0.0, %v3323
        %v3325 = vpop.f32.mrb[0].mxu0
        %3326 = vmatprep.mubr.bf16.mxu0 0
        %3327 = vmatmul.mubr.bf16.gmra.mrb[0].mxu0 %v3179
        %v3328 = vpop.f32.mrb[0].mxu0
        %v3329 = vadd.f32 0.0, %v3328
        %v3330 = vpop.f32.mrb[0].mxu0
        %v3331 = vpop.f32.mrb[0].mxu0
        %v3332 = vadd.f32 0.0, %v3331
        %v3333 = vpop.f32.mrb[0].mxu0
        %3334 = vmatprep.mubr.bf16.mxu0 0
        %3335 = vmatmul.mubr.bf16.gmra.mrb[0].mxu0 %v3182
        %v3336 = vpop.f32.mrb[0].mxu0
        %v3337 = vadd.f32 0.0, %v3336
        %v3338 = vpop.f32.mrb[0].mxu0
        %v3339 = vpop.f32.mrb[0].mxu0
        %v3340 = vadd.f32 0.0, %v3339
        %v3341 = vpop.f32.mrb[0].mxu0
        %3342 = vmatprep.mubr.bf16.mxu0 0
        %3343 = vmatmul.mubr.bf16.gmra.mrb[0].mxu0 %v3185
        %v3344 = vpop.f32.mrb[0].mxu0
        %v3345 = vadd.f32 0.0, %v3344
        %v3346 = vpop.f32.mrb[0].mxu0
        %v3347 = vpop.f32.mrb[0].mxu0
        %v3348 = vadd.f32 0.0, %v3347
        %v3349 = vpop.f32.mrb[0].mxu0
        %3350 = vdwg.mxu0
        %v3351 = vadd.f32 %v2706, %v3225
        %v3352 = vadd.f32 %v2707, %v3228
        %v3353 = vadd.f32 %v2708, %v3233
        %v3354 = vadd.f32 %v2709, %v3236
        %v3355 = vadd.f32 %v2710, %v3241
        %v3356 = vadd.f32 %v2711, %v3244
        %v3357 = vadd.f32 %v2712, %v3249
        %v3358 = vadd.f32 %v2713, %v3252
        %v3359 = vadd.f32 %v2714, %v3257
        %v3360 = vadd.f32 %v2715, %v3260
        %v3361 = vadd.f32 %v2716, %v3265
        %v3362 = vadd.f32 %v2717, %v3268
        %v3363 = vadd.f32 %v2718, %v3273
        %v3364 = vadd.f32 %v2719, %v3276
        %v3365 = vadd.f32 %v2720, %v3281
        %v3366 = vadd.f32 %v2721, %v3284
        %v3367 = vadd.f32 %v2722, %v3289
        %v3368 = vadd.f32 %v2723, %v3292
        %v3369 = vadd.f32 %v2724, %v3297
        %v3370 = vadd.f32 %v2725, %v3300
        %v3371 = vadd.f32 %v2726, %v3305
        %v3372 = vadd.f32 %v2727, %v3308
        %v3373 = vadd.f32 %v2728, %v3313
        %v3374 = vadd.f32 %v2729, %v3316
        %v3375 = vadd.f32 %v2730, %v3321
        %v3376 = vadd.f32 %v2731, %v3324
        %v3377 = vadd.f32 %v2732, %v3329
        %v3378 = vadd.f32 %v2733, %v3332
        %v3379 = vadd.f32 %v2734, %v3337
        %v3380 = vadd.f32 %v2735, %v3340
        %v3381 = vadd.f32 %v2736, %v3345
        %v3382 = vadd.f32 %v2737, %v3348
        %v3384 = vsel %vm532, %v3091, 0
        %v3387 = vsel %vm532, %v3092, 0
        %v3390 = vsel %vm532, %v3093, 0
        %v3393 = vsel %vm532, %v3094, 0
        %v3396 = vsel %vm532, %v3095, 0
        %v3399 = vsel %vm532, %v3096, 0
        %v3402 = vsel %vm532, %v3097, 0
        %v3405 = vsel %vm532, %v3098, 0
        %v3408 = vsel %vm532, %v3099, 0
        %v3411 = vsel %vm532, %v3100, 0
        %v3414 = vsel %vm532, %v3101, 0
        %v3417 = vsel %vm532, %v3102, 0
        %v3420 = vsel %vm532, %v3103, 0
        %v3423 = vsel %vm532, %v3104, 0
        %v3426 = vsel %vm532, %v3105, 0
        %v3429 = vsel %vm532, %v3106, 0
        %v3432 = vsel %vm532, %v3107, 0
        %v3435 = vsel %vm532, %v3108, 0
        %v3438 = vsel %vm532, %v3109, 0
        %v3441 = vsel %vm532, %v3110, 0
        %v3444 = vsel %vm532, %v3111, 0
        %v3447 = vsel %vm532, %v3112, 0
        %v3450 = vsel %vm532, %v3113, 0
        %v3453 = vsel %vm532, %v3114, 0
        %v3456 = vsel %vm532, %v3115, 0
        %v3459 = vsel %vm532, %v3116, 0
        %v3462 = vsel %vm532, %v3117, 0
        %v3465 = vsel %vm532, %v3118, 0
        %v3468 = vsel %vm532, %v3119, 0
        %v3471 = vsel %vm532, %v3120, 0
        %v3474 = vsel %vm532, %v3121, 0
        %v3477 = vsel %vm532, %v3122, 0
        %3479 = vmatprep.subr.mxu0 0.0
        %3480 = vmatpush1.msra.mxu0 %v633
        %3481 = vmatprep.subr.mxu0 0.0
        %3482 = vmatpush1.msra.mxu0 0.0
        %3483 = vmatprep.subr.mxu0 0.0
        %3484 = vmatpush1.msra.mxu0 0.0
        %3485 = vmatprep.subr.mxu0 0.0
        %3486 = vmatpush1.msra.mxu0 0.0
        %3487 = vmatprep.subr.mxu0 0.0
        %3488 = vmatpush1.msra.mxu0 0.0
        %3489 = vmatprep.subr.mxu0 0.0
        %3490 = vmatpush1.msra.mxu0 0.0
        %3491 = vmatprep.subr.mxu0 0.0
        %3492 = vmatpush1.msra.mxu0 0.0
        %3493 = vmatprep.subr.mxu0 0.0
        %3494 = vmatpush1.msra.mxu0 0.0
        %3495 = vmatprep.subr.mxu0 0.0
        %3496 = vmatpush1.msra.mxu0 0.0
        %3497 = vmatprep.subr.mxu0 0.0
        %3498 = vmatpush1.msra.mxu0 0.0
        %3499 = vmatprep.subr.mxu0 0.0
        %3500 = vmatpush1.msra.mxu0 0.0
        %3501 = vmatprep.subr.mxu0 0.0
        %3502 = vmatpush1.msra.mxu0 0.0
        %3503 = vmatprep.subr.mxu0 0.0
        %3504 = vmatpush1.msra.mxu0 0.0
        %3505 = vmatprep.subr.mxu0 0.0
        %3506 = vmatpush1.msra.mxu0 0.0
        %3507 = vmatprep.subr.mxu0 0.0
        %3508 = vmatpush1.msra.mxu0 0.0
        %3509 = vmatprep.subr.mxu0 0.0
        %3510 = vmatpush1.msra.mxu0 0.0
        %3511 = vmatprep.subr.mxu0 0.0
        %3512 = vmatpush1.msra.mxu0 0.0
        %3513 = vmatprep.subr.mxu0 0.0
        %3514 = vmatpush1.msra.mxu0 0.0
        %3515 = vmatprep.subr.mxu0 0.0
        %3516 = vmatpush1.msra.mxu0 0.0
        %3517 = vmatprep.subr.mxu0 0.0
        %3518 = vmatpush1.msra.mxu0 0.0
        %3519 = vmatprep.subr.mxu0 0.0
        %3520 = vmatpush1.msra.mxu0 0.0
        %3521 = vmatprep.subr.mxu0 0.0
        %3522 = vmatpush1.msra.mxu0 0.0
        %3523 = vmatprep.subr.mxu0 0.0
        %3524 = vmatpush1.msra.mxu0 0.0
        %3525 = vmatprep.subr.mxu0 0.0
        %3526 = vmatpush1.msra.mxu0 0.0
        %3527 = vmatprep.subr.mxu0 0.0
        %3528 = vmatpush1.msra.mxu0 0.0
        %3529 = vmatprep.subr.mxu0 0.0
        %3530 = vmatpush1.msra.mxu0 0.0
        %3531 = vmatprep.subr.mxu0 0.0
        %3532 = vmatpush1.msra.mxu0 0.0
        %3533 = vmatprep.subr.mxu0 0.0
        %3534 = vmatpush1.msra.mxu0 0.0
        %3535 = vmatprep.subr.mxu0 0.0
        %3536 = vmatpush1.msra.mxu0 0.0
        %3537 = vmatprep.subr.mxu0 0.0
        %3538 = vmatpush1.msra.mxu0 0.0
        %3539 = vmatprep.subr.mxu0 0.0
        %3540 = vmatpush1.msra.mxu0 0.0
        %3541 = vmatprep.subr.mxu0 0.0
        %3542 = vmatpush1.msra.mxu0 0.0
        %3543 = vmatprep.mubr.f32.mxu0 0.0
        %3544 = vmatmul.mubr.f32.gmra.mrb[0].mxu0 %v3384
        %v3545 = vpop.f32.mrb[0].mxu0
        %v3546 = vadd.f32 0.0, %v3545
        %v3547 = vpop.f32.mrb[0].mxu0
        %3548 = vmatprep.mubr.f32.mxu0 0.0
        %3549 = vmatmul.mubr.f32.gmra.mrb[0].mxu0 %v3387
        %v3550 = vpop.f32.mrb[0].mxu0
        %v3551 = vadd.f32 0.0, %v3550
        %v3552 = vpop.f32.mrb[0].mxu0
        %3553 = vmatprep.mubr.f32.mxu0 0.0
        %3554 = vmatmul.mubr.f32.gmra.mrb[0].mxu0 %v3390
        %v3555 = vpop.f32.mrb[0].mxu0
        %v3556 = vadd.f32 0.0, %v3555
        %v3557 = vpop.f32.mrb[0].mxu0
        %3558 = vmatprep.mubr.f32.mxu0 0.0
        %3559 = vmatmul.mubr.f32.gmra.mrb[0].mxu0 %v3393
        %v3560 = vpop.f32.mrb[0].mxu0
        %v3561 = vadd.f32 0.0, %v3560
        %v3562 = vpop.f32.mrb[0].mxu0
        %3563 = vmatprep.mubr.f32.mxu0 0.0
        %3564 = vmatmul.mubr.f32.gmra.mrb[0].mxu0 %v3396
        %v3565 = vpop.f32.mrb[0].mxu0
        %v3566 = vadd.f32 0.0, %v3565
        %v3567 = vpop.f32.mrb[0].mxu0
        %3568 = vmatprep.mubr.f32.mxu0 0.0
        %3569 = vmatmul.mubr.f32.gmra.mrb[0].mxu0 %v3399
        %v3570 = vpop.f32.mrb[0].mxu0
        %v3571 = vadd.f32 0.0, %v3570
        %v3572 = vpop.f32.mrb[0].mxu0
        %3573 = vmatprep.mubr.f32.mxu0 0.0
        %3574 = vmatmul.mubr.f32.gmra.mrb[0].mxu0 %v3402
        %v3575 = vpop.f32.mrb[0].mxu0
        %v3576 = vadd.f32 0.0, %v3575
        %v3577 = vpop.f32.mrb[0].mxu0
        %3578 = vmatprep.mubr.f32.mxu0 0.0
        %3579 = vmatmul.mubr.f32.gmra.mrb[0].mxu0 %v3405
        %v3580 = vpop.f32.mrb[0].mxu0
        %v3581 = vadd.f32 0.0, %v3580
        %v3582 = vpop.f32.mrb[0].mxu0
        %3583 = vmatprep.mubr.f32.mxu0 0.0
        %3584 = vmatmul.mubr.f32.gmra.mrb[0].mxu0 %v3408
        %v3585 = vpop.f32.mrb[0].mxu0
        %v3586 = vadd.f32 0.0, %v3585
        %v3587 = vpop.f32.mrb[0].mxu0
        %3588 = vmatprep.mubr.f32.mxu0 0.0
        %3589 = vmatmul.mubr.f32.gmra.mrb[0].mxu0 %v3411
        %v3590 = vpop.f32.mrb[0].mxu0
        %v3591 = vadd.f32 0.0, %v3590
        %v3592 = vpop.f32.mrb[0].mxu0
        %3593 = vmatprep.mubr.f32.mxu0 0.0
        %3594 = vmatmul.mubr.f32.gmra.mrb[0].mxu0 %v3414
        %v3595 = vpop.f32.mrb[0].mxu0
        %v3596 = vadd.f32 0.0, %v3595
        %v3597 = vpop.f32.mrb[0].mxu0
        %3598 = vmatprep.mubr.f32.mxu0 0.0
        %3599 = vmatmul.mubr.f32.gmra.mrb[0].mxu0 %v3417
        %v3600 = vpop.f32.mrb[0].mxu0
        %v3601 = vadd.f32 0.0, %v3600
        %v3602 = vpop.f32.mrb[0].mxu0
        %3603 = vmatprep.mubr.f32.mxu0 0.0
        %3604 = vmatmul.mubr.f32.gmra.mrb[0].mxu0 %v3420
        %v3605 = vpop.f32.mrb[0].mxu0
        %v3606 = vadd.f32 0.0, %v3605
        %v3607 = vpop.f32.mrb[0].mxu0
        %3608 = vmatprep.mubr.f32.mxu0 0.0
        %3609 = vmatmul.mubr.f32.gmra.mrb[0].mxu0 %v3423
        %v3610 = vpop.f32.mrb[0].mxu0
        %v3611 = vadd.f32 0.0, %v3610
        %v3612 = vpop.f32.mrb[0].mxu0
        %3613 = vmatprep.mubr.f32.mxu0 0.0
        %3614 = vmatmul.mubr.f32.gmra.mrb[0].mxu0 %v3426
        %v3615 = vpop.f32.mrb[0].mxu0
        %v3616 = vadd.f32 0.0, %v3615
        %v3617 = vpop.f32.mrb[0].mxu0
        %3618 = vmatprep.mubr.f32.mxu0 0.0
        %3619 = vmatmul.mubr.f32.gmra.mrb[0].mxu0 %v3429
        %v3620 = vpop.f32.mrb[0].mxu0
        %v3621 = vadd.f32 0.0, %v3620
        %v3622 = vpop.f32.mrb[0].mxu0
        %3623 = vmatprep.mubr.f32.mxu0 0.0
        %3624 = vmatmul.mubr.f32.gmra.mrb[0].mxu0 %v3432
        %v3625 = vpop.f32.mrb[0].mxu0
        %v3626 = vadd.f32 0.0, %v3625
        %v3627 = vpop.f32.mrb[0].mxu0
        %3628 = vmatprep.mubr.f32.mxu0 0.0
        %3629 = vmatmul.mubr.f32.gmra.mrb[0].mxu0 %v3435
        %v3630 = vpop.f32.mrb[0].mxu0
        %v3631 = vadd.f32 0.0, %v3630
        %v3632 = vpop.f32.mrb[0].mxu0
        %3633 = vmatprep.mubr.f32.mxu0 0.0
        %3634 = vmatmul.mubr.f32.gmra.mrb[0].mxu0 %v3438
        %v3635 = vpop.f32.mrb[0].mxu0
        %v3636 = vadd.f32 0.0, %v3635
        %v3637 = vpop.f32.mrb[0].mxu0
        %3638 = vmatprep.mubr.f32.mxu0 0.0
        %3639 = vmatmul.mubr.f32.gmra.mrb[0].mxu0 %v3441
        %v3640 = vpop.f32.mrb[0].mxu0
        %v3641 = vadd.f32 0.0, %v3640
        %v3642 = vpop.f32.mrb[0].mxu0
        %3643 = vmatprep.mubr.f32.mxu0 0.0
        %3644 = vmatmul.mubr.f32.gmra.mrb[0].mxu0 %v3444
        %v3645 = vpop.f32.mrb[0].mxu0
        %v3646 = vadd.f32 0.0, %v3645
        %v3647 = vpop.f32.mrb[0].mxu0
        %3648 = vmatprep.mubr.f32.mxu0 0.0
        %3649 = vmatmul.mubr.f32.gmra.mrb[0].mxu0 %v3447
        %v3650 = vpop.f32.mrb[0].mxu0
        %v3651 = vadd.f32 0.0, %v3650
        %v3652 = vpop.f32.mrb[0].mxu0
        %3653 = vmatprep.mubr.f32.mxu0 0.0
        %3654 = vmatmul.mubr.f32.gmra.mrb[0].mxu0 %v3450
        %v3655 = vpop.f32.mrb[0].mxu0
        %v3656 = vadd.f32 0.0, %v3655
        %v3657 = vpop.f32.mrb[0].mxu0
        %3658 = vmatprep.mubr.f32.mxu0 0.0
        %3659 = vmatmul.mubr.f32.gmra.mrb[0].mxu0 %v3453
        %v3660 = vpop.f32.mrb[0].mxu0
        %v3661 = vadd.f32 0.0, %v3660
        %v3662 = vpop.f32.mrb[0].mxu0
        %3663 = vmatprep.mubr.f32.mxu0 0.0
        %3664 = vmatmul.mubr.f32.gmra.mrb[0].mxu0 %v3456
        %v3665 = vpop.f32.mrb[0].mxu0
        %v3666 = vadd.f32 0.0, %v3665
        %v3667 = vpop.f32.mrb[0].mxu0
        %3668 = vmatprep.mubr.f32.mxu0 0.0
        %3669 = vmatmul.mubr.f32.gmra.mrb[0].mxu0 %v3459
        %v3670 = vpop.f32.mrb[0].mxu0
        %v3671 = vadd.f32 0.0, %v3670
        %v3672 = vpop.f32.mrb[0].mxu0
        %3673 = vmatprep.mubr.f32.mxu0 0.0
        %3674 = vmatmul.mubr.f32.gmra.mrb[0].mxu0 %v3462
        %v3675 = vpop.f32.mrb[0].mxu0
        %v3676 = vadd.f32 0.0, %v3675
        %v3677 = vpop.f32.mrb[0].mxu0
        %3678 = vmatprep.mubr.f32.mxu0 0.0
        %3679 = vmatmul.mubr.f32.gmra.mrb[0].mxu0 %v3465
        %v3680 = vpop.f32.mrb[0].mxu0
        %v3681 = vadd.f32 0.0, %v3680
        %v3682 = vpop.f32.mrb[0].mxu0
        %3683 = vmatprep.mubr.f32.mxu0 0.0
        %3684 = vmatmul.mubr.f32.gmra.mrb[0].mxu0 %v3468
        %v3685 = vpop.f32.mrb[0].mxu0
        %v3686 = vadd.f32 0.0, %v3685
        %v3687 = vpop.f32.mrb[0].mxu0
        %3688 = vmatprep.mubr.f32.mxu0 0.0
        %3689 = vmatmul.mubr.f32.gmra.mrb[0].mxu0 %v3471
        %v3690 = vpop.f32.mrb[0].mxu0
        %v3691 = vadd.f32 0.0, %v3690
        %v3692 = vpop.f32.mrb[0].mxu0
        %3693 = vmatprep.mubr.f32.mxu0 0.0
        %3694 = vmatmul.mubr.f32.gmra.mrb[0].mxu0 %v3474
        %v3695 = vpop.f32.mrb[0].mxu0
        %v3696 = vadd.f32 0.0, %v3695
        %v3697 = vpop.f32.mrb[0].mxu0
        %3698 = vmatprep.mubr.f32.mxu0 0.0
        %3699 = vmatmul.mubr.f32.gmra.mrb[0].mxu0 %v3477
        %v3700 = vpop.f32.mrb[0].mxu0
        %v3701 = vadd.f32 0.0, %v3700
        %v3702 = vpop.f32.mrb[0].mxu0
        %3703 = vdwg.mxu0
        %v3704 = vadd.f32 %v3059, %v3546
        %v3705 = vadd.f32 %v3060, %v3551
        %v3706 = vadd.f32 %v3061, %v3556
        %v3707 = vadd.f32 %v3062, %v3561
        %v3708 = vadd.f32 %v3063, %v3566
        %v3709 = vadd.f32 %v3064, %v3571
        %v3710 = vadd.f32 %v3065, %v3576
        %v3711 = vadd.f32 %v3066, %v3581
        %v3712 = vadd.f32 %v3067, %v3586
        %v3713 = vadd.f32 %v3068, %v3591
        %v3714 = vadd.f32 %v3069, %v3596
        %v3715 = vadd.f32 %v3070, %v3601
        %v3716 = vadd.f32 %v3071, %v3606
        %v3717 = vadd.f32 %v3072, %v3611
        %v3718 = vadd.f32 %v3073, %v3616
        %v3719 = vadd.f32 %v3074, %v3621
        %v3720 = vadd.f32 %v3075, %v3626
        %v3721 = vadd.f32 %v3076, %v3631
        %v3722 = vadd.f32 %v3077, %v3636
        %v3723 = vadd.f32 %v3078, %v3641
        %v3724 = vadd.f32 %v3079, %v3646
        %v3725 = vadd.f32 %v3080, %v3651
        %v3726 = vadd.f32 %v3081, %v3656
        %v3727 = vadd.f32 %v3082, %v3661
        %v3728 = vadd.f32 %v3083, %v3666
        %v3729 = vadd.f32 %v3084, %v3671
        %v3730 = vadd.f32 %v3085, %v3676
        %v3731 = vadd.f32 %v3086, %v3681
        %v3732 = vadd.f32 %v3087, %v3686
        %v3733 = vadd.f32 %v3088, %v3691
        %v3734 = vadd.f32 %v3089, %v3696
        %v3735 = vadd.f32 %v3090, %v3701
        %v3736 = vld [vmem:[%s587 + $0x2] sm:$0xff]
        %v3737 = vld [vmem:[%s587 + $0xa] sm:$0xff]
        %v3738 = vld [vmem:[%s587 + $0x1a] sm:$0xff]
        %v3739 = vld [vmem:[%s587 + $0x22] sm:$0xff]
        %v3740 = vld [vmem:[%s587 + $0x32] sm:$0xff]
        %v3741 = vld [vmem:[%s587 + $0x3a] sm:$0xff]
        %v3742 = vld [vmem:[%s587 + $0x4a] sm:$0xff]
        %v3743 = vld [vmem:[%s587 + $0x52] sm:$0xff]
        %v3744 = vld [vmem:[%s587 + $0x62] sm:$0xff]
        %v3745 = vld [vmem:[%s587 + $0x6a] sm:$0xff]
        %v3746 = vld [vmem:[%s587 + $0x7a] sm:$0xff]
        %v3747 = vld [vmem:[%s587 + $0x82] sm:$0xff]
        %v3748 = vld [vmem:[%s587 + $0x92] sm:$0xff]
        %v3749 = vld [vmem:[%s587 + $0x9a] sm:$0xff]
        %v3750 = vld [vmem:[%s587 + $0xaa] sm:$0xff]
        %v3751 = vld [vmem:[%s587 + $0xb2] sm:$0xff]
        %v3752 = vld [vmem:[%s587 + $0xc2] sm:$0xff]
        %v3753 = vld [vmem:[%s587 + $0xca] sm:$0xff]
        %v3754 = vld [vmem:[%s587 + $0xda] sm:$0xff]
        %v3755 = vld [vmem:[%s587 + $0xe2] sm:$0xff]
        %v3756 = vld [vmem:[%s587 + $0xf2] sm:$0xff]
        %v3757 = vld [vmem:[%s587 + $0xfa] sm:$0xff]
        %v3758 = vld [vmem:[%s587 + $0x10a] sm:$0xff]
        %v3759 = vld [vmem:[%s587 + $0x112] sm:$0xff]
        %v3760 = vld [vmem:[%s587 + $0x122] sm:$0xff]
        %v3761 = vld [vmem:[%s587 + $0x12a] sm:$0xff]
        %v3762 = vld [vmem:[%s587 + $0x13a] sm:$0xff]
        %v3763 = vld [vmem:[%s587 + $0x142] sm:$0xff]
        %v3764 = vld [vmem:[%s587 + $0x152] sm:$0xff]
        %v3765 = vld [vmem:[%s587 + $0x15a] sm:$0xff]
        %v3766 = vld [vmem:[%s587 + $0x16a] sm:$0xff]
        %v3767 = vld [vmem:[%s587 + $0x172] sm:$0xff]
        %v3768 = vpack.c.bf16 %v3737, %v3736
        %v3769 = vpack.c.bf16 %v3739, %v3738
        %v3770 = vpack.c.bf16 %v3741, %v3740
        %v3771 = vpack.c.bf16 %v3743, %v3742
        %v3772 = vpack.c.bf16 %v3745, %v3744
        %v3773 = vpack.c.bf16 %v3747, %v3746
        %v3774 = vpack.c.bf16 %v3749, %v3748
        %v3775 = vpack.c.bf16 %v3751, %v3750
        %v3776 = vpack.c.bf16 %v3753, %v3752
        %v3777 = vpack.c.bf16 %v3755, %v3754
        %v3778 = vpack.c.bf16 %v3757, %v3756
        %v3779 = vpack.c.bf16 %v3759, %v3758
        %v3780 = vpack.c.bf16 %v3761, %v3760
        %v3781 = vpack.c.bf16 %v3763, %v3762
        %v3782 = vpack.c.bf16 %v3765, %v3764
        %v3783 = vpack.c.bf16 %v3767, %v3766
        %v3785 = vsel %vm532, %v3768, 0
        %v3788 = vsel %vm532, %v3769, 0
        %v3791 = vsel %vm532, %v3770, 0
        %v3794 = vsel %vm532, %v3771, 0
        %v3797 = vsel %vm532, %v3772, 0
        %v3800 = vsel %vm532, %v3773, 0
        %v3803 = vsel %vm532, %v3774, 0
        %v3806 = vsel %vm532, %v3775, 0
        %v3809 = vsel %vm532, %v3776, 0
        %v3812 = vsel %vm532, %v3777, 0
        %v3815 = vsel %vm532, %v3778, 0
        %v3818 = vsel %vm532, %v3779, 0
        %v3821 = vsel %vm532, %v3780, 0
        %v3824 = vsel %vm532, %v3781, 0
        %v3827 = vsel %vm532, %v3782, 0
        %v3830 = vsel %vm532, %v3783, 0
        %v3833 = vsel %vm782, %v625, 0
        %3835 = vmatprep.subr.bf16.mxu0 0
        %3836 = vmatpush1.bf16.msra.mxu0 %v3833
        %3837 = vmatprep.subr.bf16.mxu0 0
        %3838 = vmatpush1.bf16.msra.mxu0 0
        %3839 = vmatprep.subr.bf16.mxu0 0
        %3840 = vmatpush1.bf16.msra.mxu0 0
        %3841 = vmatprep.subr.bf16.mxu0 0
        %3842 = vmatpush1.bf16.msra.mxu0 0
        %3843 = vmatprep.subr.bf16.mxu0 0
        %3844 = vmatpush1.bf16.msra.mxu0 0
        %3845 = vmatprep.subr.bf16.mxu0 0
        %3846 = vmatpush1.bf16.msra.mxu0 0
        %3847 = vmatprep.subr.bf16.mxu0 0
        %3848 = vmatpush1.bf16.msra.mxu0 0
        %3849 = vmatprep.subr.bf16.mxu0 0
        %3850 = vmatpush1.bf16.msra.mxu0 0
        %3851 = vmatprep.subr.bf16.mxu0 0
        %3852 = vmatpush1.bf16.msra.mxu0 0
        %3853 = vmatprep.subr.bf16.mxu0 0
        %3854 = vmatpush1.bf16.msra.mxu0 0
        %3855 = vmatprep.subr.bf16.mxu0 0
        %3856 = vmatpush1.bf16.msra.mxu0 0
        %3857 = vmatprep.subr.bf16.mxu0 0
        %3858 = vmatpush1.bf16.msra.mxu0 0
        %3859 = vmatprep.subr.bf16.mxu0 0
        %3860 = vmatpush1.bf16.msra.mxu0 0
        %3861 = vmatprep.subr.bf16.mxu0 0
        %3862 = vmatpush1.bf16.msra.mxu0 0
        %3863 = vmatprep.subr.bf16.mxu0 0
        %3864 = vmatpush1.bf16.msra.mxu0 0
        %3865 = vmatprep.subr.bf16.mxu0 0
        %3866 = vmatpush1.bf16.msra.mxu0 0
        %3867 = vmatprep.mubr.bf16.mxu0 0
        %3868 = vmatmul.mubr.bf16.gmra.mrb[0].mxu0 %v3785
        %v3869 = vpop.f32.mrb[0].mxu0
        %v3870 = vadd.f32 0.0, %v3869
        %v3871 = vpop.f32.mrb[0].mxu0
        %v3872 = vpop.f32.mrb[0].mxu0
        %v3873 = vadd.f32 0.0, %v3872
        %v3874 = vpop.f32.mrb[0].mxu0
        %3875 = vmatprep.mubr.bf16.mxu0 0
        %3876 = vmatmul.mubr.bf16.gmra.mrb[0].mxu0 %v3788
        %v3877 = vpop.f32.mrb[0].mxu0
        %v3878 = vadd.f32 0.0, %v3877
        %v3879 = vpop.f32.mrb[0].mxu0
        %v3880 = vpop.f32.mrb[0].mxu0
        %v3881 = vadd.f32 0.0, %v3880
        %v3882 = vpop.f32.mrb[0].mxu0
        %3883 = vmatprep.mubr.bf16.mxu0 0
        %3884 = vmatmul.mubr.bf16.gmra.mrb[0].mxu0 %v3791
        %v3885 = vpop.f32.mrb[0].mxu0
        %v3886 = vadd.f32 0.0, %v3885
        %v3887 = vpop.f32.mrb[0].mxu0
        %v3888 = vpop.f32.mrb[0].mxu0
        %v3889 = vadd.f32 0.0, %v3888
        %v3890 = vpop.f32.mrb[0].mxu0
        %3891 = vmatprep.mubr.bf16.mxu0 0
        %3892 = vmatmul.mubr.bf16.gmra.mrb[0].mxu0 %v3794
        %v3893 = vpop.f32.mrb[0].mxu0
        %v3894 = vadd.f32 0.0, %v3893
        %v3895 = vpop.f32.mrb[0].mxu0
        %v3896 = vpop.f32.mrb[0].mxu0
        %v3897 = vadd.f32 0.0, %v3896
        %v3898 = vpop.f32.mrb[0].mxu0
        %3899 = vmatprep.mubr.bf16.mxu0 0
        %3900 = vmatmul.mubr.bf16.gmra.mrb[0].mxu0 %v3797
        %v3901 = vpop.f32.mrb[0].mxu0
        %v3902 = vadd.f32 0.0, %v3901
        %v3903 = vpop.f32.mrb[0].mxu0
        %v3904 = vpop.f32.mrb[0].mxu0
        %v3905 = vadd.f32 0.0, %v3904
        %v3906 = vpop.f32.mrb[0].mxu0
        %3907 = vmatprep.mubr.bf16.mxu0 0
        %3908 = vmatmul.mubr.bf16.gmra.mrb[0].mxu0 %v3800
        %v3909 = vpop.f32.mrb[0].mxu0
        %v3910 = vadd.f32 0.0, %v3909
        %v3911 = vpop.f32.mrb[0].mxu0
        %v3912 = vpop.f32.mrb[0].mxu0
        %v3913 = vadd.f32 0.0, %v3912
        %v3914 = vpop.f32.mrb[0].mxu0
        %3915 = vmatprep.mubr.bf16.mxu0 0
        %3916 = vmatmul.mubr.bf16.gmra.mrb[0].mxu0 %v3803
        %v3917 = vpop.f32.mrb[0].mxu0
        %v3918 = vadd.f32 0.0, %v3917
        %v3919 = vpop.f32.mrb[0].mxu0
        %v3920 = vpop.f32.mrb[0].mxu0
        %v3921 = vadd.f32 0.0, %v3920
        %v3922 = vpop.f32.mrb[0].mxu0
        %3923 = vmatprep.mubr.bf16.mxu0 0
        %3924 = vmatmul.mubr.bf16.gmra.mrb[0].mxu0 %v3806
        %v3925 = vpop.f32.mrb[0].mxu0
        %v3926 = vadd.f32 0.0, %v3925
        %v3927 = vpop.f32.mrb[0].mxu0
        %v3928 = vpop.f32.mrb[0].mxu0
        %v3929 = vadd.f32 0.0, %v3928
        %v3930 = vpop.f32.mrb[0].mxu0
        %3931 = vmatprep.mubr.bf16.mxu0 0
        %3932 = vmatmul.mubr.bf16.gmra.mrb[0].mxu0 %v3809
        %v3933 = vpop.f32.mrb[0].mxu0
        %v3934 = vadd.f32 0.0, %v3933
        %v3935 = vpop.f32.mrb[0].mxu0
        %v3936 = vpop.f32.mrb[0].mxu0
        %v3937 = vadd.f32 0.0, %v3936
        %v3938 = vpop.f32.mrb[0].mxu0
        %3939 = vmatprep.mubr.bf16.mxu0 0
        %3940 = vmatmul.mubr.bf16.gmra.mrb[0].mxu0 %v3812
        %v3941 = vpop.f32.mrb[0].mxu0
        %v3942 = vadd.f32 0.0, %v3941
        %v3943 = vpop.f32.mrb[0].mxu0
        %v3944 = vpop.f32.mrb[0].mxu0
        %v3945 = vadd.f32 0.0, %v3944
        %v3946 = vpop.f32.mrb[0].mxu0
        %3947 = vmatprep.mubr.bf16.mxu0 0
        %3948 = vmatmul.mubr.bf16.gmra.mrb[0].mxu0 %v3815
        %v3949 = vpop.f32.mrb[0].mxu0
        %v3950 = vadd.f32 0.0, %v3949
        %v3951 = vpop.f32.mrb[0].mxu0
        %v3952 = vpop.f32.mrb[0].mxu0
        %v3953 = vadd.f32 0.0, %v3952
        %v3954 = vpop.f32.mrb[0].mxu0
        %3955 = vmatprep.mubr.bf16.mxu0 0
        %3956 = vmatmul.mubr.bf16.gmra.mrb[0].mxu0 %v3818
        %v3957 = vpop.f32.mrb[0].mxu0
        %v3958 = vadd.f32 0.0, %v3957
        %v3959 = vpop.f32.mrb[0].mxu0
        %v3960 = vpop.f32.mrb[0].mxu0
        %v3961 = vadd.f32 0.0, %v3960
        %v3962 = vpop.f32.mrb[0].mxu0
        %3963 = vmatprep.mubr.bf16.mxu0 0
        %3964 = vmatmul.mubr.bf16.gmra.mrb[0].mxu0 %v3821
        %v3965 = vpop.f32.mrb[0].mxu0
        %v3966 = vadd.f32 0.0, %v3965
        %v3967 = vpop.f32.mrb[0].mxu0
        %v3968 = vpop.f32.mrb[0].mxu0
        %v3969 = vadd.f32 0.0, %v3968
        %v3970 = vpop.f32.mrb[0].mxu0
        %3971 = vmatprep.mubr.bf16.mxu0 0
        %3972 = vmatmul.mubr.bf16.gmra.mrb[0].mxu0 %v3824
        %v3973 = vpop.f32.mrb[0].mxu0
        %v3974 = vadd.f32 0.0, %v3973
        %v3975 = vpop.f32.mrb[0].mxu0
        %v3976 = vpop.f32.mrb[0].mxu0
        %v3977 = vadd.f32 0.0, %v3976
        %v3978 = vpop.f32.mrb[0].mxu0
        %3979 = vmatprep.mubr.bf16.mxu0 0
        %3980 = vmatmul.mubr.bf16.gmra.mrb[0].mxu0 %v3827
        %v3981 = vpop.f32.mrb[0].mxu0
        %v3982 = vadd.f32 0.0, %v3981
        %v3983 = vpop.f32.mrb[0].mxu0
        %v3984 = vpop.f32.mrb[0].mxu0
        %v3985 = vadd.f32 0.0, %v3984
        %v3986 = vpop.f32.mrb[0].mxu0
        %3987 = vmatprep.mubr.bf16.mxu0 0
        %3988 = vmatmul.mubr.bf16.gmra.mrb[0].mxu0 %v3830
        %v3989 = vpop.f32.mrb[0].mxu0
        %v3990 = vadd.f32 0.0, %v3989
        %v3991 = vpop.f32.mrb[0].mxu0
        %v3992 = vpop.f32.mrb[0].mxu0
        %v3993 = vadd.f32 0.0, %v3992
        %v3994 = vpop.f32.mrb[0].mxu0
        %3995 = vdwg.mxu0
        %v3996 = vadd.f32 %v3351, %v3870
        %v3997 = vadd.f32 %v3352, %v3873
        %v3998 = vadd.f32 %v3353, %v3878
        %v3999 = vadd.f32 %v3354, %v3881
        %v4000 = vadd.f32 %v3355, %v3886
        %v4001 = vadd.f32 %v3356, %v3889
        %v4002 = vadd.f32 %v3357, %v3894
        %v4003 = vadd.f32 %v3358, %v3897
        %v4004 = vadd.f32 %v3359, %v3902
        %v4005 = vadd.f32 %v3360, %v3905
        %v4006 = vadd.f32 %v3361, %v3910
        %v4007 = vadd.f32 %v3362, %v3913
        %v4008 = vadd.f32 %v3363, %v3918
        %v4009 = vadd.f32 %v3364, %v3921
        %v4010 = vadd.f32 %v3365, %v3926
        %v4011 = vadd.f32 %v3366, %v3929
        %v4012 = vadd.f32 %v3367, %v3934
        %v4013 = vadd.f32 %v3368, %v3937
        %v4014 = vadd.f32 %v3369, %v3942
        %v4015 = vadd.f32 %v3370, %v3945
        %v4016 = vadd.f32 %v3371, %v3950
        %v4017 = vadd.f32 %v3372, %v3953
        %v4018 = vadd.f32 %v3373, %v3958
        %v4019 = vadd.f32 %v3374, %v3961
        %v4020 = vadd.f32 %v3375, %v3966
        %v4021 = vadd.f32 %v3376, %v3969
        %v4022 = vadd.f32 %v3377, %v3974
        %v4023 = vadd.f32 %v3378, %v3977
        %v4024 = vadd.f32 %v3379, %v3982
        %v4025 = vadd.f32 %v3380, %v3985
        %v4026 = vadd.f32 %v3381, %v3990
        %v4027 = vadd.f32 %v3382, %v3993
        %v4029 = vsel %vm532, %v3736, 0
        %v4032 = vsel %vm532, %v3737, 0
        %v4035 = vsel %vm532, %v3738, 0
        %v4038 = vsel %vm532, %v3739, 0
        %v4041 = vsel %vm532, %v3740, 0
        %v4044 = vsel %vm532, %v3741, 0
        %v4047 = vsel %vm532, %v3742, 0
        %v4050 = vsel %vm532, %v3743, 0
        %v4053 = vsel %vm532, %v3744, 0
        %v4056 = vsel %vm532, %v3745, 0
        %v4059 = vsel %vm532, %v3746, 0
        %v4062 = vsel %vm532, %v3747, 0
        %v4065 = vsel %vm532, %v3748, 0
        %v4068 = vsel %vm532, %v3749, 0
        %v4071 = vsel %vm532, %v3750, 0
        %v4074 = vsel %vm532, %v3751, 0
        %v4077 = vsel %vm532, %v3752, 0
        %v4080 = vsel %vm532, %v3753, 0
        %v4083 = vsel %vm532, %v3754, 0
        %v4086 = vsel %vm532, %v3755, 0
        %v4089 = vsel %vm532, %v3756, 0
        %v4092 = vsel %vm532, %v3757, 0
        %v4095 = vsel %vm532, %v3758, 0
        %v4098 = vsel %vm532, %v3759, 0
        %v4101 = vsel %vm532, %v3760, 0
        %v4104 = vsel %vm532, %v3761, 0
        %v4107 = vsel %vm532, %v3762, 0
        %v4110 = vsel %vm532, %v3763, 0
        %v4113 = vsel %vm532, %v3764, 0
        %v4116 = vsel %vm532, %v3765, 0
        %v4119 = vsel %vm532, %v3766, 0
        %v4122 = vsel %vm532, %v3767, 0
        %4124 = vmatprep.subr.mxu0 0.0
        %4125 = vmatpush1.msra.mxu0 %v634
        %4126 = vmatprep.subr.mxu0 0.0
        %4127 = vmatpush1.msra.mxu0 0.0
        %4128 = vmatprep.subr.mxu0 0.0
        %4129 = vmatpush1.msra.mxu0 0.0
        %4130 = vmatprep.subr.mxu0 0.0
        %4131 = vmatpush1.msra.mxu0 0.0
        %4132 = vmatprep.subr.mxu0 0.0
        %4133 = vmatpush1.msra.mxu0 0.0
        %4134 = vmatprep.subr.mxu0 0.0
        %4135 = vmatpush1.msra.mxu0 0.0
        %4136 = vmatprep.subr.mxu0 0.0
        %4137 = vmatpush1.msra.mxu0 0.0
        %4138 = vmatprep.subr.mxu0 0.0
        %4139 = vmatpush1.msra.mxu0 0.0
        %4140 = vmatprep.subr.mxu0 0.0
        %4141 = vmatpush1.msra.mxu0 0.0
        %4142 = vmatprep.subr.mxu0 0.0
        %4143 = vmatpush1.msra.mxu0 0.0
        %4144 = vmatprep.subr.mxu0 0.0
        %4145 = vmatpush1.msra.mxu0 0.0
        %4146 = vmatprep.subr.mxu0 0.0
        %4147 = vmatpush1.msra.mxu0 0.0
        %4148 = vmatprep.subr.mxu0 0.0
        %4149 = vmatpush1.msra.mxu0 0.0
        %4150 = vmatprep.subr.mxu0 0.0
        %4151 = vmatpush1.msra.mxu0 0.0
        %4152 = vmatprep.subr.mxu0 0.0
        %4153 = vmatpush1.msra.mxu0 0.0
        %4154 = vmatprep.subr.mxu0 0.0
        %4155 = vmatpush1.msra.mxu0 0.0
        %4156 = vmatprep.subr.mxu0 0.0
        %4157 = vmatpush1.msra.mxu0 0.0
        %4158 = vmatprep.subr.mxu0 0.0
        %4159 = vmatpush1.msra.mxu0 0.0
        %4160 = vmatprep.subr.mxu0 0.0
        %4161 = vmatpush1.msra.mxu0 0.0
        %4162 = vmatprep.subr.mxu0 0.0
        %4163 = vmatpush1.msra.mxu0 0.0
        %4164 = vmatprep.subr.mxu0 0.0
        %4165 = vmatpush1.msra.mxu0 0.0
        %4166 = vmatprep.subr.mxu0 0.0
        %4167 = vmatpush1.msra.mxu0 0.0
        %4168 = vmatprep.subr.mxu0 0.0
        %4169 = vmatpush1.msra.mxu0 0.0
        %4170 = vmatprep.subr.mxu0 0.0
        %4171 = vmatpush1.msra.mxu0 0.0
        %4172 = vmatprep.subr.mxu0 0.0
        %4173 = vmatpush1.msra.mxu0 0.0
        %4174 = vmatprep.subr.mxu0 0.0
        %4175 = vmatpush1.msra.mxu0 0.0
        %4176 = vmatprep.subr.mxu0 0.0
        %4177 = vmatpush1.msra.mxu0 0.0
        %4178 = vmatprep.subr.mxu0 0.0
        %4179 = vmatpush1.msra.mxu0 0.0
        %4180 = vmatprep.subr.mxu0 0.0
        %4181 = vmatpush1.msra.mxu0 0.0
        %4182 = vmatprep.subr.mxu0 0.0
        %4183 = vmatpush1.msra.mxu0 0.0
        %4184 = vmatprep.subr.mxu0 0.0
        %4185 = vmatpush1.msra.mxu0 0.0
        %4186 = vmatprep.subr.mxu0 0.0
        %4187 = vmatpush1.msra.mxu0 0.0
        %4188 = vmatprep.mubr.f32.mxu0 0.0
        %4189 = vmatmul.mubr.f32.gmra.mrb[0].mxu0 %v4029
        %v4190 = vpop.f32.mrb[0].mxu0
        %v4191 = vadd.f32 0.0, %v4190
        %v4192 = vpop.f32.mrb[0].mxu0
        %4193 = vmatprep.mubr.f32.mxu0 0.0
        %4194 = vmatmul.mubr.f32.gmra.mrb[0].mxu0 %v4032
        %v4195 = vpop.f32.mrb[0].mxu0
        %v4196 = vadd.f32 0.0, %v4195
        %v4197 = vpop.f32.mrb[0].mxu0
        %4198 = vmatprep.mubr.f32.mxu0 0.0
        %4199 = vmatmul.mubr.f32.gmra.mrb[0].mxu0 %v4035
        %v4200 = vpop.f32.mrb[0].mxu0
        %v4201 = vadd.f32 0.0, %v4200
        %v4202 = vpop.f32.mrb[0].mxu0
        %4203 = vmatprep.mubr.f32.mxu0 0.0
        %4204 = vmatmul.mubr.f32.gmra.mrb[0].mxu0 %v4038
        %v4205 = vpop.f32.mrb[0].mxu0
        %v4206 = vadd.f32 0.0, %v4205
        %v4207 = vpop.f32.mrb[0].mxu0
        %4208 = vmatprep.mubr.f32.mxu0 0.0
        %4209 = vmatmul.mubr.f32.gmra.mrb[0].mxu0 %v4041
        %v4210 = vpop.f32.mrb[0].mxu0
        %v4211 = vadd.f32 0.0, %v4210
        %v4212 = vpop.f32.mrb[0].mxu0
        %4213 = vmatprep.mubr.f32.mxu0 0.0
        %4214 = vmatmul.mubr.f32.gmra.mrb[0].mxu0 %v4044
        %v4215 = vpop.f32.mrb[0].mxu0
        %v4216 = vadd.f32 0.0, %v4215
        %v4217 = vpop.f32.mrb[0].mxu0
        %4218 = vmatprep.mubr.f32.mxu0 0.0
        %4219 = vmatmul.mubr.f32.gmra.mrb[0].mxu0 %v4047
        %v4220 = vpop.f32.mrb[0].mxu0
        %v4221 = vadd.f32 0.0, %v4220
        %v4222 = vpop.f32.mrb[0].mxu0
        %4223 = vmatprep.mubr.f32.mxu0 0.0
        %4224 = vmatmul.mubr.f32.gmra.mrb[0].mxu0 %v4050
        %v4225 = vpop.f32.mrb[0].mxu0
        %v4226 = vadd.f32 0.0, %v4225
        %v4227 = vpop.f32.mrb[0].mxu0
        %4228 = vmatprep.mubr.f32.mxu0 0.0
        %4229 = vmatmul.mubr.f32.gmra.mrb[0].mxu0 %v4053
        %v4230 = vpop.f32.mrb[0].mxu0
        %v4231 = vadd.f32 0.0, %v4230
        %v4232 = vpop.f32.mrb[0].mxu0
        %4233 = vmatprep.mubr.f32.mxu0 0.0
        %4234 = vmatmul.mubr.f32.gmra.mrb[0].mxu0 %v4056
        %v4235 = vpop.f32.mrb[0].mxu0
        %v4236 = vadd.f32 0.0, %v4235
        %v4237 = vpop.f32.mrb[0].mxu0
        %4238 = vmatprep.mubr.f32.mxu0 0.0
        %4239 = vmatmul.mubr.f32.gmra.mrb[0].mxu0 %v4059
        %v4240 = vpop.f32.mrb[0].mxu0
        %v4241 = vadd.f32 0.0, %v4240
        %v4242 = vpop.f32.mrb[0].mxu0
        %4243 = vmatprep.mubr.f32.mxu0 0.0
        %4244 = vmatmul.mubr.f32.gmra.mrb[0].mxu0 %v4062
        %v4245 = vpop.f32.mrb[0].mxu0
        %v4246 = vadd.f32 0.0, %v4245
        %v4247 = vpop.f32.mrb[0].mxu0
        %4248 = vmatprep.mubr.f32.mxu0 0.0
        %4249 = vmatmul.mubr.f32.gmra.mrb[0].mxu0 %v4065
        %v4250 = vpop.f32.mrb[0].mxu0
        %v4251 = vadd.f32 0.0, %v4250
        %v4252 = vpop.f32.mrb[0].mxu0
        %4253 = vmatprep.mubr.f32.mxu0 0.0
        %4254 = vmatmul.mubr.f32.gmra.mrb[0].mxu0 %v4068
        %v4255 = vpop.f32.mrb[0].mxu0
        %v4256 = vadd.f32 0.0, %v4255
        %v4257 = vpop.f32.mrb[0].mxu0
        %4258 = vmatprep.mubr.f32.mxu0 0.0
        %4259 = vmatmul.mubr.f32.gmra.mrb[0].mxu0 %v4071
        %v4260 = vpop.f32.mrb[0].mxu0
        %v4261 = vadd.f32 0.0, %v4260
        %v4262 = vpop.f32.mrb[0].mxu0
        %4263 = vmatprep.mubr.f32.mxu0 0.0
        %4264 = vmatmul.mubr.f32.gmra.mrb[0].mxu0 %v4074
        %v4265 = vpop.f32.mrb[0].mxu0
        %v4266 = vadd.f32 0.0, %v4265
        %v4267 = vpop.f32.mrb[0].mxu0
        %4268 = vmatprep.mubr.f32.mxu0 0.0
        %4269 = vmatmul.mubr.f32.gmra.mrb[0].mxu0 %v4077
        %v4270 = vpop.f32.mrb[0].mxu0
        %v4271 = vadd.f32 0.0, %v4270
        %v4272 = vpop.f32.mrb[0].mxu0
        %4273 = vmatprep.mubr.f32.mxu0 0.0
        %4274 = vmatmul.mubr.f32.gmra.mrb[0].mxu0 %v4080
        %v4275 = vpop.f32.mrb[0].mxu0
        %v4276 = vadd.f32 0.0, %v4275
        %v4277 = vpop.f32.mrb[0].mxu0
        %4278 = vmatprep.mubr.f32.mxu0 0.0
        %4279 = vmatmul.mubr.f32.gmra.mrb[0].mxu0 %v4083
        %v4280 = vpop.f32.mrb[0].mxu0
        %v4281 = vadd.f32 0.0, %v4280
        %v4282 = vpop.f32.mrb[0].mxu0
        %4283 = vmatprep.mubr.f32.mxu0 0.0
        %4284 = vmatmul.mubr.f32.gmra.mrb[0].mxu0 %v4086
        %v4285 = vpop.f32.mrb[0].mxu0
        %v4286 = vadd.f32 0.0, %v4285
        %v4287 = vpop.f32.mrb[0].mxu0
        %4288 = vmatprep.mubr.f32.mxu0 0.0
        %4289 = vmatmul.mubr.f32.gmra.mrb[0].mxu0 %v4089
        %v4290 = vpop.f32.mrb[0].mxu0
        %v4291 = vadd.f32 0.0, %v4290
        %v4292 = vpop.f32.mrb[0].mxu0
        %4293 = vmatprep.mubr.f32.mxu0 0.0
        %4294 = vmatmul.mubr.f32.gmra.mrb[0].mxu0 %v4092
        %v4295 = vpop.f32.mrb[0].mxu0
        %v4296 = vadd.f32 0.0, %v4295
        %v4297 = vpop.f32.mrb[0].mxu0
        %4298 = vmatprep.mubr.f32.mxu0 0.0
        %4299 = vmatmul.mubr.f32.gmra.mrb[0].mxu0 %v4095
        %v4300 = vpop.f32.mrb[0].mxu0
        %v4301 = vadd.f32 0.0, %v4300
        %v4302 = vpop.f32.mrb[0].mxu0
        %4303 = vmatprep.mubr.f32.mxu0 0.0
        %4304 = vmatmul.mubr.f32.gmra.mrb[0].mxu0 %v4098
        %v4305 = vpop.f32.mrb[0].mxu0
        %v4306 = vadd.f32 0.0, %v4305
        %v4307 = vpop.f32.mrb[0].mxu0
        %4308 = vmatprep.mubr.f32.mxu0 0.0
        %4309 = vmatmul.mubr.f32.gmra.mrb[0].mxu0 %v4101
        %v4310 = vpop.f32.mrb[0].mxu0
        %v4311 = vadd.f32 0.0, %v4310
        %v4312 = vpop.f32.mrb[0].mxu0
        %4313 = vmatprep.mubr.f32.mxu0 0.0
        %4314 = vmatmul.mubr.f32.gmra.mrb[0].mxu0 %v4104
        %v4315 = vpop.f32.mrb[0].mxu0
        %v4316 = vadd.f32 0.0, %v4315
        %v4317 = vpop.f32.mrb[0].mxu0
        %4318 = vmatprep.mubr.f32.mxu0 0.0
        %4319 = vmatmul.mubr.f32.gmra.mrb[0].mxu0 %v4107
        %v4320 = vpop.f32.mrb[0].mxu0
        %v4321 = vadd.f32 0.0, %v4320
        %v4322 = vpop.f32.mrb[0].mxu0
        %4323 = vmatprep.mubr.f32.mxu0 0.0
        %4324 = vmatmul.mubr.f32.gmra.mrb[0].mxu0 %v4110
        %v4325 = vpop.f32.mrb[0].mxu0
        %v4326 = vadd.f32 0.0, %v4325
        %v4327 = vpop.f32.mrb[0].mxu0
        %4328 = vmatprep.mubr.f32.mxu0 0.0
        %4329 = vmatmul.mubr.f32.gmra.mrb[0].mxu0 %v4113
        %v4330 = vpop.f32.mrb[0].mxu0
        %v4331 = vadd.f32 0.0, %v4330
        %v4332 = vpop.f32.mrb[0].mxu0
        %4333 = vmatprep.mubr.f32.mxu0 0.0
        %4334 = vmatmul.mubr.f32.gmra.mrb[0].mxu0 %v4116
        %v4335 = vpop.f32.mrb[0].mxu0
        %v4336 = vadd.f32 0.0, %v4335
        %v4337 = vpop.f32.mrb[0].mxu0
        %4338 = vmatprep.mubr.f32.mxu0 0.0
        %4339 = vmatmul.mubr.f32.gmra.mrb[0].mxu0 %v4119
        %v4340 = vpop.f32.mrb[0].mxu0
        %v4341 = vadd.f32 0.0, %v4340
        %v4342 = vpop.f32.mrb[0].mxu0
        %4343 = vmatprep.mubr.f32.mxu0 0.0
        %4344 = vmatmul.mubr.f32.gmra.mrb[0].mxu0 %v4122
        %v4345 = vpop.f32.mrb[0].mxu0
        %v4346 = vadd.f32 0.0, %v4345
        %v4347 = vpop.f32.mrb[0].mxu0
        %4348 = vdwg.mxu0
        %v4349 = vadd.f32 %v3704, %v4191
        %v4350 = vadd.f32 %v3705, %v4196
        %v4351 = vadd.f32 %v3706, %v4201
        %v4352 = vadd.f32 %v3707, %v4206
        %v4353 = vadd.f32 %v3708, %v4211
        %v4354 = vadd.f32 %v3709, %v4216
        %v4355 = vadd.f32 %v3710, %v4221
        %v4356 = vadd.f32 %v3711, %v4226
        %v4357 = vadd.f32 %v3712, %v4231
        %v4358 = vadd.f32 %v3713, %v4236
        %v4359 = vadd.f32 %v3714, %v4241
        %v4360 = vadd.f32 %v3715, %v4246
        %v4361 = vadd.f32 %v3716, %v4251
        %v4362 = vadd.f32 %v3717, %v4256
        %v4363 = vadd.f32 %v3718, %v4261
        %v4364 = vadd.f32 %v3719, %v4266
        %v4365 = vadd.f32 %v3720, %v4271
        %v4366 = vadd.f32 %v3721, %v4276
        %v4367 = vadd.f32 %v3722, %v4281
        %v4368 = vadd.f32 %v3723, %v4286
        %v4369 = vadd.f32 %v3724, %v4291
        %v4370 = vadd.f32 %v3725, %v4296
        %v4371 = vadd.f32 %v3726, %v4301
        %v4372 = vadd.f32 %v3727, %v4306
        %v4373 = vadd.f32 %v3728, %v4311
        %v4374 = vadd.f32 %v3729, %v4316
        %v4375 = vadd.f32 %v3730, %v4321
        %v4376 = vadd.f32 %v3731, %v4326
        %v4377 = vadd.f32 %v3732, %v4331
        %v4378 = vadd.f32 %v3733, %v4336
        %v4379 = vadd.f32 %v3734, %v4341
        %v4380 = vadd.f32 %v3735, %v4346
        %s4381 = scalar_lea.vmem [#allocation2], 48
        %v4382 = vld [vmem:[%s4381] sm:$0xff]
        %v4383 = vld [vmem:[%s4381 + $0x8] sm:$0xff]
        %v4384 = vld [vmem:[%s4381 + $0x18] sm:$0xff]
        %v4385 = vld [vmem:[%s4381 + $0x20] sm:$0xff]
        %v4386 = vld [vmem:[%s4381 + $0x30] sm:$0xff]
        %v4387 = vld [vmem:[%s4381 + $0x38] sm:$0xff]
        %v4388 = vld [vmem:[%s4381 + $0x48] sm:$0xff]
        %v4389 = vld [vmem:[%s4381 + $0x50] sm:$0xff]
        %v4390 = vld [vmem:[%s4381 + $0x60] sm:$0xff]
        %v4391 = vld [vmem:[%s4381 + $0x68] sm:$0xff]
        %v4392 = vld [vmem:[%s4381 + $0x78] sm:$0xff]
        %v4393 = vld [vmem:[%s4381 + $0x80] sm:$0xff]
        %v4394 = vld [vmem:[%s4381 + $0x90] sm:$0xff]
        %v4395 = vld [vmem:[%s4381 + $0x98] sm:$0xff]
        %v4396 = vld [vmem:[%s4381 + $0xa8] sm:$0xff]
        %v4397 = vld [vmem:[%s4381 + $0xb0] sm:$0xff]
        %v4398 = vld [vmem:[%s4381 + $0xc0] sm:$0xff]
        %v4399 = vld [vmem:[%s4381 + $0xc8] sm:$0xff]
        %v4400 = vld [vmem:[%s4381 + $0xd8] sm:$0xff]
        %v4401 = vld [vmem:[%s4381 + $0xe0] sm:$0xff]
        %v4402 = vld [vmem:[%s4381 + $0xf0] sm:$0xff]
        %v4403 = vld [vmem:[%s4381 + $0xf8] sm:$0xff]
        %v4404 = vld [vmem:[%s4381 + $0x108] sm:$0xff]
        %v4405 = vld [vmem:[%s4381 + $0x110] sm:$0xff]
        %v4406 = vld [vmem:[%s4381 + $0x120] sm:$0xff]
        %v4407 = vld [vmem:[%s4381 + $0x128] sm:$0xff]
        %v4408 = vld [vmem:[%s4381 + $0x138] sm:$0xff]
        %v4409 = vld [vmem:[%s4381 + $0x140] sm:$0xff]
        %v4410 = vld [vmem:[%s4381 + $0x150] sm:$0xff]
        %v4411 = vld [vmem:[%s4381 + $0x158] sm:$0xff]
        %v4412 = vld [vmem:[%s4381 + $0x168] sm:$0xff]
        %v4413 = vld [vmem:[%s4381 + $0x170] sm:$0xff]
        %v4414 = vpack.c.bf16 %v4383, %v4382
        %v4415 = vpack.c.bf16 %v4385, %v4384
        %v4416 = vpack.c.bf16 %v4387, %v4386
        %v4417 = vpack.c.bf16 %v4389, %v4388
        %v4418 = vpack.c.bf16 %v4391, %v4390
        %v4419 = vpack.c.bf16 %v4393, %v4392
        %v4420 = vpack.c.bf16 %v4395, %v4394
        %v4421 = vpack.c.bf16 %v4397, %v4396
        %v4422 = vpack.c.bf16 %v4399, %v4398
        %v4423 = vpack.c.bf16 %v4401, %v4400
        %v4424 = vpack.c.bf16 %v4403, %v4402
        %v4425 = vpack.c.bf16 %v4405, %v4404
        %v4426 = vpack.c.bf16 %v4407, %v4406
        %v4427 = vpack.c.bf16 %v4409, %v4408
        %v4428 = vpack.c.bf16 %v4411, %v4410
        %v4429 = vpack.c.bf16 %v4413, %v4412
        %v4431 = vsel %vm532, %v4414, 0
        %v4434 = vsel %vm532, %v4415, 0
        %v4437 = vsel %vm532, %v4416, 0
        %v4440 = vsel %vm532, %v4417, 0
        %v4443 = vsel %vm532, %v4418, 0
        %v4446 = vsel %vm532, %v4419, 0
        %v4449 = vsel %vm532, %v4420, 0
        %v4452 = vsel %vm532, %v4421, 0
        %v4455 = vsel %vm532, %v4422, 0
        %v4458 = vsel %vm532, %v4423, 0
        %v4461 = vsel %vm532, %v4424, 0
        %v4464 = vsel %vm532, %v4425, 0
        %v4467 = vsel %vm532, %v4426, 0
        %v4470 = vsel %vm532, %v4427, 0
        %v4473 = vsel %vm532, %v4428, 0
        %v4476 = vsel %vm532, %v4429, 0
        %v4479 = vsel %vm782, %v626, 0
        %4481 = vmatprep.subr.bf16.mxu0 0
        %4482 = vmatpush1.bf16.msra.mxu0 %v4479
        %4483 = vmatprep.subr.bf16.mxu0 0
        %4484 = vmatpush1.bf16.msra.mxu0 0
        %4485 = vmatprep.subr.bf16.mxu0 0
        %4486 = vmatpush1.bf16.msra.mxu0 0
        %4487 = vmatprep.subr.bf16.mxu0 0
        %4488 = vmatpush1.bf16.msra.mxu0 0
        %4489 = vmatprep.subr.bf16.mxu0 0
        %4490 = vmatpush1.bf16.msra.mxu0 0
        %4491 = vmatprep.subr.bf16.mxu0 0
        %4492 = vmatpush1.bf16.msra.mxu0 0
        %4493 = vmatprep.subr.bf16.mxu0 0
        %4494 = vmatpush1.bf16.msra.mxu0 0
        %4495 = vmatprep.subr.bf16.mxu0 0
        %4496 = vmatpush1.bf16.msra.mxu0 0
        %4497 = vmatprep.subr.bf16.mxu0 0
        %4498 = vmatpush1.bf16.msra.mxu0 0
        %4499 = vmatprep.subr.bf16.mxu0 0
        %4500 = vmatpush1.bf16.msra.mxu0 0
        %4501 = vmatprep.subr.bf16.mxu0 0
        %4502 = vmatpush1.bf16.msra.mxu0 0
        %4503 = vmatprep.subr.bf16.mxu0 0
        %4504 = vmatpush1.bf16.msra.mxu0 0
        %4505 = vmatprep.subr.bf16.mxu0 0
        %4506 = vmatpush1.bf16.msra.mxu0 0
        %4507 = vmatprep.subr.bf16.mxu0 0
        %4508 = vmatpush1.bf16.msra.mxu0 0
        %4509 = vmatprep.subr.bf16.mxu0 0
        %4510 = vmatpush1.bf16.msra.mxu0 0
        %4511 = vmatprep.subr.bf16.mxu0 0
        %4512 = vmatpush1.bf16.msra.mxu0 0
        %4513 = vmatprep.mubr.bf16.mxu0 0
        %4514 = vmatmul.mubr.bf16.gmra.mrb[0].mxu0 %v4431
        %v4515 = vpop.f32.mrb[0].mxu0
        %v4516 = vadd.f32 0.0, %v4515
        %v4517 = vpop.f32.mrb[0].mxu0
        %v4518 = vpop.f32.mrb[0].mxu0
        %v4519 = vadd.f32 0.0, %v4518
        %v4520 = vpop.f32.mrb[0].mxu0
        %4521 = vmatprep.mubr.bf16.mxu0 0
        %4522 = vmatmul.mubr.bf16.gmra.mrb[0].mxu0 %v4434
        %v4523 = vpop.f32.mrb[0].mxu0
        %v4524 = vadd.f32 0.0, %v4523
        %v4525 = vpop.f32.mrb[0].mxu0
        %v4526 = vpop.f32.mrb[0].mxu0
        %v4527 = vadd.f32 0.0, %v4526
        %v4528 = vpop.f32.mrb[0].mxu0
        %4529 = vmatprep.mubr.bf16.mxu0 0
        %4530 = vmatmul.mubr.bf16.gmra.mrb[0].mxu0 %v4437
        %v4531 = vpop.f32.mrb[0].mxu0
        %v4532 = vadd.f32 0.0, %v4531
        %v4533 = vpop.f32.mrb[0].mxu0
        %v4534 = vpop.f32.mrb[0].mxu0
        %v4535 = vadd.f32 0.0, %v4534
        %v4536 = vpop.f32.mrb[0].mxu0
        %4537 = vmatprep.mubr.bf16.mxu0 0
        %4538 = vmatmul.mubr.bf16.gmra.mrb[0].mxu0 %v4440
        %v4539 = vpop.f32.mrb[0].mxu0
        %v4540 = vadd.f32 0.0, %v4539
        %v4541 = vpop.f32.mrb[0].mxu0
        %v4542 = vpop.f32.mrb[0].mxu0
        %v4543 = vadd.f32 0.0, %v4542
        %v4544 = vpop.f32.mrb[0].mxu0
        %4545 = vmatprep.mubr.bf16.mxu0 0
        %4546 = vmatmul.mubr.bf16.gmra.mrb[0].mxu0 %v4443
        %v4547 = vpop.f32.mrb[0].mxu0
        %v4548 = vadd.f32 0.0, %v4547
        %v4549 = vpop.f32.mrb[0].mxu0
        %v4550 = vpop.f32.mrb[0].mxu0
        %v4551 = vadd.f32 0.0, %v4550
        %v4552 = vpop.f32.mrb[0].mxu0
        %4553 = vmatprep.mubr.bf16.mxu0 0
        %4554 = vmatmul.mubr.bf16.gmra.mrb[0].mxu0 %v4446
        %v4555 = vpop.f32.mrb[0].mxu0
        %v4556 = vadd.f32 0.0, %v4555
        %v4557 = vpop.f32.mrb[0].mxu0
        %v4558 = vpop.f32.mrb[0].mxu0
        %v4559 = vadd.f32 0.0, %v4558
        %v4560 = vpop.f32.mrb[0].mxu0
        %4561 = vmatprep.mubr.bf16.mxu0 0
        %4562 = vmatmul.mubr.bf16.gmra.mrb[0].mxu0 %v4449
        %v4563 = vpop.f32.mrb[0].mxu0
        %v4564 = vadd.f32 0.0, %v4563
        %v4565 = vpop.f32.mrb[0].mxu0
        %v4566 = vpop.f32.mrb[0].mxu0
        %v4567 = vadd.f32 0.0, %v4566
        %v4568 = vpop.f32.mrb[0].mxu0
        %4569 = vmatprep.mubr.bf16.mxu0 0
        %4570 = vmatmul.mubr.bf16.gmra.mrb[0].mxu0 %v4452
        %v4571 = vpop.f32.mrb[0].mxu0
        %v4572 = vadd.f32 0.0, %v4571
        %v4573 = vpop.f32.mrb[0].mxu0
        %v4574 = vpop.f32.mrb[0].mxu0
        %v4575 = vadd.f32 0.0, %v4574
        %v4576 = vpop.f32.mrb[0].mxu0
        %4577 = vmatprep.mubr.bf16.mxu0 0
        %4578 = vmatmul.mubr.bf16.gmra.mrb[0].mxu0 %v4455
        %v4579 = vpop.f32.mrb[0].mxu0
        %v4580 = vadd.f32 0.0, %v4579
        %v4581 = vpop.f32.mrb[0].mxu0
        %v4582 = vpop.f32.mrb[0].mxu0
        %v4583 = vadd.f32 0.0, %v4582
        %v4584 = vpop.f32.mrb[0].mxu0
        %4585 = vmatprep.mubr.bf16.mxu0 0
        %4586 = vmatmul.mubr.bf16.gmra.mrb[0].mxu0 %v4458
        %v4587 = vpop.f32.mrb[0].mxu0
        %v4588 = vadd.f32 0.0, %v4587
        %v4589 = vpop.f32.mrb[0].mxu0
        %v4590 = vpop.f32.mrb[0].mxu0
        %v4591 = vadd.f32 0.0, %v4590
        %v4592 = vpop.f32.mrb[0].mxu0
        %4593 = vmatprep.mubr.bf16.mxu0 0
        %4594 = vmatmul.mubr.bf16.gmra.mrb[0].mxu0 %v4461
        %v4595 = vpop.f32.mrb[0].mxu0
        %v4596 = vadd.f32 0.0, %v4595
        %v4597 = vpop.f32.mrb[0].mxu0
        %v4598 = vpop.f32.mrb[0].mxu0
        %v4599 = vadd.f32 0.0, %v4598
        %v4600 = vpop.f32.mrb[0].mxu0
        %4601 = vmatprep.mubr.bf16.mxu0 0
        %4602 = vmatmul.mubr.bf16.gmra.mrb[0].mxu0 %v4464
        %v4603 = vpop.f32.mrb[0].mxu0
        %v4604 = vadd.f32 0.0, %v4603
        %v4605 = vpop.f32.mrb[0].mxu0
        %v4606 = vpop.f32.mrb[0].mxu0
        %v4607 = vadd.f32 0.0, %v4606
        %v4608 = vpop.f32.mrb[0].mxu0
        %4609 = vmatprep.mubr.bf16.mxu0 0
        %4610 = vmatmul.mubr.bf16.gmra.mrb[0].mxu0 %v4467
        %v4611 = vpop.f32.mrb[0].mxu0
        %v4612 = vadd.f32 0.0, %v4611
        %v4613 = vpop.f32.mrb[0].mxu0
        %v4614 = vpop.f32.mrb[0].mxu0
        %v4615 = vadd.f32 0.0, %v4614
        %v4616 = vpop.f32.mrb[0].mxu0
        %4617 = vmatprep.mubr.bf16.mxu0 0
        %4618 = vmatmul.mubr.bf16.gmra.mrb[0].mxu0 %v4470
        %v4619 = vpop.f32.mrb[0].mxu0
        %v4620 = vadd.f32 0.0, %v4619
        %v4621 = vpop.f32.mrb[0].mxu0
        %v4622 = vpop.f32.mrb[0].mxu0
        %v4623 = vadd.f32 0.0, %v4622
        %v4624 = vpop.f32.mrb[0].mxu0
        %4625 = vmatprep.mubr.bf16.mxu0 0
        %4626 = vmatmul.mubr.bf16.gmra.mrb[0].mxu0 %v4473
        %v4627 = vpop.f32.mrb[0].mxu0
        %v4628 = vadd.f32 0.0, %v4627
        %v4629 = vpop.f32.mrb[0].mxu0
        %v4630 = vpop.f32.mrb[0].mxu0
        %v4631 = vadd.f32 0.0, %v4630
        %v4632 = vpop.f32.mrb[0].mxu0
        %4633 = vmatprep.mubr.bf16.mxu0 0
        %4634 = vmatmul.mubr.bf16.gmra.mrb[0].mxu0 %v4476
        %v4635 = vpop.f32.mrb[0].mxu0
        %v4636 = vadd.f32 0.0, %v4635
        %v4637 = vpop.f32.mrb[0].mxu0
        %v4638 = vpop.f32.mrb[0].mxu0
        %v4639 = vadd.f32 0.0, %v4638
        %v4640 = vpop.f32.mrb[0].mxu0
        %4641 = vdwg.mxu0
        %v4642 = vadd.f32 %v3996, %v4516
        %v4643 = vadd.f32 %v3997, %v4519
        %v4644 = vadd.f32 %v3998, %v4524
        %v4645 = vadd.f32 %v3999, %v4527
        %v4646 = vadd.f32 %v4000, %v4532
        %v4647 = vadd.f32 %v4001, %v4535
        %v4648 = vadd.f32 %v4002, %v4540
        %v4649 = vadd.f32 %v4003, %v4543
        %v4650 = vadd.f32 %v4004, %v4548
        %v4651 = vadd.f32 %v4005, %v4551
        %v4652 = vadd.f32 %v4006, %v4556
        %v4653 = vadd.f32 %v4007, %v4559
        %v4654 = vadd.f32 %v4008, %v4564
        %v4655 = vadd.f32 %v4009, %v4567
        %v4656 = vadd.f32 %v4010, %v4572
        %v4657 = vadd.f32 %v4011, %v4575
        %v4658 = vadd.f32 %v4012, %v4580
        %v4659 = vadd.f32 %v4013, %v4583
        %v4660 = vadd.f32 %v4014, %v4588
        %v4661 = vadd.f32 %v4015, %v4591
        %v4662 = vadd.f32 %v4016, %v4596
        %v4663 = vadd.f32 %v4017, %v4599
        %v4664 = vadd.f32 %v4018, %v4604
        %v4665 = vadd.f32 %v4019, %v4607
        %v4666 = vadd.f32 %v4020, %v4612
        %v4667 = vadd.f32 %v4021, %v4615
        %v4668 = vadd.f32 %v4022, %v4620
        %v4669 = vadd.f32 %v4023, %v4623
        %v4670 = vadd.f32 %v4024, %v4628
        %v4671 = vadd.f32 %v4025, %v4631
        %v4672 = vadd.f32 %v4026, %v4636
        %v4673 = vadd.f32 %v4027, %v4639
        %v4675 = vsel %vm532, %v4382, 0
        %v4678 = vsel %vm532, %v4383, 0
        %v4681 = vsel %vm532, %v4384, 0
        %v4684 = vsel %vm532, %v4385, 0
        %v4687 = vsel %vm532, %v4386, 0
        %v4690 = vsel %vm532, %v4387, 0
        %v4693 = vsel %vm532, %v4388, 0
        %v4696 = vsel %vm532, %v4389, 0
        %v4699 = vsel %vm532, %v4390, 0
        %v4702 = vsel %vm532, %v4391, 0
        %v4705 = vsel %vm532, %v4392, 0
        %v4708 = vsel %vm532, %v4393, 0
        %v4711 = vsel %vm532, %v4394, 0
        %v4714 = vsel %vm532, %v4395, 0
        %v4717 = vsel %vm532, %v4396, 0
        %v4720 = vsel %vm532, %v4397, 0
        %v4723 = vsel %vm532, %v4398, 0
        %v4726 = vsel %vm532, %v4399, 0
        %v4729 = vsel %vm532, %v4400, 0
        %v4732 = vsel %vm532, %v4401, 0
        %v4735 = vsel %vm532, %v4402, 0
        %v4738 = vsel %vm532, %v4403, 0
        %v4741 = vsel %vm532, %v4404, 0
        %v4744 = vsel %vm532, %v4405, 0
        %v4747 = vsel %vm532, %v4406, 0
        %v4750 = vsel %vm532, %v4407, 0
        %v4753 = vsel %vm532, %v4408, 0
        %v4756 = vsel %vm532, %v4409, 0
        %v4759 = vsel %vm532, %v4410, 0
        %v4762 = vsel %vm532, %v4411, 0
        %v4765 = vsel %vm532, %v4412, 0
        %v4768 = vsel %vm532, %v4413, 0
        %4770 = vmatprep.subr.mxu0 0.0
        %4771 = vmatpush1.msra.mxu0 %v635
        %4772 = vmatprep.subr.mxu0 0.0
        %4773 = vmatpush1.msra.mxu0 0.0
        %4774 = vmatprep.subr.mxu0 0.0
        %4775 = vmatpush1.msra.mxu0 0.0
        %4776 = vmatprep.subr.mxu0 0.0
        %4777 = vmatpush1.msra.mxu0 0.0
        %4778 = vmatprep.subr.mxu0 0.0
        %4779 = vmatpush1.msra.mxu0 0.0
        %4780 = vmatprep.subr.mxu0 0.0
        %4781 = vmatpush1.msra.mxu0 0.0
        %4782 = vmatprep.subr.mxu0 0.0
        %4783 = vmatpush1.msra.mxu0 0.0
        %4784 = vmatprep.subr.mxu0 0.0
        %4785 = vmatpush1.msra.mxu0 0.0
        %4786 = vmatprep.subr.mxu0 0.0
        %4787 = vmatpush1.msra.mxu0 0.0
        %4788 = vmatprep.subr.mxu0 0.0
        %4789 = vmatpush1.msra.mxu0 0.0
        %4790 = vmatprep.subr.mxu0 0.0
        %4791 = vmatpush1.msra.mxu0 0.0
        %4792 = vmatprep.subr.mxu0 0.0
        %4793 = vmatpush1.msra.mxu0 0.0
        %4794 = vmatprep.subr.mxu0 0.0
        %4795 = vmatpush1.msra.mxu0 0.0
        %4796 = vmatprep.subr.mxu0 0.0
        %4797 = vmatpush1.msra.mxu0 0.0
        %4798 = vmatprep.subr.mxu0 0.0
        %4799 = vmatpush1.msra.mxu0 0.0
        %4800 = vmatprep.subr.mxu0 0.0
        %4801 = vmatpush1.msra.mxu0 0.0
        %4802 = vmatprep.subr.mxu0 0.0
        %4803 = vmatpush1.msra.mxu0 0.0
        %4804 = vmatprep.subr.mxu0 0.0
        %4805 = vmatpush1.msra.mxu0 0.0
        %4806 = vmatprep.subr.mxu0 0.0
        %4807 = vmatpush1.msra.mxu0 0.0
        %4808 = vmatprep.subr.mxu0 0.0
        %4809 = vmatpush1.msra.mxu0 0.0
        %4810 = vmatprep.subr.mxu0 0.0
        %4811 = vmatpush1.msra.mxu0 0.0
        %4812 = vmatprep.subr.mxu0 0.0
        %4813 = vmatpush1.msra.mxu0 0.0
        %4814 = vmatprep.subr.mxu0 0.0
        %4815 = vmatpush1.msra.mxu0 0.0
        %4816 = vmatprep.subr.mxu0 0.0
        %4817 = vmatpush1.msra.mxu0 0.0
        %4818 = vmatprep.subr.mxu0 0.0
        %4819 = vmatpush1.msra.mxu0 0.0
        %4820 = vmatprep.subr.mxu0 0.0
        %4821 = vmatpush1.msra.mxu0 0.0
        %4822 = vmatprep.subr.mxu0 0.0
        %4823 = vmatpush1.msra.mxu0 0.0
        %4824 = vmatprep.subr.mxu0 0.0
        %4825 = vmatpush1.msra.mxu0 0.0
        %4826 = vmatprep.subr.mxu0 0.0
        %4827 = vmatpush1.msra.mxu0 0.0
        %4828 = vmatprep.subr.mxu0 0.0
        %4829 = vmatpush1.msra.mxu0 0.0
        %4830 = vmatprep.subr.mxu0 0.0
        %4831 = vmatpush1.msra.mxu0 0.0
        %4832 = vmatprep.subr.mxu0 0.0
        %4833 = vmatpush1.msra.mxu0 0.0
        %4834 = vmatprep.mubr.f32.mxu0 0.0
        %4835 = vmatmul.mubr.f32.gmra.mrb[0].mxu0 %v4675
        %v4836 = vpop.f32.mrb[0].mxu0
        %v4837 = vadd.f32 0.0, %v4836
        %v4838 = vpop.f32.mrb[0].mxu0
        %4839 = vmatprep.mubr.f32.mxu0 0.0
        %4840 = vmatmul.mubr.f32.gmra.mrb[0].mxu0 %v4678
        %v4841 = vpop.f32.mrb[0].mxu0
        %v4842 = vadd.f32 0.0, %v4841
        %v4843 = vpop.f32.mrb[0].mxu0
        %4844 = vmatprep.mubr.f32.mxu0 0.0
        %4845 = vmatmul.mubr.f32.gmra.mrb[0].mxu0 %v4681
        %v4846 = vpop.f32.mrb[0].mxu0
        %v4847 = vadd.f32 0.0, %v4846
        %v4848 = vpop.f32.mrb[0].mxu0
        %4849 = vmatprep.mubr.f32.mxu0 0.0
        %4850 = vmatmul.mubr.f32.gmra.mrb[0].mxu0 %v4684
        %v4851 = vpop.f32.mrb[0].mxu0
        %v4852 = vadd.f32 0.0, %v4851
        %v4853 = vpop.f32.mrb[0].mxu0
        %4854 = vmatprep.mubr.f32.mxu0 0.0
        %4855 = vmatmul.mubr.f32.gmra.mrb[0].mxu0 %v4687
        %v4856 = vpop.f32.mrb[0].mxu0
        %v4857 = vadd.f32 0.0, %v4856
        %v4858 = vpop.f32.mrb[0].mxu0
        %4859 = vmatprep.mubr.f32.mxu0 0.0
        %4860 = vmatmul.mubr.f32.gmra.mrb[0].mxu0 %v4690
        %v4861 = vpop.f32.mrb[0].mxu0
        %v4862 = vadd.f32 0.0, %v4861
        %v4863 = vpop.f32.mrb[0].mxu0
        %4864 = vmatprep.mubr.f32.mxu0 0.0
        %4865 = vmatmul.mubr.f32.gmra.mrb[0].mxu0 %v4693
        %v4866 = vpop.f32.mrb[0].mxu0
        %v4867 = vadd.f32 0.0, %v4866
        %v4868 = vpop.f32.mrb[0].mxu0
        %4869 = vmatprep.mubr.f32.mxu0 0.0
        %4870 = vmatmul.mubr.f32.gmra.mrb[0].mxu0 %v4696
        %v4871 = vpop.f32.mrb[0].mxu0
        %v4872 = vadd.f32 0.0, %v4871
        %v4873 = vpop.f32.mrb[0].mxu0
        %4874 = vmatprep.mubr.f32.mxu0 0.0
        %4875 = vmatmul.mubr.f32.gmra.mrb[0].mxu0 %v4699
        %v4876 = vpop.f32.mrb[0].mxu0
        %v4877 = vadd.f32 0.0, %v4876
        %v4878 = vpop.f32.mrb[0].mxu0
        %4879 = vmatprep.mubr.f32.mxu0 0.0
        %4880 = vmatmul.mubr.f32.gmra.mrb[0].mxu0 %v4702
        %v4881 = vpop.f32.mrb[0].mxu0
        %v4882 = vadd.f32 0.0, %v4881
        %v4883 = vpop.f32.mrb[0].mxu0
        %4884 = vmatprep.mubr.f32.mxu0 0.0
        %4885 = vmatmul.mubr.f32.gmra.mrb[0].mxu0 %v4705
        %v4886 = vpop.f32.mrb[0].mxu0
        %v4887 = vadd.f32 0.0, %v4886
        %v4888 = vpop.f32.mrb[0].mxu0
        %4889 = vmatprep.mubr.f32.mxu0 0.0
        %4890 = vmatmul.mubr.f32.gmra.mrb[0].mxu0 %v4708
        %v4891 = vpop.f32.mrb[0].mxu0
        %v4892 = vadd.f32 0.0, %v4891
        %v4893 = vpop.f32.mrb[0].mxu0
        %4894 = vmatprep.mubr.f32.mxu0 0.0
        %4895 = vmatmul.mubr.f32.gmra.mrb[0].mxu0 %v4711
        %v4896 = vpop.f32.mrb[0].mxu0
        %v4897 = vadd.f32 0.0, %v4896
        %v4898 = vpop.f32.mrb[0].mxu0
        %4899 = vmatprep.mubr.f32.mxu0 0.0
        %4900 = vmatmul.mubr.f32.gmra.mrb[0].mxu0 %v4714
        %v4901 = vpop.f32.mrb[0].mxu0
        %v4902 = vadd.f32 0.0, %v4901
        %v4903 = vpop.f32.mrb[0].mxu0
        %4904 = vmatprep.mubr.f32.mxu0 0.0
        %4905 = vmatmul.mubr.f32.gmra.mrb[0].mxu0 %v4717
        %v4906 = vpop.f32.mrb[0].mxu0
        %v4907 = vadd.f32 0.0, %v4906
        %v4908 = vpop.f32.mrb[0].mxu0
        %4909 = vmatprep.mubr.f32.mxu0 0.0
        %4910 = vmatmul.mubr.f32.gmra.mrb[0].mxu0 %v4720
        %v4911 = vpop.f32.mrb[0].mxu0
        %v4912 = vadd.f32 0.0, %v4911
        %v4913 = vpop.f32.mrb[0].mxu0
        %4914 = vmatprep.mubr.f32.mxu0 0.0
        %4915 = vmatmul.mubr.f32.gmra.mrb[0].mxu0 %v4723
        %v4916 = vpop.f32.mrb[0].mxu0
        %v4917 = vadd.f32 0.0, %v4916
        %v4918 = vpop.f32.mrb[0].mxu0
        %4919 = vmatprep.mubr.f32.mxu0 0.0
        %4920 = vmatmul.mubr.f32.gmra.mrb[0].mxu0 %v4726
        %v4921 = vpop.f32.mrb[0].mxu0
        %v4922 = vadd.f32 0.0, %v4921
        %v4923 = vpop.f32.mrb[0].mxu0
        %4924 = vmatprep.mubr.f32.mxu0 0.0
        %4925 = vmatmul.mubr.f32.gmra.mrb[0].mxu0 %v4729
        %v4926 = vpop.f32.mrb[0].mxu0
        %v4927 = vadd.f32 0.0, %v4926
        %v4928 = vpop.f32.mrb[0].mxu0
        %4929 = vmatprep.mubr.f32.mxu0 0.0
        %4930 = vmatmul.mubr.f32.gmra.mrb[0].mxu0 %v4732
        %v4931 = vpop.f32.mrb[0].mxu0
        %v4932 = vadd.f32 0.0, %v4931
        %v4933 = vpop.f32.mrb[0].mxu0
        %4934 = vmatprep.mubr.f32.mxu0 0.0
        %4935 = vmatmul.mubr.f32.gmra.mrb[0].mxu0 %v4735
        %v4936 = vpop.f32.mrb[0].mxu0
        %v4937 = vadd.f32 0.0, %v4936
        %v4938 = vpop.f32.mrb[0].mxu0
        %4939 = vmatprep.mubr.f32.mxu0 0.0
        %4940 = vmatmul.mubr.f32.gmra.mrb[0].mxu0 %v4738
        %v4941 = vpop.f32.mrb[0].mxu0
        %v4942 = vadd.f32 0.0, %v4941
        %v4943 = vpop.f32.mrb[0].mxu0
        %4944 = vmatprep.mubr.f32.mxu0 0.0
        %4945 = vmatmul.mubr.f32.gmra.mrb[0].mxu0 %v4741
        %v4946 = vpop.f32.mrb[0].mxu0
        %v4947 = vadd.f32 0.0, %v4946
        %v4948 = vpop.f32.mrb[0].mxu0
        %4949 = vmatprep.mubr.f32.mxu0 0.0
        %4950 = vmatmul.mubr.f32.gmra.mrb[0].mxu0 %v4744
        %v4951 = vpop.f32.mrb[0].mxu0
        %v4952 = vadd.f32 0.0, %v4951
        %v4953 = vpop.f32.mrb[0].mxu0
        %4954 = vmatprep.mubr.f32.mxu0 0.0
        %4955 = vmatmul.mubr.f32.gmra.mrb[0].mxu0 %v4747
        %v4956 = vpop.f32.mrb[0].mxu0
        %v4957 = vadd.f32 0.0, %v4956
        %v4958 = vpop.f32.mrb[0].mxu0
        %4959 = vmatprep.mubr.f32.mxu0 0.0
        %4960 = vmatmul.mubr.f32.gmra.mrb[0].mxu0 %v4750
        %v4961 = vpop.f32.mrb[0].mxu0
        %v4962 = vadd.f32 0.0, %v4961
        %v4963 = vpop.f32.mrb[0].mxu0
        %4964 = vmatprep.mubr.f32.mxu0 0.0
        %4965 = vmatmul.mubr.f32.gmra.mrb[0].mxu0 %v4753
        %v4966 = vpop.f32.mrb[0].mxu0
        %v4967 = vadd.f32 0.0, %v4966
        %v4968 = vpop.f32.mrb[0].mxu0
        %4969 = vmatprep.mubr.f32.mxu0 0.0
        %4970 = vmatmul.mubr.f32.gmra.mrb[0].mxu0 %v4756
        %v4971 = vpop.f32.mrb[0].mxu0
        %v4972 = vadd.f32 0.0, %v4971
        %v4973 = vpop.f32.mrb[0].mxu0
        %4974 = vmatprep.mubr.f32.mxu0 0.0
        %4975 = vmatmul.mubr.f32.gmra.mrb[0].mxu0 %v4759
        %v4976 = vpop.f32.mrb[0].mxu0
        %v4977 = vadd.f32 0.0, %v4976
        %v4978 = vpop.f32.mrb[0].mxu0
        %4979 = vmatprep.mubr.f32.mxu0 0.0
        %4980 = vmatmul.mubr.f32.gmra.mrb[0].mxu0 %v4762
        %v4981 = vpop.f32.mrb[0].mxu0
        %v4982 = vadd.f32 0.0, %v4981
        %v4983 = vpop.f32.mrb[0].mxu0
        %4984 = vmatprep.mubr.f32.mxu0 0.0
        %4985 = vmatmul.mubr.f32.gmra.mrb[0].mxu0 %v4765
        %v4986 = vpop.f32.mrb[0].mxu0
        %v4987 = vadd.f32 0.0, %v4986
        %v4988 = vpop.f32.mrb[0].mxu0
        %4989 = vmatprep.mubr.f32.mxu0 0.0
        %4990 = vmatmul.mubr.f32.gmra.mrb[0].mxu0 %v4768
        %v4991 = vpop.f32.mrb[0].mxu0
        %v4992 = vadd.f32 0.0, %v4991
        %v4993 = vpop.f32.mrb[0].mxu0
        %4994 = vdwg.mxu0
        %v4995 = vadd.f32 %v4349, %v4837
        %v4996 = vadd.f32 %v4350, %v4842
        %v4997 = vadd.f32 %v4351, %v4847
        %v4998 = vadd.f32 %v4352, %v4852
        %v4999 = vadd.f32 %v4353, %v4857
        %v5000 = vadd.f32 %v4354, %v4862
        %v5001 = vadd.f32 %v4355, %v4867
        %v5002 = vadd.f32 %v4356, %v4872
        %v5003 = vadd.f32 %v4357, %v4877
        %v5004 = vadd.f32 %v4358, %v4882
        %v5005 = vadd.f32 %v4359, %v4887
        %v5006 = vadd.f32 %v4360, %v4892
        %v5007 = vadd.f32 %v4361, %v4897
        %v5008 = vadd.f32 %v4362, %v4902
        %v5009 = vadd.f32 %v4363, %v4907
        %v5010 = vadd.f32 %v4364, %v4912
        %v5011 = vadd.f32 %v4365, %v4917
        %v5012 = vadd.f32 %v4366, %v4922
        %v5013 = vadd.f32 %v4367, %v4927
        %v5014 = vadd.f32 %v4368, %v4932
        %v5015 = vadd.f32 %v4369, %v4937
        %v5016 = vadd.f32 %v4370, %v4942
        %v5017 = vadd.f32 %v4371, %v4947
        %v5018 = vadd.f32 %v4372, %v4952
        %v5019 = vadd.f32 %v4373, %v4957
        %v5020 = vadd.f32 %v4374, %v4962
        %v5021 = vadd.f32 %v4375, %v4967
        %v5022 = vadd.f32 %v4376, %v4972
        %v5023 = vadd.f32 %v4377, %v4977
        %v5024 = vadd.f32 %v4378, %v4982
        %v5025 = vadd.f32 %v4379, %v4987
        %v5026 = vadd.f32 %v4380, %v4992
        %v5027 = vld [vmem:[%s4381 + $0x1] sm:$0xff]
        %v5028 = vld [vmem:[%s4381 + $0x9] sm:$0xff]
        %v5029 = vld [vmem:[%s4381 + $0x19] sm:$0xff]
        %v5030 = vld [vmem:[%s4381 + $0x21] sm:$0xff]
        %v5031 = vld [vmem:[%s4381 + $0x31] sm:$0xff]
        %v5032 = vld [vmem:[%s4381 + $0x39] sm:$0xff]
        %v5033 = vld [vmem:[%s4381 + $0x49] sm:$0xff]
        %v5034 = vld [vmem:[%s4381 + $0x51] sm:$0xff]
        %v5035 = vld [vmem:[%s4381 + $0x61] sm:$0xff]
        %v5036 = vld [vmem:[%s4381 + $0x69] sm:$0xff]
        %v5037 = vld [vmem:[%s4381 + $0x79] sm:$0xff]
        %v5038 = vld [vmem:[%s4381 + $0x81] sm:$0xff]
        %v5039 = vld [vmem:[%s4381 + $0x91] sm:$0xff]
        %v5040 = vld [vmem:[%s4381 + $0x99] sm:$0xff]
        %v5041 = vld [vmem:[%s4381 + $0xa9] sm:$0xff]
        %v5042 = vld [vmem:[%s4381 + $0xb1] sm:$0xff]
        %v5043 = vld [vmem:[%s4381 + $0xc1] sm:$0xff]
        %v5044 = vld [vmem:[%s4381 + $0xc9] sm:$0xff]
        %v5045 = vld [vmem:[%s4381 + $0xd9] sm:$0xff]
        %v5046 = vld [vmem:[%s4381 + $0xe1] sm:$0xff]
        %v5047 = vld [vmem:[%s4381 + $0xf1] sm:$0xff]
        %v5048 = vld [vmem:[%s4381 + $0xf9] sm:$0xff]
        %v5049 = vld [vmem:[%s4381 + $0x109] sm:$0xff]
        %v5050 = vld [vmem:[%s4381 + $0x111] sm:$0xff]
        %v5051 = vld [vmem:[%s4381 + $0x121] sm:$0xff]
        %v5052 = vld [vmem:[%s4381 + $0x129] sm:$0xff]
        %v5053 = vld [vmem:[%s4381 + $0x139] sm:$0xff]
        %v5054 = vld [vmem:[%s4381 + $0x141] sm:$0xff]
        %v5055 = vld [vmem:[%s4381 + $0x151] sm:$0xff]
        %v5056 = vld [vmem:[%s4381 + $0x159] sm:$0xff]
        %v5057 = vld [vmem:[%s4381 + $0x169] sm:$0xff]
        %v5058 = vld [vmem:[%s4381 + $0x171] sm:$0xff]
        %v5059 = vpack.c.bf16 %v5028, %v5027
        %v5060 = vpack.c.bf16 %v5030, %v5029
        %v5061 = vpack.c.bf16 %v5032, %v5031
        %v5062 = vpack.c.bf16 %v5034, %v5033
        %v5063 = vpack.c.bf16 %v5036, %v5035
        %v5064 = vpack.c.bf16 %v5038, %v5037
        %v5065 = vpack.c.bf16 %v5040, %v5039
        %v5066 = vpack.c.bf16 %v5042, %v5041
        %v5067 = vpack.c.bf16 %v5044, %v5043
        %v5068 = vpack.c.bf16 %v5046, %v5045
        %v5069 = vpack.c.bf16 %v5048, %v5047
        %v5070 = vpack.c.bf16 %v5050, %v5049
        %v5071 = vpack.c.bf16 %v5052, %v5051
        %v5072 = vpack.c.bf16 %v5054, %v5053
        %v5073 = vpack.c.bf16 %v5056, %v5055
        %v5074 = vpack.c.bf16 %v5058, %v5057
        %v5076 = vsel %vm532, %v5059, 0
        %v5079 = vsel %vm532, %v5060, 0
        %v5082 = vsel %vm532, %v5061, 0
        %v5085 = vsel %vm532, %v5062, 0
        %v5088 = vsel %vm532, %v5063, 0
        %v5091 = vsel %vm532, %v5064, 0
        %v5094 = vsel %vm532, %v5065, 0
        %v5097 = vsel %vm532, %v5066, 0
        %v5100 = vsel %vm532, %v5067, 0
        %v5103 = vsel %vm532, %v5068, 0
        %v5106 = vsel %vm532, %v5069, 0
        %v5109 = vsel %vm532, %v5070, 0
        %v5112 = vsel %vm532, %v5071, 0
        %v5115 = vsel %vm532, %v5072, 0
        %v5118 = vsel %vm532, %v5073, 0
        %v5121 = vsel %vm532, %v5074, 0
        %v5124 = vsel %vm782, %v627, 0
        %5126 = vmatprep.subr.bf16.mxu0 0
        %5127 = vmatpush1.bf16.msra.mxu0 %v5124
        %5128 = vmatprep.subr.bf16.mxu0 0
        %5129 = vmatpush1.bf16.msra.mxu0 0
        %5130 = vmatprep.subr.bf16.mxu0 0
        %5131 = vmatpush1.bf16.msra.mxu0 0
        %5132 = vmatprep.subr.bf16.mxu0 0
        %5133 = vmatpush1.bf16.msra.mxu0 0
        %5134 = vmatprep.subr.bf16.mxu0 0
        %5135 = vmatpush1.bf16.msra.mxu0 0
        %5136 = vmatprep.subr.bf16.mxu0 0
        %5137 = vmatpush1.bf16.msra.mxu0 0
        %5138 = vmatprep.subr.bf16.mxu0 0
        %5139 = vmatpush1.bf16.msra.mxu0 0
        %5140 = vmatprep.subr.bf16.mxu0 0
        %5141 = vmatpush1.bf16.msra.mxu0 0
        %5142 = vmatprep.subr.bf16.mxu0 0
        %5143 = vmatpush1.bf16.msra.mxu0 0
        %5144 = vmatprep.subr.bf16.mxu0 0
        %5145 = vmatpush1.bf16.msra.mxu0 0
        %5146 = vmatprep.subr.bf16.mxu0 0
        %5147 = vmatpush1.bf16.msra.mxu0 0
        %5148 = vmatprep.subr.bf16.mxu0 0
        %5149 = vmatpush1.bf16.msra.mxu0 0
        %5150 = vmatprep.subr.bf16.mxu0 0
        %5151 = vmatpush1.bf16.msra.mxu0 0
        %5152 = vmatprep.subr.bf16.mxu0 0
        %5153 = vmatpush1.bf16.msra.mxu0 0
        %5154 = vmatprep.subr.bf16.mxu0 0
        %5155 = vmatpush1.bf16.msra.mxu0 0
        %5156 = vmatprep.subr.bf16.mxu0 0
        %5157 = vmatpush1.bf16.msra.mxu0 0
        %5158 = vmatprep.mubr.bf16.mxu0 0
        %5159 = vmatmul.mubr.bf16.gmra.mrb[0].mxu0 %v5076
        %v5160 = vpop.f32.mrb[0].mxu0
        %v5161 = vadd.f32 0.0, %v5160
        %v5162 = vpop.f32.mrb[0].mxu0
        %v5163 = vpop.f32.mrb[0].mxu0
        %v5164 = vadd.f32 0.0, %v5163
        %v5165 = vpop.f32.mrb[0].mxu0
        %5166 = vmatprep.mubr.bf16.mxu0 0
        %5167 = vmatmul.mubr.bf16.gmra.mrb[0].mxu0 %v5079
        %v5168 = vpop.f32.mrb[0].mxu0
        %v5169 = vadd.f32 0.0, %v5168
        %v5170 = vpop.f32.mrb[0].mxu0
        %v5171 = vpop.f32.mrb[0].mxu0
        %v5172 = vadd.f32 0.0, %v5171
        %v5173 = vpop.f32.mrb[0].mxu0
        %5174 = vmatprep.mubr.bf16.mxu0 0
        %5175 = vmatmul.mubr.bf16.gmra.mrb[0].mxu0 %v5082
        %v5176 = vpop.f32.mrb[0].mxu0
        %v5177 = vadd.f32 0.0, %v5176
        %v5178 = vpop.f32.mrb[0].mxu0
        %v5179 = vpop.f32.mrb[0].mxu0
        %v5180 = vadd.f32 0.0, %v5179
        %v5181 = vpop.f32.mrb[0].mxu0
        %5182 = vmatprep.mubr.bf16.mxu0 0
        %5183 = vmatmul.mubr.bf16.gmra.mrb[0].mxu0 %v5085
        %v5184 = vpop.f32.mrb[0].mxu0
        %v5185 = vadd.f32 0.0, %v5184
        %v5186 = vpop.f32.mrb[0].mxu0
        %v5187 = vpop.f32.mrb[0].mxu0
        %v5188 = vadd.f32 0.0, %v5187
        %v5189 = vpop.f32.mrb[0].mxu0
        %5190 = vmatprep.mubr.bf16.mxu0 0
        %5191 = vmatmul.mubr.bf16.gmra.mrb[0].mxu0 %v5088
        %v5192 = vpop.f32.mrb[0].mxu0
        %v5193 = vadd.f32 0.0, %v5192
        %v5194 = vpop.f32.mrb[0].mxu0
        %v5195 = vpop.f32.mrb[0].mxu0
        %v5196 = vadd.f32 0.0, %v5195
        %v5197 = vpop.f32.mrb[0].mxu0
        %5198 = vmatprep.mubr.bf16.mxu0 0
        %5199 = vmatmul.mubr.bf16.gmra.mrb[0].mxu0 %v5091
        %v5200 = vpop.f32.mrb[0].mxu0
        %v5201 = vadd.f32 0.0, %v5200
        %v5202 = vpop.f32.mrb[0].mxu0
        %v5203 = vpop.f32.mrb[0].mxu0
        %v5204 = vadd.f32 0.0, %v5203
        %v5205 = vpop.f32.mrb[0].mxu0
        %5206 = vmatprep.mubr.bf16.mxu0 0
        %5207 = vmatmul.mubr.bf16.gmra.mrb[0].mxu0 %v5094
        %v5208 = vpop.f32.mrb[0].mxu0
        %v5209 = vadd.f32 0.0, %v5208
        %v5210 = vpop.f32.mrb[0].mxu0
        %v5211 = vpop.f32.mrb[0].mxu0
        %v5212 = vadd.f32 0.0, %v5211
        %v5213 = vpop.f32.mrb[0].mxu0
        %5214 = vmatprep.mubr.bf16.mxu0 0
        %5215 = vmatmul.mubr.bf16.gmra.mrb[0].mxu0 %v5097
        %v5216 = vpop.f32.mrb[0].mxu0
        %v5217 = vadd.f32 0.0, %v5216
        %v5218 = vpop.f32.mrb[0].mxu0
        %v5219 = vpop.f32.mrb[0].mxu0
        %v5220 = vadd.f32 0.0, %v5219
        %v5221 = vpop.f32.mrb[0].mxu0
        %5222 = vmatprep.mubr.bf16.mxu0 0
        %5223 = vmatmul.mubr.bf16.gmra.mrb[0].mxu0 %v5100
        %v5224 = vpop.f32.mrb[0].mxu0
        %v5225 = vadd.f32 0.0, %v5224
        %v5226 = vpop.f32.mrb[0].mxu0
        %v5227 = vpop.f32.mrb[0].mxu0
        %v5228 = vadd.f32 0.0, %v5227
        %v5229 = vpop.f32.mrb[0].mxu0
        %5230 = vmatprep.mubr.bf16.mxu0 0
        %5231 = vmatmul.mubr.bf16.gmra.mrb[0].mxu0 %v5103
        %v5232 = vpop.f32.mrb[0].mxu0
        %v5233 = vadd.f32 0.0, %v5232
        %v5234 = vpop.f32.mrb[0].mxu0
        %v5235 = vpop.f32.mrb[0].mxu0
        %v5236 = vadd.f32 0.0, %v5235
        %v5237 = vpop.f32.mrb[0].mxu0
        %5238 = vmatprep.mubr.bf16.mxu0 0
        %5239 = vmatmul.mubr.bf16.gmra.mrb[0].mxu0 %v5106
        %v5240 = vpop.f32.mrb[0].mxu0
        %v5241 = vadd.f32 0.0, %v5240
        %v5242 = vpop.f32.mrb[0].mxu0
        %v5243 = vpop.f32.mrb[0].mxu0
        %v5244 = vadd.f32 0.0, %v5243
        %v5245 = vpop.f32.mrb[0].mxu0
        %5246 = vmatprep.mubr.bf16.mxu0 0
        %5247 = vmatmul.mubr.bf16.gmra.mrb[0].mxu0 %v5109
        %v5248 = vpop.f32.mrb[0].mxu0
        %v5249 = vadd.f32 0.0, %v5248
        %v5250 = vpop.f32.mrb[0].mxu0
        %v5251 = vpop.f32.mrb[0].mxu0
        %v5252 = vadd.f32 0.0, %v5251
        %v5253 = vpop.f32.mrb[0].mxu0
        %5254 = vmatprep.mubr.bf16.mxu0 0
        %5255 = vmatmul.mubr.bf16.gmra.mrb[0].mxu0 %v5112
        %v5256 = vpop.f32.mrb[0].mxu0
        %v5257 = vadd.f32 0.0, %v5256
        %v5258 = vpop.f32.mrb[0].mxu0
        %v5259 = vpop.f32.mrb[0].mxu0
        %v5260 = vadd.f32 0.0, %v5259
        %v5261 = vpop.f32.mrb[0].mxu0
        %5262 = vmatprep.mubr.bf16.mxu0 0
        %5263 = vmatmul.mubr.bf16.gmra.mrb[0].mxu0 %v5115
        %v5264 = vpop.f32.mrb[0].mxu0
        %v5265 = vadd.f32 0.0, %v5264
        %v5266 = vpop.f32.mrb[0].mxu0
        %v5267 = vpop.f32.mrb[0].mxu0
        %v5268 = vadd.f32 0.0, %v5267
        %v5269 = vpop.f32.mrb[0].mxu0
        %5270 = vmatprep.mubr.bf16.mxu0 0
        %5271 = vmatmul.mubr.bf16.gmra.mrb[0].mxu0 %v5118
        %v5272 = vpop.f32.mrb[0].mxu0
        %v5273 = vadd.f32 0.0, %v5272
        %v5274 = vpop.f32.mrb[0].mxu0
        %v5275 = vpop.f32.mrb[0].mxu0
        %v5276 = vadd.f32 0.0, %v5275
        %v5277 = vpop.f32.mrb[0].mxu0
        %5278 = vmatprep.mubr.bf16.mxu0 0
        %5279 = vmatmul.mubr.bf16.gmra.mrb[0].mxu0 %v5121
        %v5280 = vpop.f32.mrb[0].mxu0
        %v5281 = vadd.f32 0.0, %v5280
        %v5282 = vpop.f32.mrb[0].mxu0
        %v5283 = vpop.f32.mrb[0].mxu0
        %v5284 = vadd.f32 0.0, %v5283
        %v5285 = vpop.f32.mrb[0].mxu0
        %5286 = vdwg.mxu0
        %v5287 = vadd.f32 %v4642, %v5161
        %v5288 = vadd.f32 %v4643, %v5164
        %v5289 = vadd.f32 %v4644, %v5169
        %v5290 = vadd.f32 %v4645, %v5172
        %v5291 = vadd.f32 %v4646, %v5177
        %v5292 = vadd.f32 %v4647, %v5180
        %v5293 = vadd.f32 %v4648, %v5185
        %v5294 = vadd.f32 %v4649, %v5188
        %v5295 = vadd.f32 %v4650, %v5193
        %v5296 = vadd.f32 %v4651, %v5196
        %v5297 = vadd.f32 %v4652, %v5201
        %v5298 = vadd.f32 %v4653, %v5204
        %v5299 = vadd.f32 %v4654, %v5209
        %v5300 = vadd.f32 %v4655, %v5212
        %v5301 = vadd.f32 %v4656, %v5217
        %v5302 = vadd.f32 %v4657, %v5220
        %v5303 = vadd.f32 %v4658, %v5225
        %v5304 = vadd.f32 %v4659, %v5228
        %v5305 = vadd.f32 %v4660, %v5233
        %v5306 = vadd.f32 %v4661, %v5236
        %v5307 = vadd.f32 %v4662, %v5241
        %v5308 = vadd.f32 %v4663, %v5244
        %v5309 = vadd.f32 %v4664, %v5249
        %v5310 = vadd.f32 %v4665, %v5252
        %v5311 = vadd.f32 %v4666, %v5257
        %v5312 = vadd.f32 %v4667, %v5260
        %v5313 = vadd.f32 %v4668, %v5265
        %v5314 = vadd.f32 %v4669, %v5268
        %v5315 = vadd.f32 %v4670, %v5273
        %v5316 = vadd.f32 %v4671, %v5276
        %v5317 = vadd.f32 %v4672, %v5281
        %v5318 = vadd.f32 %v4673, %v5284
        %v5320 = vsel %vm532, %v5027, 0
        %v5323 = vsel %vm532, %v5028, 0
        %v5326 = vsel %vm532, %v5029, 0
        %v5329 = vsel %vm532, %v5030, 0
        %v5332 = vsel %vm532, %v5031, 0
        %v5335 = vsel %vm532, %v5032, 0
        %v5338 = vsel %vm532, %v5033, 0
        %v5341 = vsel %vm532, %v5034, 0
        %v5344 = vsel %vm532, %v5035, 0
        %v5347 = vsel %vm532, %v5036, 0
        %v5350 = vsel %vm532, %v5037, 0
        %v5353 = vsel %vm532, %v5038, 0
        %v5356 = vsel %vm532, %v5039, 0
        %v5359 = vsel %vm532, %v5040, 0
        %v5362 = vsel %vm532, %v5041, 0
        %v5365 = vsel %vm532, %v5042, 0
        %v5368 = vsel %vm532, %v5043, 0
        %v5371 = vsel %vm532, %v5044, 0
        %v5374 = vsel %vm532, %v5045, 0
        %v5377 = vsel %vm532, %v5046, 0
        %v5380 = vsel %vm532, %v5047, 0
        %v5383 = vsel %vm532, %v5048, 0
        %v5386 = vsel %vm532, %v5049, 0
        %v5389 = vsel %vm532, %v5050, 0
        %v5392 = vsel %vm532, %v5051, 0
        %v5395 = vsel %vm532, %v5052, 0
        %v5398 = vsel %vm532, %v5053, 0
        %v5401 = vsel %vm532, %v5054, 0
        %v5404 = vsel %vm532, %v5055, 0
        %v5407 = vsel %vm532, %v5056, 0
        %v5410 = vsel %vm532, %v5057, 0
        %v5413 = vsel %vm532, %v5058, 0
        %5415 = vmatprep.subr.mxu0 0.0
        %5416 = vmatpush1.msra.mxu0 %v636
        %5417 = vmatprep.subr.mxu0 0.0
        %5418 = vmatpush1.msra.mxu0 0.0
        %5419 = vmatprep.subr.mxu0 0.0
        %5420 = vmatpush1.msra.mxu0 0.0
        %5421 = vmatprep.subr.mxu0 0.0
        %5422 = vmatpush1.msra.mxu0 0.0
        %5423 = vmatprep.subr.mxu0 0.0
        %5424 = vmatpush1.msra.mxu0 0.0
        %5425 = vmatprep.subr.mxu0 0.0
        %5426 = vmatpush1.msra.mxu0 0.0
        %5427 = vmatprep.subr.mxu0 0.0
        %5428 = vmatpush1.msra.mxu0 0.0
        %5429 = vmatprep.subr.mxu0 0.0
        %5430 = vmatpush1.msra.mxu0 0.0
        %5431 = vmatprep.subr.mxu0 0.0
        %5432 = vmatpush1.msra.mxu0 0.0
        %5433 = vmatprep.subr.mxu0 0.0
        %5434 = vmatpush1.msra.mxu0 0.0
        %5435 = vmatprep.subr.mxu0 0.0
        %5436 = vmatpush1.msra.mxu0 0.0
        %5437 = vmatprep.subr.mxu0 0.0
        %5438 = vmatpush1.msra.mxu0 0.0
        %5439 = vmatprep.subr.mxu0 0.0
        %5440 = vmatpush1.msra.mxu0 0.0
        %5441 = vmatprep.subr.mxu0 0.0
        %5442 = vmatpush1.msra.mxu0 0.0
        %5443 = vmatprep.subr.mxu0 0.0
        %5444 = vmatpush1.msra.mxu0 0.0
        %5445 = vmatprep.subr.mxu0 0.0
        %5446 = vmatpush1.msra.mxu0 0.0
        %5447 = vmatprep.subr.mxu0 0.0
        %5448 = vmatpush1.msra.mxu0 0.0
        %5449 = vmatprep.subr.mxu0 0.0
        %5450 = vmatpush1.msra.mxu0 0.0
        %5451 = vmatprep.subr.mxu0 0.0
        %5452 = vmatpush1.msra.mxu0 0.0
        %5453 = vmatprep.subr.mxu0 0.0
        %5454 = vmatpush1.msra.mxu0 0.0
        %5455 = vmatprep.subr.mxu0 0.0
        %5456 = vmatpush1.msra.mxu0 0.0
        %5457 = vmatprep.subr.mxu0 0.0
        %5458 = vmatpush1.msra.mxu0 0.0
        %5459 = vmatprep.subr.mxu0 0.0
        %5460 = vmatpush1.msra.mxu0 0.0
        %5461 = vmatprep.subr.mxu0 0.0
        %5462 = vmatpush1.msra.mxu0 0.0
        %5463 = vmatprep.subr.mxu0 0.0
        %5464 = vmatpush1.msra.mxu0 0.0
        %5465 = vmatprep.subr.mxu0 0.0
        %5466 = vmatpush1.msra.mxu0 0.0
        %5467 = vmatprep.subr.mxu0 0.0
        %5468 = vmatpush1.msra.mxu0 0.0
        %5469 = vmatprep.subr.mxu0 0.0
        %5470 = vmatpush1.msra.mxu0 0.0
        %5471 = vmatprep.subr.mxu0 0.0
        %5472 = vmatpush1.msra.mxu0 0.0
        %5473 = vmatprep.subr.mxu0 0.0
        %5474 = vmatpush1.msra.mxu0 0.0
        %5475 = vmatprep.subr.mxu0 0.0
        %5476 = vmatpush1.msra.mxu0 0.0
        %5477 = vmatprep.subr.mxu0 0.0
        %5478 = vmatpush1.msra.mxu0 0.0
        %5479 = vmatprep.mubr.f32.mxu0 0.0
        %5480 = vmatmul.mubr.f32.gmra.mrb[0].mxu0 %v5320
        %v5481 = vpop.f32.mrb[0].mxu0
        %v5482 = vadd.f32 0.0, %v5481
        %v5483 = vpop.f32.mrb[0].mxu0
        %5484 = vmatprep.mubr.f32.mxu0 0.0
        %5485 = vmatmul.mubr.f32.gmra.mrb[0].mxu0 %v5323
        %v5486 = vpop.f32.mrb[0].mxu0
        %v5487 = vadd.f32 0.0, %v5486
        %v5488 = vpop.f32.mrb[0].mxu0
        %5489 = vmatprep.mubr.f32.mxu0 0.0
        %5490 = vmatmul.mubr.f32.gmra.mrb[0].mxu0 %v5326
        %v5491 = vpop.f32.mrb[0].mxu0
        %v5492 = vadd.f32 0.0, %v5491
        %v5493 = vpop.f32.mrb[0].mxu0
        %5494 = vmatprep.mubr.f32.mxu0 0.0
        %5495 = vmatmul.mubr.f32.gmra.mrb[0].mxu0 %v5329
        %v5496 = vpop.f32.mrb[0].mxu0
        %v5497 = vadd.f32 0.0, %v5496
        %v5498 = vpop.f32.mrb[0].mxu0
        %5499 = vmatprep.mubr.f32.mxu0 0.0
        %5500 = vmatmul.mubr.f32.gmra.mrb[0].mxu0 %v5332
        %v5501 = vpop.f32.mrb[0].mxu0
        %v5502 = vadd.f32 0.0, %v5501
        %v5503 = vpop.f32.mrb[0].mxu0
        %5504 = vmatprep.mubr.f32.mxu0 0.0
        %5505 = vmatmul.mubr.f32.gmra.mrb[0].mxu0 %v5335
        %v5506 = vpop.f32.mrb[0].mxu0
        %v5507 = vadd.f32 0.0, %v5506
        %v5508 = vpop.f32.mrb[0].mxu0
        %5509 = vmatprep.mubr.f32.mxu0 0.0
        %5510 = vmatmul.mubr.f32.gmra.mrb[0].mxu0 %v5338
        %v5511 = vpop.f32.mrb[0].mxu0
        %v5512 = vadd.f32 0.0, %v5511
        %v5513 = vpop.f32.mrb[0].mxu0
        %5514 = vmatprep.mubr.f32.mxu0 0.0
        %5515 = vmatmul.mubr.f32.gmra.mrb[0].mxu0 %v5341
        %v5516 = vpop.f32.mrb[0].mxu0
        %v5517 = vadd.f32 0.0, %v5516
        %v5518 = vpop.f32.mrb[0].mxu0
        %5519 = vmatprep.mubr.f32.mxu0 0.0
        %5520 = vmatmul.mubr.f32.gmra.mrb[0].mxu0 %v5344
        %v5521 = vpop.f32.mrb[0].mxu0
        %v5522 = vadd.f32 0.0, %v5521
        %v5523 = vpop.f32.mrb[0].mxu0
        %5524 = vmatprep.mubr.f32.mxu0 0.0
        %5525 = vmatmul.mubr.f32.gmra.mrb[0].mxu0 %v5347
        %v5526 = vpop.f32.mrb[0].mxu0
        %v5527 = vadd.f32 0.0, %v5526
        %v5528 = vpop.f32.mrb[0].mxu0
        %5529 = vmatprep.mubr.f32.mxu0 0.0
        %5530 = vmatmul.mubr.f32.gmra.mrb[0].mxu0 %v5350
        %v5531 = vpop.f32.mrb[0].mxu0
        %v5532 = vadd.f32 0.0, %v5531
        %v5533 = vpop.f32.mrb[0].mxu0
        %5534 = vmatprep.mubr.f32.mxu0 0.0
        %5535 = vmatmul.mubr.f32.gmra.mrb[0].mxu0 %v5353
        %v5536 = vpop.f32.mrb[0].mxu0
        %v5537 = vadd.f32 0.0, %v5536
        %v5538 = vpop.f32.mrb[0].mxu0
        %5539 = vmatprep.mubr.f32.mxu0 0.0
        %5540 = vmatmul.mubr.f32.gmra.mrb[0].mxu0 %v5356
        %v5541 = vpop.f32.mrb[0].mxu0
        %v5542 = vadd.f32 0.0, %v5541
        %v5543 = vpop.f32.mrb[0].mxu0
        %5544 = vmatprep.mubr.f32.mxu0 0.0
        %5545 = vmatmul.mubr.f32.gmra.mrb[0].mxu0 %v5359
        %v5546 = vpop.f32.mrb[0].mxu0
        %v5547 = vadd.f32 0.0, %v5546
        %v5548 = vpop.f32.mrb[0].mxu0
        %5549 = vmatprep.mubr.f32.mxu0 0.0
        %5550 = vmatmul.mubr.f32.gmra.mrb[0].mxu0 %v5362
        %v5551 = vpop.f32.mrb[0].mxu0
        %v5552 = vadd.f32 0.0, %v5551
        %v5553 = vpop.f32.mrb[0].mxu0
        %5554 = vmatprep.mubr.f32.mxu0 0.0
        %5555 = vmatmul.mubr.f32.gmra.mrb[0].mxu0 %v5365
        %v5556 = vpop.f32.mrb[0].mxu0
        %v5557 = vadd.f32 0.0, %v5556
        %v5558 = vpop.f32.mrb[0].mxu0
        %5559 = vmatprep.mubr.f32.mxu0 0.0
        %5560 = vmatmul.mubr.f32.gmra.mrb[0].mxu0 %v5368
        %v5561 = vpop.f32.mrb[0].mxu0
        %v5562 = vadd.f32 0.0, %v5561
        %v5563 = vpop.f32.mrb[0].mxu0
        %5564 = vmatprep.mubr.f32.mxu0 0.0
        %5565 = vmatmul.mubr.f32.gmra.mrb[0].mxu0 %v5371
        %v5566 = vpop.f32.mrb[0].mxu0
        %v5567 = vadd.f32 0.0, %v5566
        %v5568 = vpop.f32.mrb[0].mxu0
        %5569 = vmatprep.mubr.f32.mxu0 0.0
        %5570 = vmatmul.mubr.f32.gmra.mrb[0].mxu0 %v5374
        %v5571 = vpop.f32.mrb[0].mxu0
        %v5572 = vadd.f32 0.0, %v5571
        %v5573 = vpop.f32.mrb[0].mxu0
        %5574 = vmatprep.mubr.f32.mxu0 0.0
        %5575 = vmatmul.mubr.f32.gmra.mrb[0].mxu0 %v5377
        %v5576 = vpop.f32.mrb[0].mxu0
        %v5577 = vadd.f32 0.0, %v5576
        %v5578 = vpop.f32.mrb[0].mxu0
        %5579 = vmatprep.mubr.f32.mxu0 0.0
        %5580 = vmatmul.mubr.f32.gmra.mrb[0].mxu0 %v5380
        %v5581 = vpop.f32.mrb[0].mxu0
        %v5582 = vadd.f32 0.0, %v5581
        %v5583 = vpop.f32.mrb[0].mxu0
        %5584 = vmatprep.mubr.f32.mxu0 0.0
        %5585 = vmatmul.mubr.f32.gmra.mrb[0].mxu0 %v5383
        %v5586 = vpop.f32.mrb[0].mxu0
        %v5587 = vadd.f32 0.0, %v5586
        %v5588 = vpop.f32.mrb[0].mxu0
        %5589 = vmatprep.mubr.f32.mxu0 0.0
        %5590 = vmatmul.mubr.f32.gmra.mrb[0].mxu0 %v5386
        %v5591 = vpop.f32.mrb[0].mxu0
        %v5592 = vadd.f32 0.0, %v5591
        %v5593 = vpop.f32.mrb[0].mxu0
        %5594 = vmatprep.mubr.f32.mxu0 0.0
        %5595 = vmatmul.mubr.f32.gmra.mrb[0].mxu0 %v5389
        %v5596 = vpop.f32.mrb[0].mxu0
        %v5597 = vadd.f32 0.0, %v5596
        %v5598 = vpop.f32.mrb[0].mxu0
        %5599 = vmatprep.mubr.f32.mxu0 0.0
        %5600 = vmatmul.mubr.f32.gmra.mrb[0].mxu0 %v5392
        %v5601 = vpop.f32.mrb[0].mxu0
        %v5602 = vadd.f32 0.0, %v5601
        %v5603 = vpop.f32.mrb[0].mxu0
        %5604 = vmatprep.mubr.f32.mxu0 0.0
        %5605 = vmatmul.mubr.f32.gmra.mrb[0].mxu0 %v5395
        %v5606 = vpop.f32.mrb[0].mxu0
        %v5607 = vadd.f32 0.0, %v5606
        %v5608 = vpop.f32.mrb[0].mxu0
        %5609 = vmatprep.mubr.f32.mxu0 0.0
        %5610 = vmatmul.mubr.f32.gmra.mrb[0].mxu0 %v5398
        %v5611 = vpop.f32.mrb[0].mxu0
        %v5612 = vadd.f32 0.0, %v5611
        %v5613 = vpop.f32.mrb[0].mxu0
        %5614 = vmatprep.mubr.f32.mxu0 0.0
        %5615 = vmatmul.mubr.f32.gmra.mrb[0].mxu0 %v5401
        %v5616 = vpop.f32.mrb[0].mxu0
        %v5617 = vadd.f32 0.0, %v5616
        %v5618 = vpop.f32.mrb[0].mxu0
        %5619 = vmatprep.mubr.f32.mxu0 0.0
        %5620 = vmatmul.mubr.f32.gmra.mrb[0].mxu0 %v5404
        %v5621 = vpop.f32.mrb[0].mxu0
        %v5622 = vadd.f32 0.0, %v5621
        %v5623 = vpop.f32.mrb[0].mxu0
        %5624 = vmatprep.mubr.f32.mxu0 0.0
        %5625 = vmatmul.mubr.f32.gmra.mrb[0].mxu0 %v5407
        %v5626 = vpop.f32.mrb[0].mxu0
        %v5627 = vadd.f32 0.0, %v5626
        %v5628 = vpop.f32.mrb[0].mxu0
        %5629 = vmatprep.mubr.f32.mxu0 0.0
        %5630 = vmatmul.mubr.f32.gmra.mrb[0].mxu0 %v5410
        %v5631 = vpop.f32.mrb[0].mxu0
        %v5632 = vadd.f32 0.0, %v5631
        %v5633 = vpop.f32.mrb[0].mxu0
        %5634 = vmatprep.mubr.f32.mxu0 0.0
        %5635 = vmatmul.mubr.f32.gmra.mrb[0].mxu0 %v5413
        %v5636 = vpop.f32.mrb[0].mxu0
        %v5637 = vadd.f32 0.0, %v5636
        %v5638 = vpop.f32.mrb[0].mxu0
        %5639 = vdwg.mxu0
        %v5640 = vadd.f32 %v4995, %v5482
        %v5641 = vadd.f32 %v4996, %v5487
        %v5642 = vadd.f32 %v4997, %v5492
        %v5643 = vadd.f32 %v4998, %v5497
        %v5644 = vadd.f32 %v4999, %v5502
        %v5645 = vadd.f32 %v5000, %v5507
        %v5646 = vadd.f32 %v5001, %v5512
        %v5647 = vadd.f32 %v5002, %v5517
        %v5648 = vadd.f32 %v5003, %v5522
        %v5649 = vadd.f32 %v5004, %v5527
        %v5650 = vadd.f32 %v5005, %v5532
        %v5651 = vadd.f32 %v5006, %v5537
        %v5652 = vadd.f32 %v5007, %v5542
        %v5653 = vadd.f32 %v5008, %v5547
        %v5654 = vadd.f32 %v5009, %v5552
        %v5655 = vadd.f32 %v5010, %v5557
        %v5656 = vadd.f32 %v5011, %v5562
        %v5657 = vadd.f32 %v5012, %v5567
        %v5658 = vadd.f32 %v5013, %v5572
        %v5659 = vadd.f32 %v5014, %v5577
        %v5660 = vadd.f32 %v5015, %v5582
        %v5661 = vadd.f32 %v5016, %v5587
        %v5662 = vadd.f32 %v5017, %v5592
        %v5663 = vadd.f32 %v5018, %v5597
        %v5664 = vadd.f32 %v5019, %v5602
        %v5665 = vadd.f32 %v5020, %v5607
        %v5666 = vadd.f32 %v5021, %v5612
        %v5667 = vadd.f32 %v5022, %v5617
        %v5668 = vadd.f32 %v5023, %v5622
        %v5669 = vadd.f32 %v5024, %v5627
        %v5670 = vadd.f32 %v5025, %v5632
        %v5671 = vadd.f32 %v5026, %v5637
        %v5672 = vld [vmem:[%s4381 + $0x2] sm:$0xff]
        %v5673 = vld [vmem:[%s4381 + $0xa] sm:$0xff]
        %v5674 = vld [vmem:[%s4381 + $0x1a] sm:$0xff]
        %v5675 = vld [vmem:[%s4381 + $0x22] sm:$0xff]
        %v5676 = vld [vmem:[%s4381 + $0x32] sm:$0xff]
        %v5677 = vld [vmem:[%s4381 + $0x3a] sm:$0xff]
        %v5678 = vld [vmem:[%s4381 + $0x4a] sm:$0xff]
        %v5679 = vld [vmem:[%s4381 + $0x52] sm:$0xff]
        %v5680 = vld [vmem:[%s4381 + $0x62] sm:$0xff]
        %v5681 = vld [vmem:[%s4381 + $0x6a] sm:$0xff]
        %v5682 = vld [vmem:[%s4381 + $0x7a] sm:$0xff]
        %v5683 = vld [vmem:[%s4381 + $0x82] sm:$0xff]
        %v5684 = vld [vmem:[%s4381 + $0x92] sm:$0xff]
        %v5685 = vld [vmem:[%s4381 + $0x9a] sm:$0xff]
        %v5686 = vld [vmem:[%s4381 + $0xaa] sm:$0xff]
        %v5687 = vld [vmem:[%s4381 + $0xb2] sm:$0xff]
        %v5688 = vld [vmem:[%s4381 + $0xc2] sm:$0xff]
        %v5689 = vld [vmem:[%s4381 + $0xca] sm:$0xff]
        %v5690 = vld [vmem:[%s4381 + $0xda] sm:$0xff]
        %v5691 = vld [vmem:[%s4381 + $0xe2] sm:$0xff]
        %v5692 = vld [vmem:[%s4381 + $0xf2] sm:$0xff]
        %v5693 = vld [vmem:[%s4381 + $0xfa] sm:$0xff]
        %v5694 = vld [vmem:[%s4381 + $0x10a] sm:$0xff]
        %v5695 = vld [vmem:[%s4381 + $0x112] sm:$0xff]
        %v5696 = vld [vmem:[%s4381 + $0x122] sm:$0xff]
        %v5697 = vld [vmem:[%s4381 + $0x12a] sm:$0xff]
        %v5698 = vld [vmem:[%s4381 + $0x13a] sm:$0xff]
        %v5699 = vld [vmem:[%s4381 + $0x142] sm:$0xff]
        %v5700 = vld [vmem:[%s4381 + $0x152] sm:$0xff]
        %v5701 = vld [vmem:[%s4381 + $0x15a] sm:$0xff]
        %v5702 = vld [vmem:[%s4381 + $0x16a] sm:$0xff]
        %v5703 = vld [vmem:[%s4381 + $0x172] sm:$0xff]
        %v5704 = vpack.c.bf16 %v5673, %v5672
        %v5705 = vpack.c.bf16 %v5675, %v5674
        %v5706 = vpack.c.bf16 %v5677, %v5676
        %v5707 = vpack.c.bf16 %v5679, %v5678
        %v5708 = vpack.c.bf16 %v5681, %v5680
        %v5709 = vpack.c.bf16 %v5683, %v5682
        %v5710 = vpack.c.bf16 %v5685, %v5684
        %v5711 = vpack.c.bf16 %v5687, %v5686
        %v5712 = vpack.c.bf16 %v5689, %v5688
        %v5713 = vpack.c.bf16 %v5691, %v5690
        %v5714 = vpack.c.bf16 %v5693, %v5692
        %v5715 = vpack.c.bf16 %v5695, %v5694
        %v5716 = vpack.c.bf16 %v5697, %v5696
        %v5717 = vpack.c.bf16 %v5699, %v5698
        %v5718 = vpack.c.bf16 %v5701, %v5700
        %v5719 = vpack.c.bf16 %v5703, %v5702
        %v5721 = vsel %vm532, %v5704, 0
        %v5724 = vsel %vm532, %v5705, 0
        %v5727 = vsel %vm532, %v5706, 0
        %v5730 = vsel %vm532, %v5707, 0
        %v5733 = vsel %vm532, %v5708, 0
        %v5736 = vsel %vm532, %v5709, 0
        %v5739 = vsel %vm532, %v5710, 0
        %v5742 = vsel %vm532, %v5711, 0
        %v5745 = vsel %vm532, %v5712, 0
        %v5748 = vsel %vm532, %v5713, 0
        %v5751 = vsel %vm532, %v5714, 0
        %v5754 = vsel %vm532, %v5715, 0
        %v5757 = vsel %vm532, %v5716, 0
        %v5760 = vsel %vm532, %v5717, 0
        %v5763 = vsel %vm532, %v5718, 0
        %v5766 = vsel %vm532, %v5719, 0
        %v5769 = vsel %vm782, %v628, 0
        %5771 = vmatprep.subr.bf16.mxu0 0
        %5772 = vmatpush1.bf16.msra.mxu0 %v5769
        %5773 = vmatprep.subr.bf16.mxu0 0
        %5774 = vmatpush1.bf16.msra.mxu0 0
        %5775 = vmatprep.subr.bf16.mxu0 0
        %5776 = vmatpush1.bf16.msra.mxu0 0
        %5777 = vmatprep.subr.bf16.mxu0 0
        %5778 = vmatpush1.bf16.msra.mxu0 0
        %5779 = vmatprep.subr.bf16.mxu0 0
        %5780 = vmatpush1.bf16.msra.mxu0 0
        %5781 = vmatprep.subr.bf16.mxu0 0
        %5782 = vmatpush1.bf16.msra.mxu0 0
        %5783 = vmatprep.subr.bf16.mxu0 0
        %5784 = vmatpush1.bf16.msra.mxu0 0
        %5785 = vmatprep.subr.bf16.mxu0 0
        %5786 = vmatpush1.bf16.msra.mxu0 0
        %5787 = vmatprep.subr.bf16.mxu0 0
        %5788 = vmatpush1.bf16.msra.mxu0 0
        %5789 = vmatprep.subr.bf16.mxu0 0
        %5790 = vmatpush1.bf16.msra.mxu0 0
        %5791 = vmatprep.subr.bf16.mxu0 0
        %5792 = vmatpush1.bf16.msra.mxu0 0
        %5793 = vmatprep.subr.bf16.mxu0 0
        %5794 = vmatpush1.bf16.msra.mxu0 0
        %5795 = vmatprep.subr.bf16.mxu0 0
        %5796 = vmatpush1.bf16.msra.mxu0 0
        %5797 = vmatprep.subr.bf16.mxu0 0
        %5798 = vmatpush1.bf16.msra.mxu0 0
        %5799 = vmatprep.subr.bf16.mxu0 0
        %5800 = vmatpush1.bf16.msra.mxu0 0
        %5801 = vmatprep.subr.bf16.mxu0 0
        %5802 = vmatpush1.bf16.msra.mxu0 0
        %5803 = vmatprep.mubr.bf16.mxu0 0
        %5804 = vmatmul.mubr.bf16.gmra.mrb[0].mxu0 %v5721
        %v5805 = vpop.f32.mrb[0].mxu0
        %v5806 = vadd.f32 0.0, %v5805
        %v5807 = vpop.f32.mrb[0].mxu0
        %v5808 = vpop.f32.mrb[0].mxu0
        %v5809 = vadd.f32 0.0, %v5808
        %v5810 = vpop.f32.mrb[0].mxu0
        %5811 = vmatprep.mubr.bf16.mxu0 0
        %5812 = vmatmul.mubr.bf16.gmra.mrb[0].mxu0 %v5724
        %v5813 = vpop.f32.mrb[0].mxu0
        %v5814 = vadd.f32 0.0, %v5813
        %v5815 = vpop.f32.mrb[0].mxu0
        %v5816 = vpop.f32.mrb[0].mxu0
        %v5817 = vadd.f32 0.0, %v5816
        %v5818 = vpop.f32.mrb[0].mxu0
        %5819 = vmatprep.mubr.bf16.mxu0 0
        %5820 = vmatmul.mubr.bf16.gmra.mrb[0].mxu0 %v5727
        %v5821 = vpop.f32.mrb[0].mxu0
        %v5822 = vadd.f32 0.0, %v5821
        %v5823 = vpop.f32.mrb[0].mxu0
        %v5824 = vpop.f32.mrb[0].mxu0
        %v5825 = vadd.f32 0.0, %v5824
        %v5826 = vpop.f32.mrb[0].mxu0
        %5827 = vmatprep.mubr.bf16.mxu0 0
        %5828 = vmatmul.mubr.bf16.gmra.mrb[0].mxu0 %v5730
        %v5829 = vpop.f32.mrb[0].mxu0
        %v5830 = vadd.f32 0.0, %v5829
        %v5831 = vpop.f32.mrb[0].mxu0
        %v5832 = vpop.f32.mrb[0].mxu0
        %v5833 = vadd.f32 0.0, %v5832
        %v5834 = vpop.f32.mrb[0].mxu0
        %5835 = vmatprep.mubr.bf16.mxu0 0
        %5836 = vmatmul.mubr.bf16.gmra.mrb[0].mxu0 %v5733
        %v5837 = vpop.f32.mrb[0].mxu0
        %v5838 = vadd.f32 0.0, %v5837
        %v5839 = vpop.f32.mrb[0].mxu0
        %v5840 = vpop.f32.mrb[0].mxu0
        %v5841 = vadd.f32 0.0, %v5840
        %v5842 = vpop.f32.mrb[0].mxu0
        %5843 = vmatprep.mubr.bf16.mxu0 0
        %5844 = vmatmul.mubr.bf16.gmra.mrb[0].mxu0 %v5736
        %v5845 = vpop.f32.mrb[0].mxu0
        %v5846 = vadd.f32 0.0, %v5845
        %v5847 = vpop.f32.mrb[0].mxu0
        %v5848 = vpop.f32.mrb[0].mxu0
        %v5849 = vadd.f32 0.0, %v5848
        %v5850 = vpop.f32.mrb[0].mxu0
        %5851 = vmatprep.mubr.bf16.mxu0 0
        %5852 = vmatmul.mubr.bf16.gmra.mrb[0].mxu0 %v5739
        %v5853 = vpop.f32.mrb[0].mxu0
        %v5854 = vadd.f32 0.0, %v5853
        %v5855 = vpop.f32.mrb[0].mxu0
        %v5856 = vpop.f32.mrb[0].mxu0
        %v5857 = vadd.f32 0.0, %v5856
        %v5858 = vpop.f32.mrb[0].mxu0
        %5859 = vmatprep.mubr.bf16.mxu0 0
        %5860 = vmatmul.mubr.bf16.gmra.mrb[0].mxu0 %v5742
        %v5861 = vpop.f32.mrb[0].mxu0
        %v5862 = vadd.f32 0.0, %v5861
        %v5863 = vpop.f32.mrb[0].mxu0
        %v5864 = vpop.f32.mrb[0].mxu0
        %v5865 = vadd.f32 0.0, %v5864
        %v5866 = vpop.f32.mrb[0].mxu0
        %5867 = vmatprep.mubr.bf16.mxu0 0
        %5868 = vmatmul.mubr.bf16.gmra.mrb[0].mxu0 %v5745
        %v5869 = vpop.f32.mrb[0].mxu0
        %v5870 = vadd.f32 0.0, %v5869
        %v5871 = vpop.f32.mrb[0].mxu0
        %v5872 = vpop.f32.mrb[0].mxu0
        %v5873 = vadd.f32 0.0, %v5872
        %v5874 = vpop.f32.mrb[0].mxu0
        %5875 = vmatprep.mubr.bf16.mxu0 0
        %5876 = vmatmul.mubr.bf16.gmra.mrb[0].mxu0 %v5748
        %v5877 = vpop.f32.mrb[0].mxu0
        %v5878 = vadd.f32 0.0, %v5877
        %v5879 = vpop.f32.mrb[0].mxu0
        %v5880 = vpop.f32.mrb[0].mxu0
        %v5881 = vadd.f32 0.0, %v5880
        %v5882 = vpop.f32.mrb[0].mxu0
        %5883 = vmatprep.mubr.bf16.mxu0 0
        %5884 = vmatmul.mubr.bf16.gmra.mrb[0].mxu0 %v5751
        %v5885 = vpop.f32.mrb[0].mxu0
        %v5886 = vadd.f32 0.0, %v5885
        %v5887 = vpop.f32.mrb[0].mxu0
        %v5888 = vpop.f32.mrb[0].mxu0
        %v5889 = vadd.f32 0.0, %v5888
        %v5890 = vpop.f32.mrb[0].mxu0
        %5891 = vmatprep.mubr.bf16.mxu0 0
        %5892 = vmatmul.mubr.bf16.gmra.mrb[0].mxu0 %v5754
        %v5893 = vpop.f32.mrb[0].mxu0
        %v5894 = vadd.f32 0.0, %v5893
        %v5895 = vpop.f32.mrb[0].mxu0
        %v5896 = vpop.f32.mrb[0].mxu0
        %v5897 = vadd.f32 0.0, %v5896
        %v5898 = vpop.f32.mrb[0].mxu0
        %5899 = vmatprep.mubr.bf16.mxu0 0
        %5900 = vmatmul.mubr.bf16.gmra.mrb[0].mxu0 %v5757
        %v5901 = vpop.f32.mrb[0].mxu0
        %v5902 = vadd.f32 0.0, %v5901
        %v5903 = vpop.f32.mrb[0].mxu0
        %v5904 = vpop.f32.mrb[0].mxu0
        %v5905 = vadd.f32 0.0, %v5904
        %v5906 = vpop.f32.mrb[0].mxu0
        %5907 = vmatprep.mubr.bf16.mxu0 0
        %5908 = vmatmul.mubr.bf16.gmra.mrb[0].mxu0 %v5760
        %v5909 = vpop.f32.mrb[0].mxu0
        %v5910 = vadd.f32 0.0, %v5909
        %v5911 = vpop.f32.mrb[0].mxu0
        %v5912 = vpop.f32.mrb[0].mxu0
        %v5913 = vadd.f32 0.0, %v5912
        %v5914 = vpop.f32.mrb[0].mxu0
        %5915 = vmatprep.mubr.bf16.mxu0 0
        %5916 = vmatmul.mubr.bf16.gmra.mrb[0].mxu0 %v5763
        %v5917 = vpop.f32.mrb[0].mxu0
        %v5918 = vadd.f32 0.0, %v5917
        %v5919 = vpop.f32.mrb[0].mxu0
        %v5920 = vpop.f32.mrb[0].mxu0
        %v5921 = vadd.f32 0.0, %v5920
        %v5922 = vpop.f32.mrb[0].mxu0
        %5923 = vmatprep.mubr.bf16.mxu0 0
        %5924 = vmatmul.mubr.bf16.gmra.mrb[0].mxu0 %v5766
        %v5925 = vpop.f32.mrb[0].mxu0
        %v5926 = vadd.f32 0.0, %v5925
        %v5927 = vpop.f32.mrb[0].mxu0
        %v5928 = vpop.f32.mrb[0].mxu0
        %v5929 = vadd.f32 0.0, %v5928
        %v5930 = vpop.f32.mrb[0].mxu0
        %5931 = vdwg.mxu0
        %v5932 = vadd.f32 %v5287, %v5806
        %v5933 = vadd.f32 %v5288, %v5809
        %v5934 = vadd.f32 %v5289, %v5814
        %v5935 = vadd.f32 %v5290, %v5817
        %v5936 = vadd.f32 %v5291, %v5822
        %v5937 = vadd.f32 %v5292, %v5825
        %v5938 = vadd.f32 %v5293, %v5830
        %v5939 = vadd.f32 %v5294, %v5833
        %v5940 = vadd.f32 %v5295, %v5838
        %v5941 = vadd.f32 %v5296, %v5841
        %v5942 = vadd.f32 %v5297, %v5846
        %v5943 = vadd.f32 %v5298, %v5849
        %v5944 = vadd.f32 %v5299, %v5854
        %v5945 = vadd.f32 %v5300, %v5857
        %v5946 = vadd.f32 %v5301, %v5862
        %v5947 = vadd.f32 %v5302, %v5865
        %v5948 = vadd.f32 %v5303, %v5870
        %v5949 = vadd.f32 %v5304, %v5873
        %v5950 = vadd.f32 %v5305, %v5878
        %v5951 = vadd.f32 %v5306, %v5881
        %v5952 = vadd.f32 %v5307, %v5886
        %v5953 = vadd.f32 %v5308, %v5889
        %v5954 = vadd.f32 %v5309, %v5894
        %v5955 = vadd.f32 %v5310, %v5897
        %v5956 = vadd.f32 %v5311, %v5902
        %v5957 = vadd.f32 %v5312, %v5905
        %v5958 = vadd.f32 %v5313, %v5910
        %v5959 = vadd.f32 %v5314, %v5913
        %v5960 = vadd.f32 %v5315, %v5918
        %v5961 = vadd.f32 %v5316, %v5921
        %v5962 = vadd.f32 %v5317, %v5926
        %v5963 = vadd.f32 %v5318, %v5929
        %v5965 = vsel %vm532, %v5672, 0
        %v5968 = vsel %vm532, %v5673, 0
        %v5971 = vsel %vm532, %v5674, 0
        %v5974 = vsel %vm532, %v5675, 0
        %v5977 = vsel %vm532, %v5676, 0
        %v5980 = vsel %vm532, %v5677, 0
        %v5983 = vsel %vm532, %v5678, 0
        %v5986 = vsel %vm532, %v5679, 0
        %v5989 = vsel %vm532, %v5680, 0
        %v5992 = vsel %vm532, %v5681, 0
        %v5995 = vsel %vm532, %v5682, 0
        %v5998 = vsel %vm532, %v5683, 0
        %v6001 = vsel %vm532, %v5684, 0
        %v6004 = vsel %vm532, %v5685, 0
        %v6007 = vsel %vm532, %v5686, 0
        %v6010 = vsel %vm532, %v5687, 0
        %v6013 = vsel %vm532, %v5688, 0
        %v6016 = vsel %vm532, %v5689, 0
        %v6019 = vsel %vm532, %v5690, 0
        %v6022 = vsel %vm532, %v5691, 0
        %v6025 = vsel %vm532, %v5692, 0
        %v6028 = vsel %vm532, %v5693, 0
        %v6031 = vsel %vm532, %v5694, 0
        %v6034 = vsel %vm532, %v5695, 0
        %v6037 = vsel %vm532, %v5696, 0
        %v6040 = vsel %vm532, %v5697, 0
        %v6043 = vsel %vm532, %v5698, 0
        %v6046 = vsel %vm532, %v5699, 0
        %v6049 = vsel %vm532, %v5700, 0
        %v6052 = vsel %vm532, %v5701, 0
        %v6055 = vsel %vm532, %v5702, 0
        %v6058 = vsel %vm532, %v5703, 0
        %6060 = vmatprep.subr.mxu0 0.0
        %6061 = vmatpush1.msra.mxu0 %v637
        %6062 = vmatprep.subr.mxu0 0.0
        %6063 = vmatpush1.msra.mxu0 0.0
        %6064 = vmatprep.subr.mxu0 0.0
        %6065 = vmatpush1.msra.mxu0 0.0
        %6066 = vmatprep.subr.mxu0 0.0
        %6067 = vmatpush1.msra.mxu0 0.0
        %6068 = vmatprep.subr.mxu0 0.0
        %6069 = vmatpush1.msra.mxu0 0.0
        %6070 = vmatprep.subr.mxu0 0.0
        %6071 = vmatpush1.msra.mxu0 0.0
        %6072 = vmatprep.subr.mxu0 0.0
        %6073 = vmatpush1.msra.mxu0 0.0
        %6074 = vmatprep.subr.mxu0 0.0
        %6075 = vmatpush1.msra.mxu0 0.0
        %6076 = vmatprep.subr.mxu0 0.0
        %6077 = vmatpush1.msra.mxu0 0.0
        %6078 = vmatprep.subr.mxu0 0.0
        %6079 = vmatpush1.msra.mxu0 0.0
        %6080 = vmatprep.subr.mxu0 0.0
        %6081 = vmatpush1.msra.mxu0 0.0
        %6082 = vmatprep.subr.mxu0 0.0
        %6083 = vmatpush1.msra.mxu0 0.0
        %6084 = vmatprep.subr.mxu0 0.0
        %6085 = vmatpush1.msra.mxu0 0.0
        %6086 = vmatprep.subr.mxu0 0.0
        %6087 = vmatpush1.msra.mxu0 0.0
        %6088 = vmatprep.subr.mxu0 0.0
        %6089 = vmatpush1.msra.mxu0 0.0
        %6090 = vmatprep.subr.mxu0 0.0
        %6091 = vmatpush1.msra.mxu0 0.0
        %6092 = vmatprep.subr.mxu0 0.0
        %6093 = vmatpush1.msra.mxu0 0.0
        %6094 = vmatprep.subr.mxu0 0.0
        %6095 = vmatpush1.msra.mxu0 0.0
        %6096 = vmatprep.subr.mxu0 0.0
        %6097 = vmatpush1.msra.mxu0 0.0
        %6098 = vmatprep.subr.mxu0 0.0
        %6099 = vmatpush1.msra.mxu0 0.0
        %6100 = vmatprep.subr.mxu0 0.0
        %6101 = vmatpush1.msra.mxu0 0.0
        %6102 = vmatprep.subr.mxu0 0.0
        %6103 = vmatpush1.msra.mxu0 0.0
        %6104 = vmatprep.subr.mxu0 0.0
        %6105 = vmatpush1.msra.mxu0 0.0
        %6106 = vmatprep.subr.mxu0 0.0
        %6107 = vmatpush1.msra.mxu0 0.0
        %6108 = vmatprep.subr.mxu0 0.0
        %6109 = vmatpush1.msra.mxu0 0.0
        %6110 = vmatprep.subr.mxu0 0.0
        %6111 = vmatpush1.msra.mxu0 0.0
        %6112 = vmatprep.subr.mxu0 0.0
        %6113 = vmatpush1.msra.mxu0 0.0
        %6114 = vmatprep.subr.mxu0 0.0
        %6115 = vmatpush1.msra.mxu0 0.0
        %6116 = vmatprep.subr.mxu0 0.0
        %6117 = vmatpush1.msra.mxu0 0.0
        %6118 = vmatprep.subr.mxu0 0.0
        %6119 = vmatpush1.msra.mxu0 0.0
        %6120 = vmatprep.subr.mxu0 0.0
        %6121 = vmatpush1.msra.mxu0 0.0
        %6122 = vmatprep.subr.mxu0 0.0
        %6123 = vmatpush1.msra.mxu0 0.0
        %6124 = vmatprep.mubr.f32.mxu0 0.0
        %6125 = vmatmul.mubr.f32.gmra.mrb[0].mxu0 %v5965
        %v6126 = vpop.f32.mrb[0].mxu0
        %v6127 = vadd.f32 0.0, %v6126
        %v6128 = vpop.f32.mrb[0].mxu0
        %6129 = vmatprep.mubr.f32.mxu0 0.0
        %6130 = vmatmul.mubr.f32.gmra.mrb[0].mxu0 %v5968
        %v6131 = vpop.f32.mrb[0].mxu0
        %v6132 = vadd.f32 0.0, %v6131
        %v6133 = vpop.f32.mrb[0].mxu0
        %6134 = vmatprep.mubr.f32.mxu0 0.0
        %6135 = vmatmul.mubr.f32.gmra.mrb[0].mxu0 %v5971
        %v6136 = vpop.f32.mrb[0].mxu0
        %v6137 = vadd.f32 0.0, %v6136
        %v6138 = vpop.f32.mrb[0].mxu0
        %6139 = vmatprep.mubr.f32.mxu0 0.0
        %6140 = vmatmul.mubr.f32.gmra.mrb[0].mxu0 %v5974
        %v6141 = vpop.f32.mrb[0].mxu0
        %v6142 = vadd.f32 0.0, %v6141
        %v6143 = vpop.f32.mrb[0].mxu0
        %6144 = vmatprep.mubr.f32.mxu0 0.0
        %6145 = vmatmul.mubr.f32.gmra.mrb[0].mxu0 %v5977
        %v6146 = vpop.f32.mrb[0].mxu0
        %v6147 = vadd.f32 0.0, %v6146
        %v6148 = vpop.f32.mrb[0].mxu0
        %6149 = vmatprep.mubr.f32.mxu0 0.0
        %6150 = vmatmul.mubr.f32.gmra.mrb[0].mxu0 %v5980
        %v6151 = vpop.f32.mrb[0].mxu0
        %v6152 = vadd.f32 0.0, %v6151
        %v6153 = vpop.f32.mrb[0].mxu0
        %6154 = vmatprep.mubr.f32.mxu0 0.0
        %6155 = vmatmul.mubr.f32.gmra.mrb[0].mxu0 %v5983
        %v6156 = vpop.f32.mrb[0].mxu0
        %v6157 = vadd.f32 0.0, %v6156
        %v6158 = vpop.f32.mrb[0].mxu0
        %6159 = vmatprep.mubr.f32.mxu0 0.0
        %6160 = vmatmul.mubr.f32.gmra.mrb[0].mxu0 %v5986
        %v6161 = vpop.f32.mrb[0].mxu0
        %v6162 = vadd.f32 0.0, %v6161
        %v6163 = vpop.f32.mrb[0].mxu0
        %6164 = vmatprep.mubr.f32.mxu0 0.0
        %6165 = vmatmul.mubr.f32.gmra.mrb[0].mxu0 %v5989
        %v6166 = vpop.f32.mrb[0].mxu0
        %v6167 = vadd.f32 0.0, %v6166
        %v6168 = vpop.f32.mrb[0].mxu0
        %6169 = vmatprep.mubr.f32.mxu0 0.0
        %6170 = vmatmul.mubr.f32.gmra.mrb[0].mxu0 %v5992
        %v6171 = vpop.f32.mrb[0].mxu0
        %v6172 = vadd.f32 0.0, %v6171
        %v6173 = vpop.f32.mrb[0].mxu0
        %6174 = vmatprep.mubr.f32.mxu0 0.0
        %6175 = vmatmul.mubr.f32.gmra.mrb[0].mxu0 %v5995
        %v6176 = vpop.f32.mrb[0].mxu0
        %v6177 = vadd.f32 0.0, %v6176
        %v6178 = vpop.f32.mrb[0].mxu0
        %6179 = vmatprep.mubr.f32.mxu0 0.0
        %6180 = vmatmul.mubr.f32.gmra.mrb[0].mxu0 %v5998
        %v6181 = vpop.f32.mrb[0].mxu0
        %v6182 = vadd.f32 0.0, %v6181
        %v6183 = vpop.f32.mrb[0].mxu0
        %6184 = vmatprep.mubr.f32.mxu0 0.0
        %6185 = vmatmul.mubr.f32.gmra.mrb[0].mxu0 %v6001
        %v6186 = vpop.f32.mrb[0].mxu0
        %v6187 = vadd.f32 0.0, %v6186
        %v6188 = vpop.f32.mrb[0].mxu0
        %6189 = vmatprep.mubr.f32.mxu0 0.0
        %6190 = vmatmul.mubr.f32.gmra.mrb[0].mxu0 %v6004
        %v6191 = vpop.f32.mrb[0].mxu0
        %v6192 = vadd.f32 0.0, %v6191
        %v6193 = vpop.f32.mrb[0].mxu0
        %6194 = vmatprep.mubr.f32.mxu0 0.0
        %6195 = vmatmul.mubr.f32.gmra.mrb[0].mxu0 %v6007
        %v6196 = vpop.f32.mrb[0].mxu0
        %v6197 = vadd.f32 0.0, %v6196
        %v6198 = vpop.f32.mrb[0].mxu0
        %6199 = vmatprep.mubr.f32.mxu0 0.0
        %6200 = vmatmul.mubr.f32.gmra.mrb[0].mxu0 %v6010
        %v6201 = vpop.f32.mrb[0].mxu0
        %v6202 = vadd.f32 0.0, %v6201
        %v6203 = vpop.f32.mrb[0].mxu0
        %6204 = vmatprep.mubr.f32.mxu0 0.0
        %6205 = vmatmul.mubr.f32.gmra.mrb[0].mxu0 %v6013
        %v6206 = vpop.f32.mrb[0].mxu0
        %v6207 = vadd.f32 0.0, %v6206
        %v6208 = vpop.f32.mrb[0].mxu0
        %6209 = vmatprep.mubr.f32.mxu0 0.0
        %6210 = vmatmul.mubr.f32.gmra.mrb[0].mxu0 %v6016
        %v6211 = vpop.f32.mrb[0].mxu0
        %v6212 = vadd.f32 0.0, %v6211
        %v6213 = vpop.f32.mrb[0].mxu0
        %6214 = vmatprep.mubr.f32.mxu0 0.0
        %6215 = vmatmul.mubr.f32.gmra.mrb[0].mxu0 %v6019
        %v6216 = vpop.f32.mrb[0].mxu0
        %v6217 = vadd.f32 0.0, %v6216
        %v6218 = vpop.f32.mrb[0].mxu0
        %6219 = vmatprep.mubr.f32.mxu0 0.0
        %6220 = vmatmul.mubr.f32.gmra.mrb[0].mxu0 %v6022
        %v6221 = vpop.f32.mrb[0].mxu0
        %v6222 = vadd.f32 0.0, %v6221
        %v6223 = vpop.f32.mrb[0].mxu0
        %6224 = vmatprep.mubr.f32.mxu0 0.0
        %6225 = vmatmul.mubr.f32.gmra.mrb[0].mxu0 %v6025
        %v6226 = vpop.f32.mrb[0].mxu0
        %v6227 = vadd.f32 0.0, %v6226
        %v6228 = vpop.f32.mrb[0].mxu0
        %6229 = vmatprep.mubr.f32.mxu0 0.0
        %6230 = vmatmul.mubr.f32.gmra.mrb[0].mxu0 %v6028
        %v6231 = vpop.f32.mrb[0].mxu0
        %v6232 = vadd.f32 0.0, %v6231
        %v6233 = vpop.f32.mrb[0].mxu0
        %6234 = vmatprep.mubr.f32.mxu0 0.0
        %6235 = vmatmul.mubr.f32.gmra.mrb[0].mxu0 %v6031
        %v6236 = vpop.f32.mrb[0].mxu0
        %v6237 = vadd.f32 0.0, %v6236
        %v6238 = vpop.f32.mrb[0].mxu0
        %6239 = vmatprep.mubr.f32.mxu0 0.0
        %6240 = vmatmul.mubr.f32.gmra.mrb[0].mxu0 %v6034
        %v6241 = vpop.f32.mrb[0].mxu0
        %v6242 = vadd.f32 0.0, %v6241
        %v6243 = vpop.f32.mrb[0].mxu0
        %6244 = vmatprep.mubr.f32.mxu0 0.0
        %6245 = vmatmul.mubr.f32.gmra.mrb[0].mxu0 %v6037
        %v6246 = vpop.f32.mrb[0].mxu0
        %v6247 = vadd.f32 0.0, %v6246
        %v6248 = vpop.f32.mrb[0].mxu0
        %6249 = vmatprep.mubr.f32.mxu0 0.0
        %6250 = vmatmul.mubr.f32.gmra.mrb[0].mxu0 %v6040
        %v6251 = vpop.f32.mrb[0].mxu0
        %v6252 = vadd.f32 0.0, %v6251
        %v6253 = vpop.f32.mrb[0].mxu0
        %6254 = vmatprep.mubr.f32.mxu0 0.0
        %6255 = vmatmul.mubr.f32.gmra.mrb[0].mxu0 %v6043
        %v6256 = vpop.f32.mrb[0].mxu0
        %v6257 = vadd.f32 0.0, %v6256
        %v6258 = vpop.f32.mrb[0].mxu0
        %6259 = vmatprep.mubr.f32.mxu0 0.0
        %6260 = vmatmul.mubr.f32.gmra.mrb[0].mxu0 %v6046
        %v6261 = vpop.f32.mrb[0].mxu0
        %v6262 = vadd.f32 0.0, %v6261
        %v6263 = vpop.f32.mrb[0].mxu0
        %6264 = vmatprep.mubr.f32.mxu0 0.0
        %6265 = vmatmul.mubr.f32.gmra.mrb[0].mxu0 %v6049
        %v6266 = vpop.f32.mrb[0].mxu0
        %v6267 = vadd.f32 0.0, %v6266
        %v6268 = vpop.f32.mrb[0].mxu0
        %6269 = vmatprep.mubr.f32.mxu0 0.0
        %6270 = vmatmul.mubr.f32.gmra.mrb[0].mxu0 %v6052
        %v6271 = vpop.f32.mrb[0].mxu0
        %v6272 = vadd.f32 0.0, %v6271
        %v6273 = vpop.f32.mrb[0].mxu0
        %6274 = vmatprep.mubr.f32.mxu0 0.0
        %6275 = vmatmul.mubr.f32.gmra.mrb[0].mxu0 %v6055
        %v6276 = vpop.f32.mrb[0].mxu0
        %v6277 = vadd.f32 0.0, %v6276
        %v6278 = vpop.f32.mrb[0].mxu0
        %6279 = vmatprep.mubr.f32.mxu0 0.0
        %6280 = vmatmul.mubr.f32.gmra.mrb[0].mxu0 %v6058
        %v6281 = vpop.f32.mrb[0].mxu0
        %v6282 = vadd.f32 0.0, %v6281
        %v6283 = vpop.f32.mrb[0].mxu0
        %6284 = vdwg.mxu0
        %v6285 = vadd.f32 %v5640, %v6127
        %v6286 = vadd.f32 %v5641, %v6132
        %v6287 = vadd.f32 %v5642, %v6137
        %v6288 = vadd.f32 %v5643, %v6142
        %v6289 = vadd.f32 %v5644, %v6147
        %v6290 = vadd.f32 %v5645, %v6152
        %v6291 = vadd.f32 %v5646, %v6157
        %v6292 = vadd.f32 %v5647, %v6162
        %v6293 = vadd.f32 %v5648, %v6167
        %v6294 = vadd.f32 %v5649, %v6172
        %v6295 = vadd.f32 %v5650, %v6177
        %v6296 = vadd.f32 %v5651, %v6182
        %v6297 = vadd.f32 %v5652, %v6187
        %v6298 = vadd.f32 %v5653, %v6192
        %v6299 = vadd.f32 %v5654, %v6197
        %v6300 = vadd.f32 %v5655, %v6202
        %v6301 = vadd.f32 %v5656, %v6207
        %v6302 = vadd.f32 %v5657, %v6212
        %v6303 = vadd.f32 %v5658, %v6217
        %v6304 = vadd.f32 %v5659, %v6222
        %v6305 = vadd.f32 %v5660, %v6227
        %v6306 = vadd.f32 %v5661, %v6232
        %v6307 = vadd.f32 %v5662, %v6237
        %v6308 = vadd.f32 %v5663, %v6242
        %v6309 = vadd.f32 %v5664, %v6247
        %v6310 = vadd.f32 %v5665, %v6252
        %v6311 = vadd.f32 %v5666, %v6257
        %v6312 = vadd.f32 %v5667, %v6262
        %v6313 = vadd.f32 %v5668, %v6267
        %v6314 = vadd.f32 %v5669, %v6272
        %v6315 = vadd.f32 %v5670, %v6277
        %v6316 = vadd.f32 %v5671, %v6282
        %v6317 = vld [vmem:[#allocation10] sm:$0x1]
        %v6319 = vlaneseq
        %v6320 = vshrl.u32 %v6319, 7
        %v6321 = vsub.s32 0, %v6320
        %v6322 = vrot.slane %v6317, %v6321
        %v6324 = vadd.f32 %v5932, %v6322
        %v6325 = vadd.f32 %v5933, %v6322
        %v6326 = vadd.f32 %v5934, %v6322
        %v6327 = vadd.f32 %v5935, %v6322
        %v6328 = vadd.f32 %v5936, %v6322
        %v6329 = vadd.f32 %v5937, %v6322
        %v6330 = vadd.f32 %v5938, %v6322
        %v6331 = vadd.f32 %v5939, %v6322
        %v6332 = vadd.f32 %v5940, %v6322
        %v6333 = vadd.f32 %v5941, %v6322
        %v6334 = vadd.f32 %v5942, %v6322
        %v6335 = vadd.f32 %v5943, %v6322
        %v6336 = vadd.f32 %v5944, %v6322
        %v6337 = vadd.f32 %v5945, %v6322
        %v6338 = vadd.f32 %v5946, %v6322
        %v6339 = vadd.f32 %v5947, %v6322
        %v6340 = vadd.f32 %v5948, %v6322
        %v6341 = vadd.f32 %v5949, %v6322
        %v6342 = vadd.f32 %v5950, %v6322
        %v6343 = vadd.f32 %v5951, %v6322
        %v6344 = vadd.f32 %v5952, %v6322
        %v6345 = vadd.f32 %v5953, %v6322
        %v6346 = vadd.f32 %v5954, %v6322
        %v6347 = vadd.f32 %v5955, %v6322
        %v6348 = vadd.f32 %v5956, %v6322
        %v6349 = vadd.f32 %v5957, %v6322
        %v6350 = vadd.f32 %v5958, %v6322
        %v6351 = vadd.f32 %v5959, %v6322
        %v6352 = vadd.f32 %v5960, %v6322
        %v6353 = vadd.f32 %v5961, %v6322
        %v6354 = vadd.f32 %v5962, %v6322
        %v6355 = vadd.f32 %v5963, %v6322
        %v6356 = vmax.f32 %v6324, 0.0
        %v6357 = vmax.f32 %v6325, 0.0
        %v6358 = vmax.f32 %v6326, 0.0
        %v6359 = vmax.f32 %v6327, 0.0
        %v6360 = vmax.f32 %v6328, 0.0
        %v6361 = vmax.f32 %v6329, 0.0
        %v6362 = vmax.f32 %v6330, 0.0
        %v6363 = vmax.f32 %v6331, 0.0
        %v6364 = vmax.f32 %v6332, 0.0
        %v6365 = vmax.f32 %v6333, 0.0
        %v6366 = vmax.f32 %v6334, 0.0
        %v6367 = vmax.f32 %v6335, 0.0
        %v6368 = vmax.f32 %v6336, 0.0
        %v6369 = vmax.f32 %v6337, 0.0
        %v6370 = vmax.f32 %v6338, 0.0
        %v6371 = vmax.f32 %v6339, 0.0
        %v6372 = vmax.f32 %v6340, 0.0
        %v6373 = vmax.f32 %v6341, 0.0
        %v6374 = vmax.f32 %v6342, 0.0
        %v6375 = vmax.f32 %v6343, 0.0
        %v6376 = vmax.f32 %v6344, 0.0
        %v6377 = vmax.f32 %v6345, 0.0
        %v6378 = vmax.f32 %v6346, 0.0
        %v6379 = vmax.f32 %v6347, 0.0
        %v6380 = vmax.f32 %v6348, 0.0
        %v6381 = vmax.f32 %v6349, 0.0
        %v6382 = vmax.f32 %v6350, 0.0
        %v6383 = vmax.f32 %v6351, 0.0
        %v6384 = vmax.f32 %v6352, 0.0
        %v6385 = vmax.f32 %v6353, 0.0
        %v6386 = vmax.f32 %v6354, 0.0
        %v6387 = vmax.f32 %v6355, 0.0
        %vm6388 = vcmask 261120
        %6389 = vst.msk [vmem:[#allocation3] sm:$0xff] %vm6388, 0.0
        %6390 = vst.msk [vmem:[#allocation3 + $0x8] sm:$0xff] %vm6388, 0.0
        %6391 = vst.msk [vmem:[#allocation3 + $0x10] sm:$0xff] %vm6388, 0.0
        %6392 = vst.msk [vmem:[#allocation3 + $0x18] sm:$0xff] %vm6388, 0.0
        %6393 = vst.msk [vmem:[#allocation3 + $0x20] sm:$0xff] %vm6388, 0.0
        %6394 = vst.msk [vmem:[#allocation3 + $0x28] sm:$0xff] %vm6388, 0.0
        %6395 = vst.msk [vmem:[#allocation3 + $0x30] sm:$0xff] %vm6388, 0.0
        %6396 = vst.msk [vmem:[#allocation3 + $0x38] sm:$0xff] %vm6388, 0.0
        %6397 = vst.msk [vmem:[#allocation3 + $0x40] sm:$0xff] %vm6388, 0.0
        %6398 = vst.msk [vmem:[#allocation3 + $0x48] sm:$0xff] %vm6388, 0.0
        %6399 = vst.msk [vmem:[#allocation3 + $0x50] sm:$0xff] %vm6388, 0.0
        %6400 = vst.msk [vmem:[#allocation3 + $0x58] sm:$0xff] %vm6388, 0.0
        %6401 = vst.msk [vmem:[#allocation3 + $0x60] sm:$0xff] %vm6388, 0.0
        %6402 = vst.msk [vmem:[#allocation3 + $0x68] sm:$0xff] %vm6388, 0.0
        %6403 = vst.msk [vmem:[#allocation3 + $0x70] sm:$0xff] %vm6388, 0.0
        %6404 = vst.msk [vmem:[#allocation3 + $0x78] sm:$0xff] %vm6388, 0.0
        %6405 = vst.msk [vmem:[#allocation3 + $0x80] sm:$0xff] %vm6388, 0.0
        %6406 = vst.msk [vmem:[#allocation3 + $0x88] sm:$0xff] %vm6388, 0.0
        %6407 = vst.msk [vmem:[#allocation3 + $0x90] sm:$0xff] %vm6388, 0.0
        %6408 = vst.msk [vmem:[#allocation3 + $0x98] sm:$0xff] %vm6388, 0.0
        %6409 = vst.msk [vmem:[#allocation3 + $0xa0] sm:$0xff] %vm6388, 0.0
        %6410 = vst.msk [vmem:[#allocation3 + $0xa8] sm:$0xff] %vm6388, 0.0
        %6411 = vst.msk [vmem:[#allocation3 + $0xb0] sm:$0xff] %vm6388, 0.0
        %6412 = vst.msk [vmem:[#allocation3 + $0xb8] sm:$0xff] %vm6388, 0.0
        %6413 = vst.msk [vmem:[#allocation3 + $0xc0] sm:$0xff] %vm6388, 0.0
        %6414 = vst.msk [vmem:[#allocation3 + $0xc8] sm:$0xff] %vm6388, 0.0
        %6415 = vst.msk [vmem:[#allocation3 + $0xd0] sm:$0xff] %vm6388, 0.0
        %6416 = vst.msk [vmem:[#allocation3 + $0xd8] sm:$0xff] %vm6388, 0.0
        %6417 = vst.msk [vmem:[#allocation3 + $0xe0] sm:$0xff] %vm6388, 0.0
        %6418 = vst.msk [vmem:[#allocation3 + $0xe8] sm:$0xff] %vm6388, 0.0
        %6419 = vst.msk [vmem:[#allocation3 + $0xf0] sm:$0xff] %vm6388, 0.0
        %6420 = vst.msk [vmem:[#allocation3 + $0xf8] sm:$0xff] %vm6388, 0.0
        %6421 = vst.msk [vmem:[#allocation3 + $0x100] sm:$0xff] %vm6388, 0.0
        %6422 = vst.msk [vmem:[#allocation3 + $0x108] sm:$0xff] %vm6388, 0.0
        %6423 = vst.msk [vmem:[#allocation3 + $0x110] sm:$0xff] %vm6388, 0.0
        %6424 = vst.msk [vmem:[#allocation3 + $0x118] sm:$0xff] %vm6388, 0.0
        %6425 = vst.msk [vmem:[#allocation3 + $0x120] sm:$0xff] %vm6388, 0.0
        %6426 = vst.msk [vmem:[#allocation3 + $0x128] sm:$0xff] %vm6388, 0.0
        %6427 = vst.msk [vmem:[#allocation3 + $0x130] sm:$0xff] %vm6388, 0.0
        %6428 = vst.msk [vmem:[#allocation3 + $0x138] sm:$0xff] %vm6388, 0.0
        %6429 = vst.msk [vmem:[#allocation3 + $0x140] sm:$0xff] %vm6388, 0.0
        %6430 = vst.msk [vmem:[#allocation3 + $0x148] sm:$0xff] %vm6388, 0.0
        %6431 = vst.msk [vmem:[#allocation3 + $0x150] sm:$0xff] %vm6388, 0.0
        %6432 = vst.msk [vmem:[#allocation3 + $0x158] sm:$0xff] %vm6388, 0.0
        %6433 = vst.msk [vmem:[#allocation3 + $0x160] sm:$0xff] %vm6388, 0.0
        %6434 = vst.msk [vmem:[#allocation3 + $0x168] sm:$0xff] %vm6388, 0.0
        %6435 = vst.msk [vmem:[#allocation3 + $0x170] sm:$0xff] %vm6388, 0.0
        %6436 = vst.msk [vmem:[#allocation3 + $0x178] sm:$0xff] %vm6388, 0.0
        %6437 = vst.msk [vmem:[#allocation3 + $0x180] sm:$0xff] %vm6388, 0.0
        %6438 = vst.msk [vmem:[#allocation3 + $0x188] sm:$0xff] %vm6388, 0.0
        %6439 = vst.msk [vmem:[#allocation3 + $0x190] sm:$0xff] %vm6388, 0.0
        %6440 = vst.msk [vmem:[#allocation3 + $0x198] sm:$0xff] %vm6388, 0.0
        %6441 = vst.msk [vmem:[#allocation3 + $0x1a0] sm:$0xff] %vm6388, 0.0
        %6442 = vst.msk [vmem:[#allocation3 + $0x1a8] sm:$0xff] %vm6388, 0.0
        %s6443 = scalar_lea.vmem [#allocation3], 24
        %6444 = vst.msk [vmem:[%s6443 + $0x1] sm:$0xff] %vm6388, %v6356
        %6445 = vst.msk [vmem:[%s6443 + $0x9] sm:$0xff] %vm6388, %v6357
        %6446 = vst.msk [vmem:[%s6443 + $0x19] sm:$0xff] %vm6388, %v6358
        %6447 = vst.msk [vmem:[%s6443 + $0x21] sm:$0xff] %vm6388, %v6359
        %6448 = vst.msk [vmem:[%s6443 + $0x31] sm:$0xff] %vm6388, %v6360
        %6449 = vst.msk [vmem:[%s6443 + $0x39] sm:$0xff] %vm6388, %v6361
        %6450 = vst.msk [vmem:[%s6443 + $0x49] sm:$0xff] %vm6388, %v6362
        %6451 = vst.msk [vmem:[%s6443 + $0x51] sm:$0xff] %vm6388, %v6363
        %6452 = vst.msk [vmem:[%s6443 + $0x61] sm:$0xff] %vm6388, %v6364
        %6453 = vst.msk [vmem:[%s6443 + $0x69] sm:$0xff] %vm6388, %v6365
        %6454 = vst.msk [vmem:[%s6443 + $0x79] sm:$0xff] %vm6388, %v6366
        %6455 = vst.msk [vmem:[%s6443 + $0x81] sm:$0xff] %vm6388, %v6367
        %6456 = vst.msk [vmem:[%s6443 + $0x91] sm:$0xff] %vm6388, %v6368
        %6457 = vst.msk [vmem:[%s6443 + $0x99] sm:$0xff] %vm6388, %v6369
        %6458 = vst.msk [vmem:[%s6443 + $0xa9] sm:$0xff] %vm6388, %v6370
        %6459 = vst.msk [vmem:[%s6443 + $0xb1] sm:$0xff] %vm6388, %v6371
        %6460 = vst.msk [vmem:[%s6443 + $0xc1] sm:$0xff] %vm6388, %v6372
        %6461 = vst.msk [vmem:[%s6443 + $0xc9] sm:$0xff] %vm6388, %v6373
        %6462 = vst.msk [vmem:[%s6443 + $0xd9] sm:$0xff] %vm6388, %v6374
        %6463 = vst.msk [vmem:[%s6443 + $0xe1] sm:$0xff] %vm6388, %v6375
        %6464 = vst.msk [vmem:[%s6443 + $0xf1] sm:$0xff] %vm6388, %v6376
        %6465 = vst.msk [vmem:[%s6443 + $0xf9] sm:$0xff] %vm6388, %v6377
        %6466 = vst.msk [vmem:[%s6443 + $0x109] sm:$0xff] %vm6388, %v6378
        %6467 = vst.msk [vmem:[%s6443 + $0x111] sm:$0xff] %vm6388, %v6379
        %6468 = vst.msk [vmem:[%s6443 + $0x121] sm:$0xff] %vm6388, %v6380
        %6469 = vst.msk [vmem:[%s6443 + $0x129] sm:$0xff] %vm6388, %v6381
        %6470 = vst.msk [vmem:[%s6443 + $0x139] sm:$0xff] %vm6388, %v6382
        %6471 = vst.msk [vmem:[%s6443 + $0x141] sm:$0xff] %vm6388, %v6383
        %6472 = vst.msk [vmem:[%s6443 + $0x151] sm:$0xff] %vm6388, %v6384
        %6473 = vst.msk [vmem:[%s6443 + $0x159] sm:$0xff] %vm6388, %v6385
        %6474 = vst.msk [vmem:[%s6443 + $0x169] sm:$0xff] %vm6388, %v6386
        %6475 = vst.msk [vmem:[%s6443 + $0x171] sm:$0xff] %vm6388, %v6387
        %v6476 = vld [vmem:[#allocation11] sm:$0xf]
        %v6477 = vld [vmem:[#allocation11 + $0x4] sm:$0xf]
        %v6478 = vld [vmem:[#allocation11 + $0x8] sm:$0xf]
        %v6479 = vld [vmem:[#allocation11 + $0xc] sm:$0xf]
        %v6480 = vld [vmem:[#allocation11 + $0x10] sm:$0xf]
        %v6481 = vld [vmem:[#allocation11 + $0x14] sm:$0xf]
        %v6482 = vld [vmem:[#allocation11 + $0x18] sm:$0xf]
        %v6483 = vld [vmem:[#allocation11 + $0x1c] sm:$0xf]
        %v6484 = vld [vmem:[#allocation11 + $0x20] sm:$0xf]
        %v6485 = vld [vmem:[#allocation11 + $0x24] sm:$0xf]
        %v6486 = vld [vmem:[#allocation11 + $0x28] sm:$0xf]
        %v6487 = vld [vmem:[#allocation11 + $0x2c] sm:$0xf]
        %v6488 = vld [vmem:[#allocation11 + $0x30] sm:$0xf]
        %v6489 = vld [vmem:[#allocation11 + $0x34] sm:$0xf]
        %v6490 = vld [vmem:[#allocation11 + $0x38] sm:$0xf]
        %v6491 = vld [vmem:[#allocation11 + $0x3c] sm:$0xf]
        %v6492 = vld [vmem:[#allocation11 + $0x40] sm:$0xf]
        %v6493 = vld [vmem:[#allocation11 + $0x44] sm:$0xf]
        %v6494 = vld [vmem:[#allocation11 + $0x48] sm:$0xf]
        %v6495 = vld [vmem:[#allocation11 + $0x4c] sm:$0xf]
        %v6496 = vld [vmem:[#allocation11 + $0x50] sm:$0xf]
        %v6497 = vld [vmem:[#allocation11 + $0x54] sm:$0xf]
        %v6498 = vld [vmem:[#allocation11 + $0x58] sm:$0xf]
        %v6499 = vld [vmem:[#allocation11 + $0x5c] sm:$0xf]
        %v6500 = vld [vmem:[#allocation11 + $0x60] sm:$0xf]
        %v6501 = vld [vmem:[#allocation11 + $0x64] sm:$0xf]
        %v6502 = vld [vmem:[#allocation11 + $0x68] sm:$0xf]
        %v6503 = vld [vmem:[#allocation11 + $0x6c] sm:$0xf]
        %v6504 = vld [vmem:[#allocation11 + $0x70] sm:$0xf]
        %v6505 = vld [vmem:[#allocation11 + $0x74] sm:$0xf]
        %v6506 = vld [vmem:[#allocation11 + $0x78] sm:$0xf]
        %v6507 = vld [vmem:[#allocation11 + $0x7c] sm:$0xf]
        %v6508 = vld [vmem:[#allocation11 + $0x80] sm:$0xf]
        %v6509 = vld [vmem:[#allocation11 + $0x84] sm:$0xf]
        %v6510 = vld [vmem:[#allocation11 + $0x88] sm:$0xf]
        %v6511 = vld [vmem:[#allocation11 + $0x8c] sm:$0xf]
        %v6512 = vld [vmem:[#allocation3] sm:$0xff]
        %v6513 = vld [vmem:[#allocation3 + $0x8] sm:$0xff]
        %v6514 = vld [vmem:[#allocation3 + $0x18] sm:$0xff]
        %v6515 = vld [vmem:[#allocation3 + $0x20] sm:$0xff]
        %v6516 = vld [vmem:[#allocation3 + $0x30] sm:$0xff]
        %v6517 = vld [vmem:[#allocation3 + $0x38] sm:$0xff]
        %v6518 = vld [vmem:[#allocation3 + $0x48] sm:$0xff]
        %v6519 = vld [vmem:[#allocation3 + $0x50] sm:$0xff]
        %v6520 = vld [vmem:[#allocation3 + $0x60] sm:$0xff]
        %v6521 = vld [vmem:[#allocation3 + $0x68] sm:$0xff]
        %v6522 = vld [vmem:[#allocation3 + $0x78] sm:$0xff]
        %v6523 = vld [vmem:[#allocation3 + $0x80] sm:$0xff]
        %v6524 = vld [vmem:[#allocation3 + $0x90] sm:$0xff]
        %v6525 = vld [vmem:[#allocation3 + $0x98] sm:$0xff]
        %v6526 = vld [vmem:[#allocation3 + $0xa8] sm:$0xff]
        %v6527 = vld [vmem:[#allocation3 + $0xb0] sm:$0xff]
        %v6528 = vld [vmem:[#allocation3 + $0xc0] sm:$0xff]
        %v6529 = vld [vmem:[#allocation3 + $0xc8] sm:$0xff]
        %v6530 = vld [vmem:[#allocation3 + $0xd8] sm:$0xff]
        %v6531 = vld [vmem:[#allocation3 + $0xe0] sm:$0xff]
        %v6532 = vld [vmem:[#allocation3 + $0xf0] sm:$0xff]
        %v6533 = vld [vmem:[#allocation3 + $0xf8] sm:$0xff]
        %v6534 = vld [vmem:[#allocation3 + $0x108] sm:$0xff]
        %v6535 = vld [vmem:[#allocation3 + $0x110] sm:$0xff]
        %v6536 = vld [vmem:[#allocation3 + $0x120] sm:$0xff]
        %v6537 = vld [vmem:[#allocation3 + $0x128] sm:$0xff]
        %v6538 = vld [vmem:[#allocation3 + $0x138] sm:$0xff]
        %v6539 = vld [vmem:[#allocation3 + $0x140] sm:$0xff]
        %v6540 = vld [vmem:[#allocation3 + $0x150] sm:$0xff]
        %v6541 = vld [vmem:[#allocation3 + $0x158] sm:$0xff]
        %v6542 = vld [vmem:[#allocation3 + $0x168] sm:$0xff]
        %v6543 = vld [vmem:[#allocation3 + $0x170] sm:$0xff]
        %v6544 = vpack.c.bf16 %v6513, %v6512
        %v6545 = vpack.c.bf16 %v6515, %v6514
        %v6546 = vpack.c.bf16 %v6517, %v6516
        %v6547 = vpack.c.bf16 %v6519, %v6518
        %v6548 = vpack.c.bf16 %v6521, %v6520
        %v6549 = vpack.c.bf16 %v6523, %v6522
        %v6550 = vpack.c.bf16 %v6525, %v6524
        %v6551 = vpack.c.bf16 %v6527, %v6526
        %v6552 = vpack.c.bf16 %v6529, %v6528
        %v6553 = vpack.c.bf16 %v6531, %v6530
        %v6554 = vpack.c.bf16 %v6533, %v6532
        %v6555 = vpack.c.bf16 %v6535, %v6534
        %v6556 = vpack.c.bf16 %v6537, %v6536
        %v6557 = vpack.c.bf16 %v6539, %v6538
        %v6558 = vpack.c.bf16 %v6541, %v6540
        %v6559 = vpack.c.bf16 %v6543, %v6542
        %v6560 = vld [vmem:[#allocation3 + $0x1] sm:$0xff]
        %v6561 = vld [vmem:[#allocation3 + $0x9] sm:$0xff]
        %v6562 = vld [vmem:[#allocation3 + $0x19] sm:$0xff]
        %v6563 = vld [vmem:[#allocation3 + $0x21] sm:$0xff]
        %v6564 = vld [vmem:[#allocation3 + $0x31] sm:$0xff]
        %v6565 = vld [vmem:[#allocation3 + $0x39] sm:$0xff]
        %v6566 = vld [vmem:[#allocation3 + $0x49] sm:$0xff]
        %v6567 = vld [vmem:[#allocation3 + $0x51] sm:$0xff]
        %v6568 = vld [vmem:[#allocation3 + $0x61] sm:$0xff]
        %v6569 = vld [vmem:[#allocation3 + $0x69] sm:$0xff]
        %v6570 = vld [vmem:[#allocation3 + $0x79] sm:$0xff]
        %v6571 = vld [vmem:[#allocation3 + $0x81] sm:$0xff]
        %v6572 = vld [vmem:[#allocation3 + $0x91] sm:$0xff]
        %v6573 = vld [vmem:[#allocation3 + $0x99] sm:$0xff]
        %v6574 = vld [vmem:[#allocation3 + $0xa9] sm:$0xff]
        %v6575 = vld [vmem:[#allocation3 + $0xb1] sm:$0xff]
        %v6576 = vld [vmem:[#allocation3 + $0xc1] sm:$0xff]
        %v6577 = vld [vmem:[#allocation3 + $0xc9] sm:$0xff]
        %v6578 = vld [vmem:[#allocation3 + $0xd9] sm:$0xff]
        %v6579 = vld [vmem:[#allocation3 + $0xe1] sm:$0xff]
        %v6580 = vld [vmem:[#allocation3 + $0xf1] sm:$0xff]
        %v6581 = vld [vmem:[#allocation3 + $0xf9] sm:$0xff]
        %v6582 = vld [vmem:[#allocation3 + $0x109] sm:$0xff]
        %v6583 = vld [vmem:[#allocation3 + $0x111] sm:$0xff]
        %v6584 = vld [vmem:[#allocation3 + $0x121] sm:$0xff]
        %v6585 = vld [vmem:[#allocation3 + $0x129] sm:$0xff]
        %v6586 = vld [vmem:[#allocation3 + $0x139] sm:$0xff]
        %v6587 = vld [vmem:[#allocation3 + $0x141] sm:$0xff]
        %v6588 = vld [vmem:[#allocation3 + $0x151] sm:$0xff]
        %v6589 = vld [vmem:[#allocation3 + $0x159] sm:$0xff]
        %v6590 = vld [vmem:[#allocation3 + $0x169] sm:$0xff]
        %v6591 = vld [vmem:[#allocation3 + $0x171] sm:$0xff]
        %v6592 = vpack.c.bf16 %v6561, %v6560
        %v6593 = vpack.c.bf16 %v6563, %v6562
        %v6594 = vpack.c.bf16 %v6565, %v6564
        %v6595 = vpack.c.bf16 %v6567, %v6566
        %v6596 = vpack.c.bf16 %v6569, %v6568
        %v6597 = vpack.c.bf16 %v6571, %v6570
        %v6598 = vpack.c.bf16 %v6573, %v6572
        %v6599 = vpack.c.bf16 %v6575, %v6574
        %v6600 = vpack.c.bf16 %v6577, %v6576
        %v6601 = vpack.c.bf16 %v6579, %v6578
        %v6602 = vpack.c.bf16 %v6581, %v6580
        %v6603 = vpack.c.bf16 %v6583, %v6582
        %v6604 = vpack.c.bf16 %v6585, %v6584
        %v6605 = vpack.c.bf16 %v6587, %v6586
        %v6606 = vpack.c.bf16 %v6589, %v6588
        %v6607 = vpack.c.bf16 %v6591, %v6590
        %v6612 = vunpack.c.l.b16 %v6480
        %v6613 = vunpack.c.l.b16 %v6481
        %v6614 = vunpack.c.l.b16 %v6482
        %v6615 = vunpack.c.l.b16 %v6483
        %v6616 = vpack.c.b16 %v6613, %v6612
        %v6617 = vpack.c.b16 %v6615, %v6614
        %v6621 = vsel %vm6388, %v6592, 0
        %v6624 = vsel %vm6388, %v6593, 0
        %v6627 = vsel %vm6388, %v6594, 0
        %v6630 = vsel %vm6388, %v6595, 0
        %v6633 = vsel %vm6388, %v6596, 0
        %v6636 = vsel %vm6388, %v6597, 0
        %v6639 = vsel %vm6388, %v6598, 0
        %v6642 = vsel %vm6388, %v6599, 0
        %v6645 = vsel %vm6388, %v6600, 0
        %v6648 = vsel %vm6388, %v6601, 0
        %v6651 = vsel %vm6388, %v6602, 0
        %v6654 = vsel %vm6388, %v6603, 0
        %v6657 = vsel %vm6388, %v6604, 0
        %v6660 = vsel %vm6388, %v6605, 0
        %v6663 = vsel %vm6388, %v6606, 0
        %v6666 = vsel %vm6388, %v6607, 0
        %6668 = vmatprep.subr.bf16.mxu0 0
        %6669 = vmatpush1.bf16.msra.mxu0 %v6616
        %6670 = vmatprep.subr.bf16.mxu0 0
        %6671 = vmatpush1.bf16.msra.mxu0 %v6617
        %6672 = vmatprep.subr.bf16.mxu0 0
        %6673 = vmatpush1.bf16.msra.mxu0 0
        %6674 = vmatprep.subr.bf16.mxu0 0
        %6675 = vmatpush1.bf16.msra.mxu0 0
        %6676 = vmatprep.subr.bf16.mxu0 0
        %6677 = vmatpush1.bf16.msra.mxu0 0
        %6678 = vmatprep.subr.bf16.mxu0 0
        %6679 = vmatpush1.bf16.msra.mxu0 0
        %6680 = vmatprep.subr.bf16.mxu0 0
        %6681 = vmatpush1.bf16.msra.mxu0 0
        %6682 = vmatprep.subr.bf16.mxu0 0
        %6683 = vmatpush1.bf16.msra.mxu0 0
        %6684 = vmatprep.subr.bf16.mxu0 0
        %6685 = vmatpush1.bf16.msra.mxu0 0
        %6686 = vmatprep.subr.bf16.mxu0 0
        %6687 = vmatpush1.bf16.msra.mxu0 0
        %6688 = vmatprep.subr.bf16.mxu0 0
        %6689 = vmatpush1.bf16.msra.mxu0 0
        %6690 = vmatprep.subr.bf16.mxu0 0
        %6691 = vmatpush1.bf16.msra.mxu0 0
        %6692 = vmatprep.subr.bf16.mxu0 0
        %6693 = vmatpush1.bf16.msra.mxu0 0
        %6694 = vmatprep.subr.bf16.mxu0 0
        %6695 = vmatpush1.bf16.msra.mxu0 0
        %6696 = vmatprep.subr.bf16.mxu0 0
        %6697 = vmatpush1.bf16.msra.mxu0 0
        %6698 = vmatprep.subr.bf16.mxu0 0
        %6699 = vmatpush1.bf16.msra.mxu0 0
        %6700 = vmatprep.mubr.bf16.mxu0 0
        %6701 = vmatmul.mubr.bf16.gmra.mrb[0].mxu0 %v6621
        %v6702 = vpop.f32.mrb[0].mxu0
        %v6703 = vadd.f32 0.0, %v6702
        %v6704 = vpop.f32.mrb[0].mxu0
        %v6705 = vpop.f32.mrb[0].mxu0
        %v6706 = vadd.f32 0.0, %v6705
        %v6707 = vpop.f32.mrb[0].mxu0
        %6708 = vmatprep.mubr.bf16.mxu0 0
        %6709 = vmatmul.mubr.bf16.gmra.mrb[0].mxu0 %v6624
        %v6710 = vpop.f32.mrb[0].mxu0
        %v6711 = vadd.f32 0.0, %v6710
        %v6712 = vpop.f32.mrb[0].mxu0
        %v6713 = vpop.f32.mrb[0].mxu0
        %v6714 = vadd.f32 0.0, %v6713
        %v6715 = vpop.f32.mrb[0].mxu0
        %6716 = vmatprep.mubr.bf16.mxu0 0
        %6717 = vmatmul.mubr.bf16.gmra.mrb[0].mxu0 %v6627
        %v6718 = vpop.f32.mrb[0].mxu0
        %v6719 = vadd.f32 0.0, %v6718
        %v6720 = vpop.f32.mrb[0].mxu0
        %v6721 = vpop.f32.mrb[0].mxu0
        %v6722 = vadd.f32 0.0, %v6721
        %v6723 = vpop.f32.mrb[0].mxu0
        %6724 = vmatprep.mubr.bf16.mxu0 0
        %6725 = vmatmul.mubr.bf16.gmra.mrb[0].mxu0 %v6630
        %v6726 = vpop.f32.mrb[0].mxu0
        %v6727 = vadd.f32 0.0, %v6726
        %v6728 = vpop.f32.mrb[0].mxu0
        %v6729 = vpop.f32.mrb[0].mxu0
        %v6730 = vadd.f32 0.0, %v6729
        %v6731 = vpop.f32.mrb[0].mxu0
        %6732 = vmatprep.mubr.bf16.mxu0 0
        %6733 = vmatmul.mubr.bf16.gmra.mrb[0].mxu0 %v6633
        %v6734 = vpop.f32.mrb[0].mxu0
        %v6735 = vadd.f32 0.0, %v6734
        %v6736 = vpop.f32.mrb[0].mxu0
        %v6737 = vpop.f32.mrb[0].mxu0
        %v6738 = vadd.f32 0.0, %v6737
        %v6739 = vpop.f32.mrb[0].mxu0
        %6740 = vmatprep.mubr.bf16.mxu0 0
        %6741 = vmatmul.mubr.bf16.gmra.mrb[0].mxu0 %v6636
        %v6742 = vpop.f32.mrb[0].mxu0
        %v6743 = vadd.f32 0.0, %v6742
        %v6744 = vpop.f32.mrb[0].mxu0
        %v6745 = vpop.f32.mrb[0].mxu0
        %v6746 = vadd.f32 0.0, %v6745
        %v6747 = vpop.f32.mrb[0].mxu0
        %6748 = vmatprep.mubr.bf16.mxu0 0
        %6749 = vmatmul.mubr.bf16.gmra.mrb[0].mxu0 %v6639
        %v6750 = vpop.f32.mrb[0].mxu0
        %v6751 = vadd.f32 0.0, %v6750
        %v6752 = vpop.f32.mrb[0].mxu0
        %v6753 = vpop.f32.mrb[0].mxu0
        %v6754 = vadd.f32 0.0, %v6753
        %v6755 = vpop.f32.mrb[0].mxu0
        %6756 = vmatprep.mubr.bf16.mxu0 0
        %6757 = vmatmul.mubr.bf16.gmra.mrb[0].mxu0 %v6642
        %v6758 = vpop.f32.mrb[0].mxu0
        %v6759 = vadd.f32 0.0, %v6758
        %v6760 = vpop.f32.mrb[0].mxu0
        %v6761 = vpop.f32.mrb[0].mxu0
        %v6762 = vadd.f32 0.0, %v6761
        %v6763 = vpop.f32.mrb[0].mxu0
        %6764 = vmatprep.mubr.bf16.mxu0 0
        %6765 = vmatmul.mubr.bf16.gmra.mrb[0].mxu0 %v6645
        %v6766 = vpop.f32.mrb[0].mxu0
        %v6767 = vadd.f32 0.0, %v6766
        %v6768 = vpop.f32.mrb[0].mxu0
        %v6769 = vpop.f32.mrb[0].mxu0
        %v6770 = vadd.f32 0.0, %v6769
        %v6771 = vpop.f32.mrb[0].mxu0
        %6772 = vmatprep.mubr.bf16.mxu0 0
        %6773 = vmatmul.mubr.bf16.gmra.mrb[0].mxu0 %v6648
        %v6774 = vpop.f32.mrb[0].mxu0
        %v6775 = vadd.f32 0.0, %v6774
        %v6776 = vpop.f32.mrb[0].mxu0
        %v6777 = vpop.f32.mrb[0].mxu0
        %v6778 = vadd.f32 0.0, %v6777
        %v6779 = vpop.f32.mrb[0].mxu0
        %6780 = vmatprep.mubr.bf16.mxu0 0
        %6781 = vmatmul.mubr.bf16.gmra.mrb[0].mxu0 %v6651
        %v6782 = vpop.f32.mrb[0].mxu0
        %v6783 = vadd.f32 0.0, %v6782
        %v6784 = vpop.f32.mrb[0].mxu0
        %v6785 = vpop.f32.mrb[0].mxu0
        %v6786 = vadd.f32 0.0, %v6785
        %v6787 = vpop.f32.mrb[0].mxu0
        %6788 = vmatprep.mubr.bf16.mxu0 0
        %6789 = vmatmul.mubr.bf16.gmra.mrb[0].mxu0 %v6654
        %v6790 = vpop.f32.mrb[0].mxu0
        %v6791 = vadd.f32 0.0, %v6790
        %v6792 = vpop.f32.mrb[0].mxu0
        %v6793 = vpop.f32.mrb[0].mxu0
        %v6794 = vadd.f32 0.0, %v6793
        %v6795 = vpop.f32.mrb[0].mxu0
        %6796 = vmatprep.mubr.bf16.mxu0 0
        %6797 = vmatmul.mubr.bf16.gmra.mrb[0].mxu0 %v6657
        %v6798 = vpop.f32.mrb[0].mxu0
        %v6799 = vadd.f32 0.0, %v6798
        %v6800 = vpop.f32.mrb[0].mxu0
        %v6801 = vpop.f32.mrb[0].mxu0
        %v6802 = vadd.f32 0.0, %v6801
        %v6803 = vpop.f32.mrb[0].mxu0
        %6804 = vmatprep.mubr.bf16.mxu0 0
        %6805 = vmatmul.mubr.bf16.gmra.mrb[0].mxu0 %v6660
        %v6806 = vpop.f32.mrb[0].mxu0
        %v6807 = vadd.f32 0.0, %v6806
        %v6808 = vpop.f32.mrb[0].mxu0
        %v6809 = vpop.f32.mrb[0].mxu0
        %v6810 = vadd.f32 0.0, %v6809
        %v6811 = vpop.f32.mrb[0].mxu0
        %6812 = vmatprep.mubr.bf16.mxu0 0
        %6813 = vmatmul.mubr.bf16.gmra.mrb[0].mxu0 %v6663
        %v6814 = vpop.f32.mrb[0].mxu0
        %v6815 = vadd.f32 0.0, %v6814
        %v6816 = vpop.f32.mrb[0].mxu0
        %v6817 = vpop.f32.mrb[0].mxu0
        %v6818 = vadd.f32 0.0, %v6817
        %v6819 = vpop.f32.mrb[0].mxu0
        %6820 = vmatprep.mubr.bf16.mxu0 0
        %6821 = vmatmul.mubr.bf16.gmra.mrb[0].mxu0 %v6666
        %v6822 = vpop.f32.mrb[0].mxu0
        %v6823 = vadd.f32 0.0, %v6822
        %v6824 = vpop.f32.mrb[0].mxu0
        %v6825 = vpop.f32.mrb[0].mxu0
        %v6826 = vadd.f32 0.0, %v6825
        %v6827 = vpop.f32.mrb[0].mxu0
        %6828 = vdwg.mxu0
        %v6833 = vunpack.c.l.b16 %v6476
        %v6834 = vunpack.c.l.b16 %v6477
        %v6835 = vunpack.c.l.b16 %v6478
        %v6836 = vunpack.c.l.b16 %v6479
        %v6837 = vpack.c.b16 %v6834, %v6833
        %v6838 = vpack.c.b16 %v6836, %v6835
        %v6842 = vsel %vm6388, %v6544, 0
        %v6845 = vsel %vm6388, %v6545, 0
        %v6848 = vsel %vm6388, %v6546, 0
        %v6851 = vsel %vm6388, %v6547, 0
        %v6854 = vsel %vm6388, %v6548, 0
        %v6857 = vsel %vm6388, %v6549, 0
        %v6860 = vsel %vm6388, %v6550, 0
        %v6863 = vsel %vm6388, %v6551, 0
        %v6866 = vsel %vm6388, %v6552, 0
        %v6869 = vsel %vm6388, %v6553, 0
        %v6872 = vsel %vm6388, %v6554, 0
        %v6875 = vsel %vm6388, %v6555, 0
        %v6878 = vsel %vm6388, %v6556, 0
        %v6881 = vsel %vm6388, %v6557, 0
        %v6884 = vsel %vm6388, %v6558, 0
        %v6887 = vsel %vm6388, %v6559, 0
        %6889 = vmatprep.subr.bf16.mxu0 0
        %6890 = vmatpush1.bf16.msra.mxu0 %v6837
        %6891 = vmatprep.subr.bf16.mxu0 0
        %6892 = vmatpush1.bf16.msra.mxu0 %v6838
        %6893 = vmatprep.subr.bf16.mxu0 0
        %6894 = vmatpush1.bf16.msra.mxu0 0
        %6895 = vmatprep.subr.bf16.mxu0 0
        %6896 = vmatpush1.bf16.msra.mxu0 0
        %6897 = vmatprep.subr.bf16.mxu0 0
        %6898 = vmatpush1.bf16.msra.mxu0 0
        %6899 = vmatprep.subr.bf16.mxu0 0
        %6900 = vmatpush1.bf16.msra.mxu0 0
        %6901 = vmatprep.subr.bf16.mxu0 0
        %6902 = vmatpush1.bf16.msra.mxu0 0
        %6903 = vmatprep.subr.bf16.mxu0 0
        %6904 = vmatpush1.bf16.msra.mxu0 0
        %6905 = vmatprep.subr.bf16.mxu0 0
        %6906 = vmatpush1.bf16.msra.mxu0 0
        %6907 = vmatprep.subr.bf16.mxu0 0
        %6908 = vmatpush1.bf16.msra.mxu0 0
        %6909 = vmatprep.subr.bf16.mxu0 0
        %6910 = vmatpush1.bf16.msra.mxu0 0
        %6911 = vmatprep.subr.bf16.mxu0 0
        %6912 = vmatpush1.bf16.msra.mxu0 0
        %6913 = vmatprep.subr.bf16.mxu0 0
        %6914 = vmatpush1.bf16.msra.mxu0 0
        %6915 = vmatprep.subr.bf16.mxu0 0
        %6916 = vmatpush1.bf16.msra.mxu0 0
        %6917 = vmatprep.subr.bf16.mxu0 0
        %6918 = vmatpush1.bf16.msra.mxu0 0
        %6919 = vmatprep.subr.bf16.mxu0 0
        %6920 = vmatpush1.bf16.msra.mxu0 0
        %6921 = vmatprep.mubr.bf16.mxu0 0
        %6922 = vmatmul.mubr.bf16.gmra.mrb[0].mxu0 %v6842
        %v6923 = vpop.f32.mrb[0].mxu0
        %v6924 = vadd.f32 %v6703, %v6923
        %v6925 = vpop.f32.mrb[0].mxu0
        %v6926 = vpop.f32.mrb[0].mxu0
        %v6927 = vadd.f32 %v6706, %v6926
        %v6928 = vpop.f32.mrb[0].mxu0
        %6929 = vmatprep.mubr.bf16.mxu0 0
        %6930 = vmatmul.mubr.bf16.gmra.mrb[0].mxu0 %v6845
        %v6931 = vpop.f32.mrb[0].mxu0
        %v6932 = vadd.f32 %v6711, %v6931
        %v6933 = vpop.f32.mrb[0].mxu0
        %v6934 = vpop.f32.mrb[0].mxu0
        %v6935 = vadd.f32 %v6714, %v6934
        %v6936 = vpop.f32.mrb[0].mxu0
        %6937 = vmatprep.mubr.bf16.mxu0 0
        %6938 = vmatmul.mubr.bf16.gmra.mrb[0].mxu0 %v6848
        %v6939 = vpop.f32.mrb[0].mxu0
        %v6940 = vadd.f32 %v6719, %v6939
        %v6941 = vpop.f32.mrb[0].mxu0
        %v6942 = vpop.f32.mrb[0].mxu0
        %v6943 = vadd.f32 %v6722, %v6942
        %v6944 = vpop.f32.mrb[0].mxu0
        %6945 = vmatprep.mubr.bf16.mxu0 0
        %6946 = vmatmul.mubr.bf16.gmra.mrb[0].mxu0 %v6851
        %v6947 = vpop.f32.mrb[0].mxu0
        %v6948 = vadd.f32 %v6727, %v6947
        %v6949 = vpop.f32.mrb[0].mxu0
        %v6950 = vpop.f32.mrb[0].mxu0
        %v6951 = vadd.f32 %v6730, %v6950
        %v6952 = vpop.f32.mrb[0].mxu0
        %6953 = vmatprep.mubr.bf16.mxu0 0
        %6954 = vmatmul.mubr.bf16.gmra.mrb[0].mxu0 %v6854
        %v6955 = vpop.f32.mrb[0].mxu0
        %v6956 = vadd.f32 %v6735, %v6955
        %v6957 = vpop.f32.mrb[0].mxu0
        %v6958 = vpop.f32.mrb[0].mxu0
        %v6959 = vadd.f32 %v6738, %v6958
        %v6960 = vpop.f32.mrb[0].mxu0
        %6961 = vmatprep.mubr.bf16.mxu0 0
        %6962 = vmatmul.mubr.bf16.gmra.mrb[0].mxu0 %v6857
        %v6963 = vpop.f32.mrb[0].mxu0
        %v6964 = vadd.f32 %v6743, %v6963
        %v6965 = vpop.f32.mrb[0].mxu0
        %v6966 = vpop.f32.mrb[0].mxu0
        %v6967 = vadd.f32 %v6746, %v6966
        %v6968 = vpop.f32.mrb[0].mxu0
        %6969 = vmatprep.mubr.bf16.mxu0 0
        %6970 = vmatmul.mubr.bf16.gmra.mrb[0].mxu0 %v6860
        %v6971 = vpop.f32.mrb[0].mxu0
        %v6972 = vadd.f32 %v6751, %v6971
        %v6973 = vpop.f32.mrb[0].mxu0
        %v6974 = vpop.f32.mrb[0].mxu0
        %v6975 = vadd.f32 %v6754, %v6974
        %v6976 = vpop.f32.mrb[0].mxu0
        %6977 = vmatprep.mubr.bf16.mxu0 0
        %6978 = vmatmul.mubr.bf16.gmra.mrb[0].mxu0 %v6863
        %v6979 = vpop.f32.mrb[0].mxu0
        %v6980 = vadd.f32 %v6759, %v6979
        %v6981 = vpop.f32.mrb[0].mxu0
        %v6982 = vpop.f32.mrb[0].mxu0
        %v6983 = vadd.f32 %v6762, %v6982
        %v6984 = vpop.f32.mrb[0].mxu0
        %6985 = vmatprep.mubr.bf16.mxu0 0
        %6986 = vmatmul.mubr.bf16.gmra.mrb[0].mxu0 %v6866
        %v6987 = vpop.f32.mrb[0].mxu0
        %v6988 = vadd.f32 %v6767, %v6987
        %v6989 = vpop.f32.mrb[0].mxu0
        %v6990 = vpop.f32.mrb[0].mxu0
        %v6991 = vadd.f32 %v6770, %v6990
        %v6992 = vpop.f32.mrb[0].mxu0
        %6993 = vmatprep.mubr.bf16.mxu0 0
        %6994 = vmatmul.mubr.bf16.gmra.mrb[0].mxu0 %v6869
        %v6995 = vpop.f32.mrb[0].mxu0
        %v6996 = vadd.f32 %v6775, %v6995
        %v6997 = vpop.f32.mrb[0].mxu0
        %v6998 = vpop.f32.mrb[0].mxu0
        %v6999 = vadd.f32 %v6778, %v6998
        %v7000 = vpop.f32.mrb[0].mxu0
        %7001 = vmatprep.mubr.bf16.mxu0 0
        %7002 = vmatmul.mubr.bf16.gmra.mrb[0].mxu0 %v6872
        %v7003 = vpop.f32.mrb[0].mxu0
        %v7004 = vadd.f32 %v6783, %v7003
        %v7005 = vpop.f32.mrb[0].mxu0
        %v7006 = vpop.f32.mrb[0].mxu0
        %v7007 = vadd.f32 %v6786, %v7006
        %v7008 = vpop.f32.mrb[0].mxu0
        %7009 = vmatprep.mubr.bf16.mxu0 0
        %7010 = vmatmul.mubr.bf16.gmra.mrb[0].mxu0 %v6875
        %v7011 = vpop.f32.mrb[0].mxu0
        %v7012 = vadd.f32 %v6791, %v7011
        %v7013 = vpop.f32.mrb[0].mxu0
        %v7014 = vpop.f32.mrb[0].mxu0
        %v7015 = vadd.f32 %v6794, %v7014
        %v7016 = vpop.f32.mrb[0].mxu0
        %7017 = vmatprep.mubr.bf16.mxu0 0
        %7018 = vmatmul.mubr.bf16.gmra.mrb[0].mxu0 %v6878
        %v7019 = vpop.f32.mrb[0].mxu0
        %v7020 = vadd.f32 %v6799, %v7019
        %v7021 = vpop.f32.mrb[0].mxu0
        %v7022 = vpop.f32.mrb[0].mxu0
        %v7023 = vadd.f32 %v6802, %v7022
        %v7024 = vpop.f32.mrb[0].mxu0
        %7025 = vmatprep.mubr.bf16.mxu0 0
        %7026 = vmatmul.mubr.bf16.gmra.mrb[0].mxu0 %v6881
        %v7027 = vpop.f32.mrb[0].mxu0
        %v7028 = vadd.f32 %v6807, %v7027
        %v7029 = vpop.f32.mrb[0].mxu0
        %v7030 = vpop.f32.mrb[0].mxu0
        %v7031 = vadd.f32 %v6810, %v7030
        %v7032 = vpop.f32.mrb[0].mxu0
        %7033 = vmatprep.mubr.bf16.mxu0 0
        %7034 = vmatmul.mubr.bf16.gmra.mrb[0].mxu0 %v6884
        %v7035 = vpop.f32.mrb[0].mxu0
        %v7036 = vadd.f32 %v6815, %v7035
        %v7037 = vpop.f32.mrb[0].mxu0
        %v7038 = vpop.f32.mrb[0].mxu0
        %v7039 = vadd.f32 %v6818, %v7038
        %v7040 = vpop.f32.mrb[0].mxu0
        %7041 = vmatprep.mubr.bf16.mxu0 0
        %7042 = vmatmul.mubr.bf16.gmra.mrb[0].mxu0 %v6887
        %v7043 = vpop.f32.mrb[0].mxu0
        %v7044 = vadd.f32 %v6823, %v7043
        %v7045 = vpop.f32.mrb[0].mxu0
        %v7046 = vpop.f32.mrb[0].mxu0
        %v7047 = vadd.f32 %v6826, %v7046
        %v7048 = vpop.f32.mrb[0].mxu0
        %7049 = vdwg.mxu0
        %v7050 = vld [vmem:[#allocation3 + $0x2] sm:$0xff]
        %v7051 = vld [vmem:[#allocation3 + $0xa] sm:$0xff]
        %v7052 = vld [vmem:[#allocation3 + $0x1a] sm:$0xff]
        %v7053 = vld [vmem:[#allocation3 + $0x22] sm:$0xff]
        %v7054 = vld [vmem:[#allocation3 + $0x32] sm:$0xff]
        %v7055 = vld [vmem:[#allocation3 + $0x3a] sm:$0xff]
        %v7056 = vld [vmem:[#allocation3 + $0x4a] sm:$0xff]
        %v7057 = vld [vmem:[#allocation3 + $0x52] sm:$0xff]
        %v7058 = vld [vmem:[#allocation3 + $0x62] sm:$0xff]
        %v7059 = vld [vmem:[#allocation3 + $0x6a] sm:$0xff]
        %v7060 = vld [vmem:[#allocation3 + $0x7a] sm:$0xff]
        %v7061 = vld [vmem:[#allocation3 + $0x82] sm:$0xff]
        %v7062 = vld [vmem:[#allocation3 + $0x92] sm:$0xff]
        %v7063 = vld [vmem:[#allocation3 + $0x9a] sm:$0xff]
        %v7064 = vld [vmem:[#allocation3 + $0xaa] sm:$0xff]
        %v7065 = vld [vmem:[#allocation3 + $0xb2] sm:$0xff]
        %v7066 = vld [vmem:[#allocation3 + $0xc2] sm:$0xff]
        %v7067 = vld [vmem:[#allocation3 + $0xca] sm:$0xff]
        %v7068 = vld [vmem:[#allocation3 + $0xda] sm:$0xff]
        %v7069 = vld [vmem:[#allocation3 + $0xe2] sm:$0xff]
        %v7070 = vld [vmem:[#allocation3 + $0xf2] sm:$0xff]
        %v7071 = vld [vmem:[#allocation3 + $0xfa] sm:$0xff]
        %v7072 = vld [vmem:[#allocation3 + $0x10a] sm:$0xff]
        %v7073 = vld [vmem:[#allocation3 + $0x112] sm:$0xff]
        %v7074 = vld [vmem:[#allocation3 + $0x122] sm:$0xff]
        %v7075 = vld [vmem:[#allocation3 + $0x12a] sm:$0xff]
        %v7076 = vld [vmem:[#allocation3 + $0x13a] sm:$0xff]
        %v7077 = vld [vmem:[#allocation3 + $0x142] sm:$0xff]
        %v7078 = vld [vmem:[#allocation3 + $0x152] sm:$0xff]
        %v7079 = vld [vmem:[#allocation3 + $0x15a] sm:$0xff]
        %v7080 = vld [vmem:[#allocation3 + $0x16a] sm:$0xff]
        %v7081 = vld [vmem:[#allocation3 + $0x172] sm:$0xff]
        %v7082 = vpack.c.bf16 %v7051, %v7050
        %v7083 = vpack.c.bf16 %v7053, %v7052
        %v7084 = vpack.c.bf16 %v7055, %v7054
        %v7085 = vpack.c.bf16 %v7057, %v7056
        %v7086 = vpack.c.bf16 %v7059, %v7058
        %v7087 = vpack.c.bf16 %v7061, %v7060
        %v7088 = vpack.c.bf16 %v7063, %v7062
        %v7089 = vpack.c.bf16 %v7065, %v7064
        %v7090 = vpack.c.bf16 %v7067, %v7066
        %v7091 = vpack.c.bf16 %v7069, %v7068
        %v7092 = vpack.c.bf16 %v7071, %v7070
        %v7093 = vpack.c.bf16 %v7073, %v7072
        %v7094 = vpack.c.bf16 %v7075, %v7074
        %v7095 = vpack.c.bf16 %v7077, %v7076
        %v7096 = vpack.c.bf16 %v7079, %v7078
        %v7097 = vpack.c.bf16 %v7081, %v7080
        %v7102 = vunpack.c.l.b16 %v6484
        %v7103 = vunpack.c.l.b16 %v6485
        %v7104 = vunpack.c.l.b16 %v6486
        %v7105 = vunpack.c.l.b16 %v6487
        %v7106 = vpack.c.b16 %v7103, %v7102
        %v7107 = vpack.c.b16 %v7105, %v7104
        %v7111 = vsel %vm6388, %v7082, 0
        %v7114 = vsel %vm6388, %v7083, 0
        %v7117 = vsel %vm6388, %v7084, 0
        %v7120 = vsel %vm6388, %v7085, 0
        %v7123 = vsel %vm6388, %v7086, 0
        %v7126 = vsel %vm6388, %v7087, 0
        %v7129 = vsel %vm6388, %v7088, 0
        %v7132 = vsel %vm6388, %v7089, 0
        %v7135 = vsel %vm6388, %v7090, 0
        %v7138 = vsel %vm6388, %v7091, 0
        %v7141 = vsel %vm6388, %v7092, 0
        %v7144 = vsel %vm6388, %v7093, 0
        %v7147 = vsel %vm6388, %v7094, 0
        %v7150 = vsel %vm6388, %v7095, 0
        %v7153 = vsel %vm6388, %v7096, 0
        %v7156 = vsel %vm6388, %v7097, 0
        %7158 = vmatprep.subr.bf16.mxu0 0
        %7159 = vmatpush1.bf16.msra.mxu0 %v7106
        %7160 = vmatprep.subr.bf16.mxu0 0
        %7161 = vmatpush1.bf16.msra.mxu0 %v7107
        %7162 = vmatprep.subr.bf16.mxu0 0
        %7163 = vmatpush1.bf16.msra.mxu0 0
        %7164 = vmatprep.subr.bf16.mxu0 0
        %7165 = vmatpush1.bf16.msra.mxu0 0
        %7166 = vmatprep.subr.bf16.mxu0 0
        %7167 = vmatpush1.bf16.msra.mxu0 0
        %7168 = vmatprep.subr.bf16.mxu0 0
        %7169 = vmatpush1.bf16.msra.mxu0 0
        %7170 = vmatprep.subr.bf16.mxu0 0
        %7171 = vmatpush1.bf16.msra.mxu0 0
        %7172 = vmatprep.subr.bf16.mxu0 0
        %7173 = vmatpush1.bf16.msra.mxu0 0
        %7174 = vmatprep.subr.bf16.mxu0 0
        %7175 = vmatpush1.bf16.msra.mxu0 0
        %7176 = vmatprep.subr.bf16.mxu0 0
        %7177 = vmatpush1.bf16.msra.mxu0 0
        %7178 = vmatprep.subr.bf16.mxu0 0
        %7179 = vmatpush1.bf16.msra.mxu0 0
        %7180 = vmatprep.subr.bf16.mxu0 0
        %7181 = vmatpush1.bf16.msra.mxu0 0
        %7182 = vmatprep.subr.bf16.mxu0 0
        %7183 = vmatpush1.bf16.msra.mxu0 0
        %7184 = vmatprep.subr.bf16.mxu0 0
        %7185 = vmatpush1.bf16.msra.mxu0 0
        %7186 = vmatprep.subr.bf16.mxu0 0
        %7187 = vmatpush1.bf16.msra.mxu0 0
        %7188 = vmatprep.subr.bf16.mxu0 0
        %7189 = vmatpush1.bf16.msra.mxu0 0
        %7190 = vmatprep.mubr.bf16.mxu0 0
        %7191 = vmatmul.mubr.bf16.gmra.mrb[0].mxu0 %v7111
        %v7192 = vpop.f32.mrb[0].mxu0
        %v7193 = vadd.f32 0.0, %v7192
        %v7194 = vpop.f32.mrb[0].mxu0
        %v7195 = vpop.f32.mrb[0].mxu0
        %v7196 = vadd.f32 0.0, %v7195
        %v7197 = vpop.f32.mrb[0].mxu0
        %7198 = vmatprep.mubr.bf16.mxu0 0
        %7199 = vmatmul.mubr.bf16.gmra.mrb[0].mxu0 %v7114
        %v7200 = vpop.f32.mrb[0].mxu0
        %v7201 = vadd.f32 0.0, %v7200
        %v7202 = vpop.f32.mrb[0].mxu0
        %v7203 = vpop.f32.mrb[0].mxu0
        %v7204 = vadd.f32 0.0, %v7203
        %v7205 = vpop.f32.mrb[0].mxu0
        %7206 = vmatprep.mubr.bf16.mxu0 0
        %7207 = vmatmul.mubr.bf16.gmra.mrb[0].mxu0 %v7117
        %v7208 = vpop.f32.mrb[0].mxu0
        %v7209 = vadd.f32 0.0, %v7208
        %v7210 = vpop.f32.mrb[0].mxu0
        %v7211 = vpop.f32.mrb[0].mxu0
        %v7212 = vadd.f32 0.0, %v7211
        %v7213 = vpop.f32.mrb[0].mxu0
        %7214 = vmatprep.mubr.bf16.mxu0 0
        %7215 = vmatmul.mubr.bf16.gmra.mrb[0].mxu0 %v7120
        %v7216 = vpop.f32.mrb[0].mxu0
        %v7217 = vadd.f32 0.0, %v7216
        %v7218 = vpop.f32.mrb[0].mxu0
        %v7219 = vpop.f32.mrb[0].mxu0
        %v7220 = vadd.f32 0.0, %v7219
        %v7221 = vpop.f32.mrb[0].mxu0
        %7222 = vmatprep.mubr.bf16.mxu0 0
        %7223 = vmatmul.mubr.bf16.gmra.mrb[0].mxu0 %v7123
        %v7224 = vpop.f32.mrb[0].mxu0
        %v7225 = vadd.f32 0.0, %v7224
        %v7226 = vpop.f32.mrb[0].mxu0
        %v7227 = vpop.f32.mrb[0].mxu0
        %v7228 = vadd.f32 0.0, %v7227
        %v7229 = vpop.f32.mrb[0].mxu0
        %7230 = vmatprep.mubr.bf16.mxu0 0
        %7231 = vmatmul.mubr.bf16.gmra.mrb[0].mxu0 %v7126
        %v7232 = vpop.f32.mrb[0].mxu0
        %v7233 = vadd.f32 0.0, %v7232
        %v7234 = vpop.f32.mrb[0].mxu0
        %v7235 = vpop.f32.mrb[0].mxu0
        %v7236 = vadd.f32 0.0, %v7235
        %v7237 = vpop.f32.mrb[0].mxu0
        %7238 = vmatprep.mubr.bf16.mxu0 0
        %7239 = vmatmul.mubr.bf16.gmra.mrb[0].mxu0 %v7129
        %v7240 = vpop.f32.mrb[0].mxu0
        %v7241 = vadd.f32 0.0, %v7240
        %v7242 = vpop.f32.mrb[0].mxu0
        %v7243 = vpop.f32.mrb[0].mxu0
        %v7244 = vadd.f32 0.0, %v7243
        %v7245 = vpop.f32.mrb[0].mxu0
        %7246 = vmatprep.mubr.bf16.mxu0 0
        %7247 = vmatmul.mubr.bf16.gmra.mrb[0].mxu0 %v7132
        %v7248 = vpop.f32.mrb[0].mxu0
        %v7249 = vadd.f32 0.0, %v7248
        %v7250 = vpop.f32.mrb[0].mxu0
        %v7251 = vpop.f32.mrb[0].mxu0
        %v7252 = vadd.f32 0.0, %v7251
        %v7253 = vpop.f32.mrb[0].mxu0
        %7254 = vmatprep.mubr.bf16.mxu0 0
        %7255 = vmatmul.mubr.bf16.gmra.mrb[0].mxu0 %v7135
        %v7256 = vpop.f32.mrb[0].mxu0
        %v7257 = vadd.f32 0.0, %v7256
        %v7258 = vpop.f32.mrb[0].mxu0
        %v7259 = vpop.f32.mrb[0].mxu0
        %v7260 = vadd.f32 0.0, %v7259
        %v7261 = vpop.f32.mrb[0].mxu0
        %7262 = vmatprep.mubr.bf16.mxu0 0
        %7263 = vmatmul.mubr.bf16.gmra.mrb[0].mxu0 %v7138
        %v7264 = vpop.f32.mrb[0].mxu0
        %v7265 = vadd.f32 0.0, %v7264
        %v7266 = vpop.f32.mrb[0].mxu0
        %v7267 = vpop.f32.mrb[0].mxu0
        %v7268 = vadd.f32 0.0, %v7267
        %v7269 = vpop.f32.mrb[0].mxu0
        %7270 = vmatprep.mubr.bf16.mxu0 0
        %7271 = vmatmul.mubr.bf16.gmra.mrb[0].mxu0 %v7141
        %v7272 = vpop.f32.mrb[0].mxu0
        %v7273 = vadd.f32 0.0, %v7272
        %v7274 = vpop.f32.mrb[0].mxu0
        %v7275 = vpop.f32.mrb[0].mxu0
        %v7276 = vadd.f32 0.0, %v7275
        %v7277 = vpop.f32.mrb[0].mxu0
        %7278 = vmatprep.mubr.bf16.mxu0 0
        %7279 = vmatmul.mubr.bf16.gmra.mrb[0].mxu0 %v7144
        %v7280 = vpop.f32.mrb[0].mxu0
        %v7281 = vadd.f32 0.0, %v7280
        %v7282 = vpop.f32.mrb[0].mxu0
        %v7283 = vpop.f32.mrb[0].mxu0
        %v7284 = vadd.f32 0.0, %v7283
        %v7285 = vpop.f32.mrb[0].mxu0
        %7286 = vmatprep.mubr.bf16.mxu0 0
        %7287 = vmatmul.mubr.bf16.gmra.mrb[0].mxu0 %v7147
        %v7288 = vpop.f32.mrb[0].mxu0
        %v7289 = vadd.f32 0.0, %v7288
        %v7290 = vpop.f32.mrb[0].mxu0
        %v7291 = vpop.f32.mrb[0].mxu0
        %v7292 = vadd.f32 0.0, %v7291
        %v7293 = vpop.f32.mrb[0].mxu0
        %7294 = vmatprep.mubr.bf16.mxu0 0
        %7295 = vmatmul.mubr.bf16.gmra.mrb[0].mxu0 %v7150
        %v7296 = vpop.f32.mrb[0].mxu0
        %v7297 = vadd.f32 0.0, %v7296
        %v7298 = vpop.f32.mrb[0].mxu0
        %v7299 = vpop.f32.mrb[0].mxu0
        %v7300 = vadd.f32 0.0, %v7299
        %v7301 = vpop.f32.mrb[0].mxu0
        %7302 = vmatprep.mubr.bf16.mxu0 0
        %7303 = vmatmul.mubr.bf16.gmra.mrb[0].mxu0 %v7153
        %v7304 = vpop.f32.mrb[0].mxu0
        %v7305 = vadd.f32 0.0, %v7304
        %v7306 = vpop.f32.mrb[0].mxu0
        %v7307 = vpop.f32.mrb[0].mxu0
        %v7308 = vadd.f32 0.0, %v7307
        %v7309 = vpop.f32.mrb[0].mxu0
        %7310 = vmatprep.mubr.bf16.mxu0 0
        %7311 = vmatmul.mubr.bf16.gmra.mrb[0].mxu0 %v7156
        %v7312 = vpop.f32.mrb[0].mxu0
        %v7313 = vadd.f32 0.0, %v7312
        %v7314 = vpop.f32.mrb[0].mxu0
        %v7315 = vpop.f32.mrb[0].mxu0
        %v7316 = vadd.f32 0.0, %v7315
        %v7317 = vpop.f32.mrb[0].mxu0
        %7318 = vdwg.mxu0
        %v7319 = vadd.f32 %v6924, %v7193
        %v7320 = vadd.f32 %v6927, %v7196
        %v7321 = vadd.f32 %v6932, %v7201
        %v7322 = vadd.f32 %v6935, %v7204
        %v7323 = vadd.f32 %v6940, %v7209
        %v7324 = vadd.f32 %v6943, %v7212
        %v7325 = vadd.f32 %v6948, %v7217
        %v7326 = vadd.f32 %v6951, %v7220
        %v7327 = vadd.f32 %v6956, %v7225
        %v7328 = vadd.f32 %v6959, %v7228
        %v7329 = vadd.f32 %v6964, %v7233
        %v7330 = vadd.f32 %v6967, %v7236
        %v7331 = vadd.f32 %v6972, %v7241
        %v7332 = vadd.f32 %v6975, %v7244
        %v7333 = vadd.f32 %v6980, %v7249
        %v7334 = vadd.f32 %v6983, %v7252
        %v7335 = vadd.f32 %v6988, %v7257
        %v7336 = vadd.f32 %v6991, %v7260
        %v7337 = vadd.f32 %v6996, %v7265
        %v7338 = vadd.f32 %v6999, %v7268
        %v7339 = vadd.f32 %v7004, %v7273
        %v7340 = vadd.f32 %v7007, %v7276
        %v7341 = vadd.f32 %v7012, %v7281
        %v7342 = vadd.f32 %v7015, %v7284
        %v7343 = vadd.f32 %v7020, %v7289
        %v7344 = vadd.f32 %v7023, %v7292
        %v7345 = vadd.f32 %v7028, %v7297
        %v7346 = vadd.f32 %v7031, %v7300
        %v7347 = vadd.f32 %v7036, %v7305
        %v7348 = vadd.f32 %v7039, %v7308
        %v7349 = vadd.f32 %v7044, %v7313
        %v7350 = vadd.f32 %v7047, %v7316
        %v7351 = vld [vmem:[%s6443] sm:$0xff]
        %v7352 = vld [vmem:[%s6443 + $0x8] sm:$0xff]
        %v7353 = vld [vmem:[%s6443 + $0x18] sm:$0xff]
        %v7354 = vld [vmem:[%s6443 + $0x20] sm:$0xff]
        %v7355 = vld [vmem:[%s6443 + $0x30] sm:$0xff]
        %v7356 = vld [vmem:[%s6443 + $0x38] sm:$0xff]
        %v7357 = vld [vmem:[%s6443 + $0x48] sm:$0xff]
        %v7358 = vld [vmem:[%s6443 + $0x50] sm:$0xff]
        %v7359 = vld [vmem:[%s6443 + $0x60] sm:$0xff]
        %v7360 = vld [vmem:[%s6443 + $0x68] sm:$0xff]
        %v7361 = vld [vmem:[%s6443 + $0x78] sm:$0xff]
        %v7362 = vld [vmem:[%s6443 + $0x80] sm:$0xff]
        %v7363 = vld [vmem:[%s6443 + $0x90] sm:$0xff]
        %v7364 = vld [vmem:[%s6443 + $0x98] sm:$0xff]
        %v7365 = vld [vmem:[%s6443 + $0xa8] sm:$0xff]
        %v7366 = vld [vmem:[%s6443 + $0xb0] sm:$0xff]
        %v7367 = vld [vmem:[%s6443 + $0xc0] sm:$0xff]
        %v7368 = vld [vmem:[%s6443 + $0xc8] sm:$0xff]
        %v7369 = vld [vmem:[%s6443 + $0xd8] sm:$0xff]
        %v7370 = vld [vmem:[%s6443 + $0xe0] sm:$0xff]
        %v7371 = vld [vmem:[%s6443 + $0xf0] sm:$0xff]
        %v7372 = vld [vmem:[%s6443 + $0xf8] sm:$0xff]
        %v7373 = vld [vmem:[%s6443 + $0x108] sm:$0xff]
        %v7374 = vld [vmem:[%s6443 + $0x110] sm:$0xff]
        %v7375 = vld [vmem:[%s6443 + $0x120] sm:$0xff]
        %v7376 = vld [vmem:[%s6443 + $0x128] sm:$0xff]
        %v7377 = vld [vmem:[%s6443 + $0x138] sm:$0xff]
        %v7378 = vld [vmem:[%s6443 + $0x140] sm:$0xff]
        %v7379 = vld [vmem:[%s6443 + $0x150] sm:$0xff]
        %v7380 = vld [vmem:[%s6443 + $0x158] sm:$0xff]
        %v7381 = vld [vmem:[%s6443 + $0x168] sm:$0xff]
        %v7382 = vld [vmem:[%s6443 + $0x170] sm:$0xff]
        %v7383 = vpack.c.bf16 %v7352, %v7351
        %v7384 = vpack.c.bf16 %v7354, %v7353
        %v7385 = vpack.c.bf16 %v7356, %v7355
        %v7386 = vpack.c.bf16 %v7358, %v7357
        %v7387 = vpack.c.bf16 %v7360, %v7359
        %v7388 = vpack.c.bf16 %v7362, %v7361
        %v7389 = vpack.c.bf16 %v7364, %v7363
        %v7390 = vpack.c.bf16 %v7366, %v7365
        %v7391 = vpack.c.bf16 %v7368, %v7367
        %v7392 = vpack.c.bf16 %v7370, %v7369
        %v7393 = vpack.c.bf16 %v7372, %v7371
        %v7394 = vpack.c.bf16 %v7374, %v7373
        %v7395 = vpack.c.bf16 %v7376, %v7375
        %v7396 = vpack.c.bf16 %v7378, %v7377
        %v7397 = vpack.c.bf16 %v7380, %v7379
        %v7398 = vpack.c.bf16 %v7382, %v7381
        %v7403 = vunpack.c.l.b16 %v6488
        %v7404 = vunpack.c.l.b16 %v6489
        %v7405 = vunpack.c.l.b16 %v6490
        %v7406 = vunpack.c.l.b16 %v6491
        %v7407 = vpack.c.b16 %v7404, %v7403
        %v7408 = vpack.c.b16 %v7406, %v7405
        %v7412 = vsel %vm6388, %v7383, 0
        %v7415 = vsel %vm6388, %v7384, 0
        %v7418 = vsel %vm6388, %v7385, 0
        %v7421 = vsel %vm6388, %v7386, 0
        %v7424 = vsel %vm6388, %v7387, 0
        %v7427 = vsel %vm6388, %v7388, 0
        %v7430 = vsel %vm6388, %v7389, 0
        %v7433 = vsel %vm6388, %v7390, 0
        %v7436 = vsel %vm6388, %v7391, 0
        %v7439 = vsel %vm6388, %v7392, 0
        %v7442 = vsel %vm6388, %v7393, 0
        %v7445 = vsel %vm6388, %v7394, 0
        %v7448 = vsel %vm6388, %v7395, 0
        %v7451 = vsel %vm6388, %v7396, 0
        %v7454 = vsel %vm6388, %v7397, 0
        %v7457 = vsel %vm6388, %v7398, 0
        %7459 = vmatprep.subr.bf16.mxu0 0
        %7460 = vmatpush1.bf16.msra.mxu0 %v7407
        %7461 = vmatprep.subr.bf16.mxu0 0
        %7462 = vmatpush1.bf16.msra.mxu0 %v7408
        %7463 = vmatprep.subr.bf16.mxu0 0
        %7464 = vmatpush1.bf16.msra.mxu0 0
        %7465 = vmatprep.subr.bf16.mxu0 0
        %7466 = vmatpush1.bf16.msra.mxu0 0
        %7467 = vmatprep.subr.bf16.mxu0 0
        %7468 = vmatpush1.bf16.msra.mxu0 0
        %7469 = vmatprep.subr.bf16.mxu0 0
        %7470 = vmatpush1.bf16.msra.mxu0 0
        %7471 = vmatprep.subr.bf16.mxu0 0
        %7472 = vmatpush1.bf16.msra.mxu0 0
        %7473 = vmatprep.subr.bf16.mxu0 0
        %7474 = vmatpush1.bf16.msra.mxu0 0
        %7475 = vmatprep.subr.bf16.mxu0 0
        %7476 = vmatpush1.bf16.msra.mxu0 0
        %7477 = vmatprep.subr.bf16.mxu0 0
        %7478 = vmatpush1.bf16.msra.mxu0 0
        %7479 = vmatprep.subr.bf16.mxu0 0
        %7480 = vmatpush1.bf16.msra.mxu0 0
        %7481 = vmatprep.subr.bf16.mxu0 0
        %7482 = vmatpush1.bf16.msra.mxu0 0
        %7483 = vmatprep.subr.bf16.mxu0 0
        %7484 = vmatpush1.bf16.msra.mxu0 0
        %7485 = vmatprep.subr.bf16.mxu0 0
        %7486 = vmatpush1.bf16.msra.mxu0 0
        %7487 = vmatprep.subr.bf16.mxu0 0
        %7488 = vmatpush1.bf16.msra.mxu0 0
        %7489 = vmatprep.subr.bf16.mxu0 0
        %7490 = vmatpush1.bf16.msra.mxu0 0
        %7491 = vmatprep.mubr.bf16.mxu0 0
        %7492 = vmatmul.mubr.bf16.gmra.mrb[0].mxu0 %v7412
        %v7493 = vpop.f32.mrb[0].mxu0
        %v7494 = vadd.f32 0.0, %v7493
        %v7495 = vpop.f32.mrb[0].mxu0
        %v7496 = vpop.f32.mrb[0].mxu0
        %v7497 = vadd.f32 0.0, %v7496
        %v7498 = vpop.f32.mrb[0].mxu0
        %7499 = vmatprep.mubr.bf16.mxu0 0
        %7500 = vmatmul.mubr.bf16.gmra.mrb[0].mxu0 %v7415
        %v7501 = vpop.f32.mrb[0].mxu0
        %v7502 = vadd.f32 0.0, %v7501
        %v7503 = vpop.f32.mrb[0].mxu0
        %v7504 = vpop.f32.mrb[0].mxu0
        %v7505 = vadd.f32 0.0, %v7504
        %v7506 = vpop.f32.mrb[0].mxu0
        %7507 = vmatprep.mubr.bf16.mxu0 0
        %7508 = vmatmul.mubr.bf16.gmra.mrb[0].mxu0 %v7418
        %v7509 = vpop.f32.mrb[0].mxu0
        %v7510 = vadd.f32 0.0, %v7509
        %v7511 = vpop.f32.mrb[0].mxu0
        %v7512 = vpop.f32.mrb[0].mxu0
        %v7513 = vadd.f32 0.0, %v7512
        %v7514 = vpop.f32.mrb[0].mxu0
        %7515 = vmatprep.mubr.bf16.mxu0 0
        %7516 = vmatmul.mubr.bf16.gmra.mrb[0].mxu0 %v7421
        %v7517 = vpop.f32.mrb[0].mxu0
        %v7518 = vadd.f32 0.0, %v7517
        %v7519 = vpop.f32.mrb[0].mxu0
        %v7520 = vpop.f32.mrb[0].mxu0
        %v7521 = vadd.f32 0.0, %v7520
        %v7522 = vpop.f32.mrb[0].mxu0
        %7523 = vmatprep.mubr.bf16.mxu0 0
        %7524 = vmatmul.mubr.bf16.gmra.mrb[0].mxu0 %v7424
        %v7525 = vpop.f32.mrb[0].mxu0
        %v7526 = vadd.f32 0.0, %v7525
        %v7527 = vpop.f32.mrb[0].mxu0
        %v7528 = vpop.f32.mrb[0].mxu0
        %v7529 = vadd.f32 0.0, %v7528
        %v7530 = vpop.f32.mrb[0].mxu0
        %7531 = vmatprep.mubr.bf16.mxu0 0
        %7532 = vmatmul.mubr.bf16.gmra.mrb[0].mxu0 %v7427
        %v7533 = vpop.f32.mrb[0].mxu0
        %v7534 = vadd.f32 0.0, %v7533
        %v7535 = vpop.f32.mrb[0].mxu0
        %v7536 = vpop.f32.mrb[0].mxu0
        %v7537 = vadd.f32 0.0, %v7536
        %v7538 = vpop.f32.mrb[0].mxu0
        %7539 = vmatprep.mubr.bf16.mxu0 0
        %7540 = vmatmul.mubr.bf16.gmra.mrb[0].mxu0 %v7430
        %v7541 = vpop.f32.mrb[0].mxu0
        %v7542 = vadd.f32 0.0, %v7541
        %v7543 = vpop.f32.mrb[0].mxu0
        %v7544 = vpop.f32.mrb[0].mxu0
        %v7545 = vadd.f32 0.0, %v7544
        %v7546 = vpop.f32.mrb[0].mxu0
        %7547 = vmatprep.mubr.bf16.mxu0 0
        %7548 = vmatmul.mubr.bf16.gmra.mrb[0].mxu0 %v7433
        %v7549 = vpop.f32.mrb[0].mxu0
        %v7550 = vadd.f32 0.0, %v7549
        %v7551 = vpop.f32.mrb[0].mxu0
        %v7552 = vpop.f32.mrb[0].mxu0
        %v7553 = vadd.f32 0.0, %v7552
        %v7554 = vpop.f32.mrb[0].mxu0
        %7555 = vmatprep.mubr.bf16.mxu0 0
        %7556 = vmatmul.mubr.bf16.gmra.mrb[0].mxu0 %v7436
        %v7557 = vpop.f32.mrb[0].mxu0
        %v7558 = vadd.f32 0.0, %v7557
        %v7559 = vpop.f32.mrb[0].mxu0
        %v7560 = vpop.f32.mrb[0].mxu0
        %v7561 = vadd.f32 0.0, %v7560
        %v7562 = vpop.f32.mrb[0].mxu0
        %7563 = vmatprep.mubr.bf16.mxu0 0
        %7564 = vmatmul.mubr.bf16.gmra.mrb[0].mxu0 %v7439
        %v7565 = vpop.f32.mrb[0].mxu0
        %v7566 = vadd.f32 0.0, %v7565
        %v7567 = vpop.f32.mrb[0].mxu0
        %v7568 = vpop.f32.mrb[0].mxu0
        %v7569 = vadd.f32 0.0, %v7568
        %v7570 = vpop.f32.mrb[0].mxu0
        %7571 = vmatprep.mubr.bf16.mxu0 0
        %7572 = vmatmul.mubr.bf16.gmra.mrb[0].mxu0 %v7442
        %v7573 = vpop.f32.mrb[0].mxu0
        %v7574 = vadd.f32 0.0, %v7573
        %v7575 = vpop.f32.mrb[0].mxu0
        %v7576 = vpop.f32.mrb[0].mxu0
        %v7577 = vadd.f32 0.0, %v7576
        %v7578 = vpop.f32.mrb[0].mxu0
        %7579 = vmatprep.mubr.bf16.mxu0 0
        %7580 = vmatmul.mubr.bf16.gmra.mrb[0].mxu0 %v7445
        %v7581 = vpop.f32.mrb[0].mxu0
        %v7582 = vadd.f32 0.0, %v7581
        %v7583 = vpop.f32.mrb[0].mxu0
        %v7584 = vpop.f32.mrb[0].mxu0
        %v7585 = vadd.f32 0.0, %v7584
        %v7586 = vpop.f32.mrb[0].mxu0
        %7587 = vmatprep.mubr.bf16.mxu0 0
        %7588 = vmatmul.mubr.bf16.gmra.mrb[0].mxu0 %v7448
        %v7589 = vpop.f32.mrb[0].mxu0
        %v7590 = vadd.f32 0.0, %v7589
        %v7591 = vpop.f32.mrb[0].mxu0
        %v7592 = vpop.f32.mrb[0].mxu0
        %v7593 = vadd.f32 0.0, %v7592
        %v7594 = vpop.f32.mrb[0].mxu0
        %7595 = vmatprep.mubr.bf16.mxu0 0
        %7596 = vmatmul.mubr.bf16.gmra.mrb[0].mxu0 %v7451
        %v7597 = vpop.f32.mrb[0].mxu0
        %v7598 = vadd.f32 0.0, %v7597
        %v7599 = vpop.f32.mrb[0].mxu0
        %v7600 = vpop.f32.mrb[0].mxu0
        %v7601 = vadd.f32 0.0, %v7600
        %v7602 = vpop.f32.mrb[0].mxu0
        %7603 = vmatprep.mubr.bf16.mxu0 0
        %7604 = vmatmul.mubr.bf16.gmra.mrb[0].mxu0 %v7454
        %v7605 = vpop.f32.mrb[0].mxu0
        %v7606 = vadd.f32 0.0, %v7605
        %v7607 = vpop.f32.mrb[0].mxu0
        %v7608 = vpop.f32.mrb[0].mxu0
        %v7609 = vadd.f32 0.0, %v7608
        %v7610 = vpop.f32.mrb[0].mxu0
        %7611 = vmatprep.mubr.bf16.mxu0 0
        %7612 = vmatmul.mubr.bf16.gmra.mrb[0].mxu0 %v7457
        %v7613 = vpop.f32.mrb[0].mxu0
        %v7614 = vadd.f32 0.0, %v7613
        %v7615 = vpop.f32.mrb[0].mxu0
        %v7616 = vpop.f32.mrb[0].mxu0
        %v7617 = vadd.f32 0.0, %v7616
        %v7618 = vpop.f32.mrb[0].mxu0
        %7619 = vdwg.mxu0
        %v7620 = vadd.f32 %v7319, %v7494
        %v7621 = vadd.f32 %v7320, %v7497
        %v7622 = vadd.f32 %v7321, %v7502
        %v7623 = vadd.f32 %v7322, %v7505
        %v7624 = vadd.f32 %v7323, %v7510
        %v7625 = vadd.f32 %v7324, %v7513
        %v7626 = vadd.f32 %v7325, %v7518
        %v7627 = vadd.f32 %v7326, %v7521
        %v7628 = vadd.f32 %v7327, %v7526
        %v7629 = vadd.f32 %v7328, %v7529
        %v7630 = vadd.f32 %v7329, %v7534
        %v7631 = vadd.f32 %v7330, %v7537
        %v7632 = vadd.f32 %v7331, %v7542
        %v7633 = vadd.f32 %v7332, %v7545
        %v7634 = vadd.f32 %v7333, %v7550
        %v7635 = vadd.f32 %v7334, %v7553
        %v7636 = vadd.f32 %v7335, %v7558
        %v7637 = vadd.f32 %v7336, %v7561
        %v7638 = vadd.f32 %v7337, %v7566
        %v7639 = vadd.f32 %v7338, %v7569
        %v7640 = vadd.f32 %v7339, %v7574
        %v7641 = vadd.f32 %v7340, %v7577
        %v7642 = vadd.f32 %v7341, %v7582
        %v7643 = vadd.f32 %v7342, %v7585
        %v7644 = vadd.f32 %v7343, %v7590
        %v7645 = vadd.f32 %v7344, %v7593
        %v7646 = vadd.f32 %v7345, %v7598
        %v7647 = vadd.f32 %v7346, %v7601
        %v7648 = vadd.f32 %v7347, %v7606
        %v7649 = vadd.f32 %v7348, %v7609
        %v7650 = vadd.f32 %v7349, %v7614
        %v7651 = vadd.f32 %v7350, %v7617
        %v7652 = vld [vmem:[%s6443 + $0x1] sm:$0xff]
        %v7653 = vld [vmem:[%s6443 + $0x9] sm:$0xff]
        %v7654 = vld [vmem:[%s6443 + $0x19] sm:$0xff]
        %v7655 = vld [vmem:[%s6443 + $0x21] sm:$0xff]
        %v7656 = vld [vmem:[%s6443 + $0x31] sm:$0xff]
        %v7657 = vld [vmem:[%s6443 + $0x39] sm:$0xff]
        %v7658 = vld [vmem:[%s6443 + $0x49] sm:$0xff]
        %v7659 = vld [vmem:[%s6443 + $0x51] sm:$0xff]
        %v7660 = vld [vmem:[%s6443 + $0x61] sm:$0xff]
        %v7661 = vld [vmem:[%s6443 + $0x69] sm:$0xff]
        %v7662 = vld [vmem:[%s6443 + $0x79] sm:$0xff]
        %v7663 = vld [vmem:[%s6443 + $0x81] sm:$0xff]
        %v7664 = vld [vmem:[%s6443 + $0x91] sm:$0xff]
        %v7665 = vld [vmem:[%s6443 + $0x99] sm:$0xff]
        %v7666 = vld [vmem:[%s6443 + $0xa9] sm:$0xff]
        %v7667 = vld [vmem:[%s6443 + $0xb1] sm:$0xff]
        %v7668 = vld [vmem:[%s6443 + $0xc1] sm:$0xff]
        %v7669 = vld [vmem:[%s6443 + $0xc9] sm:$0xff]
        %v7670 = vld [vmem:[%s6443 + $0xd9] sm:$0xff]
        %v7671 = vld [vmem:[%s6443 + $0xe1] sm:$0xff]
        %v7672 = vld [vmem:[%s6443 + $0xf1] sm:$0xff]
        %v7673 = vld [vmem:[%s6443 + $0xf9] sm:$0xff]
        %v7674 = vld [vmem:[%s6443 + $0x109] sm:$0xff]
        %v7675 = vld [vmem:[%s6443 + $0x111] sm:$0xff]
        %v7676 = vld [vmem:[%s6443 + $0x121] sm:$0xff]
        %v7677 = vld [vmem:[%s6443 + $0x129] sm:$0xff]
        %v7678 = vld [vmem:[%s6443 + $0x139] sm:$0xff]
        %v7679 = vld [vmem:[%s6443 + $0x141] sm:$0xff]
        %v7680 = vld [vmem:[%s6443 + $0x151] sm:$0xff]
        %v7681 = vld [vmem:[%s6443 + $0x159] sm:$0xff]
        %v7682 = vld [vmem:[%s6443 + $0x169] sm:$0xff]
        %v7683 = vld [vmem:[%s6443 + $0x171] sm:$0xff]
        %v7684 = vpack.c.bf16 %v7653, %v7652
        %v7685 = vpack.c.bf16 %v7655, %v7654
        %v7686 = vpack.c.bf16 %v7657, %v7656
        %v7687 = vpack.c.bf16 %v7659, %v7658
        %v7688 = vpack.c.bf16 %v7661, %v7660
        %v7689 = vpack.c.bf16 %v7663, %v7662
        %v7690 = vpack.c.bf16 %v7665, %v7664
        %v7691 = vpack.c.bf16 %v7667, %v7666
        %v7692 = vpack.c.bf16 %v7669, %v7668
        %v7693 = vpack.c.bf16 %v7671, %v7670
        %v7694 = vpack.c.bf16 %v7673, %v7672
        %v7695 = vpack.c.bf16 %v7675, %v7674
        %v7696 = vpack.c.bf16 %v7677, %v7676
        %v7697 = vpack.c.bf16 %v7679, %v7678
        %v7698 = vpack.c.bf16 %v7681, %v7680
        %v7699 = vpack.c.bf16 %v7683, %v7682
        %v7704 = vunpack.c.l.b16 %v6492
        %v7705 = vunpack.c.l.b16 %v6493
        %v7706 = vunpack.c.l.b16 %v6494
        %v7707 = vunpack.c.l.b16 %v6495
        %v7708 = vpack.c.b16 %v7705, %v7704
        %v7709 = vpack.c.b16 %v7707, %v7706
        %v7713 = vsel %vm6388, %v7684, 0
        %v7716 = vsel %vm6388, %v7685, 0
        %v7719 = vsel %vm6388, %v7686, 0
        %v7722 = vsel %vm6388, %v7687, 0
        %v7725 = vsel %vm6388, %v7688, 0
        %v7728 = vsel %vm6388, %v7689, 0
        %v7731 = vsel %vm6388, %v7690, 0
        %v7734 = vsel %vm6388, %v7691, 0
        %v7737 = vsel %vm6388, %v7692, 0
        %v7740 = vsel %vm6388, %v7693, 0
        %v7743 = vsel %vm6388, %v7694, 0
        %v7746 = vsel %vm6388, %v7695, 0
        %v7749 = vsel %vm6388, %v7696, 0
        %v7752 = vsel %vm6388, %v7697, 0
        %v7755 = vsel %vm6388, %v7698, 0
        %v7758 = vsel %vm6388, %v7699, 0
        %7760 = vmatprep.subr.bf16.mxu0 0
        %7761 = vmatpush1.bf16.msra.mxu0 %v7708
        %7762 = vmatprep.subr.bf16.mxu0 0
        %7763 = vmatpush1.bf16.msra.mxu0 %v7709
        %7764 = vmatprep.subr.bf16.mxu0 0
        %7765 = vmatpush1.bf16.msra.mxu0 0
        %7766 = vmatprep.subr.bf16.mxu0 0
        %7767 = vmatpush1.bf16.msra.mxu0 0
        %7768 = vmatprep.subr.bf16.mxu0 0
        %7769 = vmatpush1.bf16.msra.mxu0 0
        %7770 = vmatprep.subr.bf16.mxu0 0
        %7771 = vmatpush1.bf16.msra.mxu0 0
        %7772 = vmatprep.subr.bf16.mxu0 0
        %7773 = vmatpush1.bf16.msra.mxu0 0
        %7774 = vmatprep.subr.bf16.mxu0 0
        %7775 = vmatpush1.bf16.msra.mxu0 0
        %7776 = vmatprep.subr.bf16.mxu0 0
        %7777 = vmatpush1.bf16.msra.mxu0 0
        %7778 = vmatprep.subr.bf16.mxu0 0
        %7779 = vmatpush1.bf16.msra.mxu0 0
        %7780 = vmatprep.subr.bf16.mxu0 0
        %7781 = vmatpush1.bf16.msra.mxu0 0
        %7782 = vmatprep.subr.bf16.mxu0 0
        %7783 = vmatpush1.bf16.msra.mxu0 0
        %7784 = vmatprep.subr.bf16.mxu0 0
        %7785 = vmatpush1.bf16.msra.mxu0 0
        %7786 = vmatprep.subr.bf16.mxu0 0
        %7787 = vmatpush1.bf16.msra.mxu0 0
        %7788 = vmatprep.subr.bf16.mxu0 0
        %7789 = vmatpush1.bf16.msra.mxu0 0
        %7790 = vmatprep.subr.bf16.mxu0 0
        %7791 = vmatpush1.bf16.msra.mxu0 0
        %7792 = vmatprep.mubr.bf16.mxu0 0
        %7793 = vmatmul.mubr.bf16.gmra.mrb[0].mxu0 %v7713
        %v7794 = vpop.f32.mrb[0].mxu0
        %v7795 = vadd.f32 0.0, %v7794
        %v7796 = vpop.f32.mrb[0].mxu0
        %v7797 = vpop.f32.mrb[0].mxu0
        %v7798 = vadd.f32 0.0, %v7797
        %v7799 = vpop.f32.mrb[0].mxu0
        %7800 = vmatprep.mubr.bf16.mxu0 0
        %7801 = vmatmul.mubr.bf16.gmra.mrb[0].mxu0 %v7716
        %v7802 = vpop.f32.mrb[0].mxu0
        %v7803 = vadd.f32 0.0, %v7802
        %v7804 = vpop.f32.mrb[0].mxu0
        %v7805 = vpop.f32.mrb[0].mxu0
        %v7806 = vadd.f32 0.0, %v7805
        %v7807 = vpop.f32.mrb[0].mxu0
        %7808 = vmatprep.mubr.bf16.mxu0 0
        %7809 = vmatmul.mubr.bf16.gmra.mrb[0].mxu0 %v7719
        %v7810 = vpop.f32.mrb[0].mxu0
        %v7811 = vadd.f32 0.0, %v7810
        %v7812 = vpop.f32.mrb[0].mxu0
        %v7813 = vpop.f32.mrb[0].mxu0
        %v7814 = vadd.f32 0.0, %v7813
        %v7815 = vpop.f32.mrb[0].mxu0
        %7816 = vmatprep.mubr.bf16.mxu0 0
        %7817 = vmatmul.mubr.bf16.gmra.mrb[0].mxu0 %v7722
        %v7818 = vpop.f32.mrb[0].mxu0
        %v7819 = vadd.f32 0.0, %v7818
        %v7820 = vpop.f32.mrb[0].mxu0
        %v7821 = vpop.f32.mrb[0].mxu0
        %v7822 = vadd.f32 0.0, %v7821
        %v7823 = vpop.f32.mrb[0].mxu0
        %7824 = vmatprep.mubr.bf16.mxu0 0
        %7825 = vmatmul.mubr.bf16.gmra.mrb[0].mxu0 %v7725
        %v7826 = vpop.f32.mrb[0].mxu0
        %v7827 = vadd.f32 0.0, %v7826
        %v7828 = vpop.f32.mrb[0].mxu0
        %v7829 = vpop.f32.mrb[0].mxu0
        %v7830 = vadd.f32 0.0, %v7829
        %v7831 = vpop.f32.mrb[0].mxu0
        %7832 = vmatprep.mubr.bf16.mxu0 0
        %7833 = vmatmul.mubr.bf16.gmra.mrb[0].mxu0 %v7728
        %v7834 = vpop.f32.mrb[0].mxu0
        %v7835 = vadd.f32 0.0, %v7834
        %v7836 = vpop.f32.mrb[0].mxu0
        %v7837 = vpop.f32.mrb[0].mxu0
        %v7838 = vadd.f32 0.0, %v7837
        %v7839 = vpop.f32.mrb[0].mxu0
        %7840 = vmatprep.mubr.bf16.mxu0 0
        %7841 = vmatmul.mubr.bf16.gmra.mrb[0].mxu0 %v7731
        %v7842 = vpop.f32.mrb[0].mxu0
        %v7843 = vadd.f32 0.0, %v7842
        %v7844 = vpop.f32.mrb[0].mxu0
        %v7845 = vpop.f32.mrb[0].mxu0
        %v7846 = vadd.f32 0.0, %v7845
        %v7847 = vpop.f32.mrb[0].mxu0
        %7848 = vmatprep.mubr.bf16.mxu0 0
        %7849 = vmatmul.mubr.bf16.gmra.mrb[0].mxu0 %v7734
        %v7850 = vpop.f32.mrb[0].mxu0
        %v7851 = vadd.f32 0.0, %v7850
        %v7852 = vpop.f32.mrb[0].mxu0
        %v7853 = vpop.f32.mrb[0].mxu0
        %v7854 = vadd.f32 0.0, %v7853
        %v7855 = vpop.f32.mrb[0].mxu0
        %7856 = vmatprep.mubr.bf16.mxu0 0
        %7857 = vmatmul.mubr.bf16.gmra.mrb[0].mxu0 %v7737
        %v7858 = vpop.f32.mrb[0].mxu0
        %v7859 = vadd.f32 0.0, %v7858
        %v7860 = vpop.f32.mrb[0].mxu0
        %v7861 = vpop.f32.mrb[0].mxu0
        %v7862 = vadd.f32 0.0, %v7861
        %v7863 = vpop.f32.mrb[0].mxu0
        %7864 = vmatprep.mubr.bf16.mxu0 0
        %7865 = vmatmul.mubr.bf16.gmra.mrb[0].mxu0 %v7740
        %v7866 = vpop.f32.mrb[0].mxu0
        %v7867 = vadd.f32 0.0, %v7866
        %v7868 = vpop.f32.mrb[0].mxu0
        %v7869 = vpop.f32.mrb[0].mxu0
        %v7870 = vadd.f32 0.0, %v7869
        %v7871 = vpop.f32.mrb[0].mxu0
        %7872 = vmatprep.mubr.bf16.mxu0 0
        %7873 = vmatmul.mubr.bf16.gmra.mrb[0].mxu0 %v7743
        %v7874 = vpop.f32.mrb[0].mxu0
        %v7875 = vadd.f32 0.0, %v7874
        %v7876 = vpop.f32.mrb[0].mxu0
        %v7877 = vpop.f32.mrb[0].mxu0
        %v7878 = vadd.f32 0.0, %v7877
        %v7879 = vpop.f32.mrb[0].mxu0
        %7880 = vmatprep.mubr.bf16.mxu0 0
        %7881 = vmatmul.mubr.bf16.gmra.mrb[0].mxu0 %v7746
        %v7882 = vpop.f32.mrb[0].mxu0
        %v7883 = vadd.f32 0.0, %v7882
        %v7884 = vpop.f32.mrb[0].mxu0
        %v7885 = vpop.f32.mrb[0].mxu0
        %v7886 = vadd.f32 0.0, %v7885
        %v7887 = vpop.f32.mrb[0].mxu0
        %7888 = vmatprep.mubr.bf16.mxu0 0
        %7889 = vmatmul.mubr.bf16.gmra.mrb[0].mxu0 %v7749
        %v7890 = vpop.f32.mrb[0].mxu0
        %v7891 = vadd.f32 0.0, %v7890
        %v7892 = vpop.f32.mrb[0].mxu0
        %v7893 = vpop.f32.mrb[0].mxu0
        %v7894 = vadd.f32 0.0, %v7893
        %v7895 = vpop.f32.mrb[0].mxu0
        %7896 = vmatprep.mubr.bf16.mxu0 0
        %7897 = vmatmul.mubr.bf16.gmra.mrb[0].mxu0 %v7752
        %v7898 = vpop.f32.mrb[0].mxu0
        %v7899 = vadd.f32 0.0, %v7898
        %v7900 = vpop.f32.mrb[0].mxu0
        %v7901 = vpop.f32.mrb[0].mxu0
        %v7902 = vadd.f32 0.0, %v7901
        %v7903 = vpop.f32.mrb[0].mxu0
        %7904 = vmatprep.mubr.bf16.mxu0 0
        %7905 = vmatmul.mubr.bf16.gmra.mrb[0].mxu0 %v7755
        %v7906 = vpop.f32.mrb[0].mxu0
        %v7907 = vadd.f32 0.0, %v7906
        %v7908 = vpop.f32.mrb[0].mxu0
        %v7909 = vpop.f32.mrb[0].mxu0
        %v7910 = vadd.f32 0.0, %v7909
        %v7911 = vpop.f32.mrb[0].mxu0
        %7912 = vmatprep.mubr.bf16.mxu0 0
        %7913 = vmatmul.mubr.bf16.gmra.mrb[0].mxu0 %v7758
        %v7914 = vpop.f32.mrb[0].mxu0
        %v7915 = vadd.f32 0.0, %v7914
        %v7916 = vpop.f32.mrb[0].mxu0
        %v7917 = vpop.f32.mrb[0].mxu0
        %v7918 = vadd.f32 0.0, %v7917
        %v7919 = vpop.f32.mrb[0].mxu0
        %7920 = vdwg.mxu0
        %v7921 = vadd.f32 %v7620, %v7795
        %v7922 = vadd.f32 %v7621, %v7798
        %v7923 = vadd.f32 %v7622, %v7803
        %v7924 = vadd.f32 %v7623, %v7806
        %v7925 = vadd.f32 %v7624, %v7811
        %v7926 = vadd.f32 %v7625, %v7814
        %v7927 = vadd.f32 %v7626, %v7819
        %v7928 = vadd.f32 %v7627, %v7822
        %v7929 = vadd.f32 %v7628, %v7827
        %v7930 = vadd.f32 %v7629, %v7830
        %v7931 = vadd.f32 %v7630, %v7835
        %v7932 = vadd.f32 %v7631, %v7838
        %v7933 = vadd.f32 %v7632, %v7843
        %v7934 = vadd.f32 %v7633, %v7846
        %v7935 = vadd.f32 %v7634, %v7851
        %v7936 = vadd.f32 %v7635, %v7854
        %v7937 = vadd.f32 %v7636, %v7859
        %v7938 = vadd.f32 %v7637, %v7862
        %v7939 = vadd.f32 %v7638, %v7867
        %v7940 = vadd.f32 %v7639, %v7870
        %v7941 = vadd.f32 %v7640, %v7875
        %v7942 = vadd.f32 %v7641, %v7878
        %v7943 = vadd.f32 %v7642, %v7883
        %v7944 = vadd.f32 %v7643, %v7886
        %v7945 = vadd.f32 %v7644, %v7891
        %v7946 = vadd.f32 %v7645, %v7894
        %v7947 = vadd.f32 %v7646, %v7899
        %v7948 = vadd.f32 %v7647, %v7902
        %v7949 = vadd.f32 %v7648, %v7907
        %v7950 = vadd.f32 %v7649, %v7910
        %v7951 = vadd.f32 %v7650, %v7915
        %v7952 = vadd.f32 %v7651, %v7918
        %v7953 = vld [vmem:[%s6443 + $0x2] sm:$0xff]
        %v7954 = vld [vmem:[%s6443 + $0xa] sm:$0xff]
        %v7955 = vld [vmem:[%s6443 + $0x1a] sm:$0xff]
        %v7956 = vld [vmem:[%s6443 + $0x22] sm:$0xff]
        %v7957 = vld [vmem:[%s6443 + $0x32] sm:$0xff]
        %v7958 = vld [vmem:[%s6443 + $0x3a] sm:$0xff]
        %v7959 = vld [vmem:[%s6443 + $0x4a] sm:$0xff]
        %v7960 = vld [vmem:[%s6443 + $0x52] sm:$0xff]
        %v7961 = vld [vmem:[%s6443 + $0x62] sm:$0xff]
        %v7962 = vld [vmem:[%s6443 + $0x6a] sm:$0xff]
        %v7963 = vld [vmem:[%s6443 + $0x7a] sm:$0xff]
        %v7964 = vld [vmem:[%s6443 + $0x82] sm:$0xff]
        %v7965 = vld [vmem:[%s6443 + $0x92] sm:$0xff]
        %v7966 = vld [vmem:[%s6443 + $0x9a] sm:$0xff]
        %v7967 = vld [vmem:[%s6443 + $0xaa] sm:$0xff]
        %v7968 = vld [vmem:[%s6443 + $0xb2] sm:$0xff]
        %v7969 = vld [vmem:[%s6443 + $0xc2] sm:$0xff]
        %v7970 = vld [vmem:[%s6443 + $0xca] sm:$0xff]
        %v7971 = vld [vmem:[%s6443 + $0xda] sm:$0xff]
        %v7972 = vld [vmem:[%s6443 + $0xe2] sm:$0xff]
        %v7973 = vld [vmem:[%s6443 + $0xf2] sm:$0xff]
        %v7974 = vld [vmem:[%s6443 + $0xfa] sm:$0xff]
        %v7975 = vld [vmem:[%s6443 + $0x10a] sm:$0xff]
        %v7976 = vld [vmem:[%s6443 + $0x112] sm:$0xff]
        %v7977 = vld [vmem:[%s6443 + $0x122] sm:$0xff]
        %v7978 = vld [vmem:[%s6443 + $0x12a] sm:$0xff]
        %v7979 = vld [vmem:[%s6443 + $0x13a] sm:$0xff]
        %v7980 = vld [vmem:[%s6443 + $0x142] sm:$0xff]
        %v7981 = vld [vmem:[%s6443 + $0x152] sm:$0xff]
        %v7982 = vld [vmem:[%s6443 + $0x15a] sm:$0xff]
        %v7983 = vld [vmem:[%s6443 + $0x16a] sm:$0xff]
        %v7984 = vld [vmem:[%s6443 + $0x172] sm:$0xff]
        %v7985 = vpack.c.bf16 %v7954, %v7953
        %v7986 = vpack.c.bf16 %v7956, %v7955
        %v7987 = vpack.c.bf16 %v7958, %v7957
        %v7988 = vpack.c.bf16 %v7960, %v7959
        %v7989 = vpack.c.bf16 %v7962, %v7961
        %v7990 = vpack.c.bf16 %v7964, %v7963
        %v7991 = vpack.c.bf16 %v7966, %v7965
        %v7992 = vpack.c.bf16 %v7968, %v7967
        %v7993 = vpack.c.bf16 %v7970, %v7969
        %v7994 = vpack.c.bf16 %v7972, %v7971
        %v7995 = vpack.c.bf16 %v7974, %v7973
        %v7996 = vpack.c.bf16 %v7976, %v7975
        %v7997 = vpack.c.bf16 %v7978, %v7977
        %v7998 = vpack.c.bf16 %v7980, %v7979
        %v7999 = vpack.c.bf16 %v7982, %v7981
        %v8000 = vpack.c.bf16 %v7984, %v7983
        %v8005 = vunpack.c.l.b16 %v6496
        %v8006 = vunpack.c.l.b16 %v6497
        %v8007 = vunpack.c.l.b16 %v6498
        %v8008 = vunpack.c.l.b16 %v6499
        %v8009 = vpack.c.b16 %v8006, %v8005
        %v8010 = vpack.c.b16 %v8008, %v8007
        %v8014 = vsel %vm6388, %v7985, 0
        %v8017 = vsel %vm6388, %v7986, 0
        %v8020 = vsel %vm6388, %v7987, 0
        %v8023 = vsel %vm6388, %v7988, 0
        %v8026 = vsel %vm6388, %v7989, 0
        %v8029 = vsel %vm6388, %v7990, 0
        %v8032 = vsel %vm6388, %v7991, 0
        %v8035 = vsel %vm6388, %v7992, 0
        %v8038 = vsel %vm6388, %v7993, 0
        %v8041 = vsel %vm6388, %v7994, 0
        %v8044 = vsel %vm6388, %v7995, 0
        %v8047 = vsel %vm6388, %v7996, 0
        %v8050 = vsel %vm6388, %v7997, 0
        %v8053 = vsel %vm6388, %v7998, 0
        %v8056 = vsel %vm6388, %v7999, 0
        %v8059 = vsel %vm6388, %v8000, 0
        %8061 = vmatprep.subr.bf16.mxu0 0
        %8062 = vmatpush1.bf16.msra.mxu0 %v8009
        %8063 = vmatprep.subr.bf16.mxu0 0
        %8064 = vmatpush1.bf16.msra.mxu0 %v8010
        %8065 = vmatprep.subr.bf16.mxu0 0
        %8066 = vmatpush1.bf16.msra.mxu0 0
        %8067 = vmatprep.subr.bf16.mxu0 0
        %8068 = vmatpush1.bf16.msra.mxu0 0
        %8069 = vmatprep.subr.bf16.mxu0 0
        %8070 = vmatpush1.bf16.msra.mxu0 0
        %8071 = vmatprep.subr.bf16.mxu0 0
        %8072 = vmatpush1.bf16.msra.mxu0 0
        %8073 = vmatprep.subr.bf16.mxu0 0
        %8074 = vmatpush1.bf16.msra.mxu0 0
        %8075 = vmatprep.subr.bf16.mxu0 0
        %8076 = vmatpush1.bf16.msra.mxu0 0
        %8077 = vmatprep.subr.bf16.mxu0 0
        %8078 = vmatpush1.bf16.msra.mxu0 0
        %8079 = vmatprep.subr.bf16.mxu0 0
        %8080 = vmatpush1.bf16.msra.mxu0 0
        %8081 = vmatprep.subr.bf16.mxu0 0
        %8082 = vmatpush1.bf16.msra.mxu0 0
        %8083 = vmatprep.subr.bf16.mxu0 0
        %8084 = vmatpush1.bf16.msra.mxu0 0
        %8085 = vmatprep.subr.bf16.mxu0 0
        %8086 = vmatpush1.bf16.msra.mxu0 0
        %8087 = vmatprep.subr.bf16.mxu0 0
        %8088 = vmatpush1.bf16.msra.mxu0 0
        %8089 = vmatprep.subr.bf16.mxu0 0
        %8090 = vmatpush1.bf16.msra.mxu0 0
        %8091 = vmatprep.subr.bf16.mxu0 0
        %8092 = vmatpush1.bf16.msra.mxu0 0
        %8093 = vmatprep.mubr.bf16.mxu0 0
        %8094 = vmatmul.mubr.bf16.gmra.mrb[0].mxu0 %v8014
        %v8095 = vpop.f32.mrb[0].mxu0
        %v8096 = vadd.f32 0.0, %v8095
        %v8097 = vpop.f32.mrb[0].mxu0
        %v8098 = vpop.f32.mrb[0].mxu0
        %v8099 = vadd.f32 0.0, %v8098
        %v8100 = vpop.f32.mrb[0].mxu0
        %8101 = vmatprep.mubr.bf16.mxu0 0
        %8102 = vmatmul.mubr.bf16.gmra.mrb[0].mxu0 %v8017
        %v8103 = vpop.f32.mrb[0].mxu0
        %v8104 = vadd.f32 0.0, %v8103
        %v8105 = vpop.f32.mrb[0].mxu0
        %v8106 = vpop.f32.mrb[0].mxu0
        %v8107 = vadd.f32 0.0, %v8106
        %v8108 = vpop.f32.mrb[0].mxu0
        %8109 = vmatprep.mubr.bf16.mxu0 0
        %8110 = vmatmul.mubr.bf16.gmra.mrb[0].mxu0 %v8020
        %v8111 = vpop.f32.mrb[0].mxu0
        %v8112 = vadd.f32 0.0, %v8111
        %v8113 = vpop.f32.mrb[0].mxu0
        %v8114 = vpop.f32.mrb[0].mxu0
        %v8115 = vadd.f32 0.0, %v8114
        %v8116 = vpop.f32.mrb[0].mxu0
        %8117 = vmatprep.mubr.bf16.mxu0 0
        %8118 = vmatmul.mubr.bf16.gmra.mrb[0].mxu0 %v8023
        %v8119 = vpop.f32.mrb[0].mxu0
        %v8120 = vadd.f32 0.0, %v8119
        %v8121 = vpop.f32.mrb[0].mxu0
        %v8122 = vpop.f32.mrb[0].mxu0
        %v8123 = vadd.f32 0.0, %v8122
        %v8124 = vpop.f32.mrb[0].mxu0
        %8125 = vmatprep.mubr.bf16.mxu0 0
        %8126 = vmatmul.mubr.bf16.gmra.mrb[0].mxu0 %v8026
        %v8127 = vpop.f32.mrb[0].mxu0
        %v8128 = vadd.f32 0.0, %v8127
        %v8129 = vpop.f32.mrb[0].mxu0
        %v8130 = vpop.f32.mrb[0].mxu0
        %v8131 = vadd.f32 0.0, %v8130
        %v8132 = vpop.f32.mrb[0].mxu0
        %8133 = vmatprep.mubr.bf16.mxu0 0
        %8134 = vmatmul.mubr.bf16.gmra.mrb[0].mxu0 %v8029
        %v8135 = vpop.f32.mrb[0].mxu0
        %v8136 = vadd.f32 0.0, %v8135
        %v8137 = vpop.f32.mrb[0].mxu0
        %v8138 = vpop.f32.mrb[0].mxu0
        %v8139 = vadd.f32 0.0, %v8138
        %v8140 = vpop.f32.mrb[0].mxu0
        %8141 = vmatprep.mubr.bf16.mxu0 0
        %8142 = vmatmul.mubr.bf16.gmra.mrb[0].mxu0 %v8032
        %v8143 = vpop.f32.mrb[0].mxu0
        %v8144 = vadd.f32 0.0, %v8143
        %v8145 = vpop.f32.mrb[0].mxu0
        %v8146 = vpop.f32.mrb[0].mxu0
        %v8147 = vadd.f32 0.0, %v8146
        %v8148 = vpop.f32.mrb[0].mxu0
        %8149 = vmatprep.mubr.bf16.mxu0 0
        %8150 = vmatmul.mubr.bf16.gmra.mrb[0].mxu0 %v8035
        %v8151 = vpop.f32.mrb[0].mxu0
        %v8152 = vadd.f32 0.0, %v8151
        %v8153 = vpop.f32.mrb[0].mxu0
        %v8154 = vpop.f32.mrb[0].mxu0
        %v8155 = vadd.f32 0.0, %v8154
        %v8156 = vpop.f32.mrb[0].mxu0
        %8157 = vmatprep.mubr.bf16.mxu0 0
        %8158 = vmatmul.mubr.bf16.gmra.mrb[0].mxu0 %v8038
        %v8159 = vpop.f32.mrb[0].mxu0
        %v8160 = vadd.f32 0.0, %v8159
        %v8161 = vpop.f32.mrb[0].mxu0
        %v8162 = vpop.f32.mrb[0].mxu0
        %v8163 = vadd.f32 0.0, %v8162
        %v8164 = vpop.f32.mrb[0].mxu0
        %8165 = vmatprep.mubr.bf16.mxu0 0
        %8166 = vmatmul.mubr.bf16.gmra.mrb[0].mxu0 %v8041
        %v8167 = vpop.f32.mrb[0].mxu0
        %v8168 = vadd.f32 0.0, %v8167
        %v8169 = vpop.f32.mrb[0].mxu0
        %v8170 = vpop.f32.mrb[0].mxu0
        %v8171 = vadd.f32 0.0, %v8170
        %v8172 = vpop.f32.mrb[0].mxu0
        %8173 = vmatprep.mubr.bf16.mxu0 0
        %8174 = vmatmul.mubr.bf16.gmra.mrb[0].mxu0 %v8044
        %v8175 = vpop.f32.mrb[0].mxu0
        %v8176 = vadd.f32 0.0, %v8175
        %v8177 = vpop.f32.mrb[0].mxu0
        %v8178 = vpop.f32.mrb[0].mxu0
        %v8179 = vadd.f32 0.0, %v8178
        %v8180 = vpop.f32.mrb[0].mxu0
        %8181 = vmatprep.mubr.bf16.mxu0 0
        %8182 = vmatmul.mubr.bf16.gmra.mrb[0].mxu0 %v8047
        %v8183 = vpop.f32.mrb[0].mxu0
        %v8184 = vadd.f32 0.0, %v8183
        %v8185 = vpop.f32.mrb[0].mxu0
        %v8186 = vpop.f32.mrb[0].mxu0
        %v8187 = vadd.f32 0.0, %v8186
        %v8188 = vpop.f32.mrb[0].mxu0
        %8189 = vmatprep.mubr.bf16.mxu0 0
        %8190 = vmatmul.mubr.bf16.gmra.mrb[0].mxu0 %v8050
        %v8191 = vpop.f32.mrb[0].mxu0
        %v8192 = vadd.f32 0.0, %v8191
        %v8193 = vpop.f32.mrb[0].mxu0
        %v8194 = vpop.f32.mrb[0].mxu0
        %v8195 = vadd.f32 0.0, %v8194
        %v8196 = vpop.f32.mrb[0].mxu0
        %8197 = vmatprep.mubr.bf16.mxu0 0
        %8198 = vmatmul.mubr.bf16.gmra.mrb[0].mxu0 %v8053
        %v8199 = vpop.f32.mrb[0].mxu0
        %v8200 = vadd.f32 0.0, %v8199
        %v8201 = vpop.f32.mrb[0].mxu0
        %v8202 = vpop.f32.mrb[0].mxu0
        %v8203 = vadd.f32 0.0, %v8202
        %v8204 = vpop.f32.mrb[0].mxu0
        %8205 = vmatprep.mubr.bf16.mxu0 0
        %8206 = vmatmul.mubr.bf16.gmra.mrb[0].mxu0 %v8056
        %v8207 = vpop.f32.mrb[0].mxu0
        %v8208 = vadd.f32 0.0, %v8207
        %v8209 = vpop.f32.mrb[0].mxu0
        %v8210 = vpop.f32.mrb[0].mxu0
        %v8211 = vadd.f32 0.0, %v8210
        %v8212 = vpop.f32.mrb[0].mxu0
        %8213 = vmatprep.mubr.bf16.mxu0 0
        %8214 = vmatmul.mubr.bf16.gmra.mrb[0].mxu0 %v8059
        %v8215 = vpop.f32.mrb[0].mxu0
        %v8216 = vadd.f32 0.0, %v8215
        %v8217 = vpop.f32.mrb[0].mxu0
        %v8218 = vpop.f32.mrb[0].mxu0
        %v8219 = vadd.f32 0.0, %v8218
        %v8220 = vpop.f32.mrb[0].mxu0
        %8221 = vdwg.mxu0
        %v8222 = vadd.f32 %v7921, %v8096
        %v8223 = vadd.f32 %v7922, %v8099
        %v8224 = vadd.f32 %v7923, %v8104
        %v8225 = vadd.f32 %v7924, %v8107
        %v8226 = vadd.f32 %v7925, %v8112
        %v8227 = vadd.f32 %v7926, %v8115
        %v8228 = vadd.f32 %v7927, %v8120
        %v8229 = vadd.f32 %v7928, %v8123
        %v8230 = vadd.f32 %v7929, %v8128
        %v8231 = vadd.f32 %v7930, %v8131
        %v8232 = vadd.f32 %v7931, %v8136
        %v8233 = vadd.f32 %v7932, %v8139
        %v8234 = vadd.f32 %v7933, %v8144
        %v8235 = vadd.f32 %v7934, %v8147
        %v8236 = vadd.f32 %v7935, %v8152
        %v8237 = vadd.f32 %v7936, %v8155
        %v8238 = vadd.f32 %v7937, %v8160
        %v8239 = vadd.f32 %v7938, %v8163
        %v8240 = vadd.f32 %v7939, %v8168
        %v8241 = vadd.f32 %v7940, %v8171
        %v8242 = vadd.f32 %v7941, %v8176
        %v8243 = vadd.f32 %v7942, %v8179
        %v8244 = vadd.f32 %v7943, %v8184
        %v8245 = vadd.f32 %v7944, %v8187
        %v8246 = vadd.f32 %v7945, %v8192
        %v8247 = vadd.f32 %v7946, %v8195
        %v8248 = vadd.f32 %v7947, %v8200
        %v8249 = vadd.f32 %v7948, %v8203
        %v8250 = vadd.f32 %v7949, %v8208
        %v8251 = vadd.f32 %v7950, %v8211
        %v8252 = vadd.f32 %v7951, %v8216
        %v8253 = vadd.f32 %v7952, %v8219
        %s8254 = scalar_lea.vmem [#allocation3], 48
        %v8255 = vld [vmem:[%s8254] sm:$0xff]
        %v8256 = vld [vmem:[%s8254 + $0x8] sm:$0xff]
        %v8257 = vld [vmem:[%s8254 + $0x18] sm:$0xff]
        %v8258 = vld [vmem:[%s8254 + $0x20] sm:$0xff]
        %v8259 = vld [vmem:[%s8254 + $0x30] sm:$0xff]
        %v8260 = vld [vmem:[%s8254 + $0x38] sm:$0xff]
        %v8261 = vld [vmem:[%s8254 + $0x48] sm:$0xff]
        %v8262 = vld [vmem:[%s8254 + $0x50] sm:$0xff]
        %v8263 = vld [vmem:[%s8254 + $0x60] sm:$0xff]
        %v8264 = vld [vmem:[%s8254 + $0x68] sm:$0xff]
        %v8265 = vld [vmem:[%s8254 + $0x78] sm:$0xff]
        %v8266 = vld [vmem:[%s8254 + $0x80] sm:$0xff]
        %v8267 = vld [vmem:[%s8254 + $0x90] sm:$0xff]
        %v8268 = vld [vmem:[%s8254 + $0x98] sm:$0xff]
        %v8269 = vld [vmem:[%s8254 + $0xa8] sm:$0xff]
        %v8270 = vld [vmem:[%s8254 + $0xb0] sm:$0xff]
        %v8271 = vld [vmem:[%s8254 + $0xc0] sm:$0xff]
        %v8272 = vld [vmem:[%s8254 + $0xc8] sm:$0xff]
        %v8273 = vld [vmem:[%s8254 + $0xd8] sm:$0xff]
        %v8274 = vld [vmem:[%s8254 + $0xe0] sm:$0xff]
        %v8275 = vld [vmem:[%s8254 + $0xf0] sm:$0xff]
        %v8276 = vld [vmem:[%s8254 + $0xf8] sm:$0xff]
        %v8277 = vld [vmem:[%s8254 + $0x108] sm:$0xff]
        %v8278 = vld [vmem:[%s8254 + $0x110] sm:$0xff]
        %v8279 = vld [vmem:[%s8254 + $0x120] sm:$0xff]
        %v8280 = vld [vmem:[%s8254 + $0x128] sm:$0xff]
        %v8281 = vld [vmem:[%s8254 + $0x138] sm:$0xff]
        %v8282 = vld [vmem:[%s8254 + $0x140] sm:$0xff]
        %v8283 = vld [vmem:[%s8254 + $0x150] sm:$0xff]
        %v8284 = vld [vmem:[%s8254 + $0x158] sm:$0xff]
        %v8285 = vld [vmem:[%s8254 + $0x168] sm:$0xff]
        %v8286 = vld [vmem:[%s8254 + $0x170] sm:$0xff]
        %v8287 = vpack.c.bf16 %v8256, %v8255
        %v8288 = vpack.c.bf16 %v8258, %v8257
        %v8289 = vpack.c.bf16 %v8260, %v8259
        %v8290 = vpack.c.bf16 %v8262, %v8261
        %v8291 = vpack.c.bf16 %v8264, %v8263
        %v8292 = vpack.c.bf16 %v8266, %v8265
        %v8293 = vpack.c.bf16 %v8268, %v8267
        %v8294 = vpack.c.bf16 %v8270, %v8269
        %v8295 = vpack.c.bf16 %v8272, %v8271
        %v8296 = vpack.c.bf16 %v8274, %v8273
        %v8297 = vpack.c.bf16 %v8276, %v8275
        %v8298 = vpack.c.bf16 %v8278, %v8277
        %v8299 = vpack.c.bf16 %v8280, %v8279
        %v8300 = vpack.c.bf16 %v8282, %v8281
        %v8301 = vpack.c.bf16 %v8284, %v8283
        %v8302 = vpack.c.bf16 %v8286, %v8285
        %v8307 = vunpack.c.l.b16 %v6500
        %v8308 = vunpack.c.l.b16 %v6501
        %v8309 = vunpack.c.l.b16 %v6502
        %v8310 = vunpack.c.l.b16 %v6503
        %v8311 = vpack.c.b16 %v8308, %v8307
        %v8312 = vpack.c.b16 %v8310, %v8309
        %v8316 = vsel %vm6388, %v8287, 0
        %v8319 = vsel %vm6388, %v8288, 0
        %v8322 = vsel %vm6388, %v8289, 0
        %v8325 = vsel %vm6388, %v8290, 0
        %v8328 = vsel %vm6388, %v8291, 0
        %v8331 = vsel %vm6388, %v8292, 0
        %v8334 = vsel %vm6388, %v8293, 0
        %v8337 = vsel %vm6388, %v8294, 0
        %v8340 = vsel %vm6388, %v8295, 0
        %v8343 = vsel %vm6388, %v8296, 0
        %v8346 = vsel %vm6388, %v8297, 0
        %v8349 = vsel %vm6388, %v8298, 0
        %v8352 = vsel %vm6388, %v8299, 0
        %v8355 = vsel %vm6388, %v8300, 0
        %v8358 = vsel %vm6388, %v8301, 0
        %v8361 = vsel %vm6388, %v8302, 0
        %8363 = vmatprep.subr.bf16.mxu0 0
        %8364 = vmatpush1.bf16.msra.mxu0 %v8311
        %8365 = vmatprep.subr.bf16.mxu0 0
        %8366 = vmatpush1.bf16.msra.mxu0 %v8312
        %8367 = vmatprep.subr.bf16.mxu0 0
        %8368 = vmatpush1.bf16.msra.mxu0 0
        %8369 = vmatprep.subr.bf16.mxu0 0
        %8370 = vmatpush1.bf16.msra.mxu0 0
        %8371 = vmatprep.subr.bf16.mxu0 0
        %8372 = vmatpush1.bf16.msra.mxu0 0
        %8373 = vmatprep.subr.bf16.mxu0 0
        %8374 = vmatpush1.bf16.msra.mxu0 0
        %8375 = vmatprep.subr.bf16.mxu0 0
        %8376 = vmatpush1.bf16.msra.mxu0 0
        %8377 = vmatprep.subr.bf16.mxu0 0
        %8378 = vmatpush1.bf16.msra.mxu0 0
        %8379 = vmatprep.subr.bf16.mxu0 0
        %8380 = vmatpush1.bf16.msra.mxu0 0
        %8381 = vmatprep.subr.bf16.mxu0 0
        %8382 = vmatpush1.bf16.msra.mxu0 0
        %8383 = vmatprep.subr.bf16.mxu0 0
        %8384 = vmatpush1.bf16.msra.mxu0 0
        %8385 = vmatprep.subr.bf16.mxu0 0
        %8386 = vmatpush1.bf16.msra.mxu0 0
        %8387 = vmatprep.subr.bf16.mxu0 0
        %8388 = vmatpush1.bf16.msra.mxu0 0
        %8389 = vmatprep.subr.bf16.mxu0 0
        %8390 = vmatpush1.bf16.msra.mxu0 0
        %8391 = vmatprep.subr.bf16.mxu0 0
        %8392 = vmatpush1.bf16.msra.mxu0 0
        %8393 = vmatprep.subr.bf16.mxu0 0
        %8394 = vmatpush1.bf16.msra.mxu0 0
        %8395 = vmatprep.mubr.bf16.mxu0 0
        %8396 = vmatmul.mubr.bf16.gmra.mrb[0].mxu0 %v8316
        %v8397 = vpop.f32.mrb[0].mxu0
        %v8398 = vadd.f32 0.0, %v8397
        %v8399 = vpop.f32.mrb[0].mxu0
        %v8400 = vpop.f32.mrb[0].mxu0
        %v8401 = vadd.f32 0.0, %v8400
        %v8402 = vpop.f32.mrb[0].mxu0
        %8403 = vmatprep.mubr.bf16.mxu0 0
        %8404 = vmatmul.mubr.bf16.gmra.mrb[0].mxu0 %v8319
        %v8405 = vpop.f32.mrb[0].mxu0
        %v8406 = vadd.f32 0.0, %v8405
        %v8407 = vpop.f32.mrb[0].mxu0
        %v8408 = vpop.f32.mrb[0].mxu0
        %v8409 = vadd.f32 0.0, %v8408
        %v8410 = vpop.f32.mrb[0].mxu0
        %8411 = vmatprep.mubr.bf16.mxu0 0
        %8412 = vmatmul.mubr.bf16.gmra.mrb[0].mxu0 %v8322
        %v8413 = vpop.f32.mrb[0].mxu0
        %v8414 = vadd.f32 0.0, %v8413
        %v8415 = vpop.f32.mrb[0].mxu0
        %v8416 = vpop.f32.mrb[0].mxu0
        %v8417 = vadd.f32 0.0, %v8416
        %v8418 = vpop.f32.mrb[0].mxu0
        %8419 = vmatprep.mubr.bf16.mxu0 0
        %8420 = vmatmul.mubr.bf16.gmra.mrb[0].mxu0 %v8325
        %v8421 = vpop.f32.mrb[0].mxu0
        %v8422 = vadd.f32 0.0, %v8421
        %v8423 = vpop.f32.mrb[0].mxu0
        %v8424 = vpop.f32.mrb[0].mxu0
        %v8425 = vadd.f32 0.0, %v8424
        %v8426 = vpop.f32.mrb[0].mxu0
        %8427 = vmatprep.mubr.bf16.mxu0 0
        %8428 = vmatmul.mubr.bf16.gmra.mrb[0].mxu0 %v8328
        %v8429 = vpop.f32.mrb[0].mxu0
        %v8430 = vadd.f32 0.0, %v8429
        %v8431 = vpop.f32.mrb[0].mxu0
        %v8432 = vpop.f32.mrb[0].mxu0
        %v8433 = vadd.f32 0.0, %v8432
        %v8434 = vpop.f32.mrb[0].mxu0
        %8435 = vmatprep.mubr.bf16.mxu0 0
        %8436 = vmatmul.mubr.bf16.gmra.mrb[0].mxu0 %v8331
        %v8437 = vpop.f32.mrb[0].mxu0
        %v8438 = vadd.f32 0.0, %v8437
        %v8439 = vpop.f32.mrb[0].mxu0
        %v8440 = vpop.f32.mrb[0].mxu0
        %v8441 = vadd.f32 0.0, %v8440
        %v8442 = vpop.f32.mrb[0].mxu0
        %8443 = vmatprep.mubr.bf16.mxu0 0
        %8444 = vmatmul.mubr.bf16.gmra.mrb[0].mxu0 %v8334
        %v8445 = vpop.f32.mrb[0].mxu0
        %v8446 = vadd.f32 0.0, %v8445
        %v8447 = vpop.f32.mrb[0].mxu0
        %v8448 = vpop.f32.mrb[0].mxu0
        %v8449 = vadd.f32 0.0, %v8448
        %v8450 = vpop.f32.mrb[0].mxu0
        %8451 = vmatprep.mubr.bf16.mxu0 0
        %8452 = vmatmul.mubr.bf16.gmra.mrb[0].mxu0 %v8337
        %v8453 = vpop.f32.mrb[0].mxu0
        %v8454 = vadd.f32 0.0, %v8453
        %v8455 = vpop.f32.mrb[0].mxu0
        %v8456 = vpop.f32.mrb[0].mxu0
        %v8457 = vadd.f32 0.0, %v8456
        %v8458 = vpop.f32.mrb[0].mxu0
        %8459 = vmatprep.mubr.bf16.mxu0 0
        %8460 = vmatmul.mubr.bf16.gmra.mrb[0].mxu0 %v8340
        %v8461 = vpop.f32.mrb[0].mxu0
        %v8462 = vadd.f32 0.0, %v8461
        %v8463 = vpop.f32.mrb[0].mxu0
        %v8464 = vpop.f32.mrb[0].mxu0
        %v8465 = vadd.f32 0.0, %v8464
        %v8466 = vpop.f32.mrb[0].mxu0
        %8467 = vmatprep.mubr.bf16.mxu0 0
        %8468 = vmatmul.mubr.bf16.gmra.mrb[0].mxu0 %v8343
        %v8469 = vpop.f32.mrb[0].mxu0
        %v8470 = vadd.f32 0.0, %v8469
        %v8471 = vpop.f32.mrb[0].mxu0
        %v8472 = vpop.f32.mrb[0].mxu0
        %v8473 = vadd.f32 0.0, %v8472
        %v8474 = vpop.f32.mrb[0].mxu0
        %8475 = vmatprep.mubr.bf16.mxu0 0
        %8476 = vmatmul.mubr.bf16.gmra.mrb[0].mxu0 %v8346
        %v8477 = vpop.f32.mrb[0].mxu0
        %v8478 = vadd.f32 0.0, %v8477
        %v8479 = vpop.f32.mrb[0].mxu0
        %v8480 = vpop.f32.mrb[0].mxu0
        %v8481 = vadd.f32 0.0, %v8480
        %v8482 = vpop.f32.mrb[0].mxu0
        %8483 = vmatprep.mubr.bf16.mxu0 0
        %8484 = vmatmul.mubr.bf16.gmra.mrb[0].mxu0 %v8349
        %v8485 = vpop.f32.mrb[0].mxu0
        %v8486 = vadd.f32 0.0, %v8485
        %v8487 = vpop.f32.mrb[0].mxu0
        %v8488 = vpop.f32.mrb[0].mxu0
        %v8489 = vadd.f32 0.0, %v8488
        %v8490 = vpop.f32.mrb[0].mxu0
        %8491 = vmatprep.mubr.bf16.mxu0 0
        %8492 = vmatmul.mubr.bf16.gmra.mrb[0].mxu0 %v8352
        %v8493 = vpop.f32.mrb[0].mxu0
        %v8494 = vadd.f32 0.0, %v8493
        %v8495 = vpop.f32.mrb[0].mxu0
        %v8496 = vpop.f32.mrb[0].mxu0
        %v8497 = vadd.f32 0.0, %v8496
        %v8498 = vpop.f32.mrb[0].mxu0
        %8499 = vmatprep.mubr.bf16.mxu0 0
        %8500 = vmatmul.mubr.bf16.gmra.mrb[0].mxu0 %v8355
        %v8501 = vpop.f32.mrb[0].mxu0
        %v8502 = vadd.f32 0.0, %v8501
        %v8503 = vpop.f32.mrb[0].mxu0
        %v8504 = vpop.f32.mrb[0].mxu0
        %v8505 = vadd.f32 0.0, %v8504
        %v8506 = vpop.f32.mrb[0].mxu0
        %8507 = vmatprep.mubr.bf16.mxu0 0
        %8508 = vmatmul.mubr.bf16.gmra.mrb[0].mxu0 %v8358
        %v8509 = vpop.f32.mrb[0].mxu0
        %v8510 = vadd.f32 0.0, %v8509
        %v8511 = vpop.f32.mrb[0].mxu0
        %v8512 = vpop.f32.mrb[0].mxu0
        %v8513 = vadd.f32 0.0, %v8512
        %v8514 = vpop.f32.mrb[0].mxu0
        %8515 = vmatprep.mubr.bf16.mxu0 0
        %8516 = vmatmul.mubr.bf16.gmra.mrb[0].mxu0 %v8361
        %v8517 = vpop.f32.mrb[0].mxu0
        %v8518 = vadd.f32 0.0, %v8517
        %v8519 = vpop.f32.mrb[0].mxu0
        %v8520 = vpop.f32.mrb[0].mxu0
        %v8521 = vadd.f32 0.0, %v8520
        %v8522 = vpop.f32.mrb[0].mxu0
        %8523 = vdwg.mxu0
        %v8524 = vadd.f32 %v8222, %v8398
        %v8525 = vadd.f32 %v8223, %v8401
        %v8526 = vadd.f32 %v8224, %v8406
        %v8527 = vadd.f32 %v8225, %v8409
        %v8528 = vadd.f32 %v8226, %v8414
        %v8529 = vadd.f32 %v8227, %v8417
        %v8530 = vadd.f32 %v8228, %v8422
        %v8531 = vadd.f32 %v8229, %v8425
        %v8532 = vadd.f32 %v8230, %v8430
        %v8533 = vadd.f32 %v8231, %v8433
        %v8534 = vadd.f32 %v8232, %v8438
        %v8535 = vadd.f32 %v8233, %v8441
        %v8536 = vadd.f32 %v8234, %v8446
        %v8537 = vadd.f32 %v8235, %v8449
        %v8538 = vadd.f32 %v8236, %v8454
        %v8539 = vadd.f32 %v8237, %v8457
        %v8540 = vadd.f32 %v8238, %v8462
        %v8541 = vadd.f32 %v8239, %v8465
        %v8542 = vadd.f32 %v8240, %v8470
        %v8543 = vadd.f32 %v8241, %v8473
        %v8544 = vadd.f32 %v8242, %v8478
        %v8545 = vadd.f32 %v8243, %v8481
        %v8546 = vadd.f32 %v8244, %v8486
        %v8547 = vadd.f32 %v8245, %v8489
        %v8548 = vadd.f32 %v8246, %v8494
        %v8549 = vadd.f32 %v8247, %v8497
        %v8550 = vadd.f32 %v8248, %v8502
        %v8551 = vadd.f32 %v8249, %v8505
        %v8552 = vadd.f32 %v8250, %v8510
        %v8553 = vadd.f32 %v8251, %v8513
        %v8554 = vadd.f32 %v8252, %v8518
        %v8555 = vadd.f32 %v8253, %v8521
        %v8556 = vld [vmem:[%s8254 + $0x1] sm:$0xff]
        %v8557 = vld [vmem:[%s8254 + $0x9] sm:$0xff]
        %v8558 = vld [vmem:[%s8254 + $0x19] sm:$0xff]
        %v8559 = vld [vmem:[%s8254 + $0x21] sm:$0xff]
        %v8560 = vld [vmem:[%s8254 + $0x31] sm:$0xff]
        %v8561 = vld [vmem:[%s8254 + $0x39] sm:$0xff]
        %v8562 = vld [vmem:[%s8254 + $0x49] sm:$0xff]
        %v8563 = vld [vmem:[%s8254 + $0x51] sm:$0xff]
        %v8564 = vld [vmem:[%s8254 + $0x61] sm:$0xff]
        %v8565 = vld [vmem:[%s8254 + $0x69] sm:$0xff]
        %v8566 = vld [vmem:[%s8254 + $0x79] sm:$0xff]
        %v8567 = vld [vmem:[%s8254 + $0x81] sm:$0xff]
        %v8568 = vld [vmem:[%s8254 + $0x91] sm:$0xff]
        %v8569 = vld [vmem:[%s8254 + $0x99] sm:$0xff]
        %v8570 = vld [vmem:[%s8254 + $0xa9] sm:$0xff]
        %v8571 = vld [vmem:[%s8254 + $0xb1] sm:$0xff]
        %v8572 = vld [vmem:[%s8254 + $0xc1] sm:$0xff]
        %v8573 = vld [vmem:[%s8254 + $0xc9] sm:$0xff]
        %v8574 = vld [vmem:[%s8254 + $0xd9] sm:$0xff]
        %v8575 = vld [vmem:[%s8254 + $0xe1] sm:$0xff]
        %v8576 = vld [vmem:[%s8254 + $0xf1] sm:$0xff]
        %v8577 = vld [vmem:[%s8254 + $0xf9] sm:$0xff]
        %v8578 = vld [vmem:[%s8254 + $0x109] sm:$0xff]
        %v8579 = vld [vmem:[%s8254 + $0x111] sm:$0xff]
        %v8580 = vld [vmem:[%s8254 + $0x121] sm:$0xff]
        %v8581 = vld [vmem:[%s8254 + $0x129] sm:$0xff]
        %v8582 = vld [vmem:[%s8254 + $0x139] sm:$0xff]
        %v8583 = vld [vmem:[%s8254 + $0x141] sm:$0xff]
        %v8584 = vld [vmem:[%s8254 + $0x151] sm:$0xff]
        %v8585 = vld [vmem:[%s8254 + $0x159] sm:$0xff]
        %v8586 = vld [vmem:[%s8254 + $0x169] sm:$0xff]
        %v8587 = vld [vmem:[%s8254 + $0x171] sm:$0xff]
        %v8588 = vpack.c.bf16 %v8557, %v8556
        %v8589 = vpack.c.bf16 %v8559, %v8558
        %v8590 = vpack.c.bf16 %v8561, %v8560
        %v8591 = vpack.c.bf16 %v8563, %v8562
        %v8592 = vpack.c.bf16 %v8565, %v8564
        %v8593 = vpack.c.bf16 %v8567, %v8566
        %v8594 = vpack.c.bf16 %v8569, %v8568
        %v8595 = vpack.c.bf16 %v8571, %v8570
        %v8596 = vpack.c.bf16 %v8573, %v8572
        %v8597 = vpack.c.bf16 %v8575, %v8574
        %v8598 = vpack.c.bf16 %v8577, %v8576
        %v8599 = vpack.c.bf16 %v8579, %v8578
        %v8600 = vpack.c.bf16 %v8581, %v8580
        %v8601 = vpack.c.bf16 %v8583, %v8582
        %v8602 = vpack.c.bf16 %v8585, %v8584
        %v8603 = vpack.c.bf16 %v8587, %v8586
        %v8608 = vunpack.c.l.b16 %v6504
        %v8609 = vunpack.c.l.b16 %v6505
        %v8610 = vunpack.c.l.b16 %v6506
        %v8611 = vunpack.c.l.b16 %v6507
        %v8612 = vpack.c.b16 %v8609, %v8608
        %v8613 = vpack.c.b16 %v8611, %v8610
        %v8617 = vsel %vm6388, %v8588, 0
        %v8620 = vsel %vm6388, %v8589, 0
        %v8623 = vsel %vm6388, %v8590, 0
        %v8626 = vsel %vm6388, %v8591, 0
        %v8629 = vsel %vm6388, %v8592, 0
        %v8632 = vsel %vm6388, %v8593, 0
        %v8635 = vsel %vm6388, %v8594, 0
        %v8638 = vsel %vm6388, %v8595, 0
        %v8641 = vsel %vm6388, %v8596, 0
        %v8644 = vsel %vm6388, %v8597, 0
        %v8647 = vsel %vm6388, %v8598, 0
        %v8650 = vsel %vm6388, %v8599, 0
        %v8653 = vsel %vm6388, %v8600, 0
        %v8656 = vsel %vm6388, %v8601, 0
        %v8659 = vsel %vm6388, %v8602, 0
        %v8662 = vsel %vm6388, %v8603, 0
        %8664 = vmatprep.subr.bf16.mxu0 0
        %8665 = vmatpush1.bf16.msra.mxu0 %v8612
        %8666 = vmatprep.subr.bf16.mxu0 0
        %8667 = vmatpush1.bf16.msra.mxu0 %v8613
        %8668 = vmatprep.subr.bf16.mxu0 0
        %8669 = vmatpush1.bf16.msra.mxu0 0
        %8670 = vmatprep.subr.bf16.mxu0 0
        %8671 = vmatpush1.bf16.msra.mxu0 0
        %8672 = vmatprep.subr.bf16.mxu0 0
        %8673 = vmatpush1.bf16.msra.mxu0 0
        %8674 = vmatprep.subr.bf16.mxu0 0
        %8675 = vmatpush1.bf16.msra.mxu0 0
        %8676 = vmatprep.subr.bf16.mxu0 0
        %8677 = vmatpush1.bf16.msra.mxu0 0
        %8678 = vmatprep.subr.bf16.mxu0 0
        %8679 = vmatpush1.bf16.msra.mxu0 0
        %8680 = vmatprep.subr.bf16.mxu0 0
        %8681 = vmatpush1.bf16.msra.mxu0 0
        %8682 = vmatprep.subr.bf16.mxu0 0
        %8683 = vmatpush1.bf16.msra.mxu0 0
        %8684 = vmatprep.subr.bf16.mxu0 0
        %8685 = vmatpush1.bf16.msra.mxu0 0
        %8686 = vmatprep.subr.bf16.mxu0 0
        %8687 = vmatpush1.bf16.msra.mxu0 0
        %8688 = vmatprep.subr.bf16.mxu0 0
        %8689 = vmatpush1.bf16.msra.mxu0 0
        %8690 = vmatprep.subr.bf16.mxu0 0
        %8691 = vmatpush1.bf16.msra.mxu0 0
        %8692 = vmatprep.subr.bf16.mxu0 0
        %8693 = vmatpush1.bf16.msra.mxu0 0
        %8694 = vmatprep.subr.bf16.mxu0 0
        %8695 = vmatpush1.bf16.msra.mxu0 0
        %8696 = vmatprep.mubr.bf16.mxu0 0
        %8697 = vmatmul.mubr.bf16.gmra.mrb[0].mxu0 %v8617
        %v8698 = vpop.f32.mrb[0].mxu0
        %v8699 = vadd.f32 0.0, %v8698
        %v8700 = vpop.f32.mrb[0].mxu0
        %v8701 = vpop.f32.mrb[0].mxu0
        %v8702 = vadd.f32 0.0, %v8701
        %v8703 = vpop.f32.mrb[0].mxu0
        %8704 = vmatprep.mubr.bf16.mxu0 0
        %8705 = vmatmul.mubr.bf16.gmra.mrb[0].mxu0 %v8620
        %v8706 = vpop.f32.mrb[0].mxu0
        %v8707 = vadd.f32 0.0, %v8706
        %v8708 = vpop.f32.mrb[0].mxu0
        %v8709 = vpop.f32.mrb[0].mxu0
        %v8710 = vadd.f32 0.0, %v8709
        %v8711 = vpop.f32.mrb[0].mxu0
        %8712 = vmatprep.mubr.bf16.mxu0 0
        %8713 = vmatmul.mubr.bf16.gmra.mrb[0].mxu0 %v8623
        %v8714 = vpop.f32.mrb[0].mxu0
        %v8715 = vadd.f32 0.0, %v8714
        %v8716 = vpop.f32.mrb[0].mxu0
        %v8717 = vpop.f32.mrb[0].mxu0
        %v8718 = vadd.f32 0.0, %v8717
        %v8719 = vpop.f32.mrb[0].mxu0
        %8720 = vmatprep.mubr.bf16.mxu0 0
        %8721 = vmatmul.mubr.bf16.gmra.mrb[0].mxu0 %v8626
        %v8722 = vpop.f32.mrb[0].mxu0
        %v8723 = vadd.f32 0.0, %v8722
        %v8724 = vpop.f32.mrb[0].mxu0
        %v8725 = vpop.f32.mrb[0].mxu0
        %v8726 = vadd.f32 0.0, %v8725
        %v8727 = vpop.f32.mrb[0].mxu0
        %8728 = vmatprep.mubr.bf16.mxu0 0
        %8729 = vmatmul.mubr.bf16.gmra.mrb[0].mxu0 %v8629
        %v8730 = vpop.f32.mrb[0].mxu0
        %v8731 = vadd.f32 0.0, %v8730
        %v8732 = vpop.f32.mrb[0].mxu0
        %v8733 = vpop.f32.mrb[0].mxu0
        %v8734 = vadd.f32 0.0, %v8733
        %v8735 = vpop.f32.mrb[0].mxu0
        %8736 = vmatprep.mubr.bf16.mxu0 0
        %8737 = vmatmul.mubr.bf16.gmra.mrb[0].mxu0 %v8632
        %v8738 = vpop.f32.mrb[0].mxu0
        %v8739 = vadd.f32 0.0, %v8738
        %v8740 = vpop.f32.mrb[0].mxu0
        %v8741 = vpop.f32.mrb[0].mxu0
        %v8742 = vadd.f32 0.0, %v8741
        %v8743 = vpop.f32.mrb[0].mxu0
        %8744 = vmatprep.mubr.bf16.mxu0 0
        %8745 = vmatmul.mubr.bf16.gmra.mrb[0].mxu0 %v8635
        %v8746 = vpop.f32.mrb[0].mxu0
        %v8747 = vadd.f32 0.0, %v8746
        %v8748 = vpop.f32.mrb[0].mxu0
        %v8749 = vpop.f32.mrb[0].mxu0
        %v8750 = vadd.f32 0.0, %v8749
        %v8751 = vpop.f32.mrb[0].mxu0
        %8752 = vmatprep.mubr.bf16.mxu0 0
        %8753 = vmatmul.mubr.bf16.gmra.mrb[0].mxu0 %v8638
        %v8754 = vpop.f32.mrb[0].mxu0
        %v8755 = vadd.f32 0.0, %v8754
        %v8756 = vpop.f32.mrb[0].mxu0
        %v8757 = vpop.f32.mrb[0].mxu0
        %v8758 = vadd.f32 0.0, %v8757
        %v8759 = vpop.f32.mrb[0].mxu0
        %8760 = vmatprep.mubr.bf16.mxu0 0
        %8761 = vmatmul.mubr.bf16.gmra.mrb[0].mxu0 %v8641
        %v8762 = vpop.f32.mrb[0].mxu0
        %v8763 = vadd.f32 0.0, %v8762
        %v8764 = vpop.f32.mrb[0].mxu0
        %v8765 = vpop.f32.mrb[0].mxu0
        %v8766 = vadd.f32 0.0, %v8765
        %v8767 = vpop.f32.mrb[0].mxu0
        %8768 = vmatprep.mubr.bf16.mxu0 0
        %8769 = vmatmul.mubr.bf16.gmra.mrb[0].mxu0 %v8644
        %v8770 = vpop.f32.mrb[0].mxu0
        %v8771 = vadd.f32 0.0, %v8770
        %v8772 = vpop.f32.mrb[0].mxu0
        %v8773 = vpop.f32.mrb[0].mxu0
        %v8774 = vadd.f32 0.0, %v8773
        %v8775 = vpop.f32.mrb[0].mxu0
        %8776 = vmatprep.mubr.bf16.mxu0 0
        %8777 = vmatmul.mubr.bf16.gmra.mrb[0].mxu0 %v8647
        %v8778 = vpop.f32.mrb[0].mxu0
        %v8779 = vadd.f32 0.0, %v8778
        %v8780 = vpop.f32.mrb[0].mxu0
        %v8781 = vpop.f32.mrb[0].mxu0
        %v8782 = vadd.f32 0.0, %v8781
        %v8783 = vpop.f32.mrb[0].mxu0
        %8784 = vmatprep.mubr.bf16.mxu0 0
        %8785 = vmatmul.mubr.bf16.gmra.mrb[0].mxu0 %v8650
        %v8786 = vpop.f32.mrb[0].mxu0
        %v8787 = vadd.f32 0.0, %v8786
        %v8788 = vpop.f32.mrb[0].mxu0
        %v8789 = vpop.f32.mrb[0].mxu0
        %v8790 = vadd.f32 0.0, %v8789
        %v8791 = vpop.f32.mrb[0].mxu0
        %8792 = vmatprep.mubr.bf16.mxu0 0
        %8793 = vmatmul.mubr.bf16.gmra.mrb[0].mxu0 %v8653
        %v8794 = vpop.f32.mrb[0].mxu0
        %v8795 = vadd.f32 0.0, %v8794
        %v8796 = vpop.f32.mrb[0].mxu0
        %v8797 = vpop.f32.mrb[0].mxu0
        %v8798 = vadd.f32 0.0, %v8797
        %v8799 = vpop.f32.mrb[0].mxu0
        %8800 = vmatprep.mubr.bf16.mxu0 0
        %8801 = vmatmul.mubr.bf16.gmra.mrb[0].mxu0 %v8656
        %v8802 = vpop.f32.mrb[0].mxu0
        %v8803 = vadd.f32 0.0, %v8802
        %v8804 = vpop.f32.mrb[0].mxu0
        %v8805 = vpop.f32.mrb[0].mxu0
        %v8806 = vadd.f32 0.0, %v8805
        %v8807 = vpop.f32.mrb[0].mxu0
        %8808 = vmatprep.mubr.bf16.mxu0 0
        %8809 = vmatmul.mubr.bf16.gmra.mrb[0].mxu0 %v8659
        %v8810 = vpop.f32.mrb[0].mxu0
        %v8811 = vadd.f32 0.0, %v8810
        %v8812 = vpop.f32.mrb[0].mxu0
        %v8813 = vpop.f32.mrb[0].mxu0
        %v8814 = vadd.f32 0.0, %v8813
        %v8815 = vpop.f32.mrb[0].mxu0
        %8816 = vmatprep.mubr.bf16.mxu0 0
        %8817 = vmatmul.mubr.bf16.gmra.mrb[0].mxu0 %v8662
        %v8818 = vpop.f32.mrb[0].mxu0
        %v8819 = vadd.f32 0.0, %v8818
        %v8820 = vpop.f32.mrb[0].mxu0
        %v8821 = vpop.f32.mrb[0].mxu0
        %v8822 = vadd.f32 0.0, %v8821
        %v8823 = vpop.f32.mrb[0].mxu0
        %8824 = vdwg.mxu0
        %v8825 = vadd.f32 %v8524, %v8699
        %v8826 = vadd.f32 %v8525, %v8702
        %v8827 = vadd.f32 %v8526, %v8707
        %v8828 = vadd.f32 %v8527, %v8710
        %v8829 = vadd.f32 %v8528, %v8715
        %v8830 = vadd.f32 %v8529, %v8718
        %v8831 = vadd.f32 %v8530, %v8723
        %v8832 = vadd.f32 %v8531, %v8726
        %v8833 = vadd.f32 %v8532, %v8731
        %v8834 = vadd.f32 %v8533, %v8734
        %v8835 = vadd.f32 %v8534, %v8739
        %v8836 = vadd.f32 %v8535, %v8742
        %v8837 = vadd.f32 %v8536, %v8747
        %v8838 = vadd.f32 %v8537, %v8750
        %v8839 = vadd.f32 %v8538, %v8755
        %v8840 = vadd.f32 %v8539, %v8758
        %v8841 = vadd.f32 %v8540, %v8763
        %v8842 = vadd.f32 %v8541, %v8766
        %v8843 = vadd.f32 %v8542, %v8771
        %v8844 = vadd.f32 %v8543, %v8774
        %v8845 = vadd.f32 %v8544, %v8779
        %v8846 = vadd.f32 %v8545, %v8782
        %v8847 = vadd.f32 %v8546, %v8787
        %v8848 = vadd.f32 %v8547, %v8790
        %v8849 = vadd.f32 %v8548, %v8795
        %v8850 = vadd.f32 %v8549, %v8798
        %v8851 = vadd.f32 %v8550, %v8803
        %v8852 = vadd.f32 %v8551, %v8806
        %v8853 = vadd.f32 %v8552, %v8811
        %v8854 = vadd.f32 %v8553, %v8814
        %v8855 = vadd.f32 %v8554, %v8819
        %v8856 = vadd.f32 %v8555, %v8822
        %v8857 = vld [vmem:[%s8254 + $0x2] sm:$0xff]
        %v8858 = vld [vmem:[%s8254 + $0xa] sm:$0xff]
        %v8859 = vld [vmem:[%s8254 + $0x1a] sm:$0xff]
        %v8860 = vld [vmem:[%s8254 + $0x22] sm:$0xff]
        %v8861 = vld [vmem:[%s8254 + $0x32] sm:$0xff]
        %v8862 = vld [vmem:[%s8254 + $0x3a] sm:$0xff]
        %v8863 = vld [vmem:[%s8254 + $0x4a] sm:$0xff]
        %v8864 = vld [vmem:[%s8254 + $0x52] sm:$0xff]
        %v8865 = vld [vmem:[%s8254 + $0x62] sm:$0xff]
        %v8866 = vld [vmem:[%s8254 + $0x6a] sm:$0xff]
        %v8867 = vld [vmem:[%s8254 + $0x7a] sm:$0xff]
        %v8868 = vld [vmem:[%s8254 + $0x82] sm:$0xff]
        %v8869 = vld [vmem:[%s8254 + $0x92] sm:$0xff]
        %v8870 = vld [vmem:[%s8254 + $0x9a] sm:$0xff]
        %v8871 = vld [vmem:[%s8254 + $0xaa] sm:$0xff]
        %v8872 = vld [vmem:[%s8254 + $0xb2] sm:$0xff]
        %v8873 = vld [vmem:[%s8254 + $0xc2] sm:$0xff]
        %v8874 = vld [vmem:[%s8254 + $0xca] sm:$0xff]
        %v8875 = vld [vmem:[%s8254 + $0xda] sm:$0xff]
        %v8876 = vld [vmem:[%s8254 + $0xe2] sm:$0xff]
        %v8877 = vld [vmem:[%s8254 + $0xf2] sm:$0xff]
        %v8878 = vld [vmem:[%s8254 + $0xfa] sm:$0xff]
        %v8879 = vld [vmem:[%s8254 + $0x10a] sm:$0xff]
        %v8880 = vld [vmem:[%s8254 + $0x112] sm:$0xff]
        %v8881 = vld [vmem:[%s8254 + $0x122] sm:$0xff]
        %v8882 = vld [vmem:[%s8254 + $0x12a] sm:$0xff]
        %v8883 = vld [vmem:[%s8254 + $0x13a] sm:$0xff]
        %v8884 = vld [vmem:[%s8254 + $0x142] sm:$0xff]
        %v8885 = vld [vmem:[%s8254 + $0x152] sm:$0xff]
        %v8886 = vld [vmem:[%s8254 + $0x15a] sm:$0xff]
        %v8887 = vld [vmem:[%s8254 + $0x16a] sm:$0xff]
        %v8888 = vld [vmem:[%s8254 + $0x172] sm:$0xff]
        %v8889 = vpack.c.bf16 %v8858, %v8857
        %v8890 = vpack.c.bf16 %v8860, %v8859
        %v8891 = vpack.c.bf16 %v8862, %v8861
        %v8892 = vpack.c.bf16 %v8864, %v8863
        %v8893 = vpack.c.bf16 %v8866, %v8865
        %v8894 = vpack.c.bf16 %v8868, %v8867
        %v8895 = vpack.c.bf16 %v8870, %v8869
        %v8896 = vpack.c.bf16 %v8872, %v8871
        %v8897 = vpack.c.bf16 %v8874, %v8873
        %v8898 = vpack.c.bf16 %v8876, %v8875
        %v8899 = vpack.c.bf16 %v8878, %v8877
        %v8900 = vpack.c.bf16 %v8880, %v8879
        %v8901 = vpack.c.bf16 %v8882, %v8881
        %v8902 = vpack.c.bf16 %v8884, %v8883
        %v8903 = vpack.c.bf16 %v8886, %v8885
        %v8904 = vpack.c.bf16 %v8888, %v8887
        %v8909 = vunpack.c.l.b16 %v6508
        %v8910 = vunpack.c.l.b16 %v6509
        %v8911 = vunpack.c.l.b16 %v6510
        %v8912 = vunpack.c.l.b16 %v6511
        %v8913 = vpack.c.b16 %v8910, %v8909
        %v8914 = vpack.c.b16 %v8912, %v8911
        %v8918 = vsel %vm6388, %v8889, 0
        %v8921 = vsel %vm6388, %v8890, 0
        %v8924 = vsel %vm6388, %v8891, 0
        %v8927 = vsel %vm6388, %v8892, 0
        %v8930 = vsel %vm6388, %v8893, 0
        %v8933 = vsel %vm6388, %v8894, 0
        %v8936 = vsel %vm6388, %v8895, 0
        %v8939 = vsel %vm6388, %v8896, 0
        %v8942 = vsel %vm6388, %v8897, 0
        %v8945 = vsel %vm6388, %v8898, 0
        %v8948 = vsel %vm6388, %v8899, 0
        %v8951 = vsel %vm6388, %v8900, 0
        %v8954 = vsel %vm6388, %v8901, 0
        %v8957 = vsel %vm6388, %v8902, 0
        %v8960 = vsel %vm6388, %v8903, 0
        %v8963 = vsel %vm6388, %v8904, 0
        %8965 = vmatprep.subr.bf16.mxu0 0
        %8966 = vmatpush1.bf16.msra.mxu0 %v8913
        %8967 = vmatprep.subr.bf16.mxu0 0
        %8968 = vmatpush1.bf16.msra.mxu0 %v8914
        %8969 = vmatprep.subr.bf16.mxu0 0
        %8970 = vmatpush1.bf16.msra.mxu0 0
        %8971 = vmatprep.subr.bf16.mxu0 0
        %8972 = vmatpush1.bf16.msra.mxu0 0
        %8973 = vmatprep.subr.bf16.mxu0 0
        %8974 = vmatpush1.bf16.msra.mxu0 0
        %8975 = vmatprep.subr.bf16.mxu0 0
        %8976 = vmatpush1.bf16.msra.mxu0 0
        %8977 = vmatprep.subr.bf16.mxu0 0
        %8978 = vmatpush1.bf16.msra.mxu0 0
        %8979 = vmatprep.subr.bf16.mxu0 0
        %8980 = vmatpush1.bf16.msra.mxu0 0
        %8981 = vmatprep.subr.bf16.mxu0 0
        %8982 = vmatpush1.bf16.msra.mxu0 0
        %8983 = vmatprep.subr.bf16.mxu0 0
        %8984 = vmatpush1.bf16.msra.mxu0 0
        %8985 = vmatprep.subr.bf16.mxu0 0
        %8986 = vmatpush1.bf16.msra.mxu0 0
        %8987 = vmatprep.subr.bf16.mxu0 0
        %8988 = vmatpush1.bf16.msra.mxu0 0
        %8989 = vmatprep.subr.bf16.mxu0 0
        %8990 = vmatpush1.bf16.msra.mxu0 0
        %8991 = vmatprep.subr.bf16.mxu0 0
        %8992 = vmatpush1.bf16.msra.mxu0 0
        %8993 = vmatprep.subr.bf16.mxu0 0
        %8994 = vmatpush1.bf16.msra.mxu0 0
        %8995 = vmatprep.subr.bf16.mxu0 0
        %8996 = vmatpush1.bf16.msra.mxu0 0
        %8997 = vmatprep.mubr.bf16.mxu0 0
        %8998 = vmatmul.mubr.bf16.gmra.mrb[0].mxu0 %v8918
        %v8999 = vpop.f32.mrb[0].mxu0
        %v9000 = vadd.f32 0.0, %v8999
        %v9001 = vpop.f32.mrb[0].mxu0
        %v9002 = vpop.f32.mrb[0].mxu0
        %v9003 = vadd.f32 0.0, %v9002
        %v9004 = vpop.f32.mrb[0].mxu0
        %9005 = vmatprep.mubr.bf16.mxu0 0
        %9006 = vmatmul.mubr.bf16.gmra.mrb[0].mxu0 %v8921
        %v9007 = vpop.f32.mrb[0].mxu0
        %v9008 = vadd.f32 0.0, %v9007
        %v9009 = vpop.f32.mrb[0].mxu0
        %v9010 = vpop.f32.mrb[0].mxu0
        %v9011 = vadd.f32 0.0, %v9010
        %v9012 = vpop.f32.mrb[0].mxu0
        %9013 = vmatprep.mubr.bf16.mxu0 0
        %9014 = vmatmul.mubr.bf16.gmra.mrb[0].mxu0 %v8924
        %v9015 = vpop.f32.mrb[0].mxu0
        %v9016 = vadd.f32 0.0, %v9015
        %v9017 = vpop.f32.mrb[0].mxu0
        %v9018 = vpop.f32.mrb[0].mxu0
        %v9019 = vadd.f32 0.0, %v9018
        %v9020 = vpop.f32.mrb[0].mxu0
        %9021 = vmatprep.mubr.bf16.mxu0 0
        %9022 = vmatmul.mubr.bf16.gmra.mrb[0].mxu0 %v8927
        %v9023 = vpop.f32.mrb[0].mxu0
        %v9024 = vadd.f32 0.0, %v9023
        %v9025 = vpop.f32.mrb[0].mxu0
        %v9026 = vpop.f32.mrb[0].mxu0
        %v9027 = vadd.f32 0.0, %v9026
        %v9028 = vpop.f32.mrb[0].mxu0
        %9029 = vmatprep.mubr.bf16.mxu0 0
        %9030 = vmatmul.mubr.bf16.gmra.mrb[0].mxu0 %v8930
        %v9031 = vpop.f32.mrb[0].mxu0
        %v9032 = vadd.f32 0.0, %v9031
        %v9033 = vpop.f32.mrb[0].mxu0
        %v9034 = vpop.f32.mrb[0].mxu0
        %v9035 = vadd.f32 0.0, %v9034
        %v9036 = vpop.f32.mrb[0].mxu0
        %9037 = vmatprep.mubr.bf16.mxu0 0
        %9038 = vmatmul.mubr.bf16.gmra.mrb[0].mxu0 %v8933
        %v9039 = vpop.f32.mrb[0].mxu0
        %v9040 = vadd.f32 0.0, %v9039
        %v9041 = vpop.f32.mrb[0].mxu0
        %v9042 = vpop.f32.mrb[0].mxu0
        %v9043 = vadd.f32 0.0, %v9042
        %v9044 = vpop.f32.mrb[0].mxu0
        %9045 = vmatprep.mubr.bf16.mxu0 0
        %9046 = vmatmul.mubr.bf16.gmra.mrb[0].mxu0 %v8936
        %v9047 = vpop.f32.mrb[0].mxu0
        %v9048 = vadd.f32 0.0, %v9047
        %v9049 = vpop.f32.mrb[0].mxu0
        %v9050 = vpop.f32.mrb[0].mxu0
        %v9051 = vadd.f32 0.0, %v9050
        %v9052 = vpop.f32.mrb[0].mxu0
        %9053 = vmatprep.mubr.bf16.mxu0 0
        %9054 = vmatmul.mubr.bf16.gmra.mrb[0].mxu0 %v8939
        %v9055 = vpop.f32.mrb[0].mxu0
        %v9056 = vadd.f32 0.0, %v9055
        %v9057 = vpop.f32.mrb[0].mxu0
        %v9058 = vpop.f32.mrb[0].mxu0
        %v9059 = vadd.f32 0.0, %v9058
        %v9060 = vpop.f32.mrb[0].mxu0
        %9061 = vmatprep.mubr.bf16.mxu0 0
        %9062 = vmatmul.mubr.bf16.gmra.mrb[0].mxu0 %v8942
        %v9063 = vpop.f32.mrb[0].mxu0
        %v9064 = vadd.f32 0.0, %v9063
        %v9065 = vpop.f32.mrb[0].mxu0
        %v9066 = vpop.f32.mrb[0].mxu0
        %v9067 = vadd.f32 0.0, %v9066
        %v9068 = vpop.f32.mrb[0].mxu0
        %9069 = vmatprep.mubr.bf16.mxu0 0
        %9070 = vmatmul.mubr.bf16.gmra.mrb[0].mxu0 %v8945
        %v9071 = vpop.f32.mrb[0].mxu0
        %v9072 = vadd.f32 0.0, %v9071
        %v9073 = vpop.f32.mrb[0].mxu0
        %v9074 = vpop.f32.mrb[0].mxu0
        %v9075 = vadd.f32 0.0, %v9074
        %v9076 = vpop.f32.mrb[0].mxu0
        %9077 = vmatprep.mubr.bf16.mxu0 0
        %9078 = vmatmul.mubr.bf16.gmra.mrb[0].mxu0 %v8948
        %v9079 = vpop.f32.mrb[0].mxu0
        %v9080 = vadd.f32 0.0, %v9079
        %v9081 = vpop.f32.mrb[0].mxu0
        %v9082 = vpop.f32.mrb[0].mxu0
        %v9083 = vadd.f32 0.0, %v9082
        %v9084 = vpop.f32.mrb[0].mxu0
        %9085 = vmatprep.mubr.bf16.mxu0 0
        %9086 = vmatmul.mubr.bf16.gmra.mrb[0].mxu0 %v8951
        %v9087 = vpop.f32.mrb[0].mxu0
        %v9088 = vadd.f32 0.0, %v9087
        %v9089 = vpop.f32.mrb[0].mxu0
        %v9090 = vpop.f32.mrb[0].mxu0
        %v9091 = vadd.f32 0.0, %v9090
        %v9092 = vpop.f32.mrb[0].mxu0
        %9093 = vmatprep.mubr.bf16.mxu0 0
        %9094 = vmatmul.mubr.bf16.gmra.mrb[0].mxu0 %v8954
        %v9095 = vpop.f32.mrb[0].mxu0
        %v9096 = vadd.f32 0.0, %v9095
        %v9097 = vpop.f32.mrb[0].mxu0
        %v9098 = vpop.f32.mrb[0].mxu0
        %v9099 = vadd.f32 0.0, %v9098
        %v9100 = vpop.f32.mrb[0].mxu0
        %9101 = vmatprep.mubr.bf16.mxu0 0
        %9102 = vmatmul.mubr.bf16.gmra.mrb[0].mxu0 %v8957
        %v9103 = vpop.f32.mrb[0].mxu0
        %v9104 = vadd.f32 0.0, %v9103
        %v9105 = vpop.f32.mrb[0].mxu0
        %v9106 = vpop.f32.mrb[0].mxu0
        %v9107 = vadd.f32 0.0, %v9106
        %v9108 = vpop.f32.mrb[0].mxu0
        %9109 = vmatprep.mubr.bf16.mxu0 0
        %9110 = vmatmul.mubr.bf16.gmra.mrb[0].mxu0 %v8960
        %v9111 = vpop.f32.mrb[0].mxu0
        %v9112 = vadd.f32 0.0, %v9111
        %v9113 = vpop.f32.mrb[0].mxu0
        %v9114 = vpop.f32.mrb[0].mxu0
        %v9115 = vadd.f32 0.0, %v9114
        %v9116 = vpop.f32.mrb[0].mxu0
        %9117 = vmatprep.mubr.bf16.mxu0 0
        %9118 = vmatmul.mubr.bf16.gmra.mrb[0].mxu0 %v8963
        %v9119 = vpop.f32.mrb[0].mxu0
        %v9120 = vadd.f32 0.0, %v9119
        %v9121 = vpop.f32.mrb[0].mxu0
        %v9122 = vpop.f32.mrb[0].mxu0
        %v9123 = vadd.f32 0.0, %v9122
        %v9124 = vpop.f32.mrb[0].mxu0
        %9125 = vdwg.mxu0
        %v9126 = vadd.f32 %v8825, %v9000
        %v9127 = vadd.f32 %v8826, %v9003
        %v9128 = vadd.f32 %v8827, %v9008
        %v9129 = vadd.f32 %v8828, %v9011
        %v9130 = vadd.f32 %v8829, %v9016
        %v9131 = vadd.f32 %v8830, %v9019
        %v9132 = vadd.f32 %v8831, %v9024
        %v9133 = vadd.f32 %v8832, %v9027
        %v9134 = vadd.f32 %v8833, %v9032
        %v9135 = vadd.f32 %v8834, %v9035
        %v9136 = vadd.f32 %v8835, %v9040
        %v9137 = vadd.f32 %v8836, %v9043
        %v9138 = vadd.f32 %v8837, %v9048
        %v9139 = vadd.f32 %v8838, %v9051
        %v9140 = vadd.f32 %v8839, %v9056
        %v9141 = vadd.f32 %v8840, %v9059
        %v9142 = vadd.f32 %v8841, %v9064
        %v9143 = vadd.f32 %v8842, %v9067
        %v9144 = vadd.f32 %v8843, %v9072
        %v9145 = vadd.f32 %v8844, %v9075
        %v9146 = vadd.f32 %v8845, %v9080
        %v9147 = vadd.f32 %v8846, %v9083
        %v9148 = vadd.f32 %v8847, %v9088
        %v9149 = vadd.f32 %v8848, %v9091
        %v9150 = vadd.f32 %v8849, %v9096
        %v9151 = vadd.f32 %v8850, %v9099
        %v9152 = vadd.f32 %v8851, %v9104
        %v9153 = vadd.f32 %v8852, %v9107
        %v9154 = vadd.f32 %v8853, %v9112
        %v9155 = vadd.f32 %v8854, %v9115
        %v9156 = vadd.f32 %v8855, %v9120
        %v9157 = vadd.f32 %v8856, %v9123
        %v9158 = vld [vmem:[#allocation13] sm:$0x1]
        %v9160 = vlaneseq
        %v9161 = vshrl.u32 %v9160, 7
        %v9162 = vsub.s32 0, %v9161
        %v9163 = vrot.slane %v9158, %v9162
        %v9165 = vadd.f32 %v9126, %v9163
        %v9166 = vadd.f32 %v9127, %v9163
        %v9167 = vadd.f32 %v9128, %v9163
        %v9168 = vadd.f32 %v9129, %v9163
        %v9169 = vadd.f32 %v9130, %v9163
        %v9170 = vadd.f32 %v9131, %v9163
        %v9171 = vadd.f32 %v9132, %v9163
        %v9172 = vadd.f32 %v9133, %v9163
        %v9173 = vadd.f32 %v9134, %v9163
        %v9174 = vadd.f32 %v9135, %v9163
        %v9175 = vadd.f32 %v9136, %v9163
        %v9176 = vadd.f32 %v9137, %v9163
        %v9177 = vadd.f32 %v9138, %v9163
        %v9178 = vadd.f32 %v9139, %v9163
        %v9179 = vadd.f32 %v9140, %v9163
        %v9180 = vadd.f32 %v9141, %v9163
        %v9181 = vadd.f32 %v9142, %v9163
        %v9182 = vadd.f32 %v9143, %v9163
        %v9183 = vadd.f32 %v9144, %v9163
        %v9184 = vadd.f32 %v9145, %v9163
        %v9185 = vadd.f32 %v9146, %v9163
        %v9186 = vadd.f32 %v9147, %v9163
        %v9187 = vadd.f32 %v9148, %v9163
        %v9188 = vadd.f32 %v9149, %v9163
        %v9189 = vadd.f32 %v9150, %v9163
        %v9190 = vadd.f32 %v9151, %v9163
        %v9191 = vadd.f32 %v9152, %v9163
        %v9192 = vadd.f32 %v9153, %v9163
        %v9193 = vadd.f32 %v9154, %v9163
        %v9194 = vadd.f32 %v9155, %v9163
        %v9195 = vadd.f32 %v9156, %v9163
        %v9196 = vadd.f32 %v9157, %v9163
        %vm9197 = vcmask 130048
        %9198 = vst.msk [vmem:[#allocation4] sm:$0xff] %vm9197, 0.0
        %9199 = vst.msk [vmem:[#allocation4 + $0x8] sm:$0xff] %vm9197, 0.0
        %9200 = vst.msk [vmem:[#allocation4 + $0x10] sm:$0xff] %vm9197, 0.0
        %9201 = vst.msk [vmem:[#allocation4 + $0x18] sm:$0xff] %vm9197, 0.0
        %9202 = vst.msk [vmem:[#allocation4 + $0x20] sm:$0xff] %vm9197, 0.0
        %9203 = vst.msk [vmem:[#allocation4 + $0x28] sm:$0xff] %vm9197, 0.0
        %9204 = vst.msk [vmem:[#allocation4 + $0x30] sm:$0xff] %vm9197, 0.0
        %9205 = vst.msk [vmem:[#allocation4 + $0x38] sm:$0xff] %vm9197, 0.0
        %9206 = vst.msk [vmem:[#allocation4 + $0x40] sm:$0xff] %vm9197, 0.0
        %9207 = vst.msk [vmem:[#allocation4 + $0x48] sm:$0xff] %vm9197, 0.0
        %9208 = vst.msk [vmem:[#allocation4 + $0x50] sm:$0xff] %vm9197, 0.0
        %9209 = vst.msk [vmem:[#allocation4 + $0x58] sm:$0xff] %vm9197, 0.0
        %9210 = vst.msk [vmem:[#allocation4 + $0x60] sm:$0xff] %vm9197, 0.0
        %9211 = vst.msk [vmem:[#allocation4 + $0x68] sm:$0xff] %vm9197, 0.0
        %9212 = vst.msk [vmem:[#allocation4 + $0x70] sm:$0xff] %vm9197, 0.0
        %9213 = vst.msk [vmem:[#allocation4 + $0x78] sm:$0xff] %vm9197, 0.0
        %9214 = vst.msk [vmem:[#allocation4 + $0x80] sm:$0xff] %vm9197, 0.0
        %9215 = vst.msk [vmem:[#allocation4 + $0x88] sm:$0xff] %vm9197, 0.0
        %9216 = vst.msk [vmem:[#allocation4 + $0x90] sm:$0xff] %vm9197, 0.0
        %9217 = vst.msk [vmem:[#allocation4 + $0x98] sm:$0xff] %vm9197, 0.0
        %9218 = vst.msk [vmem:[#allocation4 + $0xa0] sm:$0xff] %vm9197, 0.0
        %9219 = vst.msk [vmem:[#allocation4 + $0xa8] sm:$0xff] %vm9197, 0.0
        %9220 = vst.msk [vmem:[#allocation4 + $0xb0] sm:$0xff] %vm9197, 0.0
        %9221 = vst.msk [vmem:[#allocation4 + $0xb8] sm:$0xff] %vm9197, 0.0
        %9222 = vst.msk [vmem:[#allocation4 + $0xc0] sm:$0xff] %vm9197, 0.0
        %9223 = vst.msk [vmem:[#allocation4 + $0xc8] sm:$0xff] %vm9197, 0.0
        %9224 = vst.msk [vmem:[#allocation4 + $0xd0] sm:$0xff] %vm9197, 0.0
        %9225 = vst.msk [vmem:[#allocation4 + $0xd8] sm:$0xff] %vm9197, 0.0
        %9226 = vst.msk [vmem:[#allocation4 + $0xe0] sm:$0xff] %vm9197, 0.0
        %9227 = vst.msk [vmem:[#allocation4 + $0xe8] sm:$0xff] %vm9197, 0.0
        %9228 = vst.msk [vmem:[#allocation4 + $0xf0] sm:$0xff] %vm9197, 0.0
        %9229 = vst.msk [vmem:[#allocation4 + $0xf8] sm:$0xff] %vm9197, 0.0
        %9230 = vst.msk [vmem:[#allocation4 + $0x100] sm:$0xff] %vm9197, 0.0
        %9231 = vst.msk [vmem:[#allocation4 + $0x108] sm:$0xff] %vm9197, 0.0
        %9232 = vst.msk [vmem:[#allocation4 + $0x110] sm:$0xff] %vm9197, 0.0
        %9233 = vst.msk [vmem:[#allocation4 + $0x118] sm:$0xff] %vm9197, 0.0
        %9234 = vst.msk [vmem:[#allocation4 + $0x120] sm:$0xff] %vm9197, 0.0
        %9235 = vst.msk [vmem:[#allocation4 + $0x128] sm:$0xff] %vm9197, 0.0
        %9236 = vst.msk [vmem:[#allocation4 + $0x130] sm:$0xff] %vm9197, 0.0
        %9237 = vst.msk [vmem:[#allocation4 + $0x138] sm:$0xff] %vm9197, 0.0
        %9238 = vst.msk [vmem:[#allocation4 + $0x140] sm:$0xff] %vm9197, 0.0
        %9239 = vst.msk [vmem:[#allocation4 + $0x148] sm:$0xff] %vm9197, 0.0
        %9240 = vst.msk [vmem:[#allocation4 + $0x150] sm:$0xff] %vm9197, 0.0
        %9241 = vst.msk [vmem:[#allocation4 + $0x158] sm:$0xff] %vm9197, 0.0
        %9242 = vst.msk [vmem:[#allocation4 + $0x160] sm:$0xff] %vm9197, 0.0
        %9243 = vst.msk [vmem:[#allocation4 + $0x168] sm:$0xff] %vm9197, 0.0
        %9244 = vst.msk [vmem:[#allocation4 + $0x170] sm:$0xff] %vm9197, 0.0
        %9245 = vst.msk [vmem:[#allocation4 + $0x178] sm:$0xff] %vm9197, 0.0
        %9246 = vst.msk [vmem:[#allocation4 + $0x180] sm:$0xff] %vm9197, 0.0
        %9247 = vst.msk [vmem:[#allocation4 + $0x188] sm:$0xff] %vm9197, 0.0
        %9248 = vst.msk [vmem:[#allocation4 + $0x190] sm:$0xff] %vm9197, 0.0
        %9249 = vst.msk [vmem:[#allocation4 + $0x198] sm:$0xff] %vm9197, 0.0
        %9250 = vst.msk [vmem:[#allocation4 + $0x1a0] sm:$0xff] %vm9197, 0.0
        %9251 = vst.msk [vmem:[#allocation4 + $0x1a8] sm:$0xff] %vm9197, 0.0
        %s9252 = scalar_lea.vmem [#allocation4], 24
        %9253 = vst.msk [vmem:[%s9252 + $0x1] sm:$0xff] %vm9197, %v9165
        %9254 = vst.msk [vmem:[%s9252 + $0x9] sm:$0xff] %vm9197, %v9166
        %9255 = vst.msk [vmem:[%s9252 + $0x19] sm:$0xff] %vm9197, %v9167
        %9256 = vst.msk [vmem:[%s9252 + $0x21] sm:$0xff] %vm9197, %v9168
        %9257 = vst.msk [vmem:[%s9252 + $0x31] sm:$0xff] %vm9197, %v9169
        %9258 = vst.msk [vmem:[%s9252 + $0x39] sm:$0xff] %vm9197, %v9170
        %9259 = vst.msk [vmem:[%s9252 + $0x49] sm:$0xff] %vm9197, %v9171
        %9260 = vst.msk [vmem:[%s9252 + $0x51] sm:$0xff] %vm9197, %v9172
        %9261 = vst.msk [vmem:[%s9252 + $0x61] sm:$0xff] %vm9197, %v9173
        %9262 = vst.msk [vmem:[%s9252 + $0x69] sm:$0xff] %vm9197, %v9174
        %9263 = vst.msk [vmem:[%s9252 + $0x79] sm:$0xff] %vm9197, %v9175
        %9264 = vst.msk [vmem:[%s9252 + $0x81] sm:$0xff] %vm9197, %v9176
        %9265 = vst.msk [vmem:[%s9252 + $0x91] sm:$0xff] %vm9197, %v9177
        %9266 = vst.msk [vmem:[%s9252 + $0x99] sm:$0xff] %vm9197, %v9178
        %9267 = vst.msk [vmem:[%s9252 + $0xa9] sm:$0xff] %vm9197, %v9179
        %9268 = vst.msk [vmem:[%s9252 + $0xb1] sm:$0xff] %vm9197, %v9180
        %9269 = vst.msk [vmem:[%s9252 + $0xc1] sm:$0xff] %vm9197, %v9181
        %9270 = vst.msk [vmem:[%s9252 + $0xc9] sm:$0xff] %vm9197, %v9182
        %9271 = vst.msk [vmem:[%s9252 + $0xd9] sm:$0xff] %vm9197, %v9183
        %9272 = vst.msk [vmem:[%s9252 + $0xe1] sm:$0xff] %vm9197, %v9184
        %9273 = vst.msk [vmem:[%s9252 + $0xf1] sm:$0xff] %vm9197, %v9185
        %9274 = vst.msk [vmem:[%s9252 + $0xf9] sm:$0xff] %vm9197, %v9186
        %9275 = vst.msk [vmem:[%s9252 + $0x109] sm:$0xff] %vm9197, %v9187
        %9276 = vst.msk [vmem:[%s9252 + $0x111] sm:$0xff] %vm9197, %v9188
        %9277 = vst.msk [vmem:[%s9252 + $0x121] sm:$0xff] %vm9197, %v9189
        %9278 = vst.msk [vmem:[%s9252 + $0x129] sm:$0xff] %vm9197, %v9190
        %9279 = vst.msk [vmem:[%s9252 + $0x139] sm:$0xff] %vm9197, %v9191
        %9280 = vst.msk [vmem:[%s9252 + $0x141] sm:$0xff] %vm9197, %v9192
        %9281 = vst.msk [vmem:[%s9252 + $0x151] sm:$0xff] %vm9197, %v9193
        %9282 = vst.msk [vmem:[%s9252 + $0x159] sm:$0xff] %vm9197, %v9194
        %9283 = vst.msk [vmem:[%s9252 + $0x169] sm:$0xff] %vm9197, %v9195
        %9284 = vst.msk [vmem:[%s9252 + $0x171] sm:$0xff] %vm9197, %v9196
        %v9285 = vld [vmem:[#allocation17] sm:$0xff]
        %v9286 = vld [vmem:[#allocation17 + $0x8] sm:$0x1]
        %v9287 = vld [vmem:[#allocation4] sm:$0xff]
        %v9288 = vld [vmem:[#allocation4 + $0x8] sm:$0xff]
        %v9289 = vld [vmem:[#allocation4 + $0x18] sm:$0xff]
        %v9290 = vld [vmem:[#allocation4 + $0x20] sm:$0xff]
        %v9291 = vld [vmem:[#allocation4 + $0x30] sm:$0xff]
        %v9292 = vld [vmem:[#allocation4 + $0x38] sm:$0xff]
        %v9293 = vld [vmem:[#allocation4 + $0x48] sm:$0xff]
        %v9294 = vld [vmem:[#allocation4 + $0x50] sm:$0xff]
        %v9295 = vld [vmem:[#allocation4 + $0x60] sm:$0xff]
        %v9296 = vld [vmem:[#allocation4 + $0x68] sm:$0xff]
        %v9297 = vld [vmem:[#allocation4 + $0x78] sm:$0xff]
        %v9298 = vld [vmem:[#allocation4 + $0x80] sm:$0xff]
        %v9299 = vld [vmem:[#allocation4 + $0x90] sm:$0xff]
        %v9300 = vld [vmem:[#allocation4 + $0x98] sm:$0xff]
        %v9301 = vld [vmem:[#allocation4 + $0xa8] sm:$0xff]
        %v9302 = vld [vmem:[#allocation4 + $0xb0] sm:$0xff]
        %v9303 = vld [vmem:[#allocation4 + $0xc0] sm:$0xff]
        %v9304 = vld [vmem:[#allocation4 + $0xc8] sm:$0xff]
        %v9305 = vld [vmem:[#allocation4 + $0xd8] sm:$0xff]
        %v9306 = vld [vmem:[#allocation4 + $0xe0] sm:$0xff]
        %v9307 = vld [vmem:[#allocation4 + $0xf0] sm:$0xff]
        %v9308 = vld [vmem:[#allocation4 + $0xf8] sm:$0xff]
        %v9309 = vld [vmem:[#allocation4 + $0x108] sm:$0xff]
        %v9310 = vld [vmem:[#allocation4 + $0x110] sm:$0xff]
        %v9311 = vld [vmem:[#allocation4 + $0x120] sm:$0xff]
        %v9312 = vld [vmem:[#allocation4 + $0x128] sm:$0xff]
        %v9313 = vld [vmem:[#allocation4 + $0x138] sm:$0xff]
        %v9314 = vld [vmem:[#allocation4 + $0x140] sm:$0xff]
        %v9315 = vld [vmem:[#allocation4 + $0x150] sm:$0xff]
        %v9316 = vld [vmem:[#allocation4 + $0x158] sm:$0xff]
        %v9317 = vld [vmem:[#allocation4 + $0x168] sm:$0xff]
        %v9318 = vld [vmem:[#allocation4 + $0x170] sm:$0xff]
        %v9319 = vlaneseq
        %v9320 = vshrl.u32 %v9319, 7
        %v9321 = vsub.s32 0, %v9320
        %v9322 = vrot.slane %v9285, %v9321
        %v9323 = vmul.f32 %v9287, %v9322
        %v9324 = vmul.f32 %v9288, %v9322
        %v9325 = vmul.f32 %v9289, %v9322
        %v9326 = vmul.f32 %v9290, %v9322
        %v9327 = vmul.f32 %v9291, %v9322
        %v9328 = vmul.f32 %v9292, %v9322
        %v9329 = vmul.f32 %v9293, %v9322
        %v9330 = vmul.f32 %v9294, %v9322
        %v9331 = vmul.f32 %v9295, %v9322
        %v9332 = vmul.f32 %v9296, %v9322
        %v9333 = vmul.f32 %v9297, %v9322
        %v9334 = vmul.f32 %v9298, %v9322
        %v9335 = vmul.f32 %v9299, %v9322
        %v9336 = vmul.f32 %v9300, %v9322
        %v9337 = vmul.f32 %v9301, %v9322
        %v9338 = vmul.f32 %v9302, %v9322
        %v9339 = vmul.f32 %v9303, %v9322
        %v9340 = vmul.f32 %v9304, %v9322
        %v9341 = vmul.f32 %v9305, %v9322
        %v9342 = vmul.f32 %v9306, %v9322
        %v9343 = vmul.f32 %v9307, %v9322
        %v9344 = vmul.f32 %v9308, %v9322
        %v9345 = vmul.f32 %v9309, %v9322
        %v9346 = vmul.f32 %v9310, %v9322
        %v9347 = vmul.f32 %v9311, %v9322
        %v9348 = vmul.f32 %v9312, %v9322
        %v9349 = vmul.f32 %v9313, %v9322
        %v9350 = vmul.f32 %v9314, %v9322
        %v9351 = vmul.f32 %v9315, %v9322
        %v9352 = vmul.f32 %v9316, %v9322
        %v9353 = vmul.f32 %v9317, %v9322
        %v9354 = vmul.f32 %v9318, %v9322
        %v9355 = vadd.f32 %v9323, 0.0
        %v9356 = vadd.f32 %v9324, 0.0
        %v9357 = vadd.f32 %v9325, 0.0
        %v9358 = vadd.f32 %v9326, 0.0
        %v9359 = vadd.f32 %v9327, 0.0
        %v9360 = vadd.f32 %v9328, 0.0
        %v9361 = vadd.f32 %v9329, 0.0
        %v9362 = vadd.f32 %v9330, 0.0
        %v9363 = vadd.f32 %v9331, 0.0
        %v9364 = vadd.f32 %v9332, 0.0
        %v9365 = vadd.f32 %v9333, 0.0
        %v9366 = vadd.f32 %v9334, 0.0
        %v9367 = vadd.f32 %v9335, 0.0
        %v9368 = vadd.f32 %v9336, 0.0
        %v9369 = vadd.f32 %v9337, 0.0
        %v9370 = vadd.f32 %v9338, 0.0
        %v9371 = vadd.f32 %v9339, 0.0
        %v9372 = vadd.f32 %v9340, 0.0
        %v9373 = vadd.f32 %v9341, 0.0
        %v9374 = vadd.f32 %v9342, 0.0
        %v9375 = vadd.f32 %v9343, 0.0
        %v9376 = vadd.f32 %v9344, 0.0
        %v9377 = vadd.f32 %v9345, 0.0
        %v9378 = vadd.f32 %v9346, 0.0
        %v9379 = vadd.f32 %v9347, 0.0
        %v9380 = vadd.f32 %v9348, 0.0
        %v9381 = vadd.f32 %v9349, 0.0
        %v9382 = vadd.f32 %v9350, 0.0
        %v9383 = vadd.f32 %v9351, 0.0
        %v9384 = vadd.f32 %v9352, 0.0
        %v9385 = vadd.f32 %v9353, 0.0
        %v9386 = vadd.f32 %v9354, 0.0
        %v9387 = vld [vmem:[#allocation4 + $0x1] sm:$0xff]
        %v9388 = vld [vmem:[#allocation4 + $0x9] sm:$0xff]
        %v9389 = vld [vmem:[#allocation4 + $0x19] sm:$0xff]
        %v9390 = vld [vmem:[#allocation4 + $0x21] sm:$0xff]
        %v9391 = vld [vmem:[#allocation4 + $0x31] sm:$0xff]
        %v9392 = vld [vmem:[#allocation4 + $0x39] sm:$0xff]
        %v9393 = vld [vmem:[#allocation4 + $0x49] sm:$0xff]
        %v9394 = vld [vmem:[#allocation4 + $0x51] sm:$0xff]
        %v9395 = vld [vmem:[#allocation4 + $0x61] sm:$0xff]
        %v9396 = vld [vmem:[#allocation4 + $0x69] sm:$0xff]
        %v9397 = vld [vmem:[#allocation4 + $0x79] sm:$0xff]
        %v9398 = vld [vmem:[#allocation4 + $0x81] sm:$0xff]
        %v9399 = vld [vmem:[#allocation4 + $0x91] sm:$0xff]
        %v9400 = vld [vmem:[#allocation4 + $0x99] sm:$0xff]
        %v9401 = vld [vmem:[#allocation4 + $0xa9] sm:$0xff]
        %v9402 = vld [vmem:[#allocation4 + $0xb1] sm:$0xff]
        %v9403 = vld [vmem:[#allocation4 + $0xc1] sm:$0xff]
        %v9404 = vld [vmem:[#allocation4 + $0xc9] sm:$0xff]
        %v9405 = vld [vmem:[#allocation4 + $0xd9] sm:$0xff]
        %v9406 = vld [vmem:[#allocation4 + $0xe1] sm:$0xff]
        %v9407 = vld [vmem:[#allocation4 + $0xf1] sm:$0xff]
        %v9408 = vld [vmem:[#allocation4 + $0xf9] sm:$0xff]
        %v9409 = vld [vmem:[#allocation4 + $0x109] sm:$0xff]
        %v9410 = vld [vmem:[#allocation4 + $0x111] sm:$0xff]
        %v9411 = vld [vmem:[#allocation4 + $0x121] sm:$0xff]
        %v9412 = vld [vmem:[#allocation4 + $0x129] sm:$0xff]
        %v9413 = vld [vmem:[#allocation4 + $0x139] sm:$0xff]
        %v9414 = vld [vmem:[#allocation4 + $0x141] sm:$0xff]
        %v9415 = vld [vmem:[#allocation4 + $0x151] sm:$0xff]
        %v9416 = vld [vmem:[#allocation4 + $0x159] sm:$0xff]
        %v9417 = vld [vmem:[#allocation4 + $0x169] sm:$0xff]
        %v9418 = vld [vmem:[#allocation4 + $0x171] sm:$0xff]
        %v9419 = vlaneseq
        %v9420 = vshrl.u32 %v9419, 7
        %v9421 = vsub.s32 1, %v9420
        %v9422 = vrot.slane %v9285, %v9421
        %v9423 = vmul.f32 %v9387, %v9422
        %v9424 = vmul.f32 %v9388, %v9422
        %v9425 = vmul.f32 %v9389, %v9422
        %v9426 = vmul.f32 %v9390, %v9422
        %v9427 = vmul.f32 %v9391, %v9422
        %v9428 = vmul.f32 %v9392, %v9422
        %v9429 = vmul.f32 %v9393, %v9422
        %v9430 = vmul.f32 %v9394, %v9422
        %v9431 = vmul.f32 %v9395, %v9422
        %v9432 = vmul.f32 %v9396, %v9422
        %v9433 = vmul.f32 %v9397, %v9422
        %v9434 = vmul.f32 %v9398, %v9422
        %v9435 = vmul.f32 %v9399, %v9422
        %v9436 = vmul.f32 %v9400, %v9422
        %v9437 = vmul.f32 %v9401, %v9422
        %v9438 = vmul.f32 %v9402, %v9422
        %v9439 = vmul.f32 %v9403, %v9422
        %v9440 = vmul.f32 %v9404, %v9422
        %v9441 = vmul.f32 %v9405, %v9422
        %v9442 = vmul.f32 %v9406, %v9422
        %v9443 = vmul.f32 %v9407, %v9422
        %v9444 = vmul.f32 %v9408, %v9422
        %v9445 = vmul.f32 %v9409, %v9422
        %v9446 = vmul.f32 %v9410, %v9422
        %v9447 = vmul.f32 %v9411, %v9422
        %v9448 = vmul.f32 %v9412, %v9422
        %v9449 = vmul.f32 %v9413, %v9422
        %v9450 = vmul.f32 %v9414, %v9422
        %v9451 = vmul.f32 %v9415, %v9422
        %v9452 = vmul.f32 %v9416, %v9422
        %v9453 = vmul.f32 %v9417, %v9422
        %v9454 = vmul.f32 %v9418, %v9422
        %v9455 = vadd.f32 %v9355, %v9423
        %v9456 = vadd.f32 %v9356, %v9424
        %v9457 = vadd.f32 %v9357, %v9425
        %v9458 = vadd.f32 %v9358, %v9426
        %v9459 = vadd.f32 %v9359, %v9427
        %v9460 = vadd.f32 %v9360, %v9428
        %v9461 = vadd.f32 %v9361, %v9429
        %v9462 = vadd.f32 %v9362, %v9430
        %v9463 = vadd.f32 %v9363, %v9431
        %v9464 = vadd.f32 %v9364, %v9432
        %v9465 = vadd.f32 %v9365, %v9433
        %v9466 = vadd.f32 %v9366, %v9434
        %v9467 = vadd.f32 %v9367, %v9435
        %v9468 = vadd.f32 %v9368, %v9436
        %v9469 = vadd.f32 %v9369, %v9437
        %v9470 = vadd.f32 %v9370, %v9438
        %v9471 = vadd.f32 %v9371, %v9439
        %v9472 = vadd.f32 %v9372, %v9440
        %v9473 = vadd.f32 %v9373, %v9441
        %v9474 = vadd.f32 %v9374, %v9442
        %v9475 = vadd.f32 %v9375, %v9443
        %v9476 = vadd.f32 %v9376, %v9444
        %v9477 = vadd.f32 %v9377, %v9445
        %v9478 = vadd.f32 %v9378, %v9446
        %v9479 = vadd.f32 %v9379, %v9447
        %v9480 = vadd.f32 %v9380, %v9448
        %v9481 = vadd.f32 %v9381, %v9449
        %v9482 = vadd.f32 %v9382, %v9450
        %v9483 = vadd.f32 %v9383, %v9451
        %v9484 = vadd.f32 %v9384, %v9452
        %v9485 = vadd.f32 %v9385, %v9453
        %v9486 = vadd.f32 %v9386, %v9454
        %v9487 = vld [vmem:[#allocation4 + $0x2] sm:$0xff]
        %v9488 = vld [vmem:[#allocation4 + $0xa] sm:$0xff]
        %v9489 = vld [vmem:[#allocation4 + $0x1a] sm:$0xff]
        %v9490 = vld [vmem:[#allocation4 + $0x22] sm:$0xff]
        %v9491 = vld [vmem:[#allocation4 + $0x32] sm:$0xff]
        %v9492 = vld [vmem:[#allocation4 + $0x3a] sm:$0xff]
        %v9493 = vld [vmem:[#allocation4 + $0x4a] sm:$0xff]
        %v9494 = vld [vmem:[#allocation4 + $0x52] sm:$0xff]
        %v9495 = vld [vmem:[#allocation4 + $0x62] sm:$0xff]
        %v9496 = vld [vmem:[#allocation4 + $0x6a] sm:$0xff]
        %v9497 = vld [vmem:[#allocation4 + $0x7a] sm:$0xff]
        %v9498 = vld [vmem:[#allocation4 + $0x82] sm:$0xff]
        %v9499 = vld [vmem:[#allocation4 + $0x92] sm:$0xff]
        %v9500 = vld [vmem:[#allocation4 + $0x9a] sm:$0xff]
        %v9501 = vld [vmem:[#allocation4 + $0xaa] sm:$0xff]
        %v9502 = vld [vmem:[#allocation4 + $0xb2] sm:$0xff]
        %v9503 = vld [vmem:[#allocation4 + $0xc2] sm:$0xff]
        %v9504 = vld [vmem:[#allocation4 + $0xca] sm:$0xff]
        %v9505 = vld [vmem:[#allocation4 + $0xda] sm:$0xff]
        %v9506 = vld [vmem:[#allocation4 + $0xe2] sm:$0xff]
        %v9507 = vld [vmem:[#allocation4 + $0xf2] sm:$0xff]
        %v9508 = vld [vmem:[#allocation4 + $0xfa] sm:$0xff]
        %v9509 = vld [vmem:[#allocation4 + $0x10a] sm:$0xff]
        %v9510 = vld [vmem:[#allocation4 + $0x112] sm:$0xff]
        %v9511 = vld [vmem:[#allocation4 + $0x122] sm:$0xff]
        %v9512 = vld [vmem:[#allocation4 + $0x12a] sm:$0xff]
        %v9513 = vld [vmem:[#allocation4 + $0x13a] sm:$0xff]
        %v9514 = vld [vmem:[#allocation4 + $0x142] sm:$0xff]
        %v9515 = vld [vmem:[#allocation4 + $0x152] sm:$0xff]
        %v9516 = vld [vmem:[#allocation4 + $0x15a] sm:$0xff]
        %v9517 = vld [vmem:[#allocation4 + $0x16a] sm:$0xff]
        %v9518 = vld [vmem:[#allocation4 + $0x172] sm:$0xff]
        %v9519 = vlaneseq
        %v9520 = vshrl.u32 %v9519, 7
        %v9521 = vsub.s32 2, %v9520
        %v9522 = vrot.slane %v9285, %v9521
        %v9523 = vmul.f32 %v9487, %v9522
        %v9524 = vmul.f32 %v9488, %v9522
        %v9525 = vmul.f32 %v9489, %v9522
        %v9526 = vmul.f32 %v9490, %v9522
        %v9527 = vmul.f32 %v9491, %v9522
        %v9528 = vmul.f32 %v9492, %v9522
        %v9529 = vmul.f32 %v9493, %v9522
        %v9530 = vmul.f32 %v9494, %v9522
        %v9531 = vmul.f32 %v9495, %v9522
        %v9532 = vmul.f32 %v9496, %v9522
        %v9533 = vmul.f32 %v9497, %v9522
        %v9534 = vmul.f32 %v9498, %v9522
        %v9535 = vmul.f32 %v9499, %v9522
        %v9536 = vmul.f32 %v9500, %v9522
        %v9537 = vmul.f32 %v9501, %v9522
        %v9538 = vmul.f32 %v9502, %v9522
        %v9539 = vmul.f32 %v9503, %v9522
        %v9540 = vmul.f32 %v9504, %v9522
        %v9541 = vmul.f32 %v9505, %v9522
        %v9542 = vmul.f32 %v9506, %v9522
        %v9543 = vmul.f32 %v9507, %v9522
        %v9544 = vmul.f32 %v9508, %v9522
        %v9545 = vmul.f32 %v9509, %v9522
        %v9546 = vmul.f32 %v9510, %v9522
        %v9547 = vmul.f32 %v9511, %v9522
        %v9548 = vmul.f32 %v9512, %v9522
        %v9549 = vmul.f32 %v9513, %v9522
        %v9550 = vmul.f32 %v9514, %v9522
        %v9551 = vmul.f32 %v9515, %v9522
        %v9552 = vmul.f32 %v9516, %v9522
        %v9553 = vmul.f32 %v9517, %v9522
        %v9554 = vmul.f32 %v9518, %v9522
        %v9555 = vadd.f32 %v9455, %v9523
        %v9556 = vadd.f32 %v9456, %v9524
        %v9557 = vadd.f32 %v9457, %v9525
        %v9558 = vadd.f32 %v9458, %v9526
        %v9559 = vadd.f32 %v9459, %v9527
        %v9560 = vadd.f32 %v9460, %v9528
        %v9561 = vadd.f32 %v9461, %v9529
        %v9562 = vadd.f32 %v9462, %v9530
        %v9563 = vadd.f32 %v9463, %v9531
        %v9564 = vadd.f32 %v9464, %v9532
        %v9565 = vadd.f32 %v9465, %v9533
        %v9566 = vadd.f32 %v9466, %v9534
        %v9567 = vadd.f32 %v9467, %v9535
        %v9568 = vadd.f32 %v9468, %v9536
        %v9569 = vadd.f32 %v9469, %v9537
        %v9570 = vadd.f32 %v9470, %v9538
        %v9571 = vadd.f32 %v9471, %v9539
        %v9572 = vadd.f32 %v9472, %v9540
        %v9573 = vadd.f32 %v9473, %v9541
        %v9574 = vadd.f32 %v9474, %v9542
        %v9575 = vadd.f32 %v9475, %v9543
        %v9576 = vadd.f32 %v9476, %v9544
        %v9577 = vadd.f32 %v9477, %v9545
        %v9578 = vadd.f32 %v9478, %v9546
        %v9579 = vadd.f32 %v9479, %v9547
        %v9580 = vadd.f32 %v9480, %v9548
        %v9581 = vadd.f32 %v9481, %v9549
        %v9582 = vadd.f32 %v9482, %v9550
        %v9583 = vadd.f32 %v9483, %v9551
        %v9584 = vadd.f32 %v9484, %v9552
        %v9585 = vadd.f32 %v9485, %v9553
        %v9586 = vadd.f32 %v9486, %v9554
        %v9587 = vld [vmem:[%s9252] sm:$0xff]
        %v9588 = vld [vmem:[%s9252 + $0x8] sm:$0xff]
        %v9589 = vld [vmem:[%s9252 + $0x18] sm:$0xff]
        %v9590 = vld [vmem:[%s9252 + $0x20] sm:$0xff]
        %v9591 = vld [vmem:[%s9252 + $0x30] sm:$0xff]
        %v9592 = vld [vmem:[%s9252 + $0x38] sm:$0xff]
        %v9593 = vld [vmem:[%s9252 + $0x48] sm:$0xff]
        %v9594 = vld [vmem:[%s9252 + $0x50] sm:$0xff]
        %v9595 = vld [vmem:[%s9252 + $0x60] sm:$0xff]
        %v9596 = vld [vmem:[%s9252 + $0x68] sm:$0xff]
        %v9597 = vld [vmem:[%s9252 + $0x78] sm:$0xff]
        %v9598 = vld [vmem:[%s9252 + $0x80] sm:$0xff]
        %v9599 = vld [vmem:[%s9252 + $0x90] sm:$0xff]
        %v9600 = vld [vmem:[%s9252 + $0x98] sm:$0xff]
        %v9601 = vld [vmem:[%s9252 + $0xa8] sm:$0xff]
        %v9602 = vld [vmem:[%s9252 + $0xb0] sm:$0xff]
        %v9603 = vld [vmem:[%s9252 + $0xc0] sm:$0xff]
        %v9604 = vld [vmem:[%s9252 + $0xc8] sm:$0xff]
        %v9605 = vld [vmem:[%s9252 + $0xd8] sm:$0xff]
        %v9606 = vld [vmem:[%s9252 + $0xe0] sm:$0xff]
        %v9607 = vld [vmem:[%s9252 + $0xf0] sm:$0xff]
        %v9608 = vld [vmem:[%s9252 + $0xf8] sm:$0xff]
        %v9609 = vld [vmem:[%s9252 + $0x108] sm:$0xff]
        %v9610 = vld [vmem:[%s9252 + $0x110] sm:$0xff]
        %v9611 = vld [vmem:[%s9252 + $0x120] sm:$0xff]
        %v9612 = vld [vmem:[%s9252 + $0x128] sm:$0xff]
        %v9613 = vld [vmem:[%s9252 + $0x138] sm:$0xff]
        %v9614 = vld [vmem:[%s9252 + $0x140] sm:$0xff]
        %v9615 = vld [vmem:[%s9252 + $0x150] sm:$0xff]
        %v9616 = vld [vmem:[%s9252 + $0x158] sm:$0xff]
        %v9617 = vld [vmem:[%s9252 + $0x168] sm:$0xff]
        %v9618 = vld [vmem:[%s9252 + $0x170] sm:$0xff]
        %v9619 = vlaneseq
        %v9620 = vshrl.u32 %v9619, 7
        %v9621 = vsub.s32 3, %v9620
        %v9622 = vrot.slane %v9285, %v9621
        %v9623 = vmul.f32 %v9587, %v9622
        %v9624 = vmul.f32 %v9588, %v9622
        %v9625 = vmul.f32 %v9589, %v9622
        %v9626 = vmul.f32 %v9590, %v9622
        %v9627 = vmul.f32 %v9591, %v9622
        %v9628 = vmul.f32 %v9592, %v9622
        %v9629 = vmul.f32 %v9593, %v9622
        %v9630 = vmul.f32 %v9594, %v9622
        %v9631 = vmul.f32 %v9595, %v9622
        %v9632 = vmul.f32 %v9596, %v9622
        %v9633 = vmul.f32 %v9597, %v9622
        %v9634 = vmul.f32 %v9598, %v9622
        %v9635 = vmul.f32 %v9599, %v9622
        %v9636 = vmul.f32 %v9600, %v9622
        %v9637 = vmul.f32 %v9601, %v9622
        %v9638 = vmul.f32 %v9602, %v9622
        %v9639 = vmul.f32 %v9603, %v9622
        %v9640 = vmul.f32 %v9604, %v9622
        %v9641 = vmul.f32 %v9605, %v9622
        %v9642 = vmul.f32 %v9606, %v9622
        %v9643 = vmul.f32 %v9607, %v9622
        %v9644 = vmul.f32 %v9608, %v9622
        %v9645 = vmul.f32 %v9609, %v9622
        %v9646 = vmul.f32 %v9610, %v9622
        %v9647 = vmul.f32 %v9611, %v9622
        %v9648 = vmul.f32 %v9612, %v9622
        %v9649 = vmul.f32 %v9613, %v9622
        %v9650 = vmul.f32 %v9614, %v9622
        %v9651 = vmul.f32 %v9615, %v9622
        %v9652 = vmul.f32 %v9616, %v9622
        %v9653 = vmul.f32 %v9617, %v9622
        %v9654 = vmul.f32 %v9618, %v9622
        %v9655 = vadd.f32 %v9555, %v9623
        %v9656 = vadd.f32 %v9556, %v9624
        %v9657 = vadd.f32 %v9557, %v9625
        %v9658 = vadd.f32 %v9558, %v9626
        %v9659 = vadd.f32 %v9559, %v9627
        %v9660 = vadd.f32 %v9560, %v9628
        %v9661 = vadd.f32 %v9561, %v9629
        %v9662 = vadd.f32 %v9562, %v9630
        %v9663 = vadd.f32 %v9563, %v9631
        %v9664 = vadd.f32 %v9564, %v9632
        %v9665 = vadd.f32 %v9565, %v9633
        %v9666 = vadd.f32 %v9566, %v9634
        %v9667 = vadd.f32 %v9567, %v9635
        %v9668 = vadd.f32 %v9568, %v9636
        %v9669 = vadd.f32 %v9569, %v9637
        %v9670 = vadd.f32 %v9570, %v9638
        %v9671 = vadd.f32 %v9571, %v9639
        %v9672 = vadd.f32 %v9572, %v9640
        %v9673 = vadd.f32 %v9573, %v9641
        %v9674 = vadd.f32 %v9574, %v9642
        %v9675 = vadd.f32 %v9575, %v9643
        %v9676 = vadd.f32 %v9576, %v9644
        %v9677 = vadd.f32 %v9577, %v9645
        %v9678 = vadd.f32 %v9578, %v9646
        %v9679 = vadd.f32 %v9579, %v9647
        %v9680 = vadd.f32 %v9580, %v9648
        %v9681 = vadd.f32 %v9581, %v9649
        %v9682 = vadd.f32 %v9582, %v9650
        %v9683 = vadd.f32 %v9583, %v9651
        %v9684 = vadd.f32 %v9584, %v9652
        %v9685 = vadd.f32 %v9585, %v9653
        %v9686 = vadd.f32 %v9586, %v9654
        %v9687 = vld [vmem:[%s9252 + $0x1] sm:$0xff]
        %v9688 = vld [vmem:[%s9252 + $0x9] sm:$0xff]
        %v9689 = vld [vmem:[%s9252 + $0x19] sm:$0xff]
        %v9690 = vld [vmem:[%s9252 + $0x21] sm:$0xff]
        %v9691 = vld [vmem:[%s9252 + $0x31] sm:$0xff]
        %v9692 = vld [vmem:[%s9252 + $0x39] sm:$0xff]
        %v9693 = vld [vmem:[%s9252 + $0x49] sm:$0xff]
        %v9694 = vld [vmem:[%s9252 + $0x51] sm:$0xff]
        %v9695 = vld [vmem:[%s9252 + $0x61] sm:$0xff]
        %v9696 = vld [vmem:[%s9252 + $0x69] sm:$0xff]
        %v9697 = vld [vmem:[%s9252 + $0x79] sm:$0xff]
        %v9698 = vld [vmem:[%s9252 + $0x81] sm:$0xff]
        %v9699 = vld [vmem:[%s9252 + $0x91] sm:$0xff]
        %v9700 = vld [vmem:[%s9252 + $0x99] sm:$0xff]
        %v9701 = vld [vmem:[%s9252 + $0xa9] sm:$0xff]
        %v9702 = vld [vmem:[%s9252 + $0xb1] sm:$0xff]
        %v9703 = vld [vmem:[%s9252 + $0xc1] sm:$0xff]
        %v9704 = vld [vmem:[%s9252 + $0xc9] sm:$0xff]
        %v9705 = vld [vmem:[%s9252 + $0xd9] sm:$0xff]
        %v9706 = vld [vmem:[%s9252 + $0xe1] sm:$0xff]
        %v9707 = vld [vmem:[%s9252 + $0xf1] sm:$0xff]
        %v9708 = vld [vmem:[%s9252 + $0xf9] sm:$0xff]
        %v9709 = vld [vmem:[%s9252 + $0x109] sm:$0xff]
        %v9710 = vld [vmem:[%s9252 + $0x111] sm:$0xff]
        %v9711 = vld [vmem:[%s9252 + $0x121] sm:$0xff]
        %v9712 = vld [vmem:[%s9252 + $0x129] sm:$0xff]
        %v9713 = vld [vmem:[%s9252 + $0x139] sm:$0xff]
        %v9714 = vld [vmem:[%s9252 + $0x141] sm:$0xff]
        %v9715 = vld [vmem:[%s9252 + $0x151] sm:$0xff]
        %v9716 = vld [vmem:[%s9252 + $0x159] sm:$0xff]
        %v9717 = vld [vmem:[%s9252 + $0x169] sm:$0xff]
        %v9718 = vld [vmem:[%s9252 + $0x171] sm:$0xff]
        %v9719 = vlaneseq
        %v9720 = vshrl.u32 %v9719, 7
        %v9721 = vsub.s32 4, %v9720
        %v9722 = vrot.slane %v9285, %v9721
        %v9723 = vmul.f32 %v9687, %v9722
        %v9724 = vmul.f32 %v9688, %v9722
        %v9725 = vmul.f32 %v9689, %v9722
        %v9726 = vmul.f32 %v9690, %v9722
        %v9727 = vmul.f32 %v9691, %v9722
        %v9728 = vmul.f32 %v9692, %v9722
        %v9729 = vmul.f32 %v9693, %v9722
        %v9730 = vmul.f32 %v9694, %v9722
        %v9731 = vmul.f32 %v9695, %v9722
        %v9732 = vmul.f32 %v9696, %v9722
        %v9733 = vmul.f32 %v9697, %v9722
        %v9734 = vmul.f32 %v9698, %v9722
        %v9735 = vmul.f32 %v9699, %v9722
        %v9736 = vmul.f32 %v9700, %v9722
        %v9737 = vmul.f32 %v9701, %v9722
        %v9738 = vmul.f32 %v9702, %v9722
        %v9739 = vmul.f32 %v9703, %v9722
        %v9740 = vmul.f32 %v9704, %v9722
        %v9741 = vmul.f32 %v9705, %v9722
        %v9742 = vmul.f32 %v9706, %v9722
        %v9743 = vmul.f32 %v9707, %v9722
        %v9744 = vmul.f32 %v9708, %v9722
        %v9745 = vmul.f32 %v9709, %v9722
        %v9746 = vmul.f32 %v9710, %v9722
        %v9747 = vmul.f32 %v9711, %v9722
        %v9748 = vmul.f32 %v9712, %v9722
        %v9749 = vmul.f32 %v9713, %v9722
        %v9750 = vmul.f32 %v9714, %v9722
        %v9751 = vmul.f32 %v9715, %v9722
        %v9752 = vmul.f32 %v9716, %v9722
        %v9753 = vmul.f32 %v9717, %v9722
        %v9754 = vmul.f32 %v9718, %v9722
        %v9755 = vadd.f32 %v9655, %v9723
        %v9756 = vadd.f32 %v9656, %v9724
        %v9757 = vadd.f32 %v9657, %v9725
        %v9758 = vadd.f32 %v9658, %v9726
        %v9759 = vadd.f32 %v9659, %v9727
        %v9760 = vadd.f32 %v9660, %v9728
        %v9761 = vadd.f32 %v9661, %v9729
        %v9762 = vadd.f32 %v9662, %v9730
        %v9763 = vadd.f32 %v9663, %v9731
        %v9764 = vadd.f32 %v9664, %v9732
        %v9765 = vadd.f32 %v9665, %v9733
        %v9766 = vadd.f32 %v9666, %v9734
        %v9767 = vadd.f32 %v9667, %v9735
        %v9768 = vadd.f32 %v9668, %v9736
        %v9769 = vadd.f32 %v9669, %v9737
        %v9770 = vadd.f32 %v9670, %v9738
        %v9771 = vadd.f32 %v9671, %v9739
        %v9772 = vadd.f32 %v9672, %v9740
        %v9773 = vadd.f32 %v9673, %v9741
        %v9774 = vadd.f32 %v9674, %v9742
        %v9775 = vadd.f32 %v9675, %v9743
        %v9776 = vadd.f32 %v9676, %v9744
        %v9777 = vadd.f32 %v9677, %v9745
        %v9778 = vadd.f32 %v9678, %v9746
        %v9779 = vadd.f32 %v9679, %v9747
        %v9780 = vadd.f32 %v9680, %v9748
        %v9781 = vadd.f32 %v9681, %v9749
        %v9782 = vadd.f32 %v9682, %v9750
        %v9783 = vadd.f32 %v9683, %v9751
        %v9784 = vadd.f32 %v9684, %v9752
        %v9785 = vadd.f32 %v9685, %v9753
        %v9786 = vadd.f32 %v9686, %v9754
        %v9787 = vld [vmem:[%s9252 + $0x2] sm:$0xff]
        %v9788 = vld [vmem:[%s9252 + $0xa] sm:$0xff]
        %v9789 = vld [vmem:[%s9252 + $0x1a] sm:$0xff]
        %v9790 = vld [vmem:[%s9252 + $0x22] sm:$0xff]
        %v9791 = vld [vmem:[%s9252 + $0x32] sm:$0xff]
        %v9792 = vld [vmem:[%s9252 + $0x3a] sm:$0xff]
        %v9793 = vld [vmem:[%s9252 + $0x4a] sm:$0xff]
        %v9794 = vld [vmem:[%s9252 + $0x52] sm:$0xff]
        %v9795 = vld [vmem:[%s9252 + $0x62] sm:$0xff]
        %v9796 = vld [vmem:[%s9252 + $0x6a] sm:$0xff]
        %v9797 = vld [vmem:[%s9252 + $0x7a] sm:$0xff]
        %v9798 = vld [vmem:[%s9252 + $0x82] sm:$0xff]
        %v9799 = vld [vmem:[%s9252 + $0x92] sm:$0xff]
        %v9800 = vld [vmem:[%s9252 + $0x9a] sm:$0xff]
        %v9801 = vld [vmem:[%s9252 + $0xaa] sm:$0xff]
        %v9802 = vld [vmem:[%s9252 + $0xb2] sm:$0xff]
        %v9803 = vld [vmem:[%s9252 + $0xc2] sm:$0xff]
        %v9804 = vld [vmem:[%s9252 + $0xca] sm:$0xff]
        %v9805 = vld [vmem:[%s9252 + $0xda] sm:$0xff]
        %v9806 = vld [vmem:[%s9252 + $0xe2] sm:$0xff]
        %v9807 = vld [vmem:[%s9252 + $0xf2] sm:$0xff]
        %v9808 = vld [vmem:[%s9252 + $0xfa] sm:$0xff]
        %v9809 = vld [vmem:[%s9252 + $0x10a] sm:$0xff]
        %v9810 = vld [vmem:[%s9252 + $0x112] sm:$0xff]
        %v9811 = vld [vmem:[%s9252 + $0x122] sm:$0xff]
        %v9812 = vld [vmem:[%s9252 + $0x12a] sm:$0xff]
        %v9813 = vld [vmem:[%s9252 + $0x13a] sm:$0xff]
        %v9814 = vld [vmem:[%s9252 + $0x142] sm:$0xff]
        %v9815 = vld [vmem:[%s9252 + $0x152] sm:$0xff]
        %v9816 = vld [vmem:[%s9252 + $0x15a] sm:$0xff]
        %v9817 = vld [vmem:[%s9252 + $0x16a] sm:$0xff]
        %v9818 = vld [vmem:[%s9252 + $0x172] sm:$0xff]
        %v9819 = vlaneseq
        %v9820 = vshrl.u32 %v9819, 7
        %v9821 = vsub.s32 5, %v9820
        %v9822 = vrot.slane %v9285, %v9821
        %v9823 = vmul.f32 %v9787, %v9822
        %v9824 = vmul.f32 %v9788, %v9822
        %v9825 = vmul.f32 %v9789, %v9822
        %v9826 = vmul.f32 %v9790, %v9822
        %v9827 = vmul.f32 %v9791, %v9822
        %v9828 = vmul.f32 %v9792, %v9822
        %v9829 = vmul.f32 %v9793, %v9822
        %v9830 = vmul.f32 %v9794, %v9822
        %v9831 = vmul.f32 %v9795, %v9822
        %v9832 = vmul.f32 %v9796, %v9822
        %v9833 = vmul.f32 %v9797, %v9822
        %v9834 = vmul.f32 %v9798, %v9822
        %v9835 = vmul.f32 %v9799, %v9822
        %v9836 = vmul.f32 %v9800, %v9822
        %v9837 = vmul.f32 %v9801, %v9822
        %v9838 = vmul.f32 %v9802, %v9822
        %v9839 = vmul.f32 %v9803, %v9822
        %v9840 = vmul.f32 %v9804, %v9822
        %v9841 = vmul.f32 %v9805, %v9822
        %v9842 = vmul.f32 %v9806, %v9822
        %v9843 = vmul.f32 %v9807, %v9822
        %v9844 = vmul.f32 %v9808, %v9822
        %v9845 = vmul.f32 %v9809, %v9822
        %v9846 = vmul.f32 %v9810, %v9822
        %v9847 = vmul.f32 %v9811, %v9822
        %v9848 = vmul.f32 %v9812, %v9822
        %v9849 = vmul.f32 %v9813, %v9822
        %v9850 = vmul.f32 %v9814, %v9822
        %v9851 = vmul.f32 %v9815, %v9822
        %v9852 = vmul.f32 %v9816, %v9822
        %v9853 = vmul.f32 %v9817, %v9822
        %v9854 = vmul.f32 %v9818, %v9822
        %v9855 = vadd.f32 %v9755, %v9823
        %v9856 = vadd.f32 %v9756, %v9824
        %v9857 = vadd.f32 %v9757, %v9825
        %v9858 = vadd.f32 %v9758, %v9826
        %v9859 = vadd.f32 %v9759, %v9827
        %v9860 = vadd.f32 %v9760, %v9828
        %v9861 = vadd.f32 %v9761, %v9829
        %v9862 = vadd.f32 %v9762, %v9830
        %v9863 = vadd.f32 %v9763, %v9831
        %v9864 = vadd.f32 %v9764, %v9832
        %v9865 = vadd.f32 %v9765, %v9833
        %v9866 = vadd.f32 %v9766, %v9834
        %v9867 = vadd.f32 %v9767, %v9835
        %v9868 = vadd.f32 %v9768, %v9836
        %v9869 = vadd.f32 %v9769, %v9837
        %v9870 = vadd.f32 %v9770, %v9838
        %v9871 = vadd.f32 %v9771, %v9839
        %v9872 = vadd.f32 %v9772, %v9840
        %v9873 = vadd.f32 %v9773, %v9841
        %v9874 = vadd.f32 %v9774, %v9842
        %v9875 = vadd.f32 %v9775, %v9843
        %v9876 = vadd.f32 %v9776, %v9844
        %v9877 = vadd.f32 %v9777, %v9845
        %v9878 = vadd.f32 %v9778, %v9846
        %v9879 = vadd.f32 %v9779, %v9847
        %v9880 = vadd.f32 %v9780, %v9848
        %v9881 = vadd.f32 %v9781, %v9849
        %v9882 = vadd.f32 %v9782, %v9850
        %v9883 = vadd.f32 %v9783, %v9851
        %v9884 = vadd.f32 %v9784, %v9852
        %v9885 = vadd.f32 %v9785, %v9853
        %v9886 = vadd.f32 %v9786, %v9854
        %s9887 = scalar_lea.vmem [#allocation4], 48
        %v9888 = vld [vmem:[%s9887] sm:$0xff]
        %v9889 = vld [vmem:[%s9887 + $0x8] sm:$0xff]
        %v9890 = vld [vmem:[%s9887 + $0x18] sm:$0xff]
        %v9891 = vld [vmem:[%s9887 + $0x20] sm:$0xff]
        %v9892 = vld [vmem:[%s9887 + $0x30] sm:$0xff]
        %v9893 = vld [vmem:[%s9887 + $0x38] sm:$0xff]
        %v9894 = vld [vmem:[%s9887 + $0x48] sm:$0xff]
        %v9895 = vld [vmem:[%s9887 + $0x50] sm:$0xff]
        %v9896 = vld [vmem:[%s9887 + $0x60] sm:$0xff]
        %v9897 = vld [vmem:[%s9887 + $0x68] sm:$0xff]
        %v9898 = vld [vmem:[%s9887 + $0x78] sm:$0xff]
        %v9899 = vld [vmem:[%s9887 + $0x80] sm:$0xff]
        %v9900 = vld [vmem:[%s9887 + $0x90] sm:$0xff]
        %v9901 = vld [vmem:[%s9887 + $0x98] sm:$0xff]
        %v9902 = vld [vmem:[%s9887 + $0xa8] sm:$0xff]
        %v9903 = vld [vmem:[%s9887 + $0xb0] sm:$0xff]
        %v9904 = vld [vmem:[%s9887 + $0xc0] sm:$0xff]
        %v9905 = vld [vmem:[%s9887 + $0xc8] sm:$0xff]
        %v9906 = vld [vmem:[%s9887 + $0xd8] sm:$0xff]
        %v9907 = vld [vmem:[%s9887 + $0xe0] sm:$0xff]
        %v9908 = vld [vmem:[%s9887 + $0xf0] sm:$0xff]
        %v9909 = vld [vmem:[%s9887 + $0xf8] sm:$0xff]
        %v9910 = vld [vmem:[%s9887 + $0x108] sm:$0xff]
        %v9911 = vld [vmem:[%s9887 + $0x110] sm:$0xff]
        %v9912 = vld [vmem:[%s9887 + $0x120] sm:$0xff]
        %v9913 = vld [vmem:[%s9887 + $0x128] sm:$0xff]
        %v9914 = vld [vmem:[%s9887 + $0x138] sm:$0xff]
        %v9915 = vld [vmem:[%s9887 + $0x140] sm:$0xff]
        %v9916 = vld [vmem:[%s9887 + $0x150] sm:$0xff]
        %v9917 = vld [vmem:[%s9887 + $0x158] sm:$0xff]
        %v9918 = vld [vmem:[%s9887 + $0x168] sm:$0xff]
        %v9919 = vld [vmem:[%s9887 + $0x170] sm:$0xff]
        %v9920 = vlaneseq
        %v9921 = vshrl.u32 %v9920, 7
        %v9922 = vsub.s32 6, %v9921
        %v9923 = vrot.slane %v9285, %v9922
        %v9924 = vmul.f32 %v9888, %v9923
        %v9925 = vmul.f32 %v9889, %v9923
        %v9926 = vmul.f32 %v9890, %v9923
        %v9927 = vmul.f32 %v9891, %v9923
        %v9928 = vmul.f32 %v9892, %v9923
        %v9929 = vmul.f32 %v9893, %v9923
        %v9930 = vmul.f32 %v9894, %v9923
        %v9931 = vmul.f32 %v9895, %v9923
        %v9932 = vmul.f32 %v9896, %v9923
        %v9933 = vmul.f32 %v9897, %v9923
        %v9934 = vmul.f32 %v9898, %v9923
        %v9935 = vmul.f32 %v9899, %v9923
        %v9936 = vmul.f32 %v9900, %v9923
        %v9937 = vmul.f32 %v9901, %v9923
        %v9938 = vmul.f32 %v9902, %v9923
        %v9939 = vmul.f32 %v9903, %v9923
        %v9940 = vmul.f32 %v9904, %v9923
        %v9941 = vmul.f32 %v9905, %v9923
        %v9942 = vmul.f32 %v9906, %v9923
        %v9943 = vmul.f32 %v9907, %v9923
        %v9944 = vmul.f32 %v9908, %v9923
        %v9945 = vmul.f32 %v9909, %v9923
        %v9946 = vmul.f32 %v9910, %v9923
        %v9947 = vmul.f32 %v9911, %v9923
        %v9948 = vmul.f32 %v9912, %v9923
        %v9949 = vmul.f32 %v9913, %v9923
        %v9950 = vmul.f32 %v9914, %v9923
        %v9951 = vmul.f32 %v9915, %v9923
        %v9952 = vmul.f32 %v9916, %v9923
        %v9953 = vmul.f32 %v9917, %v9923
        %v9954 = vmul.f32 %v9918, %v9923
        %v9955 = vmul.f32 %v9919, %v9923
        %v9956 = vadd.f32 %v9855, %v9924
        %v9957 = vadd.f32 %v9856, %v9925
        %v9958 = vadd.f32 %v9857, %v9926
        %v9959 = vadd.f32 %v9858, %v9927
        %v9960 = vadd.f32 %v9859, %v9928
        %v9961 = vadd.f32 %v9860, %v9929
        %v9962 = vadd.f32 %v9861, %v9930
        %v9963 = vadd.f32 %v9862, %v9931
        %v9964 = vadd.f32 %v9863, %v9932
        %v9965 = vadd.f32 %v9864, %v9933
        %v9966 = vadd.f32 %v9865, %v9934
        %v9967 = vadd.f32 %v9866, %v9935
        %v9968 = vadd.f32 %v9867, %v9936
        %v9969 = vadd.f32 %v9868, %v9937
        %v9970 = vadd.f32 %v9869, %v9938
        %v9971 = vadd.f32 %v9870, %v9939
        %v9972 = vadd.f32 %v9871, %v9940
        %v9973 = vadd.f32 %v9872, %v9941
        %v9974 = vadd.f32 %v9873, %v9942
        %v9975 = vadd.f32 %v9874, %v9943
        %v9976 = vadd.f32 %v9875, %v9944
        %v9977 = vadd.f32 %v9876, %v9945
        %v9978 = vadd.f32 %v9877, %v9946
        %v9979 = vadd.f32 %v9878, %v9947
        %v9980 = vadd.f32 %v9879, %v9948
        %v9981 = vadd.f32 %v9880, %v9949
        %v9982 = vadd.f32 %v9881, %v9950
        %v9983 = vadd.f32 %v9882, %v9951
        %v9984 = vadd.f32 %v9883, %v9952
        %v9985 = vadd.f32 %v9884, %v9953
        %v9986 = vadd.f32 %v9885, %v9954
        %v9987 = vadd.f32 %v9886, %v9955
        %v9988 = vld [vmem:[%s9887 + $0x1] sm:$0xff]
        %v9989 = vld [vmem:[%s9887 + $0x9] sm:$0xff]
        %v9990 = vld [vmem:[%s9887 + $0x19] sm:$0xff]
        %v9991 = vld [vmem:[%s9887 + $0x21] sm:$0xff]
        %v9992 = vld [vmem:[%s9887 + $0x31] sm:$0xff]
        %v9993 = vld [vmem:[%s9887 + $0x39] sm:$0xff]
        %v9994 = vld [vmem:[%s9887 + $0x49] sm:$0xff]
        %v9995 = vld [vmem:[%s9887 + $0x51] sm:$0xff]
        %v9996 = vld [vmem:[%s9887 + $0x61] sm:$0xff]
        %v9997 = vld [vmem:[%s9887 + $0x69] sm:$0xff]
        %v9998 = vld [vmem:[%s9887 + $0x79] sm:$0xff]
        %v9999 = vld [vmem:[%s9887 + $0x81] sm:$0xff]
        %v10000 = vld [vmem:[%s9887 + $0x91] sm:$0xff]
        %v10001 = vld [vmem:[%s9887 + $0x99] sm:$0xff]
        %v10002 = vld [vmem:[%s9887 + $0xa9] sm:$0xff]
        %v10003 = vld [vmem:[%s9887 + $0xb1] sm:$0xff]
        %v10004 = vld [vmem:[%s9887 + $0xc1] sm:$0xff]
        %v10005 = vld [vmem:[%s9887 + $0xc9] sm:$0xff]
        %v10006 = vld [vmem:[%s9887 + $0xd9] sm:$0xff]
        %v10007 = vld [vmem:[%s9887 + $0xe1] sm:$0xff]
        %v10008 = vld [vmem:[%s9887 + $0xf1] sm:$0xff]
        %v10009 = vld [vmem:[%s9887 + $0xf9] sm:$0xff]
        %v10010 = vld [vmem:[%s9887 + $0x109] sm:$0xff]
        %v10011 = vld [vmem:[%s9887 + $0x111] sm:$0xff]
        %v10012 = vld [vmem:[%s9887 + $0x121] sm:$0xff]
        %v10013 = vld [vmem:[%s9887 + $0x129] sm:$0xff]
        %v10014 = vld [vmem:[%s9887 + $0x139] sm:$0xff]
        %v10015 = vld [vmem:[%s9887 + $0x141] sm:$0xff]
        %v10016 = vld [vmem:[%s9887 + $0x151] sm:$0xff]
        %v10017 = vld [vmem:[%s9887 + $0x159] sm:$0xff]
        %v10018 = vld [vmem:[%s9887 + $0x169] sm:$0xff]
        %v10019 = vld [vmem:[%s9887 + $0x171] sm:$0xff]
        %v10020 = vlaneseq
        %v10021 = vshrl.u32 %v10020, 7
        %v10022 = vsub.s32 7, %v10021
        %v10023 = vrot.slane %v9285, %v10022
        %v10024 = vmul.f32 %v9988, %v10023
        %v10025 = vmul.f32 %v9989, %v10023
        %v10026 = vmul.f32 %v9990, %v10023
        %v10027 = vmul.f32 %v9991, %v10023
        %v10028 = vmul.f32 %v9992, %v10023
        %v10029 = vmul.f32 %v9993, %v10023
        %v10030 = vmul.f32 %v9994, %v10023
        %v10031 = vmul.f32 %v9995, %v10023
        %v10032 = vmul.f32 %v9996, %v10023
        %v10033 = vmul.f32 %v9997, %v10023
        %v10034 = vmul.f32 %v9998, %v10023
        %v10035 = vmul.f32 %v9999, %v10023
        %v10036 = vmul.f32 %v10000, %v10023
        %v10037 = vmul.f32 %v10001, %v10023
        %v10038 = vmul.f32 %v10002, %v10023
        %v10039 = vmul.f32 %v10003, %v10023
        %v10040 = vmul.f32 %v10004, %v10023
        %v10041 = vmul.f32 %v10005, %v10023
        %v10042 = vmul.f32 %v10006, %v10023
        %v10043 = vmul.f32 %v10007, %v10023
        %v10044 = vmul.f32 %v10008, %v10023
        %v10045 = vmul.f32 %v10009, %v10023
        %v10046 = vmul.f32 %v10010, %v10023
        %v10047 = vmul.f32 %v10011, %v10023
        %v10048 = vmul.f32 %v10012, %v10023
        %v10049 = vmul.f32 %v10013, %v10023
        %v10050 = vmul.f32 %v10014, %v10023
        %v10051 = vmul.f32 %v10015, %v10023
        %v10052 = vmul.f32 %v10016, %v10023
        %v10053 = vmul.f32 %v10017, %v10023
        %v10054 = vmul.f32 %v10018, %v10023
        %v10055 = vmul.f32 %v10019, %v10023
        %v10056 = vadd.f32 %v9956, %v10024
        %v10057 = vadd.f32 %v9957, %v10025
        %v10058 = vadd.f32 %v9958, %v10026
        %v10059 = vadd.f32 %v9959, %v10027
        %v10060 = vadd.f32 %v9960, %v10028
        %v10061 = vadd.f32 %v9961, %v10029
        %v10062 = vadd.f32 %v9962, %v10030
        %v10063 = vadd.f32 %v9963, %v10031
        %v10064 = vadd.f32 %v9964, %v10032
        %v10065 = vadd.f32 %v9965, %v10033
        %v10066 = vadd.f32 %v9966, %v10034
        %v10067 = vadd.f32 %v9967, %v10035
        %v10068 = vadd.f32 %v9968, %v10036
        %v10069 = vadd.f32 %v9969, %v10037
        %v10070 = vadd.f32 %v9970, %v10038
        %v10071 = vadd.f32 %v9971, %v10039
        %v10072 = vadd.f32 %v9972, %v10040
        %v10073 = vadd.f32 %v9973, %v10041
        %v10074 = vadd.f32 %v9974, %v10042
        %v10075 = vadd.f32 %v9975, %v10043
        %v10076 = vadd.f32 %v9976, %v10044
        %v10077 = vadd.f32 %v9977, %v10045
        %v10078 = vadd.f32 %v9978, %v10046
        %v10079 = vadd.f32 %v9979, %v10047
        %v10080 = vadd.f32 %v9980, %v10048
        %v10081 = vadd.f32 %v9981, %v10049
        %v10082 = vadd.f32 %v9982, %v10050
        %v10083 = vadd.f32 %v9983, %v10051
        %v10084 = vadd.f32 %v9984, %v10052
        %v10085 = vadd.f32 %v9985, %v10053
        %v10086 = vadd.f32 %v9986, %v10054
        %v10087 = vadd.f32 %v9987, %v10055
        %v10088 = vld [vmem:[%s9887 + $0x2] sm:$0xff]
        %v10089 = vld [vmem:[%s9887 + $0xa] sm:$0xff]
        %v10090 = vld [vmem:[%s9887 + $0x1a] sm:$0xff]
        %v10091 = vld [vmem:[%s9887 + $0x22] sm:$0xff]
        %v10092 = vld [vmem:[%s9887 + $0x32] sm:$0xff]
        %v10093 = vld [vmem:[%s9887 + $0x3a] sm:$0xff]
        %v10094 = vld [vmem:[%s9887 + $0x4a] sm:$0xff]
        %v10095 = vld [vmem:[%s9887 + $0x52] sm:$0xff]
        %v10096 = vld [vmem:[%s9887 + $0x62] sm:$0xff]
        %v10097 = vld [vmem:[%s9887 + $0x6a] sm:$0xff]
        %v10098 = vld [vmem:[%s9887 + $0x7a] sm:$0xff]
        %v10099 = vld [vmem:[%s9887 + $0x82] sm:$0xff]
        %v10100 = vld [vmem:[%s9887 + $0x92] sm:$0xff]
        %v10101 = vld [vmem:[%s9887 + $0x9a] sm:$0xff]
        %v10102 = vld [vmem:[%s9887 + $0xaa] sm:$0xff]
        %v10103 = vld [vmem:[%s9887 + $0xb2] sm:$0xff]
        %v10104 = vld [vmem:[%s9887 + $0xc2] sm:$0xff]
        %v10105 = vld [vmem:[%s9887 + $0xca] sm:$0xff]
        %v10106 = vld [vmem:[%s9887 + $0xda] sm:$0xff]
        %v10107 = vld [vmem:[%s9887 + $0xe2] sm:$0xff]
        %v10108 = vld [vmem:[%s9887 + $0xf2] sm:$0xff]
        %v10109 = vld [vmem:[%s9887 + $0xfa] sm:$0xff]
        %v10110 = vld [vmem:[%s9887 + $0x10a] sm:$0xff]
        %v10111 = vld [vmem:[%s9887 + $0x112] sm:$0xff]
        %v10112 = vld [vmem:[%s9887 + $0x122] sm:$0xff]
        %v10113 = vld [vmem:[%s9887 + $0x12a] sm:$0xff]
        %v10114 = vld [vmem:[%s9887 + $0x13a] sm:$0xff]
        %v10115 = vld [vmem:[%s9887 + $0x142] sm:$0xff]
        %v10116 = vld [vmem:[%s9887 + $0x152] sm:$0xff]
        %v10117 = vld [vmem:[%s9887 + $0x15a] sm:$0xff]
        %v10118 = vld [vmem:[%s9887 + $0x16a] sm:$0xff]
        %v10119 = vld [vmem:[%s9887 + $0x172] sm:$0xff]
        %v10120 = vlaneseq
        %v10121 = vshrl.u32 %v10120, 7
        %v10122 = vsub.s32 0, %v10121
        %v10123 = vrot.slane %v9286, %v10122
        %v10124 = vmul.f32 %v10088, %v10123
        %v10125 = vmul.f32 %v10089, %v10123
        %v10126 = vmul.f32 %v10090, %v10123
        %v10127 = vmul.f32 %v10091, %v10123
        %v10128 = vmul.f32 %v10092, %v10123
        %v10129 = vmul.f32 %v10093, %v10123
        %v10130 = vmul.f32 %v10094, %v10123
        %v10131 = vmul.f32 %v10095, %v10123
        %v10132 = vmul.f32 %v10096, %v10123
        %v10133 = vmul.f32 %v10097, %v10123
        %v10134 = vmul.f32 %v10098, %v10123
        %v10135 = vmul.f32 %v10099, %v10123
        %v10136 = vmul.f32 %v10100, %v10123
        %v10137 = vmul.f32 %v10101, %v10123
        %v10138 = vmul.f32 %v10102, %v10123
        %v10139 = vmul.f32 %v10103, %v10123
        %v10140 = vmul.f32 %v10104, %v10123
        %v10141 = vmul.f32 %v10105, %v10123
        %v10142 = vmul.f32 %v10106, %v10123
        %v10143 = vmul.f32 %v10107, %v10123
        %v10144 = vmul.f32 %v10108, %v10123
        %v10145 = vmul.f32 %v10109, %v10123
        %v10146 = vmul.f32 %v10110, %v10123
        %v10147 = vmul.f32 %v10111, %v10123
        %v10148 = vmul.f32 %v10112, %v10123
        %v10149 = vmul.f32 %v10113, %v10123
        %v10150 = vmul.f32 %v10114, %v10123
        %v10151 = vmul.f32 %v10115, %v10123
        %v10152 = vmul.f32 %v10116, %v10123
        %v10153 = vmul.f32 %v10117, %v10123
        %v10154 = vmul.f32 %v10118, %v10123
        %v10155 = vmul.f32 %v10119, %v10123
        %v10156 = vadd.f32 %v10056, %v10124
        %v10157 = vadd.f32 %v10057, %v10125
        %v10158 = vadd.f32 %v10058, %v10126
        %v10159 = vadd.f32 %v10059, %v10127
        %v10160 = vadd.f32 %v10060, %v10128
        %v10161 = vadd.f32 %v10061, %v10129
        %v10162 = vadd.f32 %v10062, %v10130
        %v10163 = vadd.f32 %v10063, %v10131
        %v10164 = vadd.f32 %v10064, %v10132
        %v10165 = vadd.f32 %v10065, %v10133
        %v10166 = vadd.f32 %v10066, %v10134
        %v10167 = vadd.f32 %v10067, %v10135
        %v10168 = vadd.f32 %v10068, %v10136
        %v10169 = vadd.f32 %v10069, %v10137
        %v10170 = vadd.f32 %v10070, %v10138
        %v10171 = vadd.f32 %v10071, %v10139
        %v10172 = vadd.f32 %v10072, %v10140
        %v10173 = vadd.f32 %v10073, %v10141
        %v10174 = vadd.f32 %v10074, %v10142
        %v10175 = vadd.f32 %v10075, %v10143
        %v10176 = vadd.f32 %v10076, %v10144
        %v10177 = vadd.f32 %v10077, %v10145
        %v10178 = vadd.f32 %v10078, %v10146
        %v10179 = vadd.f32 %v10079, %v10147
        %v10180 = vadd.f32 %v10080, %v10148
        %v10181 = vadd.f32 %v10081, %v10149
        %v10182 = vadd.f32 %v10082, %v10150
        %v10183 = vadd.f32 %v10083, %v10151
        %v10184 = vadd.f32 %v10084, %v10152
        %v10185 = vadd.f32 %v10085, %v10153
        %v10186 = vadd.f32 %v10086, %v10154
        %v10187 = vadd.f32 %v10087, %v10155
        %v10188 = vld [vmem:[#allocation16] sm:$0x1]
        %v10190 = vlaneseq
        %v10191 = vshrl.u32 %v10190, 7
        %v10192 = vsub.s32 0, %v10191
        %v10193 = vrot.slane %v10188, %v10192
        %v10195 = vadd.f32 %v6285, %v10193
        %v10196 = vadd.f32 %v6286, %v10193
        %v10197 = vadd.f32 %v6287, %v10193
        %v10198 = vadd.f32 %v6288, %v10193
        %v10199 = vadd.f32 %v6289, %v10193
        %v10200 = vadd.f32 %v6290, %v10193
        %v10201 = vadd.f32 %v6291, %v10193
        %v10202 = vadd.f32 %v6292, %v10193
        %v10203 = vadd.f32 %v6293, %v10193
        %v10204 = vadd.f32 %v6294, %v10193
        %v10205 = vadd.f32 %v6295, %v10193
        %v10206 = vadd.f32 %v6296, %v10193
        %v10207 = vadd.f32 %v6297, %v10193
        %v10208 = vadd.f32 %v6298, %v10193
        %v10209 = vadd.f32 %v6299, %v10193
        %v10210 = vadd.f32 %v6300, %v10193
        %v10211 = vadd.f32 %v6301, %v10193
        %v10212 = vadd.f32 %v6302, %v10193
        %v10213 = vadd.f32 %v6303, %v10193
        %v10214 = vadd.f32 %v6304, %v10193
        %v10215 = vadd.f32 %v6305, %v10193
        %v10216 = vadd.f32 %v6306, %v10193
        %v10217 = vadd.f32 %v6307, %v10193
        %v10218 = vadd.f32 %v6308, %v10193
        %v10219 = vadd.f32 %v6309, %v10193
        %v10220 = vadd.f32 %v6310, %v10193
        %v10221 = vadd.f32 %v6311, %v10193
        %v10222 = vadd.f32 %v6312, %v10193
        %v10223 = vadd.f32 %v6313, %v10193
        %v10224 = vadd.f32 %v6314, %v10193
        %v10225 = vadd.f32 %v6315, %v10193
        %v10226 = vadd.f32 %v6316, %v10193
        %v10227 = vadd.f32 %v10156, %v10195
        %v10228 = vadd.f32 %v10157, %v10196
        %v10229 = vadd.f32 %v10158, %v10197
        %v10230 = vadd.f32 %v10159, %v10198
        %v10231 = vadd.f32 %v10160, %v10199
        %v10232 = vadd.f32 %v10161, %v10200
        %v10233 = vadd.f32 %v10162, %v10201
        %v10234 = vadd.f32 %v10163, %v10202
        %v10235 = vadd.f32 %v10164, %v10203
        %v10236 = vadd.f32 %v10165, %v10204
        %v10237 = vadd.f32 %v10166, %v10205
        %v10238 = vadd.f32 %v10167, %v10206
        %v10239 = vadd.f32 %v10168, %v10207
        %v10240 = vadd.f32 %v10169, %v10208
        %v10241 = vadd.f32 %v10170, %v10209
        %v10242 = vadd.f32 %v10171, %v10210
        %v10243 = vadd.f32 %v10172, %v10211
        %v10244 = vadd.f32 %v10173, %v10212
        %v10245 = vadd.f32 %v10174, %v10213
        %v10246 = vadd.f32 %v10175, %v10214
        %v10247 = vadd.f32 %v10176, %v10215
        %v10248 = vadd.f32 %v10177, %v10216
        %v10249 = vadd.f32 %v10178, %v10217
        %v10250 = vadd.f32 %v10179, %v10218
        %v10251 = vadd.f32 %v10180, %v10219
        %v10252 = vadd.f32 %v10181, %v10220
        %v10253 = vadd.f32 %v10182, %v10221
        %v10254 = vadd.f32 %v10183, %v10222
        %v10255 = vadd.f32 %v10184, %v10223
        %v10256 = vadd.f32 %v10185, %v10224
        %v10257 = vadd.f32 %v10186, %v10225
        %v10258 = vadd.f32 %v10187, %v10226
        %v10259 = vld [vmem:[#allocation19] sm:$0x1]
        %v10261 = vlaneseq
        %v10262 = vshrl.u32 %v10261, 7
        %v10263 = vsub.s32 0, %v10262
        %v10264 = vrot.slane %v10259, %v10263
        %v10266 = vmul.f32 %v10227, %v10264
        %v10267 = vmul.f32 %v10228, %v10264
        %v10268 = vmul.f32 %v10229, %v10264
        %v10269 = vmul.f32 %v10230, %v10264
        %v10270 = vmul.f32 %v10231, %v10264
        %v10271 = vmul.f32 %v10232, %v10264
        %v10272 = vmul.f32 %v10233, %v10264
        %v10273 = vmul.f32 %v10234, %v10264
        %v10274 = vmul.f32 %v10235, %v10264
        %v10275 = vmul.f32 %v10236, %v10264
        %v10276 = vmul.f32 %v10237, %v10264
        %v10277 = vmul.f32 %v10238, %v10264
        %v10278 = vmul.f32 %v10239, %v10264
        %v10279 = vmul.f32 %v10240, %v10264
        %v10280 = vmul.f32 %v10241, %v10264
        %v10281 = vmul.f32 %v10242, %v10264
        %v10282 = vmul.f32 %v10243, %v10264
        %v10283 = vmul.f32 %v10244, %v10264
        %v10284 = vmul.f32 %v10245, %v10264
        %v10285 = vmul.f32 %v10246, %v10264
        %v10286 = vmul.f32 %v10247, %v10264
        %v10287 = vmul.f32 %v10248, %v10264
        %v10288 = vmul.f32 %v10249, %v10264
        %v10289 = vmul.f32 %v10250, %v10264
        %v10290 = vmul.f32 %v10251, %v10264
        %v10291 = vmul.f32 %v10252, %v10264
        %v10292 = vmul.f32 %v10253, %v10264
        %v10293 = vmul.f32 %v10254, %v10264
        %v10294 = vmul.f32 %v10255, %v10264
        %v10295 = vmul.f32 %v10256, %v10264
        %v10296 = vmul.f32 %v10257, %v10264
        %v10297 = vmul.f32 %v10258, %v10264
        %v10298 = vld [vmem:[#allocation20] sm:$0x1]
        %v10300 = vlaneseq
        %v10301 = vshrl.u32 %v10300, 7
        %v10302 = vsub.s32 0, %v10301
        %v10303 = vrot.slane %v10298, %v10302
        %v10305 = vadd.f32 %v10266, %v10303
        %v10306 = vadd.f32 %v10267, %v10303
        %v10307 = vadd.f32 %v10268, %v10303
        %v10308 = vadd.f32 %v10269, %v10303
        %v10309 = vadd.f32 %v10270, %v10303
        %v10310 = vadd.f32 %v10271, %v10303
        %v10311 = vadd.f32 %v10272, %v10303
        %v10312 = vadd.f32 %v10273, %v10303
        %v10313 = vadd.f32 %v10274, %v10303
        %v10314 = vadd.f32 %v10275, %v10303
        %v10315 = vadd.f32 %v10276, %v10303
        %v10316 = vadd.f32 %v10277, %v10303
        %v10317 = vadd.f32 %v10278, %v10303
        %v10318 = vadd.f32 %v10279, %v10303
        %v10319 = vadd.f32 %v10280, %v10303
        %v10320 = vadd.f32 %v10281, %v10303
        %v10321 = vadd.f32 %v10282, %v10303
        %v10322 = vadd.f32 %v10283, %v10303
        %v10323 = vadd.f32 %v10284, %v10303
        %v10324 = vadd.f32 %v10285, %v10303
        %v10325 = vadd.f32 %v10286, %v10303
        %v10326 = vadd.f32 %v10287, %v10303
        %v10327 = vadd.f32 %v10288, %v10303
        %v10328 = vadd.f32 %v10289, %v10303
        %v10329 = vadd.f32 %v10290, %v10303
        %v10330 = vadd.f32 %v10291, %v10303
        %v10331 = vadd.f32 %v10292, %v10303
        %v10332 = vadd.f32 %v10293, %v10303
        %v10333 = vadd.f32 %v10294, %v10303
        %v10334 = vadd.f32 %v10295, %v10303
        %v10335 = vadd.f32 %v10296, %v10303
        %v10336 = vadd.f32 %v10297, %v10303
        %v10337 = vcombine.low %v10305, %v10309
        %v10338 = vcombine.high %v10305, %v10309
        %v10340 = vunpack.c.l.s4 1983009808
        %v10341 = vunpack.c.0.s8 %v10340
        %v10342 = vlaneseq
        %v10343 = vshrl.u32 %v10342, 7
        %v10344 = vsub.s32 %v10341, %v10343
        %v10345 = vrot.slane %v10337, %v10344
        %v10347 = vunpack.c.l.s4 1983009808
        %v10348 = vunpack.c.0.s8 %v10347
        %v10349 = vlaneseq
        %v10350 = vshrl.u32 %v10349, 7
        %v10351 = vsub.s32 %v10348, %v10350
        %v10352 = vrot.slane %v10338, %v10351
        %v10353 = vcombine.low %v10307, %v10311
        %v10354 = vcombine.high %v10307, %v10311
        %v10356 = vunpack.c.l.s4 1983009808
        %v10357 = vunpack.c.0.s8 %v10356
        %v10358 = vlaneseq
        %v10359 = vshrl.u32 %v10358, 7
        %v10360 = vsub.s32 %v10357, %v10359
        %v10361 = vrot.slane %v10353, %v10360
        %v10363 = vunpack.c.l.s4 1983009808
        %v10364 = vunpack.c.0.s8 %v10363
        %v10365 = vlaneseq
        %v10366 = vshrl.u32 %v10365, 7
        %v10367 = vsub.s32 %v10364, %v10366
        %v10368 = vrot.slane %v10354, %v10367
        %v10369 = vcombine.low %v10313, %v10317
        %v10370 = vcombine.high %v10313, %v10317
        %v10372 = vunpack.c.l.s4 1983009808
        %v10373 = vunpack.c.0.s8 %v10372
        %v10374 = vlaneseq
        %v10375 = vshrl.u32 %v10374, 7
        %v10376 = vsub.s32 %v10373, %v10375
        %v10377 = vrot.slane %v10369, %v10376
        %v10379 = vunpack.c.l.s4 1983009808
        %v10380 = vunpack.c.0.s8 %v10379
        %v10381 = vlaneseq
        %v10382 = vshrl.u32 %v10381, 7
        %v10383 = vsub.s32 %v10380, %v10382
        %v10384 = vrot.slane %v10370, %v10383
        %v10385 = vcombine.low %v10315, %v10319
        %v10386 = vcombine.high %v10315, %v10319
        %v10388 = vunpack.c.l.s4 1983009808
        %v10389 = vunpack.c.0.s8 %v10388
        %v10390 = vlaneseq
        %v10391 = vshrl.u32 %v10390, 7
        %v10392 = vsub.s32 %v10389, %v10391
        %v10393 = vrot.slane %v10385, %v10392
        %v10395 = vunpack.c.l.s4 1983009808
        %v10396 = vunpack.c.0.s8 %v10395
        %v10397 = vlaneseq
        %v10398 = vshrl.u32 %v10397, 7
        %v10399 = vsub.s32 %v10396, %v10398
        %v10400 = vrot.slane %v10386, %v10399
        %v10401 = vcombine.low %v10345, %v10361
        %v10402 = vcombine.high %v10345, %v10361
        %v10404 = vunpack.c.l.s4 1934713408
        %v10405 = vunpack.c.0.s8 %v10404
        %v10406 = vlaneseq
        %v10407 = vshrl.u32 %v10406, 7
        %v10408 = vsub.s32 %v10405, %v10407
        %v10409 = vrot.slane %v10401, %v10408
        %v10411 = vunpack.c.l.s4 1934713408
        %v10412 = vunpack.c.0.s8 %v10411
        %v10413 = vlaneseq
        %v10414 = vshrl.u32 %v10413, 7
        %v10415 = vsub.s32 %v10412, %v10414
        %v10416 = vrot.slane %v10402, %v10415
        %v10417 = vcombine.low %v10352, %v10368
        %v10418 = vcombine.high %v10352, %v10368
        %v10420 = vunpack.c.l.s4 1934713408
        %v10421 = vunpack.c.0.s8 %v10420
        %v10422 = vlaneseq
        %v10423 = vshrl.u32 %v10422, 7
        %v10424 = vsub.s32 %v10421, %v10423
        %v10425 = vrot.slane %v10417, %v10424
        %v10427 = vunpack.c.l.s4 1934713408
        %v10428 = vunpack.c.0.s8 %v10427
        %v10429 = vlaneseq
        %v10430 = vshrl.u32 %v10429, 7
        %v10431 = vsub.s32 %v10428, %v10430
        %v10432 = vrot.slane %v10418, %v10431
        %v10433 = vcombine.low %v10377, %v10393
        %v10434 = vcombine.high %v10377, %v10393
        %v10436 = vunpack.c.l.s4 1934713408
        %v10437 = vunpack.c.0.s8 %v10436
        %v10438 = vlaneseq
        %v10439 = vshrl.u32 %v10438, 7
        %v10440 = vsub.s32 %v10437, %v10439
        %v10441 = vrot.slane %v10433, %v10440
        %v10443 = vunpack.c.l.s4 1934713408
        %v10444 = vunpack.c.0.s8 %v10443
        %v10445 = vlaneseq
        %v10446 = vshrl.u32 %v10445, 7
        %v10447 = vsub.s32 %v10444, %v10446
        %v10448 = vrot.slane %v10434, %v10447
        %v10449 = vcombine.low %v10384, %v10400
        %v10450 = vcombine.high %v10384, %v10400
        %v10452 = vunpack.c.l.s4 1934713408
        %v10453 = vunpack.c.0.s8 %v10452
        %v10454 = vlaneseq
        %v10455 = vshrl.u32 %v10454, 7
        %v10456 = vsub.s32 %v10453, %v10455
        %v10457 = vrot.slane %v10449, %v10456
        %v10459 = vunpack.c.l.s4 1934713408
        %v10460 = vunpack.c.0.s8 %v10459
        %v10461 = vlaneseq
        %v10462 = vshrl.u32 %v10461, 7
        %v10463 = vsub.s32 %v10460, %v10462
        %v10464 = vrot.slane %v10450, %v10463
        %v10465 = vcombine.low %v10409, %v10441
        %v10466 = vcombine.high %v10409, %v10441
        %v10467 = vcombine.low %v10416, %v10448
        %v10468 = vcombine.high %v10416, %v10448
        %v10469 = vcombine.low %v10425, %v10457
        %v10470 = vcombine.high %v10425, %v10457
        %v10471 = vcombine.low %v10432, %v10464
        %v10472 = vcombine.high %v10432, %v10464
        %v10473 = vcombine.low %v10321, %v10325
        %v10474 = vcombine.high %v10321, %v10325
        %v10476 = vunpack.c.l.s4 1983009808
        %v10477 = vunpack.c.0.s8 %v10476
        %v10478 = vlaneseq
        %v10479 = vshrl.u32 %v10478, 7
        %v10480 = vsub.s32 %v10477, %v10479
        %v10481 = vrot.slane %v10473, %v10480
        %v10483 = vunpack.c.l.s4 1983009808
        %v10484 = vunpack.c.0.s8 %v10483
        %v10485 = vlaneseq
        %v10486 = vshrl.u32 %v10485, 7
        %v10487 = vsub.s32 %v10484, %v10486
        %v10488 = vrot.slane %v10474, %v10487
        %v10489 = vcombine.low %v10323, %v10327
        %v10490 = vcombine.high %v10323, %v10327
        %v10492 = vunpack.c.l.s4 1983009808
        %v10493 = vunpack.c.0.s8 %v10492
        %v10494 = vlaneseq
        %v10495 = vshrl.u32 %v10494, 7
        %v10496 = vsub.s32 %v10493, %v10495
        %v10497 = vrot.slane %v10489, %v10496
        %v10499 = vunpack.c.l.s4 1983009808
        %v10500 = vunpack.c.0.s8 %v10499
        %v10501 = vlaneseq
        %v10502 = vshrl.u32 %v10501, 7
        %v10503 = vsub.s32 %v10500, %v10502
        %v10504 = vrot.slane %v10490, %v10503
        %v10505 = vcombine.low %v10329, %v10333
        %v10506 = vcombine.high %v10329, %v10333
        %v10508 = vunpack.c.l.s4 1983009808
        %v10509 = vunpack.c.0.s8 %v10508
        %v10510 = vlaneseq
        %v10511 = vshrl.u32 %v10510, 7
        %v10512 = vsub.s32 %v10509, %v10511
        %v10513 = vrot.slane %v10505, %v10512
        %v10515 = vunpack.c.l.s4 1983009808
        %v10516 = vunpack.c.0.s8 %v10515
        %v10517 = vlaneseq
        %v10518 = vshrl.u32 %v10517, 7
        %v10519 = vsub.s32 %v10516, %v10518
        %v10520 = vrot.slane %v10506, %v10519
        %v10521 = vcombine.low %v10331, %v10335
        %v10522 = vcombine.high %v10331, %v10335
        %v10524 = vunpack.c.l.s4 1983009808
        %v10525 = vunpack.c.0.s8 %v10524
        %v10526 = vlaneseq
        %v10527 = vshrl.u32 %v10526, 7
        %v10528 = vsub.s32 %v10525, %v10527
        %v10529 = vrot.slane %v10521, %v10528
        %v10531 = vunpack.c.l.s4 1983009808
        %v10532 = vunpack.c.0.s8 %v10531
        %v10533 = vlaneseq
        %v10534 = vshrl.u32 %v10533, 7
        %v10535 = vsub.s32 %v10532, %v10534
        %v10536 = vrot.slane %v10522, %v10535
        %v10537 = vcombine.low %v10481, %v10497
        %v10538 = vcombine.high %v10481, %v10497
        %v10540 = vunpack.c.l.s4 1934713408
        %v10541 = vunpack.c.0.s8 %v10540
        %v10542 = vlaneseq
        %v10543 = vshrl.u32 %v10542, 7
        %v10544 = vsub.s32 %v10541, %v10543
        %v10545 = vrot.slane %v10537, %v10544
        %v10547 = vunpack.c.l.s4 1934713408
        %v10548 = vunpack.c.0.s8 %v10547
        %v10549 = vlaneseq
        %v10550 = vshrl.u32 %v10549, 7
        %v10551 = vsub.s32 %v10548, %v10550
        %v10552 = vrot.slane %v10538, %v10551
        %v10553 = vcombine.low %v10488, %v10504
        %v10554 = vcombine.high %v10488, %v10504
        %v10556 = vunpack.c.l.s4 1934713408
        %v10557 = vunpack.c.0.s8 %v10556
        %v10558 = vlaneseq
        %v10559 = vshrl.u32 %v10558, 7
        %v10560 = vsub.s32 %v10557, %v10559
        %v10561 = vrot.slane %v10553, %v10560
        %v10563 = vunpack.c.l.s4 1934713408
        %v10564 = vunpack.c.0.s8 %v10563
        %v10565 = vlaneseq
        %v10566 = vshrl.u32 %v10565, 7
        %v10567 = vsub.s32 %v10564, %v10566
        %v10568 = vrot.slane %v10554, %v10567
        %v10569 = vcombine.low %v10513, %v10529
        %v10570 = vcombine.high %v10513, %v10529
        %v10572 = vunpack.c.l.s4 1934713408
        %v10573 = vunpack.c.0.s8 %v10572
        %v10574 = vlaneseq
        %v10575 = vshrl.u32 %v10574, 7
        %v10576 = vsub.s32 %v10573, %v10575
        %v10577 = vrot.slane %v10569, %v10576
        %v10579 = vunpack.c.l.s4 1934713408
        %v10580 = vunpack.c.0.s8 %v10579
        %v10581 = vlaneseq
        %v10582 = vshrl.u32 %v10581, 7
        %v10583 = vsub.s32 %v10580, %v10582
        %v10584 = vrot.slane %v10570, %v10583
        %v10585 = vcombine.low %v10520, %v10536
        %v10586 = vcombine.high %v10520, %v10536
        %v10588 = vunpack.c.l.s4 1934713408
        %v10589 = vunpack.c.0.s8 %v10588
        %v10590 = vlaneseq
        %v10591 = vshrl.u32 %v10590, 7
        %v10592 = vsub.s32 %v10589, %v10591
        %v10593 = vrot.slane %v10585, %v10592
        %v10595 = vunpack.c.l.s4 1934713408
        %v10596 = vunpack.c.0.s8 %v10595
        %v10597 = vlaneseq
        %v10598 = vshrl.u32 %v10597, 7
        %v10599 = vsub.s32 %v10596, %v10598
        %v10600 = vrot.slane %v10586, %v10599
        %v10601 = vcombine.low %v10545, %v10577
        %v10602 = vcombine.high %v10545, %v10577
        %v10603 = vcombine.low %v10552, %v10584
        %v10604 = vcombine.high %v10552, %v10584
        %v10605 = vcombine.low %v10561, %v10593
        %v10606 = vcombine.high %v10561, %v10593
        %v10607 = vcombine.low %v10568, %v10600
        %v10608 = vcombine.high %v10568, %v10600
        %v10609 = vcombine.low %v10306, %v10310
        %v10610 = vcombine.high %v10306, %v10310
        %v10612 = vunpack.c.l.s4 1983009808
        %v10613 = vunpack.c.0.s8 %v10612
        %v10614 = vlaneseq
        %v10615 = vshrl.u32 %v10614, 7
        %v10616 = vsub.s32 %v10613, %v10615
        %v10617 = vrot.slane %v10609, %v10616
        %v10619 = vunpack.c.l.s4 1983009808
        %v10620 = vunpack.c.0.s8 %v10619
        %v10621 = vlaneseq
        %v10622 = vshrl.u32 %v10621, 7
        %v10623 = vsub.s32 %v10620, %v10622
        %v10624 = vrot.slane %v10610, %v10623
        %v10625 = vcombine.low %v10308, %v10312
        %v10626 = vcombine.high %v10308, %v10312
        %v10628 = vunpack.c.l.s4 1983009808
        %v10629 = vunpack.c.0.s8 %v10628
        %v10630 = vlaneseq
        %v10631 = vshrl.u32 %v10630, 7
        %v10632 = vsub.s32 %v10629, %v10631
        %v10633 = vrot.slane %v10625, %v10632
        %v10635 = vunpack.c.l.s4 1983009808
        %v10636 = vunpack.c.0.s8 %v10635
        %v10637 = vlaneseq
        %v10638 = vshrl.u32 %v10637, 7
        %v10639 = vsub.s32 %v10636, %v10638
        %v10640 = vrot.slane %v10626, %v10639
        %v10641 = vcombine.low %v10314, %v10318
        %v10642 = vcombine.high %v10314, %v10318
        %v10644 = vunpack.c.l.s4 1983009808
        %v10645 = vunpack.c.0.s8 %v10644
        %v10646 = vlaneseq
        %v10647 = vshrl.u32 %v10646, 7
        %v10648 = vsub.s32 %v10645, %v10647
        %v10649 = vrot.slane %v10641, %v10648
        %v10651 = vunpack.c.l.s4 1983009808
        %v10652 = vunpack.c.0.s8 %v10651
        %v10653 = vlaneseq
        %v10654 = vshrl.u32 %v10653, 7
        %v10655 = vsub.s32 %v10652, %v10654
        %v10656 = vrot.slane %v10642, %v10655
        %v10657 = vcombine.low %v10316, %v10320
        %v10658 = vcombine.high %v10316, %v10320
        %v10660 = vunpack.c.l.s4 1983009808
        %v10661 = vunpack.c.0.s8 %v10660
        %v10662 = vlaneseq
        %v10663 = vshrl.u32 %v10662, 7
        %v10664 = vsub.s32 %v10661, %v10663
        %v10665 = vrot.slane %v10657, %v10664
        %v10667 = vunpack.c.l.s4 1983009808
        %v10668 = vunpack.c.0.s8 %v10667
        %v10669 = vlaneseq
        %v10670 = vshrl.u32 %v10669, 7
        %v10671 = vsub.s32 %v10668, %v10670
        %v10672 = vrot.slane %v10658, %v10671
        %v10673 = vcombine.low %v10617, %v10633
        %v10674 = vcombine.high %v10617, %v10633
        %v10676 = vunpack.c.l.s4 1934713408
        %v10677 = vunpack.c.0.s8 %v10676
        %v10678 = vlaneseq
        %v10679 = vshrl.u32 %v10678, 7
        %v10680 = vsub.s32 %v10677, %v10679
        %v10681 = vrot.slane %v10673, %v10680
        %v10683 = vunpack.c.l.s4 1934713408
        %v10684 = vunpack.c.0.s8 %v10683
        %v10685 = vlaneseq
        %v10686 = vshrl.u32 %v10685, 7
        %v10687 = vsub.s32 %v10684, %v10686
        %v10688 = vrot.slane %v10674, %v10687
        %v10689 = vcombine.low %v10624, %v10640
        %v10690 = vcombine.high %v10624, %v10640
        %v10692 = vunpack.c.l.s4 1934713408
        %v10693 = vunpack.c.0.s8 %v10692
        %v10694 = vlaneseq
        %v10695 = vshrl.u32 %v10694, 7
        %v10696 = vsub.s32 %v10693, %v10695
        %v10697 = vrot.slane %v10689, %v10696
        %v10699 = vunpack.c.l.s4 1934713408
        %v10700 = vunpack.c.0.s8 %v10699
        %v10701 = vlaneseq
        %v10702 = vshrl.u32 %v10701, 7
        %v10703 = vsub.s32 %v10700, %v10702
        %v10704 = vrot.slane %v10690, %v10703
        %v10705 = vcombine.low %v10649, %v10665
        %v10706 = vcombine.high %v10649, %v10665
        %v10708 = vunpack.c.l.s4 1934713408
        %v10709 = vunpack.c.0.s8 %v10708
        %v10710 = vlaneseq
        %v10711 = vshrl.u32 %v10710, 7
        %v10712 = vsub.s32 %v10709, %v10711
        %v10713 = vrot.slane %v10705, %v10712
        %v10715 = vunpack.c.l.s4 1934713408
        %v10716 = vunpack.c.0.s8 %v10715
        %v10717 = vlaneseq
        %v10718 = vshrl.u32 %v10717, 7
        %v10719 = vsub.s32 %v10716, %v10718
        %v10720 = vrot.slane %v10706, %v10719
        %v10721 = vcombine.low %v10656, %v10672
        %v10722 = vcombine.high %v10656, %v10672
        %v10724 = vunpack.c.l.s4 1934713408
        %v10725 = vunpack.c.0.s8 %v10724
        %v10726 = vlaneseq
        %v10727 = vshrl.u32 %v10726, 7
        %v10728 = vsub.s32 %v10725, %v10727
        %v10729 = vrot.slane %v10721, %v10728
        %v10731 = vunpack.c.l.s4 1934713408
        %v10732 = vunpack.c.0.s8 %v10731
        %v10733 = vlaneseq
        %v10734 = vshrl.u32 %v10733, 7
        %v10735 = vsub.s32 %v10732, %v10734
        %v10736 = vrot.slane %v10722, %v10735
        %v10737 = vcombine.low %v10681, %v10713
        %v10738 = vcombine.high %v10681, %v10713
        %v10739 = vcombine.low %v10688, %v10720
        %v10740 = vcombine.high %v10688, %v10720
        %v10741 = vcombine.low %v10697, %v10729
        %v10742 = vcombine.high %v10697, %v10729
        %v10743 = vcombine.low %v10704, %v10736
        %v10744 = vcombine.high %v10704, %v10736
        %v10745 = vcombine.low %v10322, %v10326
        %v10746 = vcombine.high %v10322, %v10326
        %v10748 = vunpack.c.l.s4 1983009808
        %v10749 = vunpack.c.0.s8 %v10748
        %v10750 = vlaneseq
        %v10751 = vshrl.u32 %v10750, 7
        %v10752 = vsub.s32 %v10749, %v10751
        %v10753 = vrot.slane %v10745, %v10752
        %v10755 = vunpack.c.l.s4 1983009808
        %v10756 = vunpack.c.0.s8 %v10755
        %v10757 = vlaneseq
        %v10758 = vshrl.u32 %v10757, 7
        %v10759 = vsub.s32 %v10756, %v10758
        %v10760 = vrot.slane %v10746, %v10759
        %v10761 = vcombine.low %v10324, %v10328
        %v10762 = vcombine.high %v10324, %v10328
        %v10764 = vunpack.c.l.s4 1983009808
        %v10765 = vunpack.c.0.s8 %v10764
        %v10766 = vlaneseq
        %v10767 = vshrl.u32 %v10766, 7
        %v10768 = vsub.s32 %v10765, %v10767
        %v10769 = vrot.slane %v10761, %v10768
        %v10771 = vunpack.c.l.s4 1983009808
        %v10772 = vunpack.c.0.s8 %v10771
        %v10773 = vlaneseq
        %v10774 = vshrl.u32 %v10773, 7
        %v10775 = vsub.s32 %v10772, %v10774
        %v10776 = vrot.slane %v10762, %v10775
        %v10777 = vcombine.low %v10330, %v10334
        %v10778 = vcombine.high %v10330, %v10334
        %v10780 = vunpack.c.l.s4 1983009808
        %v10781 = vunpack.c.0.s8 %v10780
        %v10782 = vlaneseq
        %v10783 = vshrl.u32 %v10782, 7
        %v10784 = vsub.s32 %v10781, %v10783
        %v10785 = vrot.slane %v10777, %v10784
        %v10787 = vunpack.c.l.s4 1983009808
        %v10788 = vunpack.c.0.s8 %v10787
        %v10789 = vlaneseq
        %v10790 = vshrl.u32 %v10789, 7
        %v10791 = vsub.s32 %v10788, %v10790
        %v10792 = vrot.slane %v10778, %v10791
        %v10793 = vcombine.low %v10332, %v10336
        %v10794 = vcombine.high %v10332, %v10336
        %v10796 = vunpack.c.l.s4 1983009808
        %v10797 = vunpack.c.0.s8 %v10796
        %v10798 = vlaneseq
        %v10799 = vshrl.u32 %v10798, 7
        %v10800 = vsub.s32 %v10797, %v10799
        %v10801 = vrot.slane %v10793, %v10800
        %v10803 = vunpack.c.l.s4 1983009808
        %v10804 = vunpack.c.0.s8 %v10803
        %v10805 = vlaneseq
        %v10806 = vshrl.u32 %v10805, 7
        %v10807 = vsub.s32 %v10804, %v10806
        %v10808 = vrot.slane %v10794, %v10807
        %v10809 = vcombine.low %v10753, %v10769
        %v10810 = vcombine.high %v10753, %v10769
        %v10812 = vunpack.c.l.s4 1934713408
        %v10813 = vunpack.c.0.s8 %v10812
        %v10814 = vlaneseq
        %v10815 = vshrl.u32 %v10814, 7
        %v10816 = vsub.s32 %v10813, %v10815
        %v10817 = vrot.slane %v10809, %v10816
        %v10819 = vunpack.c.l.s4 1934713408
        %v10820 = vunpack.c.0.s8 %v10819
        %v10821 = vlaneseq
        %v10822 = vshrl.u32 %v10821, 7
        %v10823 = vsub.s32 %v10820, %v10822
        %v10824 = vrot.slane %v10810, %v10823
        %v10825 = vcombine.low %v10760, %v10776
        %v10826 = vcombine.high %v10760, %v10776
        %v10828 = vunpack.c.l.s4 1934713408
        %v10829 = vunpack.c.0.s8 %v10828
        %v10830 = vlaneseq
        %v10831 = vshrl.u32 %v10830, 7
        %v10832 = vsub.s32 %v10829, %v10831
        %v10833 = vrot.slane %v10825, %v10832
        %v10835 = vunpack.c.l.s4 1934713408
        %v10836 = vunpack.c.0.s8 %v10835
        %v10837 = vlaneseq
        %v10838 = vshrl.u32 %v10837, 7
        %v10839 = vsub.s32 %v10836, %v10838
        %v10840 = vrot.slane %v10826, %v10839
        %v10841 = vcombine.low %v10785, %v10801
        %v10842 = vcombine.high %v10785, %v10801
        %v10844 = vunpack.c.l.s4 1934713408
        %v10845 = vunpack.c.0.s8 %v10844
        %v10846 = vlaneseq
        %v10847 = vshrl.u32 %v10846, 7
        %v10848 = vsub.s32 %v10845, %v10847
        %v10849 = vrot.slane %v10841, %v10848
        %v10851 = vunpack.c.l.s4 1934713408
        %v10852 = vunpack.c.0.s8 %v10851
        %v10853 = vlaneseq
        %v10854 = vshrl.u32 %v10853, 7
        %v10855 = vsub.s32 %v10852, %v10854
        %v10856 = vrot.slane %v10842, %v10855
        %v10857 = vcombine.low %v10792, %v10808
        %v10858 = vcombine.high %v10792, %v10808
        %v10860 = vunpack.c.l.s4 1934713408
        %v10861 = vunpack.c.0.s8 %v10860
        %v10862 = vlaneseq
        %v10863 = vshrl.u32 %v10862, 7
        %v10864 = vsub.s32 %v10861, %v10863
        %v10865 = vrot.slane %v10857, %v10864
        %v10867 = vunpack.c.l.s4 1934713408
        %v10868 = vunpack.c.0.s8 %v10867
        %v10869 = vlaneseq
        %v10870 = vshrl.u32 %v10869, 7
        %v10871 = vsub.s32 %v10868, %v10870
        %v10872 = vrot.slane %v10858, %v10871
        %v10873 = vcombine.low %v10817, %v10849
        %v10874 = vcombine.high %v10817, %v10849
        %v10875 = vcombine.low %v10824, %v10856
        %v10876 = vcombine.high %v10824, %v10856
        %v10877 = vcombine.low %v10833, %v10865
        %v10878 = vcombine.high %v10833, %v10865
        %v10879 = vcombine.low %v10840, %v10872
        %v10880 = vcombine.high %v10840, %v10872
        %10883 = vrot.lane.b32.xlu0 %v10466, 16
        %v10884 = vpop.permute.xlu0 %10883
        %10885 = vrot.lane.b32.xlu0 %v10602, 16
        %v10886 = vpop.permute.xlu0 %10885
        %10891 = vrot.lane.b32.xlu0 %v10467, 32
        %v10892 = vpop.permute.xlu0 %10891
        %10893 = vrot.lane.b32.xlu0 %v10603, 32
        %v10894 = vpop.permute.xlu0 %10893
        %10899 = vrot.lane.b32.xlu0 %v10468, 48
        %v10900 = vpop.permute.xlu0 %10899
        %10901 = vrot.lane.b32.xlu0 %v10604, 48
        %v10902 = vpop.permute.xlu0 %10901
        %10907 = vrot.lane.b32.xlu0 %v10469, 64
        %v10908 = vpop.permute.xlu0 %10907
        %10909 = vrot.lane.b32.xlu0 %v10605, 64
        %v10910 = vpop.permute.xlu0 %10909
        %10915 = vrot.lane.b32.xlu0 %v10470, 80
        %v10916 = vpop.permute.xlu0 %10915
        %10917 = vrot.lane.b32.xlu0 %v10606, 80
        %v10918 = vpop.permute.xlu0 %10917
        %10923 = vrot.lane.b32.xlu0 %v10471, 96
        %v10924 = vpop.permute.xlu0 %10923
        %10925 = vrot.lane.b32.xlu0 %v10607, 96
        %v10926 = vpop.permute.xlu0 %10925
        %10931 = vrot.lane.b32.xlu0 %v10472, 112
        %v10932 = vpop.permute.xlu0 %10931
        %10933 = vrot.lane.b32.xlu0 %v10608, 112
        %v10934 = vpop.permute.xlu0 %10933
        %10939 = vrot.lane.b32.xlu0 %v10738, 16
        %v10940 = vpop.permute.xlu0 %10939
        %10941 = vrot.lane.b32.xlu0 %v10874, 16
        %v10942 = vpop.permute.xlu0 %10941
        %10947 = vrot.lane.b32.xlu0 %v10739, 32
        %v10948 = vpop.permute.xlu0 %10947
        %10949 = vrot.lane.b32.xlu0 %v10875, 32
        %v10950 = vpop.permute.xlu0 %10949
        %10955 = vrot.lane.b32.xlu0 %v10740, 48
        %v10956 = vpop.permute.xlu0 %10955
        %10957 = vrot.lane.b32.xlu0 %v10876, 48
        %v10958 = vpop.permute.xlu0 %10957
        %10963 = vrot.lane.b32.xlu0 %v10741, 64
        %v10964 = vpop.permute.xlu0 %10963
        %10965 = vrot.lane.b32.xlu0 %v10877, 64
        %v10966 = vpop.permute.xlu0 %10965
        %10971 = vrot.lane.b32.xlu0 %v10742, 80
        %v10972 = vpop.permute.xlu0 %10971
        %10973 = vrot.lane.b32.xlu0 %v10878, 80
        %v10974 = vpop.permute.xlu0 %10973
        %10979 = vrot.lane.b32.xlu0 %v10743, 96
        %v10980 = vpop.permute.xlu0 %10979
        %10981 = vrot.lane.b32.xlu0 %v10879, 96
        %v10982 = vpop.permute.xlu0 %10981
        %10987 = vrot.lane.b32.xlu0 %v10744, 112
        %v10988 = vpop.permute.xlu0 %10987
        %10989 = vrot.lane.b32.xlu0 %v10880, 112
        %v10990 = vpop.permute.xlu0 %10989
        %v10993 = vsel %vm9197, %v10465, %v10884
        %v10994 = vsel %vm9197, %v10601, %v10886
        %v10995 = vsel %vm6388, %v10993, %v10892
        %v10996 = vsel %vm6388, %v10994, %v10894
        %vm10997 = vcmask 392192
        %v10998 = vsel %vm10997, %v10995, %v10900
        %v10999 = vsel %vm10997, %v10996, %v10902
        %vm11000 = vcmask 523264
        %v11001 = vsel %vm11000, %v10998, %v10908
        %v11002 = vsel %vm11000, %v10999, %v10910
        %vm11003 = vcmask 654336
        %v11004 = vsel %vm11003, %v11001, %v10916
        %v11005 = vsel %vm11003, %v11002, %v10918
        %vm11006 = vcmask 785408
        %v11007 = vsel %vm11006, %v11004, %v10924
        %v11008 = vsel %vm11006, %v11005, %v10926
        %vm11009 = vcmask 916480
        %v11010 = vsel %vm11009, %v11007, %v10932
        %v11011 = vsel %vm11009, %v11008, %v10934
        %v11012 = vsel %vm9197, %v10737, %v10940
        %v11013 = vsel %vm9197, %v10873, %v10942
        %v11014 = vsel %vm6388, %v11012, %v10948
        %v11015 = vsel %vm6388, %v11013, %v10950
        %v11016 = vsel %vm10997, %v11014, %v10956
        %v11017 = vsel %vm10997, %v11015, %v10958
        %v11018 = vsel %vm11000, %v11016, %v10964
        %v11019 = vsel %vm11000, %v11017, %v10966
        %v11020 = vsel %vm11003, %v11018, %v10972
        %v11021 = vsel %vm11003, %v11019, %v10974
        %v11022 = vsel %vm11006, %v11020, %v10980
        %v11023 = vsel %vm11006, %v11021, %v10982
        %v11024 = vsel %vm11009, %v11022, %v10988
        %v11025 = vsel %vm11009, %v11023, %v10990
        %11026 = vst [vmem:[%s498] sm:$0xff] %v11010
        %11027 = vst [vmem:[%s498 + $0x8] sm:$0xff] %v11024
        %11028 = vst [vmem:[%s498 + $0x10] sm:$0xff] %v11011
        %11029 = vst [vmem:[%s498 + $0x18] sm:$0xff] %v11025
        %s11030 = sand.u32 %s255, 1
        %s11031 = scalar_lea.sflag [#allocation7], %s11030
        %s11032 = sand.u32 %s255, 1
        %s11033 = smul.addr %s11032, 32
        %s11034 = scalar_lea.vmem [#allocation22], %s11033
        // Predicated region
        $region101: #{tpu_custom_call.1} parent=59 // pred_check
          %p11035 = pneg %p265
        $region102: #{tpu_custom_call.1} parent=59 // pred_check_branch
          %11037 = sbr.rel (%p11035) target = $region104
        $region103: #{tpu_custom_call.1} parent=59 // pred_region
          %s11039 = ssub.s32 512, 512
          %11040 = vsyncadd %s11031, %s11039
          %s11041 = smul.addr %s32, 4
          %s11042 = smul.addr %s11041, 128
          %s11043 = scalar_lea.hbm %s10, %s11042
          %s11044 = sshll.u32 %s11034, 4
          %s11045 = int_to_ptr.vmem [resolvable:$true] %s11044
          %11050 = dma.vmem_to_hbm [thread:$0]  %s11045, 512, %s11043, %s11031, 256, 256, 16
        $region104: #{tpu_custom_call.1} parent=59 // pred_fallthru
          _
      $region60: #{tpu_custom_call.1} parent=5 // pred_fallthru
        _
      %p11051 = scmp.le.s32.totalorder 2, %s27
      // Predicated region
      $region105: #{tpu_custom_call.1} parent=5 // pred_check
        %p11052 = pneg %p11051
      $region106: #{tpu_custom_call.1} parent=5 // pred_check_branch
        %11054 = sbr.rel (%p11052) target = $region108
      $region107: #{tpu_custom_call.1} parent=5 // pred_region
        %s11055 = ssub.s32 %s27, 2
        // Predicated region
        $region109: #{tpu_custom_call.1} parent=107 // pred_check
          %p11056 = pneg %p271
        $region110: #{tpu_custom_call.1} parent=107 // pred_check_branch
          %11058 = sbr.rel (%p11056) target = $region112
        $region111: #{tpu_custom_call.1} parent=107 // pred_region
          %s11059 = sand.u32 %s256, 1
          %s11060 = scalar_lea.sflag [#allocation7], %s11059
          %s11061 = sand.u32 %s256, 1
          %s11062 = smul.addr %s11061, 32
          %s11063 = scalar_lea.vmem [#allocation22], %s11062
          %11064 = dma.done %s11060, 512
        $region112: #{tpu_custom_call.1} parent=107 // pred_fallthru
          _
      $region108: #{tpu_custom_call.1} parent=5 // pred_fallthru
        _
    $region6: #{tpu_custom_call.1} parent=1 // loop_footer
      %s31 = sadd.s32 1, %s27
    $region7: #{tpu_custom_call.1} parent=1 // loop_footer_branch
      %26 = sbr.rel target = $region3
    $region8: #{tpu_custom_call.1} parent=1 // loop_exit
      _
    %11065 = vsyncpa [#allocation6], 1
    %s11066 = scalar_lea.sflag [#allocation6], 1
    %11067 = vsyncpa %s11066, 1
    %11068 = vsyncpa [#allocation9], 1
    %11069 = vsyncpa [#allocation12], 1
    %11070 = vsyncpa [#allocation15], 1
    %11071 = vsyncpa [#allocation18], 1
    %11072 = vsyncpa [#allocation21], 1
    %11073 = vsyncpa [#allocation7], 1
    %s11074 = scalar_lea.sflag [#allocation7], 1
    %11075 = vsyncpa %s11074, 1

</llo_original>
